<compile_context>
chip_gen: v7x
topology: tpu7x:2x2x1
jax: 0.10.0
libtpu: 0.0.40
codegen_flags: <defaults>
</compile_context>

<pallas_src>
import math
import functools
import numpy as np
import jax
import jax.numpy as jnp
from jax.experimental import pallas as pl
from jax.experimental.pallas import tpu as pltpu

SPARSITY = 0.5            # stand-in for args.sparsity
EPS_BN = 1e-5

# Architecture constants (28x28 FashionMNIST input, model_state_dict shapes)
H0 = 14                   # spatial after initial MaxPool2d(2)
KH = 3                    # conv kernel height/width
C1, C2 = 64, 16           # conv1 / conv2 output channels
S1 = 12                   # conv1 output spatial (14 - 3 + 1)
S2 = 10                   # conv2 output spatial (12 - 3 + 1)
P2 = 5                    # spatial after second MaxPool2d(2)
NFEAT = P2 * P2 * C2      # 400 (fc1 input)
NHID = 128                # fc1 output
NCLS = 10                 # classes
NCLS_PAD = 128            # lane-dense final store width


# ----------------------------------------------------------------------------
# Fused whole-network Pallas kernel
# ----------------------------------------------------------------------------
def _fused_net_kernel(x_ref, t1_ref, t2_ref, g1_ref, g2_ref, w1_ref, w2_ref,
                      out_ref, act1_ref, feat_ref, *, n_img, qb):
    f32, bf16 = jnp.float32, jnp.bfloat16
    levels = float(2 ** qb - 1)

    def quant_after_relu(h):
        # torch quantization(..., after_relu=True): quint8, zero_point=0
        mx, mn = jnp.max(h), jnp.min(h)
        sc = (mx - mn) / levels
        # guard max==min; the torch code would produce NaN here
        sc = jnp.where(sc == 0.0, 1.0, sc)
        return jnp.clip(jnp.round(h / sc), 0.0, 255.0) * sc

    # -------- input quantization (pre-ReLU branch of `quantization`) --------
    # x is the shift-stacked pooled input: rows are duplicated across the three
    # conv1 kernel-row views, which leaves max/min unchanged, and the quant map
    # is elementwise, so this equals quantizing the original pooled input.
    x = x_ref[...]                                     # (3*n_img*12, 14) f32
    mx, mn = jnp.max(x), jnp.min(x)
    sc = (mx - mn) / levels
    sc = jnp.where(sc == 0.0, 1.0, sc)
    zp_max = jnp.floor(mx / sc)                        # torch float `//` == floor
    zp_min = jnp.floor(mn / sc)
    zp = zp_min + 2.0 ** (qb - 1) - zp_max - 1.0
    q = jnp.round((x - mn) / sc) + zp                  # qint32 int_repr (no clamp hit)
    xq = (q - zp + zp_min) * sc

    # -------- conv1 (3x3, 1->64, 1/scale folded into t1) --------
    # Three batch-wide block-Toeplitz matmuls; LHS slabs are sublane-aligned
    # (offsets are multiples of n_img*12).  Result rows: image-major, channels-last.
    o1 = jnp.zeros((n_img * S1, S1 * C1), f32)
    for di in range(KH):
        lhs = xq[di * n_img * S1:(di + 1) * n_img * S1, :]       # (n*12, 14)
        rhs = t1_ref[di * H0:(di + 1) * H0, :]                   # (14, 768) bf16
        o1 = o1 + jnp.dot(lhs.astype(bf16), rhs,
                          preferred_element_type=f32)
    act1_ref[...] = o1                                           # channels-last, VMEM

    # -------- BN1 (batch stats, affine=False) + ReLU + quant --------
    a = act1_ref[...]                                            # (n*12, 768)
    cnt1 = float(n_img * S1 * S1)
    ch_sum = jnp.dot(jnp.sum(a, axis=0, keepdims=True), g1_ref[...])       # (1, 64)
    ch_sq = jnp.dot(jnp.sum(a * a, axis=0, keepdims=True), g1_ref[...])
    mean1 = ch_sum / cnt1
    var1 = jnp.maximum(ch_sq / cnt1 - mean1 * mean1, 0.0)        # biased batch var
    inv1 = jax.lax.rsqrt(var1 + EPS_BN)
    mean1_b = jnp.concatenate([mean1] * S1, axis=1)              # (1, 768)
    inv1_b = jnp.concatenate([inv1] * S1, axis=1)
    act1_ref[...] = quant_after_relu(jnp.maximum((a - mean1_b) * inv1_b, 0.0))

    # -------- conv2 (3x3, 64->16, 1/scale folded) + MaxPool2d(2) --------
    for n in range(n_img):
        aq = act1_ref[n * S1:(n + 1) * S1, :]                    # (12, 768)
        o2 = jnp.zeros((S2, S2 * C2), f32)
        for di in range(KH):
            lhs = aq[di:di + S2, :]                              # (10, 768)
            rhs = t2_ref[di * S1 * C1:(di + 1) * S1 * C1, :]     # (768, 160) bf16
            o2 = o2 + jnp.dot(lhs.astype(bf16), rhs,
                              preferred_element_type=f32)
        # 2x2 max pool assembled in registers; single lane-dense store per image
        chunks = []
        for ip in range(P2):
            rowm = jnp.maximum(o2[2 * ip:2 * ip + 1, :],
                               o2[2 * ip + 1:2 * ip + 2, :])     # (1, 160)
            for jp in range(P2):
                c0 = rowm[:, (2 * jp) * C2:(2 * jp + 1) * C2]
                c1 = rowm[:, (2 * jp + 1) * C2:(2 * jp + 2) * C2]
                chunks.append(jnp.maximum(c0, c1))               # (1, 16)
        feat_ref[n:n + 1, :] = jnp.concatenate(chunks, axis=1)   # (1, 400)

    # -------- BN2 + ReLU + quant --------
    f = feat_ref[...]                                            # (n, 400)
    cnt2 = float(n_img * P2 * P2)
    ch_sum = jnp.dot(jnp.sum(f, axis=0, keepdims=True), g2_ref[...])       # (1, 16)
    ch_sq = jnp.dot(jnp.sum(f * f, axis=0, keepdims=True), g2_ref[...])
    mean2 = ch_sum / cnt2
    var2 = jnp.maximum(ch_sq / cnt2 - mean2 * mean2, 0.0)
    inv2 = jax.lax.rsqrt(var2 + EPS_BN)
    mean2_b = jnp.concatenate([mean2] * (P2 * P2), axis=1)       # (1, 400)
    inv2_b = jnp.concatenate([inv2] * (P2 * P2), axis=1)
    hq = quant_after_relu(jnp.maximum((f - mean2_b) * inv2_b, 0.0))

    # -------- fc1 (1/scale folded) + ReLU + quant --------
    z1 = jnp.dot(hq.astype(bf16), w1_ref[...], preferred_element_type=f32)  # (n, 128)
    h1q = quant_after_relu(jnp.maximum(z1, 0.0))

    # -------- fc2 (1/scale folded) + log_softmax over the 10 real logits --------
    z2 = jnp.dot(h1q.astype(bf16), w2_ref[...], preferred_element_type=f32)  # (n, 128)
    lane = jax.lax.broadcasted_iota(jnp.int32, (1, NCLS_PAD), 1)
    z2 = jnp.where(lane < NCLS, z2, -1e30)           # mask padded lanes (lane-dense store)
    m = jnp.max(z2, axis=-1, keepdims=True)
    sh = z2 - m
    lse = jnp.log(jnp.sum(jnp.exp(sh), axis=-1, keepdims=True))
    out_ref[...] = (sh - lse).astype(out_ref.dtype)


# ----------------------------------------------------------------------------
# Deterministic parameter construction (MaskConv/MaskLinear effective weights)
# ----------------------------------------------------------------------------
def make_masked_weight(rng, shape, fan_in, sparsity=SPARSITY):
    w = rng.standard_normal(shape).astype(np.float32)
    sign = np.sign(w)
    scores = rng.standard_normal(shape).astype(np.float32)
    hw_one = np.abs(rng.standard_normal((1,) + tuple(shape))).astype(np.float32)
    hw_zero = np.abs(rng.standard_normal((1,) + tuple(shape))).astype(np.float32)
    # GetSubnet: keep top `sparsity` fraction of |scores| as 1, rest 0
    flat = np.abs(scores).flatten()
    idx = np.argsort(flat)
    j = int((1 - sparsity) * flat.size)
    mask = np.zeros_like(flat)
    mask[idx[j:]] = 1.0
    subnet = mask.reshape(shape)
    fan = fan_in * 0.5
    std = math.sqrt(2.0) / math.sqrt(fan)             # gain('relu') / sqrt(fan)
    scale = float(hw_one.mean() / std)
    w_eff = sign * (hw_one[0] * subnet + hw_zero[0] * (1.0 - subnet))
    return w_eff.astype(np.float32), scale


def build_params():
    rng = np.random.RandomState(0)
    w1e, s1 = make_masked_weight(rng, (64, 1, 3, 3), fan_in=1 * 3 * 3)
    w2e, s2 = make_masked_weight(rng, (16, 64, 3, 3), fan_in=64 * 3 * 3)
    f1e, sf1 = make_masked_weight(rng, (128, 400), fan_in=400)
    f2e, sf2 = make_masked_weight(rng, (10, 128), fan_in=128)

    # Block-Toeplitz conv matrices: conv becomes 3 plain 2-D matmuls on a
    # channels-last activation.  The Mask layer's 1/scale is folded in (identical math:
    # the following BN / quant / linear steps all commute with that positive scaling).
    t1 = np.zeros((KH * H0, S1 * C1), np.float32)                # (42, 768)
    for di in range(KH):
        for j in range(S1):
            for dj in range(KH):
                t1[di * H0 + j + dj, j * C1:(j + 1) * C1] = w1e[:, 0, di, dj] / s1

    t2 = np.zeros((KH * S1 * C1, S2 * C2), np.float32)           # (2304, 160)
    for di in range(KH):
        for j in range(S2):
            for dj in range(KH):
                p = j + dj
                t2[di * S1 * C1 + p * C1: di * S1 * C1 + (p + 1) * C1,
                   j * C2:(j + 1) * C2] = w2e[:, :, di, dj].T / s2

    # Per-channel reduction matrices for in-kernel BatchNorm batch statistics
    g1 = np.tile(np.eye(C1, dtype=np.float32), (S1, 1))          # (768, 64)
    g2 = np.tile(np.eye(C2, dtype=np.float32), (P2 * P2, 1))     # (400, 16)

    # fc1: permute torch NCHW flatten order (c*25 + i*5 + j) -> kernel order (i*5+j)*16 + c
    w1p = f1e.reshape(NHID, C2, P2, P2).transpose(2, 3, 1, 0).reshape(NFEAT, NHID) / sf1
    # fc2: pad 10 classes to 128 output lanes (lane-dense store); padded columns stay 0
    w2p = np.zeros((NHID, NCLS_PAD), np.float32)
    w2p[:, :NCLS] = f2e.T / sf2

    return dict(
        t1=jnp.asarray(t1, jnp.bfloat16),
        t2=jnp.asarray(t2, jnp.bfloat16),
        g1=jnp.asarray(g1, jnp.float32),
        g2=jnp.asarray(g2, jnp.float32),
        w1=jnp.asarray(w1p, jnp.bfloat16),
        w2=jnp.asarray(w2p, jnp.bfloat16),
    )


# ----------------------------------------------------------------------------
# Forward pass wrapper (single fused pallas_call)
# ----------------------------------------------------------------------------
def _full_spec(arr):
    nd = arr.ndim
    return pl.BlockSpec(arr.shape, lambda i: (0,) * nd)


def net_forward(x_nchw, params, qb=8):
    # TODO(synk): torch default qb=0 would divide by (2**0 - 1) = 0; demo uses qb=8.
    n = x_nchw.shape[0]
    # Initial MaxPool2d(2) on the raw 28x28 input plus stacking the three
    # row-shifted views (for batched block-Toeplitz conv1) stay in XLA as one
    # tiny fused op; everything downstream runs inside one fused Pallas kernel.
    xp = x_nchw.reshape(n, H0, 2, H0, 2).max(axis=(2, 4))        # (n, 14, 14), Cin=1 squeezed
    xsh = jnp.stack([xp[:, di:di + S1, :] for di in range(KH)], axis=0)   # (3, n, 12, 14)
    x2 = xsh.reshape(KH * n * S1, H0)                            # (3*n*12, 14)

    operands = (x2, params['t1'], params['t2'], params['g1'], params['g2'],
                params['w1'], params['w2'])

    out = pl.pallas_call(
        functools.partial(_fused_net_kernel, n_img=n, qb=qb),
        out_shape=jax.ShapeDtypeStruct((n, NCLS_PAD), jnp.float32),
        grid=(1,),
        in_specs=[_full_spec(a) for a in operands],
        out_specs=pl.BlockSpec((n, NCLS_PAD), lambda i: (0, 0)),
        scratch_shapes=[
            pltpu.VMEM((n * S1, S1 * C1), jnp.float32),   # conv1 activations (channels-last)
            pltpu.VMEM((n, NFEAT), jnp.float32),          # pooled conv2 features (fc1 input)
        ],
        # TODO(synk): single grid step leaves the 2nd v7x TensorCore idle; splitting the
        # batch across cores would need a cross-step reduction for the BN batch stats.
        compiler_params=pltpu.CompilerParams(dimension_semantics=("arbitrary",)),
    )(*operands)
    return out[:, :NCLS]


if __name__ == "__main__":
    key = jax.random.PRNGKey(0)
    # FashionMNIST-shaped input: batch=2, 1 channel, 28x28 (required so flatten -> 400)
    x = jax.random.normal(key, (2, 1, 28, 28), dtype=jnp.float32)
    params = build_params()
    fwd = jax.jit(lambda xx: net_forward(xx, params, qb=8))
    out = jax.block_until_ready(fwd(x))
    assert out.shape == (2, 10)
    assert bool(jnp.all(jnp.isfinite(out)))
    # log_softmax rows must normalise (computed in f32 inside the kernel)
    assert bool(jnp.all(jnp.abs(jnp.sum(jnp.exp(out), axis=-1) - 1.0) < 1e-3))
    print("KERNEL_OK")
</pallas_src>

<mosaic_0001>
module attributes {stable_mosaic.version = 11 : i64} {
  func.func @_fused_net_kernel(%arg0: i32, %arg1: memref<72x14xf32, #tpu.memory_space<vmem>>, %arg2: memref<42x768xbf16, #tpu.memory_space<vmem>>, %arg3: memref<2304x160xbf16, #tpu.memory_space<vmem>>, %arg4: memref<768x64xf32, #tpu.memory_space<vmem>>, %arg5: memref<400x16xf32, #tpu.memory_space<vmem>>, %arg6: memref<400x128xbf16, #tpu.memory_space<vmem>>, %arg7: memref<128x128xbf16, #tpu.memory_space<vmem>>, %arg8: memref<2x128xf32, #tpu.memory_space<vmem>>, %arg9: memref<24x768xf32, #tpu.memory_space<vmem>>, %arg10: memref<2x400xf32, #tpu.memory_space<vmem>>) attributes {dimension_semantics = [#tpu.dimension_semantics<arbitrary>], iteration_bounds = array<i64: 1>, scalar_prefetch = 0 : i64, scratch_operands = 2 : i64, tpu.core_type = #tpu.core_type<tc>, window_params = [{pipeline_mode = #tpu.pipeline_mode<synchronous>, transform_indices = @transform_0, window_bounds = array<i64: 72, 14>}, {pipeline_mode = #tpu.pipeline_mode<synchronous>, transform_indices = @transform_1, window_bounds = array<i64: 42, 768>}, {pipeline_mode = #tpu.pipeline_mode<synchronous>, transform_indices = @transform_2, window_bounds = array<i64: 2304, 160>}, {pipeline_mode = #tpu.pipeline_mode<synchronous>, transform_indices = @transform_3, window_bounds = array<i64: 768, 64>}, {pipeline_mode = #tpu.pipeline_mode<synchronous>, transform_indices = @transform_4, window_bounds = array<i64: 400, 16>}, {pipeline_mode = #tpu.pipeline_mode<synchronous>, transform_indices = @transform_5, window_bounds = array<i64: 400, 128>}, {pipeline_mode = #tpu.pipeline_mode<synchronous>, transform_indices = @transform_6, window_bounds = array<i64: 128, 128>}, {pipeline_mode = #tpu.pipeline_mode<synchronous>, transform_indices = @transform_7, window_bounds = array<i64: 2, 128>}]} {
    %c0 = arith.constant 0 : index
    %c0_0 = arith.constant 0 : index
    %0 = vector.load %arg1[%c0, %c0_0] : memref<72x14xf32, #tpu.memory_space<vmem>>, vector<72x14xf32>
    %1 = vector.shape_cast %0 : vector<72x14xf32> to vector<1x72x14xf32>
    %cst = arith.constant dense<0xFF800000> : vector<1xf32>
    %2 = vector.multi_reduction <maximumf>, %1, %cst [1, 2] : vector<1x72x14xf32> to vector<1xf32>
    %3 = vector.shape_cast %2 : vector<1xf32> to vector<1x1x1xf32>
    %4 = vector.extract %3[0, 0, 0] : f32 from vector<1x1x1xf32>
    %5 = vector.shape_cast %0 : vector<72x14xf32> to vector<1x72x14xf32>
    %cst_1 = arith.constant dense<0x7F800000> : vector<1xf32>
    %6 = vector.multi_reduction <minimumf>, %5, %cst_1 [1, 2] : vector<1x72x14xf32> to vector<1xf32>
    %7 = vector.shape_cast %6 : vector<1xf32> to vector<1x1x1xf32>
    %8 = vector.extract %7[0, 0, 0] : f32 from vector<1x1x1xf32>
    %9 = arith.subf %4, %8 : f32
    %cst_2 = arith.constant 2.550000e+02 : f32
    %10 = arith.divf %9, %cst_2 : f32
    %cst_3 = arith.constant 0.000000e+00 : f32
    %11 = arith.cmpf oeq, %10, %cst_3 : f32
    %cst_4 = arith.constant 1.000000e+00 : f32
    %12 = arith.select %11, %cst_4, %10 : f32
    %13 = arith.divf %4, %12 : f32
    %14 = math.floor %13 : f32
    %15 = arith.divf %8, %12 : f32
    %16 = math.floor %15 : f32
    %cst_5 = arith.constant 1.280000e+02 : f32
    %17 = arith.addf %16, %cst_5 : f32
    %18 = arith.subf %17, %14 : f32
    %cst_6 = arith.constant 1.000000e+00 : f32
    %19 = arith.subf %18, %cst_6 : f32
    %20 = vector.broadcast %8 : f32 to vector<72x14xf32>
    %21 = arith.subf %0, %20 : vector<72x14xf32>
    %22 = vector.broadcast %12 : f32 to vector<72x14xf32>
    %23 = arith.divf %21, %22 : vector<72x14xf32>
    %24 = math.roundeven %23 : vector<72x14xf32>
    %25 = vector.broadcast %19 : f32 to vector<72x14xf32>
    %26 = arith.addf %24, %25 : vector<72x14xf32>
    %27 = vector.broadcast %19 : f32 to vector<72x14xf32>
    %28 = arith.subf %26, %27 : vector<72x14xf32>
    %29 = vector.broadcast %16 : f32 to vector<72x14xf32>
    %30 = arith.addf %28, %29 : vector<72x14xf32>
    %31 = vector.broadcast %12 : f32 to vector<72x14xf32>
    %32 = arith.mulf %30, %31 : vector<72x14xf32>
    %cst_7 = arith.constant 0.000000e+00 : f32
    %33 = vector.broadcast %cst_7 : f32 to vector<24x768xf32>
    %34 = vector.extract_strided_slice %32 {offsets = [0, 0], sizes = [24, 14], strides = [1, 1]} : vector<72x14xf32> to vector<24x14xf32>
    %c0_8 = arith.constant 0 : index
    %c0_9 = arith.constant 0 : index
    %35 = vector.load %arg2[%c0_8, %c0_9] : memref<42x768xbf16, #tpu.memory_space<vmem>>, vector<14x768xbf16>
    %36 = arith.truncf %34 : vector<24x14xf32> to vector<24x14xbf16>
    %cst_10 = arith.constant dense<0.000000e+00> : vector<24x768xf32>
    %37 = tpu.matmul %36, %35, %cst_10 {dimension_numbers = #tpu.dot_dimension_numbers<[1], [0], [0], [1], [0, 0, 1, 1], [], []>} : vector<24x14xbf16>, vector<14x768xbf16>, vector<24x768xf32> -> vector<24x768xf32>
    %38 = arith.addf %33, %37 : vector<24x768xf32>
    %39 = vector.extract_strided_slice %32 {offsets = [24, 0], sizes = [24, 14], strides = [1, 1]} : vector<72x14xf32> to vector<24x14xf32>
    %c14 = arith.constant 14 : index
    %c0_11 = arith.constant 0 : index
    %40 = vector.load %arg2[%c14, %c0_11] : memref<42x768xbf16, #tpu.memory_space<vmem>>, vector<14x768xbf16>
    %41 = arith.truncf %39 : vector<24x14xf32> to vector<24x14xbf16>
    %cst_12 = arith.constant dense<0.000000e+00> : vector<24x768xf32>
    %42 = tpu.matmul %41, %40, %cst_12 {dimension_numbers = #tpu.dot_dimension_numbers<[1], [0], [0], [1], [0, 0, 1, 1], [], []>} : vector<24x14xbf16>, vector<14x768xbf16>, vector<24x768xf32> -> vector<24x768xf32>
    %43 = arith.addf %38, %42 : vector<24x768xf32>
    %44 = vector.extract_strided_slice %32 {offsets = [48, 0], sizes = [24, 14], strides = [1, 1]} : vector<72x14xf32> to vector<24x14xf32>
    %c28 = arith.constant 28 : index
    %c0_13 = arith.constant 0 : index
    %45 = vector.load %arg2[%c28, %c0_13] : memref<42x768xbf16, #tpu.memory_space<vmem>>, vector<14x768xbf16>
    %46 = arith.truncf %44 : vector<24x14xf32> to vector<24x14xbf16>
    %cst_14 = arith.constant dense<0.000000e+00> : vector<24x768xf32>
    %47 = tpu.matmul %46, %45, %cst_14 {dimension_numbers = #tpu.dot_dimension_numbers<[1], [0], [0], [1], [0, 0, 1, 1], [], []>} : vector<24x14xbf16>, vector<14x768xbf16>, vector<24x768xf32> -> vector<24x768xf32>
    %48 = arith.addf %43, %47 : vector<24x768xf32>
    %c0_15 = arith.constant 0 : index
    %c0_16 = arith.constant 0 : index
    %49 = vector.load %arg9[%c0_15, %c0_16] : memref<24x768xf32, #tpu.memory_space<vmem>>, vector<24x768xf32>
    tpu.vector_store %arg9[%c0_15, %c0_16], %48 {strides = array<i32>} : memref<24x768xf32, #tpu.memory_space<vmem>>, vector<24x768xf32>,
    %c0_17 = arith.constant 0 : index
    %c0_18 = arith.constant 0 : index
    %50 = vector.load %arg9[%c0_17, %c0_18] : memref<24x768xf32, #tpu.memory_space<vmem>>, vector<24x768xf32>
    %cst_19 = arith.constant dense<0.000000e+00> : vector<768xf32>
    %51 = vector.multi_reduction <add>, %50, %cst_19 [0] : vector<24x768xf32> to vector<768xf32>
    %52 = vector.shape_cast %51 : vector<768xf32> to vector<1x768xf32>
    %c0_20 = arith.constant 0 : index
    %c0_21 = arith.constant 0 : index
    %53 = vector.load %arg4[%c0_20, %c0_21] : memref<768x64xf32, #tpu.memory_space<vmem>>, vector<768x64xf32>
    %cst_22 = arith.constant dense<0.000000e+00> : vector<1x64xf32>
    %54 = tpu.matmul %52, %53, %cst_22 {dimension_numbers = #tpu.dot_dimension_numbers<[1], [0], [0], [1], [0, 0, 1, 1], [], []>} : vector<1x768xf32>, vector<768x64xf32>, vector<1x64xf32> -> vector<1x64xf32>
    %55 = arith.mulf %50, %50 : vector<24x768xf32>
    %cst_23 = arith.constant dense<0.000000e+00> : vector<768xf32>
    %56 = vector.multi_reduction <add>, %55, %cst_23 [0] : vector<24x768xf32> to vector<768xf32>
    %57 = vector.shape_cast %56 : vector<768xf32> to vector<1x768xf32>
    %c0_24 = arith.constant 0 : index
    %c0_25 = arith.constant 0 : index
    %58 = vector.load %arg4[%c0_24, %c0_25] : memref<768x64xf32, #tpu.memory_space<vmem>>, vector<768x64xf32>
    %cst_26 = arith.constant dense<0.000000e+00> : vector<1x64xf32>
    %59 = tpu.matmul %57, %58, %cst_26 {dimension_numbers = #tpu.dot_dimension_numbers<[1], [0], [0], [1], [0, 0, 1, 1], [], []>} : vector<1x768xf32>, vector<768x64xf32>, vector<1x64xf32> -> vector<1x64xf32>
    %cst_27 = arith.constant 2.880000e+02 : f32
    %60 = vector.broadcast %cst_27 : f32 to vector<1x64xf32>
    %61 = arith.divf %54, %60 : vector<1x64xf32>
    %cst_28 = arith.constant 2.880000e+02 : f32
    %62 = vector.broadcast %cst_28 : f32 to vector<1x64xf32>
    %63 = arith.divf %59, %62 : vector<1x64xf32>
    %64 = arith.mulf %61, %61 : vector<1x64xf32>
    %65 = arith.subf %63, %64 : vector<1x64xf32>
    %cst_29 = arith.constant 0.000000e+00 : f32
    %66 = vector.broadcast %cst_29 : f32 to vector<1x64xf32>
    %67 = arith.maximumf %65, %66 : vector<1x64xf32>
    %cst_30 = arith.constant 9.99999974E-6 : f32
    %68 = vector.broadcast %cst_30 : f32 to vector<1x64xf32>
    %69 = arith.addf %67, %68 : vector<1x64xf32>
    %70 = math.rsqrt %69 : vector<1x64xf32>
    %71 = tpu.concatenate %61, %61, %61, %61, %61, %61, %61, %61, %61, %61, %61, %61 in 1 : vector<1x64xf32>, vector<1x64xf32>, vector<1x64xf32>, vector<1x64xf32>, vector<1x64xf32>, vector<1x64xf32>, vector<1x64xf32>, vector<1x64xf32>, vector<1x64xf32>, vector<1x64xf32>, vector<1x64xf32>, vector<1x64xf32> -> vector<1x768xf32>
    %72 = tpu.concatenate %70, %70, %70, %70, %70, %70, %70, %70, %70, %70, %70, %70 in 1 : vector<1x64xf32>, vector<1x64xf32>, vector<1x64xf32>, vector<1x64xf32>, vector<1x64xf32>, vector<1x64xf32>, vector<1x64xf32>, vector<1x64xf32>, vector<1x64xf32>, vector<1x64xf32>, vector<1x64xf32>, vector<1x64xf32> -> vector<1x768xf32>
    %73 = vector.broadcast %71 : vector<1x768xf32> to vector<24x768xf32>
    %74 = arith.subf %50, %73 : vector<24x768xf32>
    %75 = vector.broadcast %72 : vector<1x768xf32> to vector<24x768xf32>
    %76 = arith.mulf %74, %75 : vector<24x768xf32>
    %cst_31 = arith.constant 0.000000e+00 : f32
    %77 = vector.broadcast %cst_31 : f32 to vector<24x768xf32>
    %78 = arith.maximumf %76, %77 : vector<24x768xf32>
    %79 = vector.shape_cast %78 : vector<24x768xf32> to vector<1x24x768xf32>
    %cst_32 = arith.constant dense<0xFF800000> : vector<1xf32>
    %80 = vector.multi_reduction <maximumf>, %79, %cst_32 [1, 2] : vector<1x24x768xf32> to vector<1xf32>
    %81 = vector.shape_cast %80 : vector<1xf32> to vector<1x1x1xf32>
    %82 = vector.extract %81[0, 0, 0] : f32 from vector<1x1x1xf32>
    %83 = vector.shape_cast %78 : vector<24x768xf32> to vector<1x24x768xf32>
    %cst_33 = arith.constant dense<0x7F800000> : vector<1xf32>
    %84 = vector.multi_reduction <minimumf>, %83, %cst_33 [1, 2] : vector<1x24x768xf32> to vector<1xf32>
    %85 = vector.shape_cast %84 : vector<1xf32> to vector<1x1x1xf32>
    %86 = vector.extract %85[0, 0, 0] : f32 from vector<1x1x1xf32>
    %87 = arith.subf %82, %86 : f32
    %cst_34 = arith.constant 2.550000e+02 : f32
    %88 = arith.divf %87, %cst_34 : f32
    %cst_35 = arith.constant 0.000000e+00 : f32
    %89 = arith.cmpf oeq, %88, %cst_35 : f32
    %cst_36 = arith.constant 1.000000e+00 : f32
    %90 = arith.select %89, %cst_36, %88 : f32
    %91 = vector.broadcast %90 : f32 to vector<24x768xf32>
    %92 = arith.divf %78, %91 : vector<24x768xf32>
    %93 = math.roundeven %92 : vector<24x768xf32>
    %cst_37 = arith.constant 0.000000e+00 : f32
    %cst_38 = arith.constant 2.550000e+02 : f32
    %94 = vector.broadcast %cst_37 : f32 to vector<24x768xf32>
    %95 = arith.maximumf %94, %93 : vector<24x768xf32>
    %96 = vector.broadcast %cst_38 : f32 to vector<24x768xf32>
    %97 = arith.minimumf %96, %95 : vector<24x768xf32>
    %98 = vector.broadcast %90 : f32 to vector<24x768xf32>
    %99 = arith.mulf %97, %98 : vector<24x768xf32>
    %c0_39 = arith.constant 0 : index
    %c0_40 = arith.constant 0 : index
    %100 = vector.load %arg9[%c0_39, %c0_40] : memref<24x768xf32, #tpu.memory_space<vmem>>, vector<24x768xf32>
    tpu.vector_store %arg9[%c0_39, %c0_40], %99 {strides = array<i32>} : memref<24x768xf32, #tpu.memory_space<vmem>>, vector<24x768xf32>,
    %c0_41 = arith.constant 0 : index
    %c0_42 = arith.constant 0 : index
    %101 = vector.load %arg9[%c0_41, %c0_42] : memref<24x768xf32, #tpu.memory_space<vmem>>, vector<12x768xf32>
    %cst_43 = arith.constant 0.000000e+00 : f32
    %102 = vector.broadcast %cst_43 : f32 to vector<10x160xf32>
    %103 = vector.extract_strided_slice %101 {offsets = [0, 0], sizes = [10, 768], strides = [1, 1]} : vector<12x768xf32> to vector<10x768xf32>
    %c0_44 = arith.constant 0 : index
    %c0_45 = arith.constant 0 : index
    %104 = vector.load %arg3[%c0_44, %c0_45] : memref<2304x160xbf16, #tpu.memory_space<vmem>>, vector<768x160xbf16>
    %105 = arith.truncf %103 : vector<10x768xf32> to vector<10x768xbf16>
    %cst_46 = arith.constant dense<0.000000e+00> : vector<10x160xf32>
    %106 = tpu.matmul %105, %104, %cst_46 {dimension_numbers = #tpu.dot_dimension_numbers<[1], [0], [0], [1], [0, 0, 1, 1], [], []>} : vector<10x768xbf16>, vector<768x160xbf16>, vector<10x160xf32> -> vector<10x160xf32>
    %107 = arith.addf %102, %106 : vector<10x160xf32>
    %108 = vector.extract_strided_slice %101 {offsets = [1, 0], sizes = [10, 768], strides = [1, 1]} : vector<12x768xf32> to vector<10x768xf32>
    %c768 = arith.constant 768 : index
    %c0_47 = arith.constant 0 : index
    %109 = vector.load %arg3[%c768, %c0_47] : memref<2304x160xbf16, #tpu.memory_space<vmem>>, vector<768x160xbf16>
    %110 = arith.truncf %108 : vector<10x768xf32> to vector<10x768xbf16>
    %cst_48 = arith.constant dense<0.000000e+00> : vector<10x160xf32>
    %111 = tpu.matmul %110, %109, %cst_48 {dimension_numbers = #tpu.dot_dimension_numbers<[1], [0], [0], [1], [0, 0, 1, 1], [], []>} : vector<10x768xbf16>, vector<768x160xbf16>, vector<10x160xf32> -> vector<10x160xf32>
    %112 = arith.addf %107, %111 : vector<10x160xf32>
    %113 = vector.extract_strided_slice %101 {offsets = [2, 0], sizes = [10, 768], strides = [1, 1]} : vector<12x768xf32> to vector<10x768xf32>
    %c1536 = arith.constant 1536 : index
    %c0_49 = arith.constant 0 : index
    %114 = vector.load %arg3[%c1536, %c0_49] : memref<2304x160xbf16, #tpu.memory_space<vmem>>, vector<768x160xbf16>
    %115 = arith.truncf %113 : vector<10x768xf32> to vector<10x768xbf16>
    %cst_50 = arith.constant dense<0.000000e+00> : vector<10x160xf32>
    %116 = tpu.matmul %115, %114, %cst_50 {dimension_numbers = #tpu.dot_dimension_numbers<[1], [0], [0], [1], [0, 0, 1, 1], [], []>} : vector<10x768xbf16>, vector<768x160xbf16>, vector<10x160xf32> -> vector<10x160xf32>
    %117 = arith.addf %112, %116 : vector<10x160xf32>
    %118 = vector.extract_strided_slice %117 {offsets = [0, 0], sizes = [1, 160], strides = [1, 1]} : vector<10x160xf32> to vector<1x160xf32>
    %119 = vector.extract_strided_slice %117 {offsets = [1, 0], sizes = [1, 160], strides = [1, 1]} : vector<10x160xf32> to vector<1x160xf32>
    %120 = arith.maximumf %118, %119 : vector<1x160xf32>
    %121 = vector.extract_strided_slice %120 {offsets = [0, 0], sizes = [1, 16], strides = [1, 1]} : vector<1x160xf32> to vector<1x16xf32>
    %122 = vector.extract_strided_slice %120 {offsets = [0, 16], sizes = [1, 16], strides = [1, 1]} : vector<1x160xf32> to vector<1x16xf32>
    %123 = arith.maximumf %121, %122 : vector<1x16xf32>
    %124 = vector.extract_strided_slice %120 {offsets = [0, 32], sizes = [1, 16], strides = [1, 1]} : vector<1x160xf32> to vector<1x16xf32>
    %125 = vector.extract_strided_slice %120 {offsets = [0, 48], sizes = [1, 16], strides = [1, 1]} : vector<1x160xf32> to vector<1x16xf32>
    %126 = arith.maximumf %124, %125 : vector<1x16xf32>
    %127 = vector.extract_strided_slice %120 {offsets = [0, 64], sizes = [1, 16], strides = [1, 1]} : vector<1x160xf32> to vector<1x16xf32>
    %128 = vector.extract_strided_slice %120 {offsets = [0, 80], sizes = [1, 16], strides = [1, 1]} : vector<1x160xf32> to vector<1x16xf32>
    %129 = arith.maximumf %127, %128 : vector<1x16xf32>
    %130 = vector.extract_strided_slice %120 {offsets = [0, 96], sizes = [1, 16], strides = [1, 1]} : vector<1x160xf32> to vector<1x16xf32>
    %131 = vector.extract_strided_slice %120 {offsets = [0, 112], sizes = [1, 16], strides = [1, 1]} : vector<1x160xf32> to vector<1x16xf32>
    %132 = arith.maximumf %130, %131 : vector<1x16xf32>
    %133 = vector.extract_strided_slice %120 {offsets = [0, 128], sizes = [1, 16], strides = [1, 1]} : vector<1x160xf32> to vector<1x16xf32>
    %134 = vector.extract_strided_slice %120 {offsets = [0, 144], sizes = [1, 16], strides = [1, 1]} : vector<1x160xf32> to vector<1x16xf32>
    %135 = arith.maximumf %133, %134 : vector<1x16xf32>
    %136 = vector.extract_strided_slice %117 {offsets = [2, 0], sizes = [1, 160], strides = [1, 1]} : vector<10x160xf32> to vector<1x160xf32>
    %137 = vector.extract_strided_slice %117 {offsets = [3, 0], sizes = [1, 160], strides = [1, 1]} : vector<10x160xf32> to vector<1x160xf32>
    %138 = arith.maximumf %136, %137 : vector<1x160xf32>
    %139 = vector.extract_strided_slice %138 {offsets = [0, 0], sizes = [1, 16], strides = [1, 1]} : vector<1x160xf32> to vector<1x16xf32>
    %140 = vector.extract_strided_slice %138 {offsets = [0, 16], sizes = [1, 16], strides = [1, 1]} : vector<1x160xf32> to vector<1x16xf32>
    %141 = arith.maximumf %139, %140 : vector<1x16xf32>
    %142 = vector.extract_strided_slice %138 {offsets = [0, 32], sizes = [1, 16], strides = [1, 1]} : vector<1x160xf32> to vector<1x16xf32>
    %143 = vector.extract_strided_slice %138 {offsets = [0, 48], sizes = [1, 16], strides = [1, 1]} : vector<1x160xf32> to vector<1x16xf32>
    %144 = arith.maximumf %142, %143 : vector<1x16xf32>
    %145 = vector.extract_strided_slice %138 {offsets = [0, 64], sizes = [1, 16], strides = [1, 1]} : vector<1x160xf32> to vector<1x16xf32>
    %146 = vector.extract_strided_slice %138 {offsets = [0, 80], sizes = [1, 16], strides = [1, 1]} : vector<1x160xf32> to vector<1x16xf32>
    %147 = arith.maximumf %145, %146 : vector<1x16xf32>
    %148 = vector.extract_strided_slice %138 {offsets = [0, 96], sizes = [1, 16], strides = [1, 1]} : vector<1x160xf32> to vector<1x16xf32>
    %149 = vector.extract_strided_slice %138 {offsets = [0, 112], sizes = [1, 16], strides = [1, 1]} : vector<1x160xf32> to vector<1x16xf32>
    %150 = arith.maximumf %148, %149 : vector<1x16xf32>
    %151 = vector.extract_strided_slice %138 {offsets = [0, 128], sizes = [1, 16], strides = [1, 1]} : vector<1x160xf32> to vector<1x16xf32>
    %152 = vector.extract_strided_slice %138 {offsets = [0, 144], sizes = [1, 16], strides = [1, 1]} : vector<1x160xf32> to vector<1x16xf32>
    %153 = arith.maximumf %151, %152 : vector<1x16xf32>
    %154 = vector.extract_strided_slice %117 {offsets = [4, 0], sizes = [1, 160], strides = [1, 1]} : vector<10x160xf32> to vector<1x160xf32>
    %155 = vector.extract_strided_slice %117 {offsets = [5, 0], sizes = [1, 160], strides = [1, 1]} : vector<10x160xf32> to vector<1x160xf32>
    %156 = arith.maximumf %154, %155 : vector<1x160xf32>
    %157 = vector.extract_strided_slice %156 {offsets = [0, 0], sizes = [1, 16], strides = [1, 1]} : vector<1x160xf32> to vector<1x16xf32>
    %158 = vector.extract_strided_slice %156 {offsets = [0, 16], sizes = [1, 16], strides = [1, 1]} : vector<1x160xf32> to vector<1x16xf32>
    %159 = arith.maximumf %157, %158 : vector<1x16xf32>
    %160 = vector.extract_strided_slice %156 {offsets = [0, 32], sizes = [1, 16], strides = [1, 1]} : vector<1x160xf32> to vector<1x16xf32>
    %161 = vector.extract_strided_slice %156 {offsets = [0, 48], sizes = [1, 16], strides = [1, 1]} : vector<1x160xf32> to vector<1x16xf32>
    %162 = arith.maximumf %160, %161 : vector<1x16xf32>
    %163 = vector.extract_strided_slice %156 {offsets = [0, 64], sizes = [1, 16], strides = [1, 1]} : vector<1x160xf32> to vector<1x16xf32>
    %164 = vector.extract_strided_slice %156 {offsets = [0, 80], sizes = [1, 16], strides = [1, 1]} : vector<1x160xf32> to vector<1x16xf32>
    %165 = arith.maximumf %163, %164 : vector<1x16xf32>
    %166 = vector.extract_strided_slice %156 {offsets = [0, 96], sizes = [1, 16], strides = [1, 1]} : vector<1x160xf32> to vector<1x16xf32>
    %167 = vector.extract_strided_slice %156 {offsets = [0, 112], sizes = [1, 16], strides = [1, 1]} : vector<1x160xf32> to vector<1x16xf32>
    %168 = arith.maximumf %166, %167 : vector<1x16xf32>
    %169 = vector.extract_strided_slice %156 {offsets = [0, 128], sizes = [1, 16], strides = [1, 1]} : vector<1x160xf32> to vector<1x16xf32>
    %170 = vector.extract_strided_slice %156 {offsets = [0, 144], sizes = [1, 16], strides = [1, 1]} : vector<1x160xf32> to vector<1x16xf32>
    %171 = arith.maximumf %169, %170 : vector<1x16xf32>
    %172 = vector.extract_strided_slice %117 {offsets = [6, 0], sizes = [1, 160], strides = [1, 1]} : vector<10x160xf32> to vector<1x160xf32>
    %173 = vector.extract_strided_slice %117 {offsets = [7, 0], sizes = [1, 160], strides = [1, 1]} : vector<10x160xf32> to vector<1x160xf32>
    %174 = arith.maximumf %172, %173 : vector<1x160xf32>
    %175 = vector.extract_strided_slice %174 {offsets = [0, 0], sizes = [1, 16], strides = [1, 1]} : vector<1x160xf32> to vector<1x16xf32>
    %176 = vector.extract_strided_slice %174 {offsets = [0, 16], sizes = [1, 16], strides = [1, 1]} : vector<1x160xf32> to vector<1x16xf32>
    %177 = arith.maximumf %175, %176 : vector<1x16xf32>
    %178 = vector.extract_strided_slice %174 {offsets = [0, 32], sizes = [1, 16], strides = [1, 1]} : vector<1x160xf32> to vector<1x16xf32>
    %179 = vector.extract_strided_slice %174 {offsets = [0, 48], sizes = [1, 16], strides = [1, 1]} : vector<1x160xf32> to vector<1x16xf32>
    %180 = arith.maximumf %178, %179 : vector<1x16xf32>
    %181 = vector.extract_strided_slice %174 {offsets = [0, 64], sizes = [1, 16], strides = [1, 1]} : vector<1x160xf32> to vector<1x16xf32>
    %182 = vector.extract_strided_slice %174 {offsets = [0, 80], sizes = [1, 16], strides = [1, 1]} : vector<1x160xf32> to vector<1x16xf32>
    %183 = arith.maximumf %181, %182 : vector<1x16xf32>
    %184 = vector.extract_strided_slice %174 {offsets = [0, 96], sizes = [1, 16], strides = [1, 1]} : vector<1x160xf32> to vector<1x16xf32>
    %185 = vector.extract_strided_slice %174 {offsets = [0, 112], sizes = [1, 16], strides = [1, 1]} : vector<1x160xf32> to vector<1x16xf32>
    %186 = arith.maximumf %184, %185 : vector<1x16xf32>
    %187 = vector.extract_strided_slice %174 {offsets = [0, 128], sizes = [1, 16], strides = [1, 1]} : vector<1x160xf32> to vector<1x16xf32>
    %188 = vector.extract_strided_slice %174 {offsets = [0, 144], sizes = [1, 16], strides = [1, 1]} : vector<1x160xf32> to vector<1x16xf32>
    %189 = arith.maximumf %187, %188 : vector<1x16xf32>
    %190 = vector.extract_strided_slice %117 {offsets = [8, 0], sizes = [1, 160], strides = [1, 1]} : vector<10x160xf32> to vector<1x160xf32>
    %191 = vector.extract_strided_slice %117 {offsets = [9, 0], sizes = [1, 160], strides = [1, 1]} : vector<10x160xf32> to vector<1x160xf32>
    %192 = arith.maximumf %190, %191 : vector<1x160xf32>
    %193 = vector.extract_strided_slice %192 {offsets = [0, 0], sizes = [1, 16], strides = [1, 1]} : vector<1x160xf32> to vector<1x16xf32>
    %194 = vector.extract_strided_slice %192 {offsets = [0, 16], sizes = [1, 16], strides = [1, 1]} : vector<1x160xf32> to vector<1x16xf32>
    %195 = arith.maximumf %193, %194 : vector<1x16xf32>
    %196 = vector.extract_strided_slice %192 {offsets = [0, 32], sizes = [1, 16], strides = [1, 1]} : vector<1x160xf32> to vector<1x16xf32>
    %197 = vector.extract_strided_slice %192 {offsets = [0, 48], sizes = [1, 16], strides = [1, 1]} : vector<1x160xf32> to vector<1x16xf32>
    %198 = arith.maximumf %196, %197 : vector<1x16xf32>
    %199 = vector.extract_strided_slice %192 {offsets = [0, 64], sizes = [1, 16], strides = [1, 1]} : vector<1x160xf32> to vector<1x16xf32>
    %200 = vector.extract_strided_slice %192 {offsets = [0, 80], sizes = [1, 16], strides = [1, 1]} : vector<1x160xf32> to vector<1x16xf32>
    %201 = arith.maximumf %199, %200 : vector<1x16xf32>
    %202 = vector.extract_strided_slice %192 {offsets = [0, 96], sizes = [1, 16], strides = [1, 1]} : vector<1x160xf32> to vector<1x16xf32>
    %203 = vector.extract_strided_slice %192 {offsets = [0, 112], sizes = [1, 16], strides = [1, 1]} : vector<1x160xf32> to vector<1x16xf32>
    %204 = arith.maximumf %202, %203 : vector<1x16xf32>
    %205 = vector.extract_strided_slice %192 {offsets = [0, 128], sizes = [1, 16], strides = [1, 1]} : vector<1x160xf32> to vector<1x16xf32>
    %206 = vector.extract_strided_slice %192 {offsets = [0, 144], sizes = [1, 16], strides = [1, 1]} : vector<1x160xf32> to vector<1x16xf32>
    %207 = arith.maximumf %205, %206 : vector<1x16xf32>
    %208 = tpu.concatenate %123, %126, %129, %132, %135, %141, %144, %147, %150, %153, %159, %162, %165, %168, %171, %177 in 1 : vector<1x16xf32>, vector<1x16xf32>, vector<1x16xf32>, vector<1x16xf32>, vector<1x16xf32>, vector<1x16xf32>, vector<1x16xf32>, vector<1x16xf32>, vector<1x16xf32>, vector<1x16xf32>, vector<1x16xf32>, vector<1x16xf32>, vector<1x16xf32>, vector<1x16xf32>, vector<1x16xf32>, vector<1x16xf32> -> vector<1x256xf32>
    %209 = tpu.concatenate %180, %183, %186, %189, %195, %198, %201, %204, %207 in 1 : vector<1x16xf32>, vector<1x16xf32>, vector<1x16xf32>, vector<1x16xf32>, vector<1x16xf32>, vector<1x16xf32>, vector<1x16xf32>, vector<1x16xf32>, vector<1x16xf32> -> vector<1x144xf32>
    %210 = tpu.concatenate %208, %209 in 1 : vector<1x256xf32>, vector<1x144xf32> -> vector<1x400xf32>
    %c0_51 = arith.constant 0 : index
    %c0_52 = arith.constant 0 : index
    %211 = vector.load %arg10[%c0_51, %c0_52] : memref<2x400xf32, #tpu.memory_space<vmem>>, vector<1x400xf32>
    tpu.vector_store %arg10[%c0_51, %c0_52], %210 {strides = array<i32>} : memref<2x400xf32, #tpu.memory_space<vmem>>, vector<1x400xf32>,
    %c12 = arith.constant 12 : index
    %c0_53 = arith.constant 0 : index
    %212 = vector.load %arg9[%c12, %c0_53] : memref<24x768xf32, #tpu.memory_space<vmem>>, vector<12x768xf32>
    %cst_54 = arith.constant 0.000000e+00 : f32
    %213 = vector.broadcast %cst_54 : f32 to vector<10x160xf32>
    %214 = vector.extract_strided_slice %212 {offsets = [0, 0], sizes = [10, 768], strides = [1, 1]} : vector<12x768xf32> to vector<10x768xf32>
    %c0_55 = arith.constant 0 : index
    %c0_56 = arith.constant 0 : index
    %215 = vector.load %arg3[%c0_55, %c0_56] : memref<2304x160xbf16, #tpu.memory_space<vmem>>, vector<768x160xbf16>
    %216 = arith.truncf %214 : vector<10x768xf32> to vector<10x768xbf16>
    %cst_57 = arith.constant dense<0.000000e+00> : vector<10x160xf32>
    %217 = tpu.matmul %216, %215, %cst_57 {dimension_numbers = #tpu.dot_dimension_numbers<[1], [0], [0], [1], [0, 0, 1, 1], [], []>} : vector<10x768xbf16>, vector<768x160xbf16>, vector<10x160xf32> -> vector<10x160xf32>
    %218 = arith.addf %213, %217 : vector<10x160xf32>
    %219 = vector.extract_strided_slice %212 {offsets = [1, 0], sizes = [10, 768], strides = [1, 1]} : vector<12x768xf32> to vector<10x768xf32>
    %c768_58 = arith.constant 768 : index
    %c0_59 = arith.constant 0 : index
    %220 = vector.load %arg3[%c768_58, %c0_59] : memref<2304x160xbf16, #tpu.memory_space<vmem>>, vector<768x160xbf16>
    %221 = arith.truncf %219 : vector<10x768xf32> to vector<10x768xbf16>
    %cst_60 = arith.constant dense<0.000000e+00> : vector<10x160xf32>
    %222 = tpu.matmul %221, %220, %cst_60 {dimension_numbers = #tpu.dot_dimension_numbers<[1], [0], [0], [1], [0, 0, 1, 1], [], []>} : vector<10x768xbf16>, vector<768x160xbf16>, vector<10x160xf32> -> vector<10x160xf32>
    %223 = arith.addf %218, %222 : vector<10x160xf32>
    %224 = vector.extract_strided_slice %212 {offsets = [2, 0], sizes = [10, 768], strides = [1, 1]} : vector<12x768xf32> to vector<10x768xf32>
    %c1536_61 = arith.constant 1536 : index
    %c0_62 = arith.constant 0 : index
    %225 = vector.load %arg3[%c1536_61, %c0_62] : memref<2304x160xbf16, #tpu.memory_space<vmem>>, vector<768x160xbf16>
    %226 = arith.truncf %224 : vector<10x768xf32> to vector<10x768xbf16>
    %cst_63 = arith.constant dense<0.000000e+00> : vector<10x160xf32>
    %227 = tpu.matmul %226, %225, %cst_63 {dimension_numbers = #tpu.dot_dimension_numbers<[1], [0], [0], [1], [0, 0, 1, 1], [], []>} : vector<10x768xbf16>, vector<768x160xbf16>, vector<10x160xf32> -> vector<10x160xf32>
    %228 = arith.addf %223, %227 : vector<10x160xf32>
    %229 = vector.extract_strided_slice %228 {offsets = [0, 0], sizes = [1, 160], strides = [1, 1]} : vector<10x160xf32> to vector<1x160xf32>
    %230 = vector.extract_strided_slice %228 {offsets = [1, 0], sizes = [1, 160], strides = [1, 1]} : vector<10x160xf32> to vector<1x160xf32>
    %231 = arith.maximumf %229, %230 : vector<1x160xf32>
    %232 = vector.extract_strided_slice %231 {offsets = [0, 0], sizes = [1, 16], strides = [1, 1]} : vector<1x160xf32> to vector<1x16xf32>
    %233 = vector.extract_strided_slice %231 {offsets = [0, 16], sizes = [1, 16], strides = [1, 1]} : vector<1x160xf32> to vector<1x16xf32>
    %234 = arith.maximumf %232, %233 : vector<1x16xf32>
    %235 = vector.extract_strided_slice %231 {offsets = [0, 32], sizes = [1, 16], strides = [1, 1]} : vector<1x160xf32> to vector<1x16xf32>
    %236 = vector.extract_strided_slice %231 {offsets = [0, 48], sizes = [1, 16], strides = [1, 1]} : vector<1x160xf32> to vector<1x16xf32>
    %237 = arith.maximumf %235, %236 : vector<1x16xf32>
    %238 = vector.extract_strided_slice %231 {offsets = [0, 64], sizes = [1, 16], strides = [1, 1]} : vector<1x160xf32> to vector<1x16xf32>
    %239 = vector.extract_strided_slice %231 {offsets = [0, 80], sizes = [1, 16], strides = [1, 1]} : vector<1x160xf32> to vector<1x16xf32>
    %240 = arith.maximumf %238, %239 : vector<1x16xf32>
    %241 = vector.extract_strided_slice %231 {offsets = [0, 96], sizes = [1, 16], strides = [1, 1]} : vector<1x160xf32> to vector<1x16xf32>
    %242 = vector.extract_strided_slice %231 {offsets = [0, 112], sizes = [1, 16], strides = [1, 1]} : vector<1x160xf32> to vector<1x16xf32>
    %243 = arith.maximumf %241, %242 : vector<1x16xf32>
    %244 = vector.extract_strided_slice %231 {offsets = [0, 128], sizes = [1, 16], strides = [1, 1]} : vector<1x160xf32> to vector<1x16xf32>
    %245 = vector.extract_strided_slice %231 {offsets = [0, 144], sizes = [1, 16], strides = [1, 1]} : vector<1x160xf32> to vector<1x16xf32>
    %246 = arith.maximumf %244, %245 : vector<1x16xf32>
    %247 = vector.extract_strided_slice %228 {offsets = [2, 0], sizes = [1, 160], strides = [1, 1]} : vector<10x160xf32> to vector<1x160xf32>
    %248 = vector.extract_strided_slice %228 {offsets = [3, 0], sizes = [1, 160], strides = [1, 1]} : vector<10x160xf32> to vector<1x160xf32>
    %249 = arith.maximumf %247, %248 : vector<1x160xf32>
    %250 = vector.extract_strided_slice %249 {offsets = [0, 0], sizes = [1, 16], strides = [1, 1]} : vector<1x160xf32> to vector<1x16xf32>
    %251 = vector.extract_strided_slice %249 {offsets = [0, 16], sizes = [1, 16], strides = [1, 1]} : vector<1x160xf32> to vector<1x16xf32>
    %252 = arith.maximumf %250, %251 : vector<1x16xf32>
    %253 = vector.extract_strided_slice %249 {offsets = [0, 32], sizes = [1, 16], strides = [1, 1]} : vector<1x160xf32> to vector<1x16xf32>
    %254 = vector.extract_strided_slice %249 {offsets = [0, 48], sizes = [1, 16], strides = [1, 1]} : vector<1x160xf32> to vector<1x16xf32>
    %255 = arith.maximumf %253, %254 : vector<1x16xf32>
    %256 = vector.extract_strided_slice %249 {offsets = [0, 64], sizes = [1, 16], strides = [1, 1]} : vector<1x160xf32> to vector<1x16xf32>
    %257 = vector.extract_strided_slice %249 {offsets = [0, 80], sizes = [1, 16], strides = [1, 1]} : vector<1x160xf32> to vector<1x16xf32>
    %258 = arith.maximumf %256, %257 : vector<1x16xf32>
    %259 = vector.extract_strided_slice %249 {offsets = [0, 96], sizes = [1, 16], strides = [1, 1]} : vector<1x160xf32> to vector<1x16xf32>
    %260 = vector.extract_strided_slice %249 {offsets = [0, 112], sizes = [1, 16], strides = [1, 1]} : vector<1x160xf32> to vector<1x16xf32>
    %261 = arith.maximumf %259, %260 : vector<1x16xf32>
    %262 = vector.extract_strided_slice %249 {offsets = [0, 128], sizes = [1, 16], strides = [1, 1]} : vector<1x160xf32> to vector<1x16xf32>
    %263 = vector.extract_strided_slice %249 {offsets = [0, 144], sizes = [1, 16], strides = [1, 1]} : vector<1x160xf32> to vector<1x16xf32>
    %264 = arith.maximumf %262, %263 : vector<1x16xf32>
    %265 = vector.extract_strided_slice %228 {offsets = [4, 0], sizes = [1, 160], strides = [1, 1]} : vector<10x160xf32> to vector<1x160xf32>
    %266 = vector.extract_strided_slice %228 {offsets = [5, 0], sizes = [1, 160], strides = [1, 1]} : vector<10x160xf32> to vector<1x160xf32>
    %267 = arith.maximumf %265, %266 : vector<1x160xf32>
    %268 = vector.extract_strided_slice %267 {offsets = [0, 0], sizes = [1, 16], strides = [1, 1]} : vector<1x160xf32> to vector<1x16xf32>
    %269 = vector.extract_strided_slice %267 {offsets = [0, 16], sizes = [1, 16], strides = [1, 1]} : vector<1x160xf32> to vector<1x16xf32>
    %270 = arith.maximumf %268, %269 : vector<1x16xf32>
    %271 = vector.extract_strided_slice %267 {offsets = [0, 32], sizes = [1, 16], strides = [1, 1]} : vector<1x160xf32> to vector<1x16xf32>
    %272 = vector.extract_strided_slice %267 {offsets = [0, 48], sizes = [1, 16], strides = [1, 1]} : vector<1x160xf32> to vector<1x16xf32>
    %273 = arith.maximumf %271, %272 : vector<1x16xf32>
    %274 = vector.extract_strided_slice %267 {offsets = [0, 64], sizes = [1, 16], strides = [1, 1]} : vector<1x160xf32> to vector<1x16xf32>
    %275 = vector.extract_strided_slice %267 {offsets = [0, 80], sizes = [1, 16], strides = [1, 1]} : vector<1x160xf32> to vector<1x16xf32>
    %276 = arith.maximumf %274, %275 : vector<1x16xf32>
    %277 = vector.extract_strided_slice %267 {offsets = [0, 96], sizes = [1, 16], strides = [1, 1]} : vector<1x160xf32> to vector<1x16xf32>
    %278 = vector.extract_strided_slice %267 {offsets = [0, 112], sizes = [1, 16], strides = [1, 1]} : vector<1x160xf32> to vector<1x16xf32>
    %279 = arith.maximumf %277, %278 : vector<1x16xf32>
    %280 = vector.extract_strided_slice %267 {offsets = [0, 128], sizes = [1, 16], strides = [1, 1]} : vector<1x160xf32> to vector<1x16xf32>
    %281 = vector.extract_strided_slice %267 {offsets = [0, 144], sizes = [1, 16], strides = [1, 1]} : vector<1x160xf32> to vector<1x16xf32>
    %282 = arith.maximumf %280, %281 : vector<1x16xf32>
    %283 = vector.extract_strided_slice %228 {offsets = [6, 0], sizes = [1, 160], strides = [1, 1]} : vector<10x160xf32> to vector<1x160xf32>
    %284 = vector.extract_strided_slice %228 {offsets = [7, 0], sizes = [1, 160], strides = [1, 1]} : vector<10x160xf32> to vector<1x160xf32>
    %285 = arith.maximumf %283, %284 : vector<1x160xf32>
    %286 = vector.extract_strided_slice %285 {offsets = [0, 0], sizes = [1, 16], strides = [1, 1]} : vector<1x160xf32> to vector<1x16xf32>
    %287 = vector.extract_strided_slice %285 {offsets = [0, 16], sizes = [1, 16], strides = [1, 1]} : vector<1x160xf32> to vector<1x16xf32>
    %288 = arith.maximumf %286, %287 : vector<1x16xf32>
    %289 = vector.extract_strided_slice %285 {offsets = [0, 32], sizes = [1, 16], strides = [1, 1]} : vector<1x160xf32> to vector<1x16xf32>
    %290 = vector.extract_strided_slice %285 {offsets = [0, 48], sizes = [1, 16], strides = [1, 1]} : vector<1x160xf32> to vector<1x16xf32>
    %291 = arith.maximumf %289, %290 : vector<1x16xf32>
    %292 = vector.extract_strided_slice %285 {offsets = [0, 64], sizes = [1, 16], strides = [1, 1]} : vector<1x160xf32> to vector<1x16xf32>
    %293 = vector.extract_strided_slice %285 {offsets = [0, 80], sizes = [1, 16], strides = [1, 1]} : vector<1x160xf32> to vector<1x16xf32>
    %294 = arith.maximumf %292, %293 : vector<1x16xf32>
    %295 = vector.extract_strided_slice %285 {offsets = [0, 96], sizes = [1, 16], strides = [1, 1]} : vector<1x160xf32> to vector<1x16xf32>
    %296 = vector.extract_strided_slice %285 {offsets = [0, 112], sizes = [1, 16], strides = [1, 1]} : vector<1x160xf32> to vector<1x16xf32>
    %297 = arith.maximumf %295, %296 : vector<1x16xf32>
    %298 = vector.extract_strided_slice %285 {offsets = [0, 128], sizes = [1, 16], strides = [1, 1]} : vector<1x160xf32> to vector<1x16xf32>
    %299 = vector.extract_strided_slice %285 {offsets = [0, 144], sizes = [1, 16], strides = [1, 1]} : vector<1x160xf32> to vector<1x16xf32>
    %300 = arith.maximumf %298, %299 : vector<1x16xf32>
    %301 = vector.extract_strided_slice %228 {offsets = [8, 0], sizes = [1, 160], strides = [1, 1]} : vector<10x160xf32> to vector<1x160xf32>
    %302 = vector.extract_strided_slice %228 {offsets = [9, 0], sizes = [1, 160], strides = [1, 1]} : vector<10x160xf32> to vector<1x160xf32>
    %303 = arith.maximumf %301, %302 : vector<1x160xf32>
    %304 = vector.extract_strided_slice %303 {offsets = [0, 0], sizes = [1, 16], strides = [1, 1]} : vector<1x160xf32> to vector<1x16xf32>
    %305 = vector.extract_strided_slice %303 {offsets = [0, 16], sizes = [1, 16], strides = [1, 1]} : vector<1x160xf32> to vector<1x16xf32>
    %306 = arith.maximumf %304, %305 : vector<1x16xf32>
    %307 = vector.extract_strided_slice %303 {offsets = [0, 32], sizes = [1, 16], strides = [1, 1]} : vector<1x160xf32> to vector<1x16xf32>
    %308 = vector.extract_strided_slice %303 {offsets = [0, 48], sizes = [1, 16], strides = [1, 1]} : vector<1x160xf32> to vector<1x16xf32>
    %309 = arith.maximumf %307, %308 : vector<1x16xf32>
    %310 = vector.extract_strided_slice %303 {offsets = [0, 64], sizes = [1, 16], strides = [1, 1]} : vector<1x160xf32> to vector<1x16xf32>
    %311 = vector.extract_strided_slice %303 {offsets = [0, 80], sizes = [1, 16], strides = [1, 1]} : vector<1x160xf32> to vector<1x16xf32>
    %312 = arith.maximumf %310, %311 : vector<1x16xf32>
    %313 = vector.extract_strided_slice %303 {offsets = [0, 96], sizes = [1, 16], strides = [1, 1]} : vector<1x160xf32> to vector<1x16xf32>
    %314 = vector.extract_strided_slice %303 {offsets = [0, 112], sizes = [1, 16], strides = [1, 1]} : vector<1x160xf32> to vector<1x16xf32>
    %315 = arith.maximumf %313, %314 : vector<1x16xf32>
    %316 = vector.extract_strided_slice %303 {offsets = [0, 128], sizes = [1, 16], strides = [1, 1]} : vector<1x160xf32> to vector<1x16xf32>
    %317 = vector.extract_strided_slice %303 {offsets = [0, 144], sizes = [1, 16], strides = [1, 1]} : vector<1x160xf32> to vector<1x16xf32>
    %318 = arith.maximumf %316, %317 : vector<1x16xf32>
    %319 = tpu.concatenate %234, %237, %240, %243, %246, %252, %255, %258, %261, %264, %270, %273, %276, %279, %282, %288 in 1 : vector<1x16xf32>, vector<1x16xf32>, vector<1x16xf32>, vector<1x16xf32>, vector<1x16xf32>, vector<1x16xf32>, vector<1x16xf32>, vector<1x16xf32>, vector<1x16xf32>, vector<1x16xf32>, vector<1x16xf32>, vector<1x16xf32>, vector<1x16xf32>, vector<1x16xf32>, vector<1x16xf32>, vector<1x16xf32> -> vector<1x256xf32>
    %320 = tpu.concatenate %291, %294, %297, %300, %306, %309, %312, %315, %318 in 1 : vector<1x16xf32>, vector<1x16xf32>, vector<1x16xf32>, vector<1x16xf32>, vector<1x16xf32>, vector<1x16xf32>, vector<1x16xf32>, vector<1x16xf32>, vector<1x16xf32> -> vector<1x144xf32>
    %321 = tpu.concatenate %319, %320 in 1 : vector<1x256xf32>, vector<1x144xf32> -> vector<1x400xf32>
    %c1 = arith.constant 1 : index
    %c0_64 = arith.constant 0 : index
    %322 = vector.load %arg10[%c1, %c0_64] : memref<2x400xf32, #tpu.memory_space<vmem>>, vector<1x400xf32>
    tpu.vector_store %arg10[%c1, %c0_64], %321 {strides = array<i32>} : memref<2x400xf32, #tpu.memory_space<vmem>>, vector<1x400xf32>,
    %c0_65 = arith.constant 0 : index
    %c0_66 = arith.constant 0 : index
    %323 = vector.load %arg10[%c0_65, %c0_66] : memref<2x400xf32, #tpu.memory_space<vmem>>, vector<2x400xf32>
    %cst_67 = arith.constant dense<0.000000e+00> : vector<400xf32>
    %324 = vector.multi_reduction <add>, %323, %cst_67 [0] : vector<2x400xf32> to vector<400xf32>
    %325 = vector.shape_cast %324 : vector<400xf32> to vector<1x400xf32>
    %c0_68 = arith.constant 0 : index
    %c0_69 = arith.constant 0 : index
    %326 = vector.load %arg5[%c0_68, %c0_69] : memref<400x16xf32, #tpu.memory_space<vmem>>, vector<400x16xf32>
    %cst_70 = arith.constant dense<0.000000e+00> : vector<1x16xf32>
    %327 = tpu.matmul %325, %326, %cst_70 {dimension_numbers = #tpu.dot_dimension_numbers<[1], [0], [0], [1], [0, 0, 1, 1], [], []>} : vector<1x400xf32>, vector<400x16xf32>, vector<1x16xf32> -> vector<1x16xf32>
    %328 = arith.mulf %323, %323 : vector<2x400xf32>
    %cst_71 = arith.constant dense<0.000000e+00> : vector<400xf32>
    %329 = vector.multi_reduction <add>, %328, %cst_71 [0] : vector<2x400xf32> to vector<400xf32>
    %330 = vector.shape_cast %329 : vector<400xf32> to vector<1x400xf32>
    %c0_72 = arith.constant 0 : index
    %c0_73 = arith.constant 0 : index
    %331 = vector.load %arg5[%c0_72, %c0_73] : memref<400x16xf32, #tpu.memory_space<vmem>>, vector<400x16xf32>
    %cst_74 = arith.constant dense<0.000000e+00> : vector<1x16xf32>
    %332 = tpu.matmul %330, %331, %cst_74 {dimension_numbers = #tpu.dot_dimension_numbers<[1], [0], [0], [1], [0, 0, 1, 1], [], []>} : vector<1x400xf32>, vector<400x16xf32>, vector<1x16xf32> -> vector<1x16xf32>
    %cst_75 = arith.constant 5.000000e+01 : f32
    %333 = vector.broadcast %cst_75 : f32 to vector<1x16xf32>
    %334 = arith.divf %327, %333 : vector<1x16xf32>
    %cst_76 = arith.constant 5.000000e+01 : f32
    %335 = vector.broadcast %cst_76 : f32 to vector<1x16xf32>
    %336 = arith.divf %332, %335 : vector<1x16xf32>
    %337 = arith.mulf %334, %334 : vector<1x16xf32>
    %338 = arith.subf %336, %337 : vector<1x16xf32>
    %cst_77 = arith.constant 0.000000e+00 : f32
    %339 = vector.broadcast %cst_77 : f32 to vector<1x16xf32>
    %340 = arith.maximumf %338, %339 : vector<1x16xf32>
    %cst_78 = arith.constant 9.99999974E-6 : f32
    %341 = vector.broadcast %cst_78 : f32 to vector<1x16xf32>
    %342 = arith.addf %340, %341 : vector<1x16xf32>
    %343 = math.rsqrt %342 : vector<1x16xf32>
    %344 = tpu.concatenate %334, %334, %334, %334, %334, %334, %334, %334, %334, %334, %334, %334, %334, %334, %334, %334 in 1 : vector<1x16xf32>, vector<1x16xf32>, vector<1x16xf32>, vector<1x16xf32>, vector<1x16xf32>, vector<1x16xf32>, vector<1x16xf32>, vector<1x16xf32>, vector<1x16xf32>, vector<1x16xf32>, vector<1x16xf32>, vector<1x16xf32>, vector<1x16xf32>, vector<1x16xf32>, vector<1x16xf32>, vector<1x16xf32> -> vector<1x256xf32>
    %345 = tpu.concatenate %334, %334, %334, %334, %334, %334, %334, %334, %334 in 1 : vector<1x16xf32>, vector<1x16xf32>, vector<1x16xf32>, vector<1x16xf32>, vector<1x16xf32>, vector<1x16xf32>, vector<1x16xf32>, vector<1x16xf32>, vector<1x16xf32> -> vector<1x144xf32>
    %346 = tpu.concatenate %344, %345 in 1 : vector<1x256xf32>, vector<1x144xf32> -> vector<1x400xf32>
    %347 = tpu.concatenate %343, %343, %343, %343, %343, %343, %343, %343, %343, %343, %343, %343, %343, %343, %343, %343 in 1 : vector<1x16xf32>, vector<1x16xf32>, vector<1x16xf32>, vector<1x16xf32>, vector<1x16xf32>, vector<1x16xf32>, vector<1x16xf32>, vector<1x16xf32>, vector<1x16xf32>, vector<1x16xf32>, vector<1x16xf32>, vector<1x16xf32>, vector<1x16xf32>, vector<1x16xf32>, vector<1x16xf32>, vector<1x16xf32> -> vector<1x256xf32>
    %348 = tpu.concatenate %343, %343, %343, %343, %343, %343, %343, %343, %343 in 1 : vector<1x16xf32>, vector<1x16xf32>, vector<1x16xf32>, vector<1x16xf32>, vector<1x16xf32>, vector<1x16xf32>, vector<1x16xf32>, vector<1x16xf32>, vector<1x16xf32> -> vector<1x144xf32>
    %349 = tpu.concatenate %347, %348 in 1 : vector<1x256xf32>, vector<1x144xf32> -> vector<1x400xf32>
    %350 = vector.broadcast %346 : vector<1x400xf32> to vector<2x400xf32>
    %351 = arith.subf %323, %350 : vector<2x400xf32>
    %352 = vector.broadcast %349 : vector<1x400xf32> to vector<2x400xf32>
    %353 = arith.mulf %351, %352 : vector<2x400xf32>
    %cst_79 = arith.constant 0.000000e+00 : f32
    %354 = vector.broadcast %cst_79 : f32 to vector<2x400xf32>
    %355 = arith.maximumf %353, %354 : vector<2x400xf32>
    %356 = vector.shape_cast %355 : vector<2x400xf32> to vector<1x2x400xf32>
    %cst_80 = arith.constant dense<0xFF800000> : vector<1xf32>
    %357 = vector.multi_reduction <maximumf>, %356, %cst_80 [1, 2] : vector<1x2x400xf32> to vector<1xf32>
    %358 = vector.shape_cast %357 : vector<1xf32> to vector<1x1x1xf32>
    %359 = vector.extract %358[0, 0, 0] : f32 from vector<1x1x1xf32>
    %360 = vector.shape_cast %355 : vector<2x400xf32> to vector<1x2x400xf32>
    %cst_81 = arith.constant dense<0x7F800000> : vector<1xf32>
    %361 = vector.multi_reduction <minimumf>, %360, %cst_81 [1, 2] : vector<1x2x400xf32> to vector<1xf32>
    %362 = vector.shape_cast %361 : vector<1xf32> to vector<1x1x1xf32>
    %363 = vector.extract %362[0, 0, 0] : f32 from vector<1x1x1xf32>
    %364 = arith.subf %359, %363 : f32
    %cst_82 = arith.constant 2.550000e+02 : f32
    %365 = arith.divf %364, %cst_82 : f32
    %cst_83 = arith.constant 0.000000e+00 : f32
    %366 = arith.cmpf oeq, %365, %cst_83 : f32
    %cst_84 = arith.constant 1.000000e+00 : f32
    %367 = arith.select %366, %cst_84, %365 : f32
    %368 = vector.broadcast %367 : f32 to vector<2x400xf32>
    %369 = arith.divf %355, %368 : vector<2x400xf32>
    %370 = math.roundeven %369 : vector<2x400xf32>
    %cst_85 = arith.constant 0.000000e+00 : f32
    %cst_86 = arith.constant 2.550000e+02 : f32
    %371 = vector.broadcast %cst_85 : f32 to vector<2x400xf32>
    %372 = arith.maximumf %371, %370 : vector<2x400xf32>
    %373 = vector.broadcast %cst_86 : f32 to vector<2x400xf32>
    %374 = arith.minimumf %373, %372 : vector<2x400xf32>
    %375 = vector.broadcast %367 : f32 to vector<2x400xf32>
    %376 = arith.mulf %374, %375 : vector<2x400xf32>
    %377 = arith.truncf %376 : vector<2x400xf32> to vector<2x400xbf16>
    %c0_87 = arith.constant 0 : index
    %c0_88 = arith.constant 0 : index
    %378 = vector.load %arg6[%c0_87, %c0_88] : memref<400x128xbf16, #tpu.memory_space<vmem>>, vector<400x128xbf16>
    %cst_89 = arith.constant dense<0.000000e+00> : vector<2x128xf32>
    %379 = tpu.matmul %377, %378, %cst_89 {dimension_numbers = #tpu.dot_dimension_numbers<[1], [0], [0], [1], [0, 0, 1, 1], [], []>} : vector<2x400xbf16>, vector<400x128xbf16>, vector<2x128xf32> -> vector<2x128xf32>
    %cst_90 = arith.constant 0.000000e+00 : f32
    %380 = vector.broadcast %cst_90 : f32 to vector<2x128xf32>
    %381 = arith.maximumf %379, %380 : vector<2x128xf32>
    %382 = vector.shape_cast %381 : vector<2x128xf32> to vector<1x2x128xf32>
    %cst_91 = arith.constant dense<0xFF800000> : vector<1xf32>
    %383 = vector.multi_reduction <maximumf>, %382, %cst_91 [1, 2] : vector<1x2x128xf32> to vector<1xf32>
    %384 = vector.shape_cast %383 : vector<1xf32> to vector<1x1x1xf32>
    %385 = vector.extract %384[0, 0, 0] : f32 from vector<1x1x1xf32>
    %386 = vector.shape_cast %381 : vector<2x128xf32> to vector<1x2x128xf32>
    %cst_92 = arith.constant dense<0x7F800000> : vector<1xf32>
    %387 = vector.multi_reduction <minimumf>, %386, %cst_92 [1, 2] : vector<1x2x128xf32> to vector<1xf32>
    %388 = vector.shape_cast %387 : vector<1xf32> to vector<1x1x1xf32>
    %389 = vector.extract %388[0, 0, 0] : f32 from vector<1x1x1xf32>
    %390 = arith.subf %385, %389 : f32
    %cst_93 = arith.constant 2.550000e+02 : f32
    %391 = arith.divf %390, %cst_93 : f32
    %cst_94 = arith.constant 0.000000e+00 : f32
    %392 = arith.cmpf oeq, %391, %cst_94 : f32
    %cst_95 = arith.constant 1.000000e+00 : f32
    %393 = arith.select %392, %cst_95, %391 : f32
    %394 = vector.broadcast %393 : f32 to vector<2x128xf32>
    %395 = arith.divf %381, %394 : vector<2x128xf32>
    %396 = math.roundeven %395 : vector<2x128xf32>
    %cst_96 = arith.constant 0.000000e+00 : f32
    %cst_97 = arith.constant 2.550000e+02 : f32
    %397 = vector.broadcast %cst_96 : f32 to vector<2x128xf32>
    %398 = arith.maximumf %397, %396 : vector<2x128xf32>
    %399 = vector.broadcast %cst_97 : f32 to vector<2x128xf32>
    %400 = arith.minimumf %399, %398 : vector<2x128xf32>
    %401 = vector.broadcast %393 : f32 to vector<2x128xf32>
    %402 = arith.mulf %400, %401 : vector<2x128xf32>
    %403 = arith.truncf %402 : vector<2x128xf32> to vector<2x128xbf16>
    %c0_98 = arith.constant 0 : index
    %c0_99 = arith.constant 0 : index
    %404 = vector.load %arg7[%c0_98, %c0_99] : memref<128x128xbf16, #tpu.memory_space<vmem>>, vector<128x128xbf16>
    %cst_100 = arith.constant dense<0.000000e+00> : vector<2x128xf32>
    %405 = tpu.matmul %403, %404, %cst_100 {dimension_numbers = #tpu.dot_dimension_numbers<[1], [0], [0], [1], [0, 0, 1, 1], [], []>} : vector<2x128xbf16>, vector<128x128xbf16>, vector<2x128xf32> -> vector<2x128xf32>
    %406 = tpu.iota {dimensions = array<i32: 1>} : vector<1x128xi32>
    %c10_i32 = arith.constant 10 : i32
    %407 = vector.broadcast %c10_i32 : i32 to vector<1x128xi32>
    %408 = arith.cmpi slt, %406, %407 : vector<1x128xi32>
    %cst_101 = arith.constant -1.000000e+30 : f32
    %409 = vector.shape_cast %408 : vector<1x128xi1> to vector<1x128xi1>
    %410 = vector.broadcast %409 : vector<1x128xi1> to vector<2x128xi1>
    %411 = vector.broadcast %cst_101 : f32 to vector<2x128xf32>
    %412 = arith.select %410, %405, %411 : vector<2x128xi1>, vector<2x128xf32>
    %cst_102 = arith.constant dense<0xFF800000> : vector<2xf32>
    %413 = vector.multi_reduction <maximumf>, %412, %cst_102 [1] : vector<2x128xf32> to vector<2xf32>
    %414 = vector.shape_cast %413 : vector<2xf32> to vector<2x1xf32>
    %415 = vector.broadcast %414 : vector<2x1xf32> to vector<2x128xf32>
    %416 = arith.subf %412, %415 : vector<2x128xf32>
    %417 = math.exp %416 : vector<2x128xf32>
    %cst_103 = arith.constant dense<0.000000e+00> : vector<2xf32>
    %418 = vector.multi_reduction <add>, %417, %cst_103 [1] : vector<2x128xf32> to vector<2xf32>
    %419 = vector.shape_cast %418 : vector<2xf32> to vector<2x1xf32>
    %420 = math.log %419 : vector<2x1xf32>
    %421 = vector.broadcast %420 : vector<2x1xf32> to vector<2x128xf32>
    %422 = arith.subf %416, %421 : vector<2x128xf32>
    %c0_104 = arith.constant 0 : index
    %c0_105 = arith.constant 0 : index
    %423 = vector.load %arg8[%c0_104, %c0_105] : memref<2x128xf32, #tpu.memory_space<vmem>>, vector<2x128xf32>
    tpu.vector_store %arg8[%c0_104, %c0_105], %422 {strides = array<i32>} : memref<2x128xf32, #tpu.memory_space<vmem>>, vector<2x128xf32>,
    return
  }
  func.func @transform_0(%arg0: i32) -> (i32, i32) {
    %c0_i32 = arith.constant 0 : i32
    %c0_i32_0 = arith.constant 0 : i32
    %c0_i32_1 = arith.constant 0 : i32
    return %c0_i32, %c0_i32_0 : i32, i32
  }
  func.func @transform_1(%arg0: i32) -> (i32, i32) {
    %c0_i32 = arith.constant 0 : i32
    %c0_i32_0 = arith.constant 0 : i32
    %c0_i32_1 = arith.constant 0 : i32
    return %c0_i32, %c0_i32_0 : i32, i32
  }
  func.func @transform_2(%arg0: i32) -> (i32, i32) {
    %c0_i32 = arith.constant 0 : i32
    %c0_i32_0 = arith.constant 0 : i32
    %c0_i32_1 = arith.constant 0 : i32
    return %c0_i32, %c0_i32_0 : i32, i32
  }
  func.func @transform_3(%arg0: i32) -> (i32, i32) {
    %c0_i32 = arith.constant 0 : i32
    %c0_i32_0 = arith.constant 0 : i32
    %c0_i32_1 = arith.constant 0 : i32
    return %c0_i32, %c0_i32_0 : i32, i32
  }
  func.func @transform_4(%arg0: i32) -> (i32, i32) {
    %c0_i32 = arith.constant 0 : i32
    %c0_i32_0 = arith.constant 0 : i32
    %c0_i32_1 = arith.constant 0 : i32
    return %c0_i32, %c0_i32_0 : i32, i32
  }
  func.func @transform_5(%arg0: i32) -> (i32, i32) {
    %c0_i32 = arith.constant 0 : i32
    %c0_i32_0 = arith.constant 0 : i32
    %c0_i32_1 = arith.constant 0 : i32
    return %c0_i32, %c0_i32_0 : i32, i32
  }
  func.func @transform_6(%arg0: i32) -> (i32, i32) {
    %c0_i32 = arith.constant 0 : i32
    %c0_i32_0 = arith.constant 0 : i32
    %c0_i32_1 = arith.constant 0 : i32
    return %c0_i32, %c0_i32_0 : i32, i32
  }
  func.func @transform_7(%arg0: i32) -> (i32, i32) {
    %c0_i32 = arith.constant 0 : i32
    %c0_i32_0 = arith.constant 0 : i32
    %c0_i32_1 = arith.constant 0 : i32
    return %c0_i32, %c0_i32_0 : i32, i32
  }
}

</mosaic_0001>

<llo_original>
// kernel: _lambda_.1
$region0: #{_lambda_.1}
  #allocation0 [shape = 'u32[]', space=smem, size = 0x4, offset = 0x4, fixed_abs, tag = 'smem constant byte address 0x4 - core index']
  #allocation1 [shape = 'u32[144,128]{1,0:T(1,128)}', space=vmem, size = 0x12000, scoped, tag = 'internal scratch']
  #allocation2 [shape = 'f32[24,768]{1,0:T(8,128)}', space=vmem, size = 0x12000, scoped, tag = 'scratch operand']
  #allocation3 [shape = 'f32[2,400]{1,0:T(2,128)}', space=vmem, size = 0x1000, scoped, tag = 'scratch operand']
  %s0 = inlined_call_operand.vmem [shape: f32[72,14], index: 0, kind: input, shape index: {}]
  %s1 = inlined_call_operand.vmem [shape: bf16[42,768], index: 1, kind: input, shape index: {}]
  %s2 = inlined_call_operand.vmem [shape: bf16[2304,160], index: 2, kind: input, shape index: {}]
  %s3 = inlined_call_operand.vmem [shape: f32[768,64], index: 3, kind: input, shape index: {}]
  %s4 = inlined_call_operand.vmem [shape: f32[400,16], index: 4, kind: input, shape index: {}]
  %s5 = inlined_call_operand.vmem [shape: bf16[400,128], index: 5, kind: input, shape index: {}]
  %s6 = inlined_call_operand.vmem [shape: bf16[128,128], index: 6, kind: input, shape index: {}]
  %s7 = inlined_call_operand.hbm [shape: f32[2,128], index: 7, kind: output, shape index: {}]
  %s8 = sld [smem:[#allocation0]]
  $region38: #{_lambda_.1} parent=0
    _
  %s10 = ssub.s32 1, %s8
  %s11 = scalar_select 0, %s10, %s8
  $region1: #{_lambda_.1} parent=0
    #allocation4 [shape = 'u8[1024]{0}', space=vmem, size = 0x400, scoped, tag = 'output window, operand 0, single buffered']
    #allocation5 [shape = 's32[1]{0}', space=sflag, size = 0x4, scoped, tag = 'scoped memory for _lambda_.1']
    %12 = vsyncpa [#allocation5], 0
    // Predicated region
    $region2: #{_lambda_.1} parent=1 // pred_check
      _
    $region3: #{_lambda_.1} parent=1 // pred_check_branch
      %14 = sbr.rel (0) target = $region5
    $region4: #{_lambda_.1} parent=1 // pred_region
      _
    $region5: #{_lambda_.1} parent=1 // pred_fallthru
      _
    // Predicated region
    $region6: #{_lambda_.1} parent=1 // pred_check
      _
    $region7: #{_lambda_.1} parent=1 // pred_check_branch
      %16 = sbr.rel (0) target = $region9
    $region8: #{_lambda_.1} parent=1 // pred_region
      _
    $region9: #{_lambda_.1} parent=1 // pred_fallthru
      _
    // Predicated region
    $region10: #{_lambda_.1} parent=1 // pred_check
      _
    $region11: #{_lambda_.1} parent=1 // pred_check_branch
      %18 = sbr.rel (0) target = $region13
    $region12: #{_lambda_.1} parent=1 // pred_region
      _
    $region13: #{_lambda_.1} parent=1 // pred_fallthru
      _
    // Predicated region
    $region14: #{_lambda_.1} parent=1 // pred_check
      _
    $region15: #{_lambda_.1} parent=1 // pred_check_branch
      %20 = sbr.rel (0) target = $region17
    $region16: #{_lambda_.1} parent=1 // pred_region
      _
    $region17: #{_lambda_.1} parent=1 // pred_fallthru
      _
    // Predicated region
    $region18: #{_lambda_.1} parent=1 // pred_check
      _
    $region19: #{_lambda_.1} parent=1 // pred_check_branch
      %22 = sbr.rel (0) target = $region21
    $region20: #{_lambda_.1} parent=1 // pred_region
      _
    $region21: #{_lambda_.1} parent=1 // pred_fallthru
      _
    // Predicated region
    $region22: #{_lambda_.1} parent=1 // pred_check
      _
    $region23: #{_lambda_.1} parent=1 // pred_check_branch
      %24 = sbr.rel (0) target = $region25
    $region24: #{_lambda_.1} parent=1 // pred_region
      _
    $region25: #{_lambda_.1} parent=1 // pred_fallthru
      _
    // Predicated region
    $region26: #{_lambda_.1} parent=1 // pred_check
      _
    $region27: #{_lambda_.1} parent=1 // pred_check_branch
      %26 = sbr.rel (0) target = $region29
    $region28: #{_lambda_.1} parent=1 // pred_region
      _
    $region29: #{_lambda_.1} parent=1 // pred_fallthru
      _
    %v28 = vld [vmem:[%s0] sm:$0xff]
    %v29 = vld [vmem:[%s0 + $0x8] sm:$0xff]
    %v30 = vld [vmem:[%s0 + $0x10] sm:$0xff]
    %v31 = vld [vmem:[%s0 + $0x18] sm:$0xff]
    %v32 = vld [vmem:[%s0 + $0x20] sm:$0xff]
    %v33 = vld [vmem:[%s0 + $0x28] sm:$0xff]
    %v34 = vld [vmem:[%s0 + $0x30] sm:$0xff]
    %v35 = vld [vmem:[%s0 + $0x38] sm:$0xff]
    %v36 = vld [vmem:[%s0 + $0x40] sm:$0xff]
    %vm37 = vcmask 113664
    %v38 = vsel %vm37, %v28, -inf
    %v39 = vsel %vm37, %v29, -inf
    %v40 = vsel %vm37, %v30, -inf
    %v41 = vsel %vm37, %v31, -inf
    %v42 = vsel %vm37, %v32, -inf
    %v43 = vmax.f32 %v38, %v42
    %v44 = vsel %vm37, %v33, -inf
    %v45 = vmax.f32 %v39, %v44
    %v46 = vsel %vm37, %v34, -inf
    %v47 = vmax.f32 %v40, %v46
    %v48 = vsel %vm37, %v35, -inf
    %v49 = vmax.f32 %v41, %v48
    %v50 = vsel %vm37, %v36, -inf
    %v51 = vmax.f32 %v43, %v50
    %v52 = vmax.f32 %v51, %v45
    %v53 = vmax.f32 %v47, %v49
    %v54 = vmax.f32 %v52, %v53
    %55 = vmax.xlane.f32.xlu0 %v54
    %v56 = vpop.xlane.xlu0 %55
    %v57 = vrot.slane %v56, 4
    %v58 = vmax.f32 %v56, %v57
    %v59 = vrot.slane %v58, 2
    %v60 = vmax.f32 %v58, %v59
    %v61 = vrot.slane %v60, 1
    %v62 = vmax.f32 %v60, %v61
    %s63 = vtos %v62
    %v64 = vsel %vm37, %v28, inf
    %v65 = vsel %vm37, %v29, inf
    %v66 = vsel %vm37, %v30, inf
    %v67 = vsel %vm37, %v31, inf
    %v68 = vsel %vm37, %v32, inf
    %v69 = vmin.f32 %v64, %v68
    %v70 = vsel %vm37, %v33, inf
    %v71 = vmin.f32 %v65, %v70
    %v72 = vsel %vm37, %v34, inf
    %v73 = vmin.f32 %v66, %v72
    %v74 = vsel %vm37, %v35, inf
    %v75 = vmin.f32 %v67, %v74
    %v76 = vsel %vm37, %v36, inf
    %v77 = vmin.f32 %v69, %v76
    %v78 = vmin.f32 %v77, %v71
    %v79 = vmin.f32 %v73, %v75
    %v80 = vmin.f32 %v78, %v79
    %81 = vmin.xlane.f32.xlu0 %v80
    %v82 = vpop.xlane.xlu0 %81
    %v83 = vrot.slane %v82, 4
    %v84 = vmin.f32 %v82, %v83
    %v85 = vrot.slane %v84, 2
    %v86 = vmin.f32 %v84, %v85
    %v87 = vrot.slane %v86, 1
    %v88 = vmin.f32 %v86, %v87
    %s89 = vtos %v88
    %s90 = ssub.f32 %s63, %s89
    %v91 = vrcp.pop 255.0
    %s92 = vtos %v91
    %s93 = smul.f32 %s90, %s92
    %p94 = scmp.eq.f32.partialorder %s93, 0.0
    %s95 = scalar_select %p94, 1.0, %s93
    %v96 = vstv %s95
    %v97 = vrcp.pop %v96
    %s98 = vtos %v97
    %s99 = smul.f32 %s63, %s98
    %s100 = sfloor.f32 %s99
    %v101 = vstv %s95
    %v102 = vrcp.pop %v101
    %s103 = vtos %v102
    %s104 = smul.f32 %s89, %s103
    %s105 = sfloor.f32 %s104
    %s106 = sadd.f32 %s105, 128.0
    %s107 = ssub.f32 %s106, %s100
    %s108 = ssub.f32 %s107, 1.0
    %v109 = vstv %s89
    %v110 = vsub.f32 %v28, %v109
    %v111 = vsub.f32 %v29, %v109
    %v112 = vsub.f32 %v30, %v109
    %v113 = vsub.f32 %v31, %v109
    %v114 = vsub.f32 %v32, %v109
    %v115 = vsub.f32 %v33, %v109
    %v116 = vsub.f32 %v34, %v109
    %v117 = vsub.f32 %v35, %v109
    %v118 = vsub.f32 %v36, %v109
    %v119 = vstv %s95
    %v120 = vrcp.pop %v119
    %v121 = vmul.f32 %v110, %v120
    %v122 = vmul.f32 %v111, %v120
    %v123 = vmul.f32 %v112, %v120
    %v124 = vmul.f32 %v113, %v120
    %v125 = vmul.f32 %v114, %v120
    %v126 = vmul.f32 %v115, %v120
    %v127 = vmul.f32 %v116, %v120
    %v128 = vmul.f32 %v117, %v120
    %v129 = vmul.f32 %v118, %v120
    %v130 = vround.ne.pseudo %v121
    %v131 = vround.ne.pseudo %v122
    %v132 = vround.ne.pseudo %v123
    %v133 = vround.ne.pseudo %v124
    %v134 = vround.ne.pseudo %v125
    %v135 = vround.ne.pseudo %v126
    %v136 = vround.ne.pseudo %v127
    %v137 = vround.ne.pseudo %v128
    %v138 = vround.ne.pseudo %v129
    %v139 = vstv %s108
    %v140 = vadd.f32 %v130, %v139
    %v141 = vadd.f32 %v131, %v139
    %v142 = vadd.f32 %v132, %v139
    %v143 = vadd.f32 %v133, %v139
    %v144 = vadd.f32 %v134, %v139
    %v145 = vadd.f32 %v135, %v139
    %v146 = vadd.f32 %v136, %v139
    %v147 = vadd.f32 %v137, %v139
    %v148 = vadd.f32 %v138, %v139
    %v149 = vsub.f32 %v140, %v139
    %v150 = vsub.f32 %v141, %v139
    %v151 = vsub.f32 %v142, %v139
    %v152 = vsub.f32 %v143, %v139
    %v153 = vsub.f32 %v144, %v139
    %v154 = vsub.f32 %v145, %v139
    %v155 = vsub.f32 %v146, %v139
    %v156 = vsub.f32 %v147, %v139
    %v157 = vsub.f32 %v148, %v139
    %v158 = vstv %s105
    %v159 = vadd.f32 %v149, %v158
    %v160 = vadd.f32 %v150, %v158
    %v161 = vadd.f32 %v151, %v158
    %v162 = vadd.f32 %v152, %v158
    %v163 = vadd.f32 %v153, %v158
    %v164 = vadd.f32 %v154, %v158
    %v165 = vadd.f32 %v155, %v158
    %v166 = vadd.f32 %v156, %v158
    %v167 = vadd.f32 %v157, %v158
    %v168 = vmul.f32 %v159, %v119
    %v169 = vmul.f32 %v160, %v119
    %v170 = vmul.f32 %v161, %v119
    %v171 = vmul.f32 %v162, %v119
    %v172 = vmul.f32 %v163, %v119
    %v173 = vmul.f32 %v164, %v119
    %v174 = vmul.f32 %v165, %v119
    %v175 = vmul.f32 %v166, %v119
    %v176 = vmul.f32 %v167, %v119
    %v177 = vld [vmem:[%s1] sm:$0xff]
    %v178 = vld [vmem:[%s1 + $0x8] sm:$0xff]
    %v179 = vld [vmem:[%s1 + $0x10] sm:$0xff]
    %v180 = vld [vmem:[%s1 + $0x18] sm:$0x77]
    %v181 = vld [vmem:[%s1 + $0x20] sm:$0x77]
    %v182 = vld [vmem:[%s1 + $0x28] sm:$0x77]
    %v183 = vpack.c.bf16 %v169, %v168
    %v184 = vpack.c.bf16 %v170, %v170
    %v185 = vld [vmem:[%s1 + $0x18] sm:$0x88]
    %v186 = vld [vmem:[%s1 + $0x20] sm:$0x88]
    %v187 = vld [vmem:[%s1 + $0x28] sm:$0x88]
    %v188 = vld [vmem:[%s1 + $0x30] sm:$0xff]
    %v189 = vld [vmem:[%s1 + $0x38] sm:$0xff]
    %v190 = vld [vmem:[%s1 + $0x40] sm:$0xff]
    %v191 = vld [vmem:[%s1 + $0x48] sm:$0x33]
    %v192 = vld [vmem:[%s1 + $0x50] sm:$0x33]
    %v193 = vld [vmem:[%s1 + $0x58] sm:$0x33]
    %v194 = vpack.c.bf16 %v172, %v171
    %v195 = vpack.c.bf16 %v173, %v173
    %v205 = vunpack.c.l.b16 %v185
    %v206 = vunpack.c.h.b16 %v185
    %v207 = vunpack.c.l.b16 %v186
    %v208 = vunpack.c.h.b16 %v186
    %v209 = vunpack.c.l.b16 %v187
    %v210 = vunpack.c.h.b16 %v187
    %v211 = vunpack.c.l.b16 %v188
    %v212 = vunpack.c.h.b16 %v188
    %v213 = vunpack.c.l.b16 %v189
    %v214 = vunpack.c.h.b16 %v189
    %v215 = vunpack.c.l.b16 %v190
    %v216 = vunpack.c.h.b16 %v190
    %v217 = vunpack.c.l.b16 %v191
    %v218 = vunpack.c.h.b16 %v191
    %v219 = vunpack.c.l.b16 %v192
    %v220 = vunpack.c.h.b16 %v192
    %v221 = vunpack.c.l.b16 %v193
    %v222 = vunpack.c.h.b16 %v193
    %v223 = vpack.c.b16 %v211, %v205
    %v224 = vpack.c.b16 %v212, %v206
    %v225 = vpack.c.b16 %v213, %v207
    %v226 = vpack.c.b16 %v214, %v208
    %v227 = vpack.c.b16 %v215, %v209
    %v228 = vpack.c.b16 %v216, %v210
    %v229 = vpack.c.b16 %v217, %v217
    %v230 = vpack.c.b16 %v218, %v218
    %v231 = vpack.c.b16 %v219, %v219
    %v232 = vpack.c.b16 %v220, %v220
    %v233 = vpack.c.b16 %v221, %v221
    %v234 = vpack.c.b16 %v222, %v222
    %vm235 = vcmask 1044480
    %v236 = vrot.slane %v223, 3
    %v237 = vrot.slane %v229, 3
    %v238 = vsel %vm235, %v236, %v237
    %v239 = vrot.slane %v224, 3
    %v240 = vrot.slane %v230, 3
    %v241 = vsel %vm235, %v239, %v240
    %v242 = vrot.slane %v225, 3
    %v243 = vrot.slane %v231, 3
    %v244 = vsel %vm235, %v242, %v243
    %v245 = vrot.slane %v226, 3
    %v246 = vrot.slane %v232, 3
    %v247 = vsel %vm235, %v245, %v246
    %v248 = vrot.slane %v227, 3
    %v249 = vrot.slane %v233, 3
    %v250 = vsel %vm235, %v248, %v249
    %v251 = vrot.slane %v228, 3
    %v252 = vrot.slane %v234, 3
    %v253 = vsel %vm235, %v251, %v252
    %v255 = vsel %vm37, %v194, 0
    %v258 = vsel %vm37, %v195, 0
    %vm260 = vcmask 1046528
    %v262 = vsel %vm260, %v238, 0
    %v265 = vsel %vm260, %v241, 0
    %v268 = vsel %vm260, %v244, 0
    %v271 = vsel %vm260, %v247, 0
    %v274 = vsel %vm260, %v250, 0
    %v277 = vsel %vm260, %v253, 0
    %279 = vmatprep.subr.bf16.mxu0 %v265
    %280 = vmatpush1.bf16.msra.mxu0 %v262
    %281 = vmatprep.subr.bf16.mxu0 0
    %282 = vmatpush1.bf16.msra.mxu0 0
    %283 = vmatprep.subr.bf16.mxu0 0
    %284 = vmatpush1.bf16.msra.mxu0 0
    %285 = vmatprep.subr.bf16.mxu0 0
    %286 = vmatpush1.bf16.msra.mxu0 0
    %287 = vmatprep.subr.bf16.mxu0 0
    %288 = vmatpush1.bf16.msra.mxu0 0
    %289 = vmatprep.subr.bf16.mxu0 0
    %290 = vmatpush1.bf16.msra.mxu0 0
    %291 = vmatprep.subr.bf16.mxu0 0
    %292 = vmatpush1.bf16.msra.mxu0 0
    %293 = vmatprep.subr.bf16.mxu0 0
    %294 = vmatpush1.bf16.msra.mxu0 0
    %295 = vmatprep.subr.bf16.mxu0 0
    %296 = vmatpush1.bf16.msra.mxu0 0
    %297 = vmatprep.subr.bf16.mxu0 0
    %298 = vmatpush1.bf16.msra.mxu0 0
    %299 = vmatprep.subr.bf16.mxu0 0
    %300 = vmatpush1.bf16.msra.mxu0 0
    %301 = vmatprep.subr.bf16.mxu0 0
    %302 = vmatpush1.bf16.msra.mxu0 0
    %303 = vmatprep.subr.bf16.mxu0 0
    %304 = vmatpush1.bf16.msra.mxu0 0
    %305 = vmatprep.subr.bf16.mxu0 0
    %306 = vmatpush1.bf16.msra.mxu0 0
    %307 = vmatprep.subr.bf16.mxu0 0
    %308 = vmatpush1.bf16.msra.mxu0 0
    %309 = vmatprep.subr.bf16.mxu0 0
    %310 = vmatpush1.bf16.msra.mxu0 0
    %311 = vmatprep.mubr.bf16.mxu0 0
    %312 = vmatmul.mubr.bf16.gmra.mrb[0].mxu0 %v255
    %v313 = vpop.f32.mrb[0].mxu0
    %v314 = vadd.f32 0.0, %v313
    %v315 = vpop.f32.mrb[0].mxu0
    %v316 = vadd.f32 0.0, %v315
    %v317 = vpop.f32.mrb[0].mxu0
    %v318 = vadd.f32 0.0, %v317
    %v319 = vpop.f32.mrb[0].mxu0
    %v320 = vadd.f32 0.0, %v319
    %321 = vmatprep.mubr.bf16.mxu0 0
    %322 = vmatmul.mubr.bf16.gmra.mrb[0].mxu0 %v258
    %v323 = vpop.f32.mrb[0].mxu0
    %v324 = vadd.f32 0.0, %v323
    %v325 = vpop.f32.mrb[0].mxu0
    %v326 = vadd.f32 0.0, %v325
    %v327 = vpop.f32.mrb[0].mxu0
    %v328 = vpop.f32.mrb[0].mxu0
    %329 = vdwg.mxu0
    %330 = vmatprep.subr.bf16.mxu0 %v271
    %331 = vmatpush1.bf16.msra.mxu0 %v268
    %332 = vmatprep.subr.bf16.mxu0 0
    %333 = vmatpush1.bf16.msra.mxu0 0
    %334 = vmatprep.subr.bf16.mxu0 0
    %335 = vmatpush1.bf16.msra.mxu0 0
    %336 = vmatprep.subr.bf16.mxu0 0
    %337 = vmatpush1.bf16.msra.mxu0 0
    %338 = vmatprep.subr.bf16.mxu0 0
    %339 = vmatpush1.bf16.msra.mxu0 0
    %340 = vmatprep.subr.bf16.mxu0 0
    %341 = vmatpush1.bf16.msra.mxu0 0
    %342 = vmatprep.subr.bf16.mxu0 0
    %343 = vmatpush1.bf16.msra.mxu0 0
    %344 = vmatprep.subr.bf16.mxu0 0
    %345 = vmatpush1.bf16.msra.mxu0 0
    %346 = vmatprep.subr.bf16.mxu0 0
    %347 = vmatpush1.bf16.msra.mxu0 0
    %348 = vmatprep.subr.bf16.mxu0 0
    %349 = vmatpush1.bf16.msra.mxu0 0
    %350 = vmatprep.subr.bf16.mxu0 0
    %351 = vmatpush1.bf16.msra.mxu0 0
    %352 = vmatprep.subr.bf16.mxu0 0
    %353 = vmatpush1.bf16.msra.mxu0 0
    %354 = vmatprep.subr.bf16.mxu0 0
    %355 = vmatpush1.bf16.msra.mxu0 0
    %356 = vmatprep.subr.bf16.mxu0 0
    %357 = vmatpush1.bf16.msra.mxu0 0
    %358 = vmatprep.subr.bf16.mxu0 0
    %359 = vmatpush1.bf16.msra.mxu0 0
    %360 = vmatprep.subr.bf16.mxu0 0
    %361 = vmatpush1.bf16.msra.mxu0 0
    %362 = vmatprep.mubr.bf16.mxu0 0
    %363 = vmatmul.mubr.bf16.gmra.mrb[0].mxu0 %v255
    %v364 = vpop.f32.mrb[0].mxu0
    %v365 = vadd.f32 0.0, %v364
    %v366 = vpop.f32.mrb[0].mxu0
    %v367 = vadd.f32 0.0, %v366
    %v368 = vpop.f32.mrb[0].mxu0
    %v369 = vadd.f32 0.0, %v368
    %v370 = vpop.f32.mrb[0].mxu0
    %v371 = vadd.f32 0.0, %v370
    %372 = vmatprep.mubr.bf16.mxu0 0
    %373 = vmatmul.mubr.bf16.gmra.mrb[0].mxu0 %v258
    %v374 = vpop.f32.mrb[0].mxu0
    %v375 = vadd.f32 0.0, %v374
    %v376 = vpop.f32.mrb[0].mxu0
    %v377 = vadd.f32 0.0, %v376
    %v378 = vpop.f32.mrb[0].mxu0
    %v379 = vpop.f32.mrb[0].mxu0
    %380 = vdwg.mxu0
    %381 = vmatprep.subr.bf16.mxu0 %v277
    %382 = vmatpush1.bf16.msra.mxu0 %v274
    %383 = vmatprep.subr.bf16.mxu0 0
    %384 = vmatpush1.bf16.msra.mxu0 0
    %385 = vmatprep.subr.bf16.mxu0 0
    %386 = vmatpush1.bf16.msra.mxu0 0
    %387 = vmatprep.subr.bf16.mxu0 0
    %388 = vmatpush1.bf16.msra.mxu0 0
    %389 = vmatprep.subr.bf16.mxu0 0
    %390 = vmatpush1.bf16.msra.mxu0 0
    %391 = vmatprep.subr.bf16.mxu0 0
    %392 = vmatpush1.bf16.msra.mxu0 0
    %393 = vmatprep.subr.bf16.mxu0 0
    %394 = vmatpush1.bf16.msra.mxu0 0
    %395 = vmatprep.subr.bf16.mxu0 0
    %396 = vmatpush1.bf16.msra.mxu0 0
    %397 = vmatprep.subr.bf16.mxu0 0
    %398 = vmatpush1.bf16.msra.mxu0 0
    %399 = vmatprep.subr.bf16.mxu0 0
    %400 = vmatpush1.bf16.msra.mxu0 0
    %401 = vmatprep.subr.bf16.mxu0 0
    %402 = vmatpush1.bf16.msra.mxu0 0
    %403 = vmatprep.subr.bf16.mxu0 0
    %404 = vmatpush1.bf16.msra.mxu0 0
    %405 = vmatprep.subr.bf16.mxu0 0
    %406 = vmatpush1.bf16.msra.mxu0 0
    %407 = vmatprep.subr.bf16.mxu0 0
    %408 = vmatpush1.bf16.msra.mxu0 0
    %409 = vmatprep.subr.bf16.mxu0 0
    %410 = vmatpush1.bf16.msra.mxu0 0
    %411 = vmatprep.subr.bf16.mxu0 0
    %412 = vmatpush1.bf16.msra.mxu0 0
    %413 = vmatprep.mubr.bf16.mxu0 0
    %414 = vmatmul.mubr.bf16.gmra.mrb[0].mxu0 %v255
    %v415 = vpop.f32.mrb[0].mxu0
    %v416 = vadd.f32 0.0, %v415
    %v417 = vpop.f32.mrb[0].mxu0
    %v418 = vadd.f32 0.0, %v417
    %v419 = vpop.f32.mrb[0].mxu0
    %v420 = vadd.f32 0.0, %v419
    %v421 = vpop.f32.mrb[0].mxu0
    %v422 = vadd.f32 0.0, %v421
    %423 = vmatprep.mubr.bf16.mxu0 0
    %424 = vmatmul.mubr.bf16.gmra.mrb[0].mxu0 %v258
    %v425 = vpop.f32.mrb[0].mxu0
    %v426 = vadd.f32 0.0, %v425
    %v427 = vpop.f32.mrb[0].mxu0
    %v428 = vadd.f32 0.0, %v427
    %v429 = vpop.f32.mrb[0].mxu0
    %v430 = vpop.f32.mrb[0].mxu0
    %431 = vdwg.mxu0
    %v438 = vunpack.c.l.b16 %v177
    %v439 = vunpack.c.h.b16 %v177
    %v440 = vunpack.c.l.b16 %v178
    %v441 = vunpack.c.h.b16 %v178
    %v442 = vunpack.c.l.b16 %v179
    %v443 = vunpack.c.h.b16 %v179
    %v444 = vunpack.c.l.b16 %v180
    %v445 = vunpack.c.h.b16 %v180
    %v446 = vunpack.c.l.b16 %v181
    %v447 = vunpack.c.h.b16 %v181
    %v448 = vunpack.c.l.b16 %v182
    %v449 = vunpack.c.h.b16 %v182
    %v450 = vpack.c.b16 %v444, %v438
    %v451 = vpack.c.b16 %v445, %v439
    %v452 = vpack.c.b16 %v446, %v440
    %v453 = vpack.c.b16 %v447, %v441
    %v454 = vpack.c.b16 %v448, %v442
    %v455 = vpack.c.b16 %v449, %v443
    %v457 = vsel %vm37, %v183, 0
    %v460 = vsel %vm37, %v184, 0
    %v463 = vsel %vm260, %v450, 0
    %v466 = vsel %vm260, %v451, 0
    %v469 = vsel %vm260, %v452, 0
    %v472 = vsel %vm260, %v453, 0
    %v475 = vsel %vm260, %v454, 0
    %v478 = vsel %vm260, %v455, 0
    %480 = vmatprep.subr.bf16.mxu0 %v466
    %481 = vmatpush1.bf16.msra.mxu0 %v463
    %482 = vmatprep.subr.bf16.mxu0 0
    %483 = vmatpush1.bf16.msra.mxu0 0
    %484 = vmatprep.subr.bf16.mxu0 0
    %485 = vmatpush1.bf16.msra.mxu0 0
    %486 = vmatprep.subr.bf16.mxu0 0
    %487 = vmatpush1.bf16.msra.mxu0 0
    %488 = vmatprep.subr.bf16.mxu0 0
    %489 = vmatpush1.bf16.msra.mxu0 0
    %490 = vmatprep.subr.bf16.mxu0 0
    %491 = vmatpush1.bf16.msra.mxu0 0
    %492 = vmatprep.subr.bf16.mxu0 0
    %493 = vmatpush1.bf16.msra.mxu0 0
    %494 = vmatprep.subr.bf16.mxu0 0
    %495 = vmatpush1.bf16.msra.mxu0 0
    %496 = vmatprep.subr.bf16.mxu0 0
    %497 = vmatpush1.bf16.msra.mxu0 0
    %498 = vmatprep.subr.bf16.mxu0 0
    %499 = vmatpush1.bf16.msra.mxu0 0
    %500 = vmatprep.subr.bf16.mxu0 0
    %501 = vmatpush1.bf16.msra.mxu0 0
    %502 = vmatprep.subr.bf16.mxu0 0
    %503 = vmatpush1.bf16.msra.mxu0 0
    %504 = vmatprep.subr.bf16.mxu0 0
    %505 = vmatpush1.bf16.msra.mxu0 0
    %506 = vmatprep.subr.bf16.mxu0 0
    %507 = vmatpush1.bf16.msra.mxu0 0
    %508 = vmatprep.subr.bf16.mxu0 0
    %509 = vmatpush1.bf16.msra.mxu0 0
    %510 = vmatprep.subr.bf16.mxu0 0
    %511 = vmatpush1.bf16.msra.mxu0 0
    %512 = vmatprep.mubr.bf16.mxu0 0
    %513 = vmatmul.mubr.bf16.gmra.mrb[0].mxu0 %v457
    %v514 = vpop.f32.mrb[0].mxu0
    %v515 = vadd.f32 %v314, %v514
    %v516 = vpop.f32.mrb[0].mxu0
    %v517 = vadd.f32 %v316, %v516
    %v518 = vpop.f32.mrb[0].mxu0
    %v519 = vadd.f32 %v318, %v518
    %v520 = vpop.f32.mrb[0].mxu0
    %v521 = vadd.f32 %v320, %v520
    %522 = vmatprep.mubr.bf16.mxu0 0
    %523 = vmatmul.mubr.bf16.gmra.mrb[0].mxu0 %v460
    %v524 = vpop.f32.mrb[0].mxu0
    %v525 = vadd.f32 %v324, %v524
    %v526 = vpop.f32.mrb[0].mxu0
    %v527 = vadd.f32 %v326, %v526
    %v528 = vpop.f32.mrb[0].mxu0
    %v529 = vpop.f32.mrb[0].mxu0
    %530 = vdwg.mxu0
    %531 = vmatprep.subr.bf16.mxu0 %v472
    %532 = vmatpush1.bf16.msra.mxu0 %v469
    %533 = vmatprep.subr.bf16.mxu0 0
    %534 = vmatpush1.bf16.msra.mxu0 0
    %535 = vmatprep.subr.bf16.mxu0 0
    %536 = vmatpush1.bf16.msra.mxu0 0
    %537 = vmatprep.subr.bf16.mxu0 0
    %538 = vmatpush1.bf16.msra.mxu0 0
    %539 = vmatprep.subr.bf16.mxu0 0
    %540 = vmatpush1.bf16.msra.mxu0 0
    %541 = vmatprep.subr.bf16.mxu0 0
    %542 = vmatpush1.bf16.msra.mxu0 0
    %543 = vmatprep.subr.bf16.mxu0 0
    %544 = vmatpush1.bf16.msra.mxu0 0
    %545 = vmatprep.subr.bf16.mxu0 0
    %546 = vmatpush1.bf16.msra.mxu0 0
    %547 = vmatprep.subr.bf16.mxu0 0
    %548 = vmatpush1.bf16.msra.mxu0 0
    %549 = vmatprep.subr.bf16.mxu0 0
    %550 = vmatpush1.bf16.msra.mxu0 0
    %551 = vmatprep.subr.bf16.mxu0 0
    %552 = vmatpush1.bf16.msra.mxu0 0
    %553 = vmatprep.subr.bf16.mxu0 0
    %554 = vmatpush1.bf16.msra.mxu0 0
    %555 = vmatprep.subr.bf16.mxu0 0
    %556 = vmatpush1.bf16.msra.mxu0 0
    %557 = vmatprep.subr.bf16.mxu0 0
    %558 = vmatpush1.bf16.msra.mxu0 0
    %559 = vmatprep.subr.bf16.mxu0 0
    %560 = vmatpush1.bf16.msra.mxu0 0
    %561 = vmatprep.subr.bf16.mxu0 0
    %562 = vmatpush1.bf16.msra.mxu0 0
    %563 = vmatprep.mubr.bf16.mxu0 0
    %564 = vmatmul.mubr.bf16.gmra.mrb[0].mxu0 %v457
    %v565 = vpop.f32.mrb[0].mxu0
    %v566 = vadd.f32 %v365, %v565
    %v567 = vpop.f32.mrb[0].mxu0
    %v568 = vadd.f32 %v367, %v567
    %v569 = vpop.f32.mrb[0].mxu0
    %v570 = vadd.f32 %v369, %v569
    %v571 = vpop.f32.mrb[0].mxu0
    %v572 = vadd.f32 %v371, %v571
    %573 = vmatprep.mubr.bf16.mxu0 0
    %574 = vmatmul.mubr.bf16.gmra.mrb[0].mxu0 %v460
    %v575 = vpop.f32.mrb[0].mxu0
    %v576 = vadd.f32 %v375, %v575
    %v577 = vpop.f32.mrb[0].mxu0
    %v578 = vadd.f32 %v377, %v577
    %v579 = vpop.f32.mrb[0].mxu0
    %v580 = vpop.f32.mrb[0].mxu0
    %581 = vdwg.mxu0
    %582 = vmatprep.subr.bf16.mxu0 %v478
    %583 = vmatpush1.bf16.msra.mxu0 %v475
    %584 = vmatprep.subr.bf16.mxu0 0
    %585 = vmatpush1.bf16.msra.mxu0 0
    %586 = vmatprep.subr.bf16.mxu0 0
    %587 = vmatpush1.bf16.msra.mxu0 0
    %588 = vmatprep.subr.bf16.mxu0 0
    %589 = vmatpush1.bf16.msra.mxu0 0
    %590 = vmatprep.subr.bf16.mxu0 0
    %591 = vmatpush1.bf16.msra.mxu0 0
    %592 = vmatprep.subr.bf16.mxu0 0
    %593 = vmatpush1.bf16.msra.mxu0 0
    %594 = vmatprep.subr.bf16.mxu0 0
    %595 = vmatpush1.bf16.msra.mxu0 0
    %596 = vmatprep.subr.bf16.mxu0 0
    %597 = vmatpush1.bf16.msra.mxu0 0
    %598 = vmatprep.subr.bf16.mxu0 0
    %599 = vmatpush1.bf16.msra.mxu0 0
    %600 = vmatprep.subr.bf16.mxu0 0
    %601 = vmatpush1.bf16.msra.mxu0 0
    %602 = vmatprep.subr.bf16.mxu0 0
    %603 = vmatpush1.bf16.msra.mxu0 0
    %604 = vmatprep.subr.bf16.mxu0 0
    %605 = vmatpush1.bf16.msra.mxu0 0
    %606 = vmatprep.subr.bf16.mxu0 0
    %607 = vmatpush1.bf16.msra.mxu0 0
    %608 = vmatprep.subr.bf16.mxu0 0
    %609 = vmatpush1.bf16.msra.mxu0 0
    %610 = vmatprep.subr.bf16.mxu0 0
    %611 = vmatpush1.bf16.msra.mxu0 0
    %612 = vmatprep.subr.bf16.mxu0 0
    %613 = vmatpush1.bf16.msra.mxu0 0
    %614 = vmatprep.mubr.bf16.mxu0 0
    %615 = vmatmul.mubr.bf16.gmra.mrb[0].mxu0 %v457
    %v616 = vpop.f32.mrb[0].mxu0
    %v617 = vadd.f32 %v416, %v616
    %v618 = vpop.f32.mrb[0].mxu0
    %v619 = vadd.f32 %v418, %v618
    %v620 = vpop.f32.mrb[0].mxu0
    %v621 = vadd.f32 %v420, %v620
    %v622 = vpop.f32.mrb[0].mxu0
    %v623 = vadd.f32 %v422, %v622
    %624 = vmatprep.mubr.bf16.mxu0 0
    %625 = vmatmul.mubr.bf16.gmra.mrb[0].mxu0 %v460
    %v626 = vpop.f32.mrb[0].mxu0
    %v627 = vadd.f32 %v426, %v626
    %v628 = vpop.f32.mrb[0].mxu0
    %v629 = vadd.f32 %v428, %v628
    %v630 = vpop.f32.mrb[0].mxu0
    %v631 = vpop.f32.mrb[0].mxu0
    %632 = vdwg.mxu0
    %v633 = vld [vmem:[%s1 + $0x48] sm:$0xcc]
    %v634 = vld [vmem:[%s1 + $0x50] sm:$0xcc]
    %v635 = vld [vmem:[%s1 + $0x58] sm:$0xcc]
    %v636 = vld [vmem:[%s1 + $0x60] sm:$0xff]
    %v637 = vld [vmem:[%s1 + $0x68] sm:$0xff]
    %v638 = vld [vmem:[%s1 + $0x70] sm:$0xff]
    %v639 = vld [vmem:[%s1 + $0x78] sm:$0x11]
    %v640 = vld [vmem:[%s1 + $0x80] sm:$0x11]
    %v641 = vld [vmem:[%s1 + $0x88] sm:$0x11]
    %v642 = vpack.c.bf16 %v175, %v174
    %v643 = vpack.c.bf16 %v176, %v176
    %v653 = vunpack.c.l.b16 %v633
    %v654 = vunpack.c.h.b16 %v633
    %v655 = vunpack.c.l.b16 %v634
    %v656 = vunpack.c.h.b16 %v634
    %v657 = vunpack.c.l.b16 %v635
    %v658 = vunpack.c.h.b16 %v635
    %v659 = vunpack.c.l.b16 %v636
    %v660 = vunpack.c.h.b16 %v636
    %v661 = vunpack.c.l.b16 %v637
    %v662 = vunpack.c.h.b16 %v637
    %v663 = vunpack.c.l.b16 %v638
    %v664 = vunpack.c.h.b16 %v638
    %v665 = vunpack.c.l.b16 %v639
    %v666 = vunpack.c.h.b16 %v639
    %v667 = vunpack.c.l.b16 %v640
    %v668 = vunpack.c.h.b16 %v640
    %v669 = vunpack.c.l.b16 %v641
    %v670 = vunpack.c.h.b16 %v641
    %v671 = vpack.c.b16 %v659, %v653
    %v672 = vpack.c.b16 %v660, %v654
    %v673 = vpack.c.b16 %v661, %v655
    %v674 = vpack.c.b16 %v662, %v656
    %v675 = vpack.c.b16 %v663, %v657
    %v676 = vpack.c.b16 %v664, %v658
    %v677 = vpack.c.b16 %v665, %v665
    %v678 = vpack.c.b16 %v666, %v666
    %v679 = vpack.c.b16 %v667, %v667
    %v680 = vpack.c.b16 %v668, %v668
    %v681 = vpack.c.b16 %v669, %v669
    %v682 = vpack.c.b16 %v670, %v670
    %vm683 = vcmask 1045504
    %v684 = vrot.slane %v671, 2
    %v685 = vrot.slane %v677, 2
    %v686 = vsel %vm683, %v684, %v685
    %v687 = vrot.slane %v672, 2
    %v688 = vrot.slane %v678, 2
    %v689 = vsel %vm683, %v687, %v688
    %v690 = vrot.slane %v673, 2
    %v691 = vrot.slane %v679, 2
    %v692 = vsel %vm683, %v690, %v691
    %v693 = vrot.slane %v674, 2
    %v694 = vrot.slane %v680, 2
    %v695 = vsel %vm683, %v693, %v694
    %v696 = vrot.slane %v675, 2
    %v697 = vrot.slane %v681, 2
    %v698 = vsel %vm683, %v696, %v697
    %v699 = vrot.slane %v676, 2
    %v700 = vrot.slane %v682, 2
    %v701 = vsel %vm683, %v699, %v700
    %v703 = vsel %vm37, %v642, 0
    %v706 = vsel %vm37, %v643, 0
    %v709 = vsel %vm260, %v686, 0
    %v712 = vsel %vm260, %v689, 0
    %v715 = vsel %vm260, %v692, 0
    %v718 = vsel %vm260, %v695, 0
    %v721 = vsel %vm260, %v698, 0
    %v724 = vsel %vm260, %v701, 0
    %726 = vmatprep.subr.bf16.mxu0 %v712
    %727 = vmatpush1.bf16.msra.mxu0 %v709
    %728 = vmatprep.subr.bf16.mxu0 0
    %729 = vmatpush1.bf16.msra.mxu0 0
    %730 = vmatprep.subr.bf16.mxu0 0
    %731 = vmatpush1.bf16.msra.mxu0 0
    %732 = vmatprep.subr.bf16.mxu0 0
    %733 = vmatpush1.bf16.msra.mxu0 0
    %734 = vmatprep.subr.bf16.mxu0 0
    %735 = vmatpush1.bf16.msra.mxu0 0
    %736 = vmatprep.subr.bf16.mxu0 0
    %737 = vmatpush1.bf16.msra.mxu0 0
    %738 = vmatprep.subr.bf16.mxu0 0
    %739 = vmatpush1.bf16.msra.mxu0 0
    %740 = vmatprep.subr.bf16.mxu0 0
    %741 = vmatpush1.bf16.msra.mxu0 0
    %742 = vmatprep.subr.bf16.mxu0 0
    %743 = vmatpush1.bf16.msra.mxu0 0
    %744 = vmatprep.subr.bf16.mxu0 0
    %745 = vmatpush1.bf16.msra.mxu0 0
    %746 = vmatprep.subr.bf16.mxu0 0
    %747 = vmatpush1.bf16.msra.mxu0 0
    %748 = vmatprep.subr.bf16.mxu0 0
    %749 = vmatpush1.bf16.msra.mxu0 0
    %750 = vmatprep.subr.bf16.mxu0 0
    %751 = vmatpush1.bf16.msra.mxu0 0
    %752 = vmatprep.subr.bf16.mxu0 0
    %753 = vmatpush1.bf16.msra.mxu0 0
    %754 = vmatprep.subr.bf16.mxu0 0
    %755 = vmatpush1.bf16.msra.mxu0 0
    %756 = vmatprep.subr.bf16.mxu0 0
    %757 = vmatpush1.bf16.msra.mxu0 0
    %758 = vmatprep.mubr.bf16.mxu0 0
    %759 = vmatmul.mubr.bf16.gmra.mrb[0].mxu0 %v703
    %v760 = vpop.f32.mrb[0].mxu0
    %v761 = vadd.f32 0.0, %v760
    %v762 = vpop.f32.mrb[0].mxu0
    %v763 = vadd.f32 0.0, %v762
    %v764 = vpop.f32.mrb[0].mxu0
    %v765 = vadd.f32 0.0, %v764
    %v766 = vpop.f32.mrb[0].mxu0
    %v767 = vadd.f32 0.0, %v766
    %768 = vmatprep.mubr.bf16.mxu0 0
    %769 = vmatmul.mubr.bf16.gmra.mrb[0].mxu0 %v706
    %v770 = vpop.f32.mrb[0].mxu0
    %v771 = vadd.f32 0.0, %v770
    %v772 = vpop.f32.mrb[0].mxu0
    %v773 = vadd.f32 0.0, %v772
    %v774 = vpop.f32.mrb[0].mxu0
    %v775 = vpop.f32.mrb[0].mxu0
    %776 = vdwg.mxu0
    %777 = vmatprep.subr.bf16.mxu0 %v718
    %778 = vmatpush1.bf16.msra.mxu0 %v715
    %779 = vmatprep.subr.bf16.mxu0 0
    %780 = vmatpush1.bf16.msra.mxu0 0
    %781 = vmatprep.subr.bf16.mxu0 0
    %782 = vmatpush1.bf16.msra.mxu0 0
    %783 = vmatprep.subr.bf16.mxu0 0
    %784 = vmatpush1.bf16.msra.mxu0 0
    %785 = vmatprep.subr.bf16.mxu0 0
    %786 = vmatpush1.bf16.msra.mxu0 0
    %787 = vmatprep.subr.bf16.mxu0 0
    %788 = vmatpush1.bf16.msra.mxu0 0
    %789 = vmatprep.subr.bf16.mxu0 0
    %790 = vmatpush1.bf16.msra.mxu0 0
    %791 = vmatprep.subr.bf16.mxu0 0
    %792 = vmatpush1.bf16.msra.mxu0 0
    %793 = vmatprep.subr.bf16.mxu0 0
    %794 = vmatpush1.bf16.msra.mxu0 0
    %795 = vmatprep.subr.bf16.mxu0 0
    %796 = vmatpush1.bf16.msra.mxu0 0
    %797 = vmatprep.subr.bf16.mxu0 0
    %798 = vmatpush1.bf16.msra.mxu0 0
    %799 = vmatprep.subr.bf16.mxu0 0
    %800 = vmatpush1.bf16.msra.mxu0 0
    %801 = vmatprep.subr.bf16.mxu0 0
    %802 = vmatpush1.bf16.msra.mxu0 0
    %803 = vmatprep.subr.bf16.mxu0 0
    %804 = vmatpush1.bf16.msra.mxu0 0
    %805 = vmatprep.subr.bf16.mxu0 0
    %806 = vmatpush1.bf16.msra.mxu0 0
    %807 = vmatprep.subr.bf16.mxu0 0
    %808 = vmatpush1.bf16.msra.mxu0 0
    %809 = vmatprep.mubr.bf16.mxu0 0
    %810 = vmatmul.mubr.bf16.gmra.mrb[0].mxu0 %v703
    %v811 = vpop.f32.mrb[0].mxu0
    %v812 = vadd.f32 0.0, %v811
    %v813 = vpop.f32.mrb[0].mxu0
    %v814 = vadd.f32 0.0, %v813
    %v815 = vpop.f32.mrb[0].mxu0
    %v816 = vadd.f32 0.0, %v815
    %v817 = vpop.f32.mrb[0].mxu0
    %v818 = vadd.f32 0.0, %v817
    %819 = vmatprep.mubr.bf16.mxu0 0
    %820 = vmatmul.mubr.bf16.gmra.mrb[0].mxu0 %v706
    %v821 = vpop.f32.mrb[0].mxu0
    %v822 = vadd.f32 0.0, %v821
    %v823 = vpop.f32.mrb[0].mxu0
    %v824 = vadd.f32 0.0, %v823
    %v825 = vpop.f32.mrb[0].mxu0
    %v826 = vpop.f32.mrb[0].mxu0
    %827 = vdwg.mxu0
    %828 = vmatprep.subr.bf16.mxu0 %v724
    %829 = vmatpush1.bf16.msra.mxu0 %v721
    %830 = vmatprep.subr.bf16.mxu0 0
    %831 = vmatpush1.bf16.msra.mxu0 0
    %832 = vmatprep.subr.bf16.mxu0 0
    %833 = vmatpush1.bf16.msra.mxu0 0
    %834 = vmatprep.subr.bf16.mxu0 0
    %835 = vmatpush1.bf16.msra.mxu0 0
    %836 = vmatprep.subr.bf16.mxu0 0
    %837 = vmatpush1.bf16.msra.mxu0 0
    %838 = vmatprep.subr.bf16.mxu0 0
    %839 = vmatpush1.bf16.msra.mxu0 0
    %840 = vmatprep.subr.bf16.mxu0 0
    %841 = vmatpush1.bf16.msra.mxu0 0
    %842 = vmatprep.subr.bf16.mxu0 0
    %843 = vmatpush1.bf16.msra.mxu0 0
    %844 = vmatprep.subr.bf16.mxu0 0
    %845 = vmatpush1.bf16.msra.mxu0 0
    %846 = vmatprep.subr.bf16.mxu0 0
    %847 = vmatpush1.bf16.msra.mxu0 0
    %848 = vmatprep.subr.bf16.mxu0 0
    %849 = vmatpush1.bf16.msra.mxu0 0
    %850 = vmatprep.subr.bf16.mxu0 0
    %851 = vmatpush1.bf16.msra.mxu0 0
    %852 = vmatprep.subr.bf16.mxu0 0
    %853 = vmatpush1.bf16.msra.mxu0 0
    %854 = vmatprep.subr.bf16.mxu0 0
    %855 = vmatpush1.bf16.msra.mxu0 0
    %856 = vmatprep.subr.bf16.mxu0 0
    %857 = vmatpush1.bf16.msra.mxu0 0
    %858 = vmatprep.subr.bf16.mxu0 0
    %859 = vmatpush1.bf16.msra.mxu0 0
    %860 = vmatprep.mubr.bf16.mxu0 0
    %861 = vmatmul.mubr.bf16.gmra.mrb[0].mxu0 %v703
    %v862 = vpop.f32.mrb[0].mxu0
    %v863 = vadd.f32 0.0, %v862
    %v864 = vpop.f32.mrb[0].mxu0
    %v865 = vadd.f32 0.0, %v864
    %v866 = vpop.f32.mrb[0].mxu0
    %v867 = vadd.f32 0.0, %v866
    %v868 = vpop.f32.mrb[0].mxu0
    %v869 = vadd.f32 0.0, %v868
    %870 = vmatprep.mubr.bf16.mxu0 0
    %871 = vmatmul.mubr.bf16.gmra.mrb[0].mxu0 %v706
    %v872 = vpop.f32.mrb[0].mxu0
    %v873 = vadd.f32 0.0, %v872
    %v874 = vpop.f32.mrb[0].mxu0
    %v875 = vadd.f32 0.0, %v874
    %v876 = vpop.f32.mrb[0].mxu0
    %v877 = vpop.f32.mrb[0].mxu0
    %878 = vdwg.mxu0
    %v879 = vadd.f32 %v515, %v761
    %v880 = vadd.f32 %v517, %v763
    %v881 = vadd.f32 %v566, %v812
    %v882 = vadd.f32 %v568, %v814
    %v883 = vadd.f32 %v617, %v863
    %v884 = vadd.f32 %v619, %v865
    %v885 = vadd.f32 %v519, %v765
    %v886 = vadd.f32 %v521, %v767
    %v887 = vadd.f32 %v570, %v816
    %v888 = vadd.f32 %v572, %v818
    %v889 = vadd.f32 %v621, %v867
    %v890 = vadd.f32 %v623, %v869
    %v891 = vadd.f32 %v525, %v771
    %v892 = vadd.f32 %v527, %v773
    %v893 = vadd.f32 %v576, %v822
    %v894 = vadd.f32 %v578, %v824
    %v895 = vadd.f32 %v627, %v873
    %v896 = vadd.f32 %v629, %v875
    %897 = vst [vmem:[#allocation2] sm:$0xff] %v879
    %898 = vst [vmem:[#allocation2 + $0x8] sm:$0xff] %v880
    %899 = vst [vmem:[#allocation2 + $0x10] sm:$0xff] %v881
    %900 = vst [vmem:[#allocation2 + $0x18] sm:$0xff] %v882
    %901 = vst [vmem:[#allocation2 + $0x20] sm:$0xff] %v883
    %902 = vst [vmem:[#allocation2 + $0x28] sm:$0xff] %v884
    %903 = vst [vmem:[#allocation2 + $0x30] sm:$0xff] %v885
    %904 = vst [vmem:[#allocation2 + $0x38] sm:$0xff] %v886
    %905 = vst [vmem:[#allocation2 + $0x40] sm:$0xff] %v887
    %906 = vst [vmem:[#allocation2 + $0x48] sm:$0xff] %v888
    %907 = vst [vmem:[#allocation2 + $0x50] sm:$0xff] %v889
    %908 = vst [vmem:[#allocation2 + $0x58] sm:$0xff] %v890
    %909 = vst [vmem:[#allocation2 + $0x60] sm:$0xff] %v891
    %910 = vst [vmem:[#allocation2 + $0x68] sm:$0xff] %v892
    %911 = vst [vmem:[#allocation2 + $0x70] sm:$0xff] %v893
    %912 = vst [vmem:[#allocation2 + $0x78] sm:$0xff] %v894
    %913 = vst [vmem:[#allocation2 + $0x80] sm:$0xff] %v895
    %914 = vst [vmem:[#allocation2 + $0x88] sm:$0xff] %v896
    %v915 = vld [vmem:[#allocation2] sm:$0xff]
    %v916 = vld [vmem:[#allocation2 + $0x8] sm:$0xff]
    %v917 = vld [vmem:[#allocation2 + $0x10] sm:$0xff]
    %v918 = vld [vmem:[#allocation2 + $0x18] sm:$0xff]
    %v919 = vld [vmem:[#allocation2 + $0x20] sm:$0xff]
    %v920 = vld [vmem:[#allocation2 + $0x28] sm:$0xff]
    %v921 = vld [vmem:[#allocation2 + $0x30] sm:$0xff]
    %v922 = vld [vmem:[#allocation2 + $0x38] sm:$0xff]
    %v923 = vld [vmem:[#allocation2 + $0x40] sm:$0xff]
    %v924 = vld [vmem:[#allocation2 + $0x48] sm:$0xff]
    %v925 = vld [vmem:[#allocation2 + $0x50] sm:$0xff]
    %v926 = vld [vmem:[#allocation2 + $0x58] sm:$0xff]
    %v927 = vld [vmem:[#allocation2 + $0x60] sm:$0xff]
    %v928 = vld [vmem:[#allocation2 + $0x68] sm:$0xff]
    %v929 = vld [vmem:[#allocation2 + $0x70] sm:$0xff]
    %v930 = vld [vmem:[#allocation2 + $0x78] sm:$0xff]
    %v931 = vld [vmem:[#allocation2 + $0x80] sm:$0xff]
    %v932 = vld [vmem:[#allocation2 + $0x88] sm:$0xff]
    %v933 = vadd.f32 %v915, %v921
    %v934 = vadd.f32 %v933, %v927
    %v935 = vrot.slane %v934, 4
    %v936 = vadd.f32 %v934, %v935
    %v937 = vrot.slane %v936, 2
    %v938 = vadd.f32 %v936, %v937
    %v939 = vrot.slane %v938, 1
    %v940 = vadd.f32 %v938, %v939
    %v941 = vadd.f32 %v916, %v922
    %v942 = vadd.f32 %v941, %v928
    %v943 = vrot.slane %v942, 4
    %v944 = vadd.f32 %v942, %v943
    %v945 = vrot.slane %v944, 2
    %v946 = vadd.f32 %v944, %v945
    %v947 = vrot.slane %v946, 1
    %v948 = vadd.f32 %v946, %v947
    %v949 = vadd.f32 %v917, %v923
    %v950 = vadd.f32 %v949, %v929
    %v951 = vrot.slane %v950, 4
    %v952 = vadd.f32 %v950, %v951
    %v953 = vrot.slane %v952, 2
    %v954 = vadd.f32 %v952, %v953
    %v955 = vrot.slane %v954, 1
    %v956 = vadd.f32 %v954, %v955
    %v957 = vadd.f32 %v918, %v924
    %v958 = vadd.f32 %v957, %v930
    %v959 = vrot.slane %v958, 4
    %v960 = vadd.f32 %v958, %v959
    %v961 = vrot.slane %v960, 2
    %v962 = vadd.f32 %v960, %v961
    %v963 = vrot.slane %v962, 1
    %v964 = vadd.f32 %v962, %v963
    %v965 = vadd.f32 %v919, %v925
    %v966 = vadd.f32 %v965, %v931
    %v967 = vrot.slane %v966, 4
    %v968 = vadd.f32 %v966, %v967
    %v969 = vrot.slane %v968, 2
    %v970 = vadd.f32 %v968, %v969
    %v971 = vrot.slane %v970, 1
    %v972 = vadd.f32 %v970, %v971
    %v973 = vadd.f32 %v920, %v926
    %v974 = vadd.f32 %v973, %v932
    %v975 = vrot.slane %v974, 4
    %v976 = vadd.f32 %v974, %v975
    %v977 = vrot.slane %v976, 2
    %v978 = vadd.f32 %v976, %v977
    %v979 = vrot.slane %v978, 1
    %v980 = vadd.f32 %v978, %v979
    %v981 = vld [vmem:[%s3] sm:$0xff]
    %v982 = vld [vmem:[%s3 + $0x8] sm:$0xff]
    %v983 = vld [vmem:[%s3 + $0x10] sm:$0xff]
    %v984 = vld [vmem:[%s3 + $0x18] sm:$0xff]
    %v985 = vld [vmem:[%s3 + $0x20] sm:$0xff]
    %v986 = vld [vmem:[%s3 + $0x28] sm:$0xff]
    %v987 = vld [vmem:[%s3 + $0x30] sm:$0xff]
    %v988 = vld [vmem:[%s3 + $0x38] sm:$0xff]
    %v989 = vld [vmem:[%s3 + $0x40] sm:$0xff]
    %v990 = vld [vmem:[%s3 + $0x48] sm:$0xff]
    %v991 = vld [vmem:[%s3 + $0x50] sm:$0xff]
    %v992 = vld [vmem:[%s3 + $0x58] sm:$0xff]
    %v993 = vld [vmem:[%s3 + $0x60] sm:$0xff]
    %v994 = vld [vmem:[%s3 + $0x68] sm:$0xff]
    %v995 = vld [vmem:[%s3 + $0x70] sm:$0xff]
    %v996 = vld [vmem:[%s3 + $0x78] sm:$0xff]
    %v997 = vld [vmem:[%s3 + $0x80] sm:$0xff]
    %v998 = vld [vmem:[%s3 + $0x88] sm:$0xff]
    %v999 = vld [vmem:[%s3 + $0x90] sm:$0xff]
    %v1000 = vld [vmem:[%s3 + $0x98] sm:$0xff]
    %v1001 = vld [vmem:[%s3 + $0xa0] sm:$0xff]
    %v1002 = vld [vmem:[%s3 + $0xa8] sm:$0xff]
    %v1003 = vld [vmem:[%s3 + $0xb0] sm:$0xff]
    %v1004 = vld [vmem:[%s3 + $0xb8] sm:$0xff]
    %v1005 = vld [vmem:[%s3 + $0xc0] sm:$0xff]
    %v1006 = vld [vmem:[%s3 + $0xc8] sm:$0xff]
    %v1007 = vld [vmem:[%s3 + $0xd0] sm:$0xff]
    %v1008 = vld [vmem:[%s3 + $0xd8] sm:$0xff]
    %v1009 = vld [vmem:[%s3 + $0xe0] sm:$0xff]
    %v1010 = vld [vmem:[%s3 + $0xe8] sm:$0xff]
    %v1011 = vld [vmem:[%s3 + $0xf0] sm:$0xff]
    %v1012 = vld [vmem:[%s3 + $0xf8] sm:$0xff]
    %v1013 = vld [vmem:[%s3 + $0x100] sm:$0xff]
    %v1014 = vld [vmem:[%s3 + $0x108] sm:$0xff]
    %v1015 = vld [vmem:[%s3 + $0x110] sm:$0xff]
    %v1016 = vld [vmem:[%s3 + $0x118] sm:$0xff]
    %v1017 = vld [vmem:[%s3 + $0x120] sm:$0xff]
    %v1018 = vld [vmem:[%s3 + $0x128] sm:$0xff]
    %v1019 = vld [vmem:[%s3 + $0x130] sm:$0xff]
    %v1020 = vld [vmem:[%s3 + $0x138] sm:$0xff]
    %v1021 = vld [vmem:[%s3 + $0x140] sm:$0xff]
    %v1022 = vld [vmem:[%s3 + $0x148] sm:$0xff]
    %v1023 = vld [vmem:[%s3 + $0x150] sm:$0xff]
    %v1024 = vld [vmem:[%s3 + $0x158] sm:$0xff]
    %v1025 = vld [vmem:[%s3 + $0x160] sm:$0xff]
    %v1026 = vld [vmem:[%s3 + $0x168] sm:$0xff]
    %v1027 = vld [vmem:[%s3 + $0x170] sm:$0xff]
    %v1028 = vld [vmem:[%s3 + $0x178] sm:$0xff]
    %v1029 = vld [vmem:[%s3 + $0x180] sm:$0xff]
    %v1030 = vld [vmem:[%s3 + $0x188] sm:$0xff]
    %v1031 = vld [vmem:[%s3 + $0x190] sm:$0xff]
    %v1032 = vld [vmem:[%s3 + $0x198] sm:$0xff]
    %v1033 = vld [vmem:[%s3 + $0x1a0] sm:$0xff]
    %v1034 = vld [vmem:[%s3 + $0x1a8] sm:$0xff]
    %v1035 = vld [vmem:[%s3 + $0x1b0] sm:$0xff]
    %v1036 = vld [vmem:[%s3 + $0x1b8] sm:$0xff]
    %v1037 = vld [vmem:[%s3 + $0x1c0] sm:$0xff]
    %v1038 = vld [vmem:[%s3 + $0x1c8] sm:$0xff]
    %v1039 = vld [vmem:[%s3 + $0x1d0] sm:$0xff]
    %v1040 = vld [vmem:[%s3 + $0x1d8] sm:$0xff]
    %v1041 = vld [vmem:[%s3 + $0x1e0] sm:$0xff]
    %v1042 = vld [vmem:[%s3 + $0x1e8] sm:$0xff]
    %v1043 = vld [vmem:[%s3 + $0x1f0] sm:$0xff]
    %v1044 = vld [vmem:[%s3 + $0x1f8] sm:$0xff]
    %v1045 = vld [vmem:[%s3 + $0x200] sm:$0xff]
    %v1046 = vld [vmem:[%s3 + $0x208] sm:$0xff]
    %v1047 = vld [vmem:[%s3 + $0x210] sm:$0xff]
    %v1048 = vld [vmem:[%s3 + $0x218] sm:$0xff]
    %v1049 = vld [vmem:[%s3 + $0x220] sm:$0xff]
    %v1050 = vld [vmem:[%s3 + $0x228] sm:$0xff]
    %v1051 = vld [vmem:[%s3 + $0x230] sm:$0xff]
    %v1052 = vld [vmem:[%s3 + $0x238] sm:$0xff]
    %v1053 = vld [vmem:[%s3 + $0x240] sm:$0xff]
    %v1054 = vld [vmem:[%s3 + $0x248] sm:$0xff]
    %v1055 = vld [vmem:[%s3 + $0x250] sm:$0xff]
    %v1056 = vld [vmem:[%s3 + $0x258] sm:$0xff]
    %v1057 = vld [vmem:[%s3 + $0x260] sm:$0xff]
    %v1058 = vld [vmem:[%s3 + $0x268] sm:$0xff]
    %v1059 = vld [vmem:[%s3 + $0x270] sm:$0xff]
    %v1060 = vld [vmem:[%s3 + $0x278] sm:$0xff]
    %v1061 = vld [vmem:[%s3 + $0x280] sm:$0xff]
    %v1062 = vld [vmem:[%s3 + $0x288] sm:$0xff]
    %v1063 = vld [vmem:[%s3 + $0x290] sm:$0xff]
    %v1064 = vld [vmem:[%s3 + $0x298] sm:$0xff]
    %v1065 = vld [vmem:[%s3 + $0x2a0] sm:$0xff]
    %v1066 = vld [vmem:[%s3 + $0x2a8] sm:$0xff]
    %v1067 = vld [vmem:[%s3 + $0x2b0] sm:$0xff]
    %v1068 = vld [vmem:[%s3 + $0x2b8] sm:$0xff]
    %v1069 = vld [vmem:[%s3 + $0x2c0] sm:$0xff]
    %v1070 = vld [vmem:[%s3 + $0x2c8] sm:$0xff]
    %v1071 = vld [vmem:[%s3 + $0x2d0] sm:$0xff]
    %v1072 = vld [vmem:[%s3 + $0x2d8] sm:$0xff]
    %v1073 = vld [vmem:[%s3 + $0x2e0] sm:$0xff]
    %v1074 = vld [vmem:[%s3 + $0x2e8] sm:$0xff]
    %v1075 = vld [vmem:[%s3 + $0x2f0] sm:$0xff]
    %v1076 = vld [vmem:[%s3 + $0x2f8] sm:$0xff]
    %1077 = vmatprep.subr.mxu0 0.0
    %1078 = vmatpush1.msra.mxu0 %v981
    %1079 = vmatprep.subr.mxu0 0.0
    %1080 = vmatpush1.msra.mxu0 %v982
    %1081 = vmatprep.subr.mxu0 0.0
    %1082 = vmatpush1.msra.mxu0 %v983
    %1083 = vmatprep.subr.mxu0 0.0
    %1084 = vmatpush1.msra.mxu0 %v984
    %1085 = vmatprep.subr.mxu0 0.0
    %1086 = vmatpush1.msra.mxu0 %v985
    %1087 = vmatprep.subr.mxu0 0.0
    %1088 = vmatpush1.msra.mxu0 %v986
    %1089 = vmatprep.subr.mxu0 0.0
    %1090 = vmatpush1.msra.mxu0 %v987
    %1091 = vmatprep.subr.mxu0 0.0
    %1092 = vmatpush1.msra.mxu0 %v988
    %1093 = vmatprep.subr.mxu0 0.0
    %1094 = vmatpush1.msra.mxu0 %v989
    %1095 = vmatprep.subr.mxu0 0.0
    %1096 = vmatpush1.msra.mxu0 %v990
    %1097 = vmatprep.subr.mxu0 0.0
    %1098 = vmatpush1.msra.mxu0 %v991
    %1099 = vmatprep.subr.mxu0 0.0
    %1100 = vmatpush1.msra.mxu0 %v992
    %1101 = vmatprep.subr.mxu0 0.0
    %1102 = vmatpush1.msra.mxu0 %v993
    %1103 = vmatprep.subr.mxu0 0.0
    %1104 = vmatpush1.msra.mxu0 %v994
    %1105 = vmatprep.subr.mxu0 0.0
    %1106 = vmatpush1.msra.mxu0 %v995
    %1107 = vmatprep.subr.mxu0 0.0
    %1108 = vmatpush1.msra.mxu0 %v996
    %1109 = vmatprep.subr.mxu0 0.0
    %1110 = vmatpush1.msra.mxu0 %v997
    %1111 = vmatprep.subr.mxu0 0.0
    %1112 = vmatpush1.msra.mxu0 %v998
    %1113 = vmatprep.subr.mxu0 0.0
    %1114 = vmatpush1.msra.mxu0 %v999
    %1115 = vmatprep.subr.mxu0 0.0
    %1116 = vmatpush1.msra.mxu0 %v1000
    %1117 = vmatprep.subr.mxu0 0.0
    %1118 = vmatpush1.msra.mxu0 %v1001
    %1119 = vmatprep.subr.mxu0 0.0
    %1120 = vmatpush1.msra.mxu0 %v1002
    %1121 = vmatprep.subr.mxu0 0.0
    %1122 = vmatpush1.msra.mxu0 %v1003
    %1123 = vmatprep.subr.mxu0 0.0
    %1124 = vmatpush1.msra.mxu0 %v1004
    %1125 = vmatprep.subr.mxu0 0.0
    %1126 = vmatpush1.msra.mxu0 %v1005
    %1127 = vmatprep.subr.mxu0 0.0
    %1128 = vmatpush1.msra.mxu0 %v1006
    %1129 = vmatprep.subr.mxu0 0.0
    %1130 = vmatpush1.msra.mxu0 %v1007
    %1131 = vmatprep.subr.mxu0 0.0
    %1132 = vmatpush1.msra.mxu0 %v1008
    %1133 = vmatprep.subr.mxu0 0.0
    %1134 = vmatpush1.msra.mxu0 %v1009
    %1135 = vmatprep.subr.mxu0 0.0
    %1136 = vmatpush1.msra.mxu0 %v1010
    %1137 = vmatprep.subr.mxu0 0.0
    %1138 = vmatpush1.msra.mxu0 %v1011
    %1139 = vmatprep.subr.mxu0 0.0
    %1140 = vmatpush1.msra.mxu0 %v1012
    %1141 = vmatprep.mubr.f32.mxu0 %v948
    %1142 = vmatmul.mubr.f32.gmra.mrb[0].mxu0 %v940
    %v1143 = vpop.f32.mrb[0].mxu0
    %v1144 = vadd.f32 0.0, %v1143
    %v1145 = vpop.f32.mrb[0].mxu0
    %1146 = vdwg.mxu0
    %1147 = vmatprep.subr.mxu0 0.0
    %1148 = vmatpush1.msra.mxu0 %v1013
    %1149 = vmatprep.subr.mxu0 0.0
    %1150 = vmatpush1.msra.mxu0 %v1014
    %1151 = vmatprep.subr.mxu0 0.0
    %1152 = vmatpush1.msra.mxu0 %v1015
    %1153 = vmatprep.subr.mxu0 0.0
    %1154 = vmatpush1.msra.mxu0 %v1016
    %1155 = vmatprep.subr.mxu0 0.0
    %1156 = vmatpush1.msra.mxu0 %v1017
    %1157 = vmatprep.subr.mxu0 0.0
    %1158 = vmatpush1.msra.mxu0 %v1018
    %1159 = vmatprep.subr.mxu0 0.0
    %1160 = vmatpush1.msra.mxu0 %v1019
    %1161 = vmatprep.subr.mxu0 0.0
    %1162 = vmatpush1.msra.mxu0 %v1020
    %1163 = vmatprep.subr.mxu0 0.0
    %1164 = vmatpush1.msra.mxu0 %v1021
    %1165 = vmatprep.subr.mxu0 0.0
    %1166 = vmatpush1.msra.mxu0 %v1022
    %1167 = vmatprep.subr.mxu0 0.0
    %1168 = vmatpush1.msra.mxu0 %v1023
    %1169 = vmatprep.subr.mxu0 0.0
    %1170 = vmatpush1.msra.mxu0 %v1024
    %1171 = vmatprep.subr.mxu0 0.0
    %1172 = vmatpush1.msra.mxu0 %v1025
    %1173 = vmatprep.subr.mxu0 0.0
    %1174 = vmatpush1.msra.mxu0 %v1026
    %1175 = vmatprep.subr.mxu0 0.0
    %1176 = vmatpush1.msra.mxu0 %v1027
    %1177 = vmatprep.subr.mxu0 0.0
    %1178 = vmatpush1.msra.mxu0 %v1028
    %1179 = vmatprep.subr.mxu0 0.0
    %1180 = vmatpush1.msra.mxu0 %v1029
    %1181 = vmatprep.subr.mxu0 0.0
    %1182 = vmatpush1.msra.mxu0 %v1030
    %1183 = vmatprep.subr.mxu0 0.0
    %1184 = vmatpush1.msra.mxu0 %v1031
    %1185 = vmatprep.subr.mxu0 0.0
    %1186 = vmatpush1.msra.mxu0 %v1032
    %1187 = vmatprep.subr.mxu0 0.0
    %1188 = vmatpush1.msra.mxu0 %v1033
    %1189 = vmatprep.subr.mxu0 0.0
    %1190 = vmatpush1.msra.mxu0 %v1034
    %1191 = vmatprep.subr.mxu0 0.0
    %1192 = vmatpush1.msra.mxu0 %v1035
    %1193 = vmatprep.subr.mxu0 0.0
    %1194 = vmatpush1.msra.mxu0 %v1036
    %1195 = vmatprep.subr.mxu0 0.0
    %1196 = vmatpush1.msra.mxu0 %v1037
    %1197 = vmatprep.subr.mxu0 0.0
    %1198 = vmatpush1.msra.mxu0 %v1038
    %1199 = vmatprep.subr.mxu0 0.0
    %1200 = vmatpush1.msra.mxu0 %v1039
    %1201 = vmatprep.subr.mxu0 0.0
    %1202 = vmatpush1.msra.mxu0 %v1040
    %1203 = vmatprep.subr.mxu0 0.0
    %1204 = vmatpush1.msra.mxu0 %v1041
    %1205 = vmatprep.subr.mxu0 0.0
    %1206 = vmatpush1.msra.mxu0 %v1042
    %1207 = vmatprep.subr.mxu0 0.0
    %1208 = vmatpush1.msra.mxu0 %v1043
    %1209 = vmatprep.subr.mxu0 0.0
    %1210 = vmatpush1.msra.mxu0 %v1044
    %1211 = vmatprep.mubr.f32.mxu0 %v964
    %1212 = vmatmul.mubr.f32.gmra.mrb[0].mxu0 %v956
    %v1213 = vpop.f32.mrb[0].mxu0
    %v1214 = vadd.f32 %v1144, %v1213
    %v1215 = vpop.f32.mrb[0].mxu0
    %1216 = vdwg.mxu0
    %1217 = vmatprep.subr.mxu0 0.0
    %1218 = vmatpush1.msra.mxu0 %v1045
    %1219 = vmatprep.subr.mxu0 0.0
    %1220 = vmatpush1.msra.mxu0 %v1046
    %1221 = vmatprep.subr.mxu0 0.0
    %1222 = vmatpush1.msra.mxu0 %v1047
    %1223 = vmatprep.subr.mxu0 0.0
    %1224 = vmatpush1.msra.mxu0 %v1048
    %1225 = vmatprep.subr.mxu0 0.0
    %1226 = vmatpush1.msra.mxu0 %v1049
    %1227 = vmatprep.subr.mxu0 0.0
    %1228 = vmatpush1.msra.mxu0 %v1050
    %1229 = vmatprep.subr.mxu0 0.0
    %1230 = vmatpush1.msra.mxu0 %v1051
    %1231 = vmatprep.subr.mxu0 0.0
    %1232 = vmatpush1.msra.mxu0 %v1052
    %1233 = vmatprep.subr.mxu0 0.0
    %1234 = vmatpush1.msra.mxu0 %v1053
    %1235 = vmatprep.subr.mxu0 0.0
    %1236 = vmatpush1.msra.mxu0 %v1054
    %1237 = vmatprep.subr.mxu0 0.0
    %1238 = vmatpush1.msra.mxu0 %v1055
    %1239 = vmatprep.subr.mxu0 0.0
    %1240 = vmatpush1.msra.mxu0 %v1056
    %1241 = vmatprep.subr.mxu0 0.0
    %1242 = vmatpush1.msra.mxu0 %v1057
    %1243 = vmatprep.subr.mxu0 0.0
    %1244 = vmatpush1.msra.mxu0 %v1058
    %1245 = vmatprep.subr.mxu0 0.0
    %1246 = vmatpush1.msra.mxu0 %v1059
    %1247 = vmatprep.subr.mxu0 0.0
    %1248 = vmatpush1.msra.mxu0 %v1060
    %1249 = vmatprep.subr.mxu0 0.0
    %1250 = vmatpush1.msra.mxu0 %v1061
    %1251 = vmatprep.subr.mxu0 0.0
    %1252 = vmatpush1.msra.mxu0 %v1062
    %1253 = vmatprep.subr.mxu0 0.0
    %1254 = vmatpush1.msra.mxu0 %v1063
    %1255 = vmatprep.subr.mxu0 0.0
    %1256 = vmatpush1.msra.mxu0 %v1064
    %1257 = vmatprep.subr.mxu0 0.0
    %1258 = vmatpush1.msra.mxu0 %v1065
    %1259 = vmatprep.subr.mxu0 0.0
    %1260 = vmatpush1.msra.mxu0 %v1066
    %1261 = vmatprep.subr.mxu0 0.0
    %1262 = vmatpush1.msra.mxu0 %v1067
    %1263 = vmatprep.subr.mxu0 0.0
    %1264 = vmatpush1.msra.mxu0 %v1068
    %1265 = vmatprep.subr.mxu0 0.0
    %1266 = vmatpush1.msra.mxu0 %v1069
    %1267 = vmatprep.subr.mxu0 0.0
    %1268 = vmatpush1.msra.mxu0 %v1070
    %1269 = vmatprep.subr.mxu0 0.0
    %1270 = vmatpush1.msra.mxu0 %v1071
    %1271 = vmatprep.subr.mxu0 0.0
    %1272 = vmatpush1.msra.mxu0 %v1072
    %1273 = vmatprep.subr.mxu0 0.0
    %1274 = vmatpush1.msra.mxu0 %v1073
    %1275 = vmatprep.subr.mxu0 0.0
    %1276 = vmatpush1.msra.mxu0 %v1074
    %1277 = vmatprep.subr.mxu0 0.0
    %1278 = vmatpush1.msra.mxu0 %v1075
    %1279 = vmatprep.subr.mxu0 0.0
    %1280 = vmatpush1.msra.mxu0 %v1076
    %1281 = vmatprep.mubr.f32.mxu0 %v980
    %1282 = vmatmul.mubr.f32.gmra.mrb[0].mxu0 %v972
    %v1283 = vpop.f32.mrb[0].mxu0
    %v1284 = vadd.f32 %v1214, %v1283
    %v1285 = vpop.f32.mrb[0].mxu0
    %1286 = vdwg.mxu0
    %v1287 = vmul.f32 %v915, %v915
    %v1288 = vmul.f32 %v916, %v916
    %v1289 = vmul.f32 %v917, %v917
    %v1290 = vmul.f32 %v918, %v918
    %v1291 = vmul.f32 %v919, %v919
    %v1292 = vmul.f32 %v920, %v920
    %v1293 = vmul.f32 %v921, %v921
    %v1294 = vmul.f32 %v922, %v922
    %v1295 = vmul.f32 %v923, %v923
    %v1296 = vmul.f32 %v924, %v924
    %v1297 = vmul.f32 %v925, %v925
    %v1298 = vmul.f32 %v926, %v926
    %v1299 = vmul.f32 %v927, %v927
    %v1300 = vmul.f32 %v928, %v928
    %v1301 = vmul.f32 %v929, %v929
    %v1302 = vmul.f32 %v930, %v930
    %v1303 = vmul.f32 %v931, %v931
    %v1304 = vmul.f32 %v932, %v932
    %v1305 = vadd.f32 %v1287, %v1293
    %v1306 = vadd.f32 %v1305, %v1299
    %v1307 = vrot.slane %v1306, 4
    %v1308 = vadd.f32 %v1306, %v1307
    %v1309 = vrot.slane %v1308, 2
    %v1310 = vadd.f32 %v1308, %v1309
    %v1311 = vrot.slane %v1310, 1
    %v1312 = vadd.f32 %v1310, %v1311
    %v1313 = vadd.f32 %v1288, %v1294
    %v1314 = vadd.f32 %v1313, %v1300
    %v1315 = vrot.slane %v1314, 4
    %v1316 = vadd.f32 %v1314, %v1315
    %v1317 = vrot.slane %v1316, 2
    %v1318 = vadd.f32 %v1316, %v1317
    %v1319 = vrot.slane %v1318, 1
    %v1320 = vadd.f32 %v1318, %v1319
    %v1321 = vadd.f32 %v1289, %v1295
    %v1322 = vadd.f32 %v1321, %v1301
    %v1323 = vrot.slane %v1322, 4
    %v1324 = vadd.f32 %v1322, %v1323
    %v1325 = vrot.slane %v1324, 2
    %v1326 = vadd.f32 %v1324, %v1325
    %v1327 = vrot.slane %v1326, 1
    %v1328 = vadd.f32 %v1326, %v1327
    %v1329 = vadd.f32 %v1290, %v1296
    %v1330 = vadd.f32 %v1329, %v1302
    %v1331 = vrot.slane %v1330, 4
    %v1332 = vadd.f32 %v1330, %v1331
    %v1333 = vrot.slane %v1332, 2
    %v1334 = vadd.f32 %v1332, %v1333
    %v1335 = vrot.slane %v1334, 1
    %v1336 = vadd.f32 %v1334, %v1335
    %v1337 = vadd.f32 %v1291, %v1297
    %v1338 = vadd.f32 %v1337, %v1303
    %v1339 = vrot.slane %v1338, 4
    %v1340 = vadd.f32 %v1338, %v1339
    %v1341 = vrot.slane %v1340, 2
    %v1342 = vadd.f32 %v1340, %v1341
    %v1343 = vrot.slane %v1342, 1
    %v1344 = vadd.f32 %v1342, %v1343
    %v1345 = vadd.f32 %v1292, %v1298
    %v1346 = vadd.f32 %v1345, %v1304
    %v1347 = vrot.slane %v1346, 4
    %v1348 = vadd.f32 %v1346, %v1347
    %v1349 = vrot.slane %v1348, 2
    %v1350 = vadd.f32 %v1348, %v1349
    %v1351 = vrot.slane %v1350, 1
    %v1352 = vadd.f32 %v1350, %v1351
    %1353 = vmatprep.subr.mxu0 0.0
    %1354 = vmatpush1.msra.mxu0 %v981
    %1355 = vmatprep.subr.mxu0 0.0
    %1356 = vmatpush1.msra.mxu0 %v982
    %1357 = vmatprep.subr.mxu0 0.0
    %1358 = vmatpush1.msra.mxu0 %v983
    %1359 = vmatprep.subr.mxu0 0.0
    %1360 = vmatpush1.msra.mxu0 %v984
    %1361 = vmatprep.subr.mxu0 0.0
    %1362 = vmatpush1.msra.mxu0 %v985
    %1363 = vmatprep.subr.mxu0 0.0
    %1364 = vmatpush1.msra.mxu0 %v986
    %1365 = vmatprep.subr.mxu0 0.0
    %1366 = vmatpush1.msra.mxu0 %v987
    %1367 = vmatprep.subr.mxu0 0.0
    %1368 = vmatpush1.msra.mxu0 %v988
    %1369 = vmatprep.subr.mxu0 0.0
    %1370 = vmatpush1.msra.mxu0 %v989
    %1371 = vmatprep.subr.mxu0 0.0
    %1372 = vmatpush1.msra.mxu0 %v990
    %1373 = vmatprep.subr.mxu0 0.0
    %1374 = vmatpush1.msra.mxu0 %v991
    %1375 = vmatprep.subr.mxu0 0.0
    %1376 = vmatpush1.msra.mxu0 %v992
    %1377 = vmatprep.subr.mxu0 0.0
    %1378 = vmatpush1.msra.mxu0 %v993
    %1379 = vmatprep.subr.mxu0 0.0
    %1380 = vmatpush1.msra.mxu0 %v994
    %1381 = vmatprep.subr.mxu0 0.0
    %1382 = vmatpush1.msra.mxu0 %v995
    %1383 = vmatprep.subr.mxu0 0.0
    %1384 = vmatpush1.msra.mxu0 %v996
    %1385 = vmatprep.subr.mxu0 0.0
    %1386 = vmatpush1.msra.mxu0 %v997
    %1387 = vmatprep.subr.mxu0 0.0
    %1388 = vmatpush1.msra.mxu0 %v998
    %1389 = vmatprep.subr.mxu0 0.0
    %1390 = vmatpush1.msra.mxu0 %v999
    %1391 = vmatprep.subr.mxu0 0.0
    %1392 = vmatpush1.msra.mxu0 %v1000
    %1393 = vmatprep.subr.mxu0 0.0
    %1394 = vmatpush1.msra.mxu0 %v1001
    %1395 = vmatprep.subr.mxu0 0.0
    %1396 = vmatpush1.msra.mxu0 %v1002
    %1397 = vmatprep.subr.mxu0 0.0
    %1398 = vmatpush1.msra.mxu0 %v1003
    %1399 = vmatprep.subr.mxu0 0.0
    %1400 = vmatpush1.msra.mxu0 %v1004
    %1401 = vmatprep.subr.mxu0 0.0
    %1402 = vmatpush1.msra.mxu0 %v1005
    %1403 = vmatprep.subr.mxu0 0.0
    %1404 = vmatpush1.msra.mxu0 %v1006
    %1405 = vmatprep.subr.mxu0 0.0
    %1406 = vmatpush1.msra.mxu0 %v1007
    %1407 = vmatprep.subr.mxu0 0.0
    %1408 = vmatpush1.msra.mxu0 %v1008
    %1409 = vmatprep.subr.mxu0 0.0
    %1410 = vmatpush1.msra.mxu0 %v1009
    %1411 = vmatprep.subr.mxu0 0.0
    %1412 = vmatpush1.msra.mxu0 %v1010
    %1413 = vmatprep.subr.mxu0 0.0
    %1414 = vmatpush1.msra.mxu0 %v1011
    %1415 = vmatprep.subr.mxu0 0.0
    %1416 = vmatpush1.msra.mxu0 %v1012
    %1417 = vmatprep.mubr.f32.mxu0 %v1320
    %1418 = vmatmul.mubr.f32.gmra.mrb[0].mxu0 %v1312
    %v1419 = vpop.f32.mrb[0].mxu0
    %v1420 = vadd.f32 0.0, %v1419
    %v1421 = vpop.f32.mrb[0].mxu0
    %1422 = vdwg.mxu0
    %1423 = vmatprep.subr.mxu0 0.0
    %1424 = vmatpush1.msra.mxu0 %v1013
    %1425 = vmatprep.subr.mxu0 0.0
    %1426 = vmatpush1.msra.mxu0 %v1014
    %1427 = vmatprep.subr.mxu0 0.0
    %1428 = vmatpush1.msra.mxu0 %v1015
    %1429 = vmatprep.subr.mxu0 0.0
    %1430 = vmatpush1.msra.mxu0 %v1016
    %1431 = vmatprep.subr.mxu0 0.0
    %1432 = vmatpush1.msra.mxu0 %v1017
    %1433 = vmatprep.subr.mxu0 0.0
    %1434 = vmatpush1.msra.mxu0 %v1018
    %1435 = vmatprep.subr.mxu0 0.0
    %1436 = vmatpush1.msra.mxu0 %v1019
    %1437 = vmatprep.subr.mxu0 0.0
    %1438 = vmatpush1.msra.mxu0 %v1020
    %1439 = vmatprep.subr.mxu0 0.0
    %1440 = vmatpush1.msra.mxu0 %v1021
    %1441 = vmatprep.subr.mxu0 0.0
    %1442 = vmatpush1.msra.mxu0 %v1022
    %1443 = vmatprep.subr.mxu0 0.0
    %1444 = vmatpush1.msra.mxu0 %v1023
    %1445 = vmatprep.subr.mxu0 0.0
    %1446 = vmatpush1.msra.mxu0 %v1024
    %1447 = vmatprep.subr.mxu0 0.0
    %1448 = vmatpush1.msra.mxu0 %v1025
    %1449 = vmatprep.subr.mxu0 0.0
    %1450 = vmatpush1.msra.mxu0 %v1026
    %1451 = vmatprep.subr.mxu0 0.0
    %1452 = vmatpush1.msra.mxu0 %v1027
    %1453 = vmatprep.subr.mxu0 0.0
    %1454 = vmatpush1.msra.mxu0 %v1028
    %1455 = vmatprep.subr.mxu0 0.0
    %1456 = vmatpush1.msra.mxu0 %v1029
    %1457 = vmatprep.subr.mxu0 0.0
    %1458 = vmatpush1.msra.mxu0 %v1030
    %1459 = vmatprep.subr.mxu0 0.0
    %1460 = vmatpush1.msra.mxu0 %v1031
    %1461 = vmatprep.subr.mxu0 0.0
    %1462 = vmatpush1.msra.mxu0 %v1032
    %1463 = vmatprep.subr.mxu0 0.0
    %1464 = vmatpush1.msra.mxu0 %v1033
    %1465 = vmatprep.subr.mxu0 0.0
    %1466 = vmatpush1.msra.mxu0 %v1034
    %1467 = vmatprep.subr.mxu0 0.0
    %1468 = vmatpush1.msra.mxu0 %v1035
    %1469 = vmatprep.subr.mxu0 0.0
    %1470 = vmatpush1.msra.mxu0 %v1036
    %1471 = vmatprep.subr.mxu0 0.0
    %1472 = vmatpush1.msra.mxu0 %v1037
    %1473 = vmatprep.subr.mxu0 0.0
    %1474 = vmatpush1.msra.mxu0 %v1038
    %1475 = vmatprep.subr.mxu0 0.0
    %1476 = vmatpush1.msra.mxu0 %v1039
    %1477 = vmatprep.subr.mxu0 0.0
    %1478 = vmatpush1.msra.mxu0 %v1040
    %1479 = vmatprep.subr.mxu0 0.0
    %1480 = vmatpush1.msra.mxu0 %v1041
    %1481 = vmatprep.subr.mxu0 0.0
    %1482 = vmatpush1.msra.mxu0 %v1042
    %1483 = vmatprep.subr.mxu0 0.0
    %1484 = vmatpush1.msra.mxu0 %v1043
    %1485 = vmatprep.subr.mxu0 0.0
    %1486 = vmatpush1.msra.mxu0 %v1044
    %1487 = vmatprep.mubr.f32.mxu0 %v1336
    %1488 = vmatmul.mubr.f32.gmra.mrb[0].mxu0 %v1328
    %v1489 = vpop.f32.mrb[0].mxu0
    %v1490 = vadd.f32 %v1420, %v1489
    %v1491 = vpop.f32.mrb[0].mxu0
    %1492 = vdwg.mxu0
    %1493 = vmatprep.subr.mxu0 0.0
    %1494 = vmatpush1.msra.mxu0 %v1045
    %1495 = vmatprep.subr.mxu0 0.0
    %1496 = vmatpush1.msra.mxu0 %v1046
    %1497 = vmatprep.subr.mxu0 0.0
    %1498 = vmatpush1.msra.mxu0 %v1047
    %1499 = vmatprep.subr.mxu0 0.0
    %1500 = vmatpush1.msra.mxu0 %v1048
    %1501 = vmatprep.subr.mxu0 0.0
    %1502 = vmatpush1.msra.mxu0 %v1049
    %1503 = vmatprep.subr.mxu0 0.0
    %1504 = vmatpush1.msra.mxu0 %v1050
    %1505 = vmatprep.subr.mxu0 0.0
    %1506 = vmatpush1.msra.mxu0 %v1051
    %1507 = vmatprep.subr.mxu0 0.0
    %1508 = vmatpush1.msra.mxu0 %v1052
    %1509 = vmatprep.subr.mxu0 0.0
    %1510 = vmatpush1.msra.mxu0 %v1053
    %1511 = vmatprep.subr.mxu0 0.0
    %1512 = vmatpush1.msra.mxu0 %v1054
    %1513 = vmatprep.subr.mxu0 0.0
    %1514 = vmatpush1.msra.mxu0 %v1055
    %1515 = vmatprep.subr.mxu0 0.0
    %1516 = vmatpush1.msra.mxu0 %v1056
    %1517 = vmatprep.subr.mxu0 0.0
    %1518 = vmatpush1.msra.mxu0 %v1057
    %1519 = vmatprep.subr.mxu0 0.0
    %1520 = vmatpush1.msra.mxu0 %v1058
    %1521 = vmatprep.subr.mxu0 0.0
    %1522 = vmatpush1.msra.mxu0 %v1059
    %1523 = vmatprep.subr.mxu0 0.0
    %1524 = vmatpush1.msra.mxu0 %v1060
    %1525 = vmatprep.subr.mxu0 0.0
    %1526 = vmatpush1.msra.mxu0 %v1061
    %1527 = vmatprep.subr.mxu0 0.0
    %1528 = vmatpush1.msra.mxu0 %v1062
    %1529 = vmatprep.subr.mxu0 0.0
    %1530 = vmatpush1.msra.mxu0 %v1063
    %1531 = vmatprep.subr.mxu0 0.0
    %1532 = vmatpush1.msra.mxu0 %v1064
    %1533 = vmatprep.subr.mxu0 0.0
    %1534 = vmatpush1.msra.mxu0 %v1065
    %1535 = vmatprep.subr.mxu0 0.0
    %1536 = vmatpush1.msra.mxu0 %v1066
    %1537 = vmatprep.subr.mxu0 0.0
    %1538 = vmatpush1.msra.mxu0 %v1067
    %1539 = vmatprep.subr.mxu0 0.0
    %1540 = vmatpush1.msra.mxu0 %v1068
    %1541 = vmatprep.subr.mxu0 0.0
    %1542 = vmatpush1.msra.mxu0 %v1069
    %1543 = vmatprep.subr.mxu0 0.0
    %1544 = vmatpush1.msra.mxu0 %v1070
    %1545 = vmatprep.subr.mxu0 0.0
    %1546 = vmatpush1.msra.mxu0 %v1071
    %1547 = vmatprep.subr.mxu0 0.0
    %1548 = vmatpush1.msra.mxu0 %v1072
    %1549 = vmatprep.subr.mxu0 0.0
    %1550 = vmatpush1.msra.mxu0 %v1073
    %1551 = vmatprep.subr.mxu0 0.0
    %1552 = vmatpush1.msra.mxu0 %v1074
    %1553 = vmatprep.subr.mxu0 0.0
    %1554 = vmatpush1.msra.mxu0 %v1075
    %1555 = vmatprep.subr.mxu0 0.0
    %1556 = vmatpush1.msra.mxu0 %v1076
    %1557 = vmatprep.mubr.f32.mxu0 %v1352
    %1558 = vmatmul.mubr.f32.gmra.mrb[0].mxu0 %v1344
    %v1559 = vpop.f32.mrb[0].mxu0
    %v1560 = vadd.f32 %v1490, %v1559
    %v1561 = vpop.f32.mrb[0].mxu0
    %1562 = vdwg.mxu0
    %v1563 = vrcp.pop 288.0
    %v1564 = vmul.f32 %v1284, %v1563
    %v1565 = vmul.f32 %v1560, %v1563
    %v1566 = vmul.f32 %v1564, %v1564
    %v1567 = vsub.f32 %v1565, %v1566
    %v1568 = vmax.f32 %v1567, 0.0
    %v1569 = vadd.f32 %v1568, 1e-05
    %v1570 = vrsqrt.pop %v1569
    %1572 = vrot.lane.b32.xlu0 %v1564, 64
    %v1573 = vpop.permute.xlu0 %1572
    %vm1575 = vcmask 523264
    %v1576 = vsel %vm1575, %v1564, %v1573
    %1578 = vrot.lane.b32.xlu0 %v1570, 64
    %v1579 = vpop.permute.xlu0 %1578
    %v1581 = vsel %vm1575, %v1570, %v1579
    %v1582 = vlaneseq
    %v1583 = vshrl.u32 %v1582, 7
    %v1584 = vsub.s32 0, %v1583
    %v1585 = vrot.slane %v1576, %v1584
    %v1586 = vsub.f32 %v915, %v1585
    %v1587 = vsub.f32 %v916, %v1585
    %v1588 = vsub.f32 %v917, %v1585
    %v1589 = vsub.f32 %v918, %v1585
    %v1590 = vsub.f32 %v919, %v1585
    %v1591 = vsub.f32 %v920, %v1585
    %v1592 = vsub.f32 %v921, %v1585
    %v1593 = vsub.f32 %v922, %v1585
    %v1594 = vsub.f32 %v923, %v1585
    %v1595 = vsub.f32 %v924, %v1585
    %v1596 = vsub.f32 %v925, %v1585
    %v1597 = vsub.f32 %v926, %v1585
    %v1598 = vsub.f32 %v927, %v1585
    %v1599 = vsub.f32 %v928, %v1585
    %v1600 = vsub.f32 %v929, %v1585
    %v1601 = vsub.f32 %v930, %v1585
    %v1602 = vsub.f32 %v931, %v1585
    %v1603 = vsub.f32 %v932, %v1585
    %v1604 = vlaneseq
    %v1605 = vshrl.u32 %v1604, 7
    %v1606 = vsub.s32 0, %v1605
    %v1607 = vrot.slane %v1581, %v1606
    %v1608 = vmul.f32 %v1586, %v1607
    %v1609 = vmul.f32 %v1587, %v1607
    %v1610 = vmul.f32 %v1588, %v1607
    %v1611 = vmul.f32 %v1589, %v1607
    %v1612 = vmul.f32 %v1590, %v1607
    %v1613 = vmul.f32 %v1591, %v1607
    %v1614 = vmul.f32 %v1592, %v1607
    %v1615 = vmul.f32 %v1593, %v1607
    %v1616 = vmul.f32 %v1594, %v1607
    %v1617 = vmul.f32 %v1595, %v1607
    %v1618 = vmul.f32 %v1596, %v1607
    %v1619 = vmul.f32 %v1597, %v1607
    %v1620 = vmul.f32 %v1598, %v1607
    %v1621 = vmul.f32 %v1599, %v1607
    %v1622 = vmul.f32 %v1600, %v1607
    %v1623 = vmul.f32 %v1601, %v1607
    %v1624 = vmul.f32 %v1602, %v1607
    %v1625 = vmul.f32 %v1603, %v1607
    %v1626 = vmax.f32 %v1608, 0.0
    %v1627 = vmax.f32 %v1609, 0.0
    %v1628 = vmax.f32 %v1610, 0.0
    %v1629 = vmax.f32 %v1611, 0.0
    %v1630 = vmax.f32 %v1612, 0.0
    %v1631 = vmax.f32 %v1613, 0.0
    %v1632 = vmax.f32 %v1614, 0.0
    %v1633 = vmax.f32 %v1615, 0.0
    %v1634 = vmax.f32 %v1616, 0.0
    %v1635 = vmax.f32 %v1617, 0.0
    %v1636 = vmax.f32 %v1618, 0.0
    %v1637 = vmax.f32 %v1619, 0.0
    %v1638 = vmax.f32 %v1620, 0.0
    %v1639 = vmax.f32 %v1621, 0.0
    %v1640 = vmax.f32 %v1622, 0.0
    %v1641 = vmax.f32 %v1623, 0.0
    %v1642 = vmax.f32 %v1624, 0.0
    %v1643 = vmax.f32 %v1625, 0.0
    %v1644 = vmax.f32 %v1626, %v1630
    %v1645 = vmax.f32 %v1627, %v1631
    %v1646 = vmax.f32 %v1628, %v1632
    %v1647 = vmax.f32 %v1629, %v1633
    %v1648 = vmax.f32 %v1644, %v1634
    %v1649 = vmax.f32 %v1645, %v1635
    %v1650 = vmax.f32 %v1646, %v1636
    %v1651 = vmax.f32 %v1647, %v1637
    %v1652 = vmax.f32 %v1648, %v1638
    %v1653 = vmax.f32 %v1649, %v1639
    %v1654 = vmax.f32 %v1650, %v1640
    %v1655 = vmax.f32 %v1651, %v1641
    %v1656 = vmax.f32 %v1652, %v1642
    %v1657 = vmax.f32 %v1653, %v1643
    %v1658 = vmax.f32 %v1656, %v1657
    %v1659 = vmax.f32 %v1654, %v1655
    %v1660 = vmax.f32 %v1658, %v1659
    %1661 = vmax.xlane.f32.xlu0 %v1660
    %v1662 = vpop.xlane.xlu0 %1661
    %v1663 = vrot.slane %v1662, 4
    %v1664 = vmax.f32 %v1662, %v1663
    %v1665 = vrot.slane %v1664, 2
    %v1666 = vmax.f32 %v1664, %v1665
    %v1667 = vrot.slane %v1666, 1
    %v1668 = vmax.f32 %v1666, %v1667
    %s1669 = vtos %v1668
    %v1670 = vmin.f32 %v1626, %v1630
    %v1671 = vmin.f32 %v1627, %v1631
    %v1672 = vmin.f32 %v1628, %v1632
    %v1673 = vmin.f32 %v1629, %v1633
    %v1674 = vmin.f32 %v1670, %v1634
    %v1675 = vmin.f32 %v1671, %v1635
    %v1676 = vmin.f32 %v1672, %v1636
    %v1677 = vmin.f32 %v1673, %v1637
    %v1678 = vmin.f32 %v1674, %v1638
    %v1679 = vmin.f32 %v1675, %v1639
    %v1680 = vmin.f32 %v1676, %v1640
    %v1681 = vmin.f32 %v1677, %v1641
    %v1682 = vmin.f32 %v1678, %v1642
    %v1683 = vmin.f32 %v1679, %v1643
    %v1684 = vmin.f32 %v1682, %v1683
    %v1685 = vmin.f32 %v1680, %v1681
    %v1686 = vmin.f32 %v1684, %v1685
    %1687 = vmin.xlane.f32.xlu0 %v1686
    %v1688 = vpop.xlane.xlu0 %1687
    %v1689 = vrot.slane %v1688, 4
    %v1690 = vmin.f32 %v1688, %v1689
    %v1691 = vrot.slane %v1690, 2
    %v1692 = vmin.f32 %v1690, %v1691
    %v1693 = vrot.slane %v1692, 1
    %v1694 = vmin.f32 %v1692, %v1693
    %s1695 = vtos %v1694
    %s1696 = ssub.f32 %s1669, %s1695
    %v1697 = vrcp.pop 255.0
    %s1698 = vtos %v1697
    %s1699 = smul.f32 %s1696, %s1698
    %p1700 = scmp.eq.f32.partialorder %s1699, 0.0
    %s1701 = scalar_select %p1700, 1.0, %s1699
    %v1702 = vstv %s1701
    %v1703 = vrcp.pop %v1702
    %v1704 = vmul.f32 %v1626, %v1703
    %v1705 = vmul.f32 %v1627, %v1703
    %v1706 = vmul.f32 %v1628, %v1703
    %v1707 = vmul.f32 %v1629, %v1703
    %v1708 = vmul.f32 %v1630, %v1703
    %v1709 = vmul.f32 %v1631, %v1703
    %v1710 = vmul.f32 %v1632, %v1703
    %v1711 = vmul.f32 %v1633, %v1703
    %v1712 = vmul.f32 %v1634, %v1703
    %v1713 = vmul.f32 %v1635, %v1703
    %v1714 = vmul.f32 %v1636, %v1703
    %v1715 = vmul.f32 %v1637, %v1703
    %v1716 = vmul.f32 %v1638, %v1703
    %v1717 = vmul.f32 %v1639, %v1703
    %v1718 = vmul.f32 %v1640, %v1703
    %v1719 = vmul.f32 %v1641, %v1703
    %v1720 = vmul.f32 %v1642, %v1703
    %v1721 = vmul.f32 %v1643, %v1703
    %v1722 = vround.ne.pseudo %v1704
    %v1723 = vround.ne.pseudo %v1705
    %v1724 = vround.ne.pseudo %v1706
    %v1725 = vround.ne.pseudo %v1707
    %v1726 = vround.ne.pseudo %v1708
    %v1727 = vround.ne.pseudo %v1709
    %v1728 = vround.ne.pseudo %v1710
    %v1729 = vround.ne.pseudo %v1711
    %v1730 = vround.ne.pseudo %v1712
    %v1731 = vround.ne.pseudo %v1713
    %v1732 = vround.ne.pseudo %v1714
    %v1733 = vround.ne.pseudo %v1715
    %v1734 = vround.ne.pseudo %v1716
    %v1735 = vround.ne.pseudo %v1717
    %v1736 = vround.ne.pseudo %v1718
    %v1737 = vround.ne.pseudo %v1719
    %v1738 = vround.ne.pseudo %v1720
    %v1739 = vround.ne.pseudo %v1721
    %v1740 = vmax.f32 %v1722, 0.0
    %v1741 = vmax.f32 %v1723, 0.0
    %v1742 = vmax.f32 %v1724, 0.0
    %v1743 = vmax.f32 %v1725, 0.0
    %v1744 = vmax.f32 %v1726, 0.0
    %v1745 = vmax.f32 %v1727, 0.0
    %v1746 = vmax.f32 %v1728, 0.0
    %v1747 = vmax.f32 %v1729, 0.0
    %v1748 = vmax.f32 %v1730, 0.0
    %v1749 = vmax.f32 %v1731, 0.0
    %v1750 = vmax.f32 %v1732, 0.0
    %v1751 = vmax.f32 %v1733, 0.0
    %v1752 = vmax.f32 %v1734, 0.0
    %v1753 = vmax.f32 %v1735, 0.0
    %v1754 = vmax.f32 %v1736, 0.0
    %v1755 = vmax.f32 %v1737, 0.0
    %v1756 = vmax.f32 %v1738, 0.0
    %v1757 = vmax.f32 %v1739, 0.0
    %v1758 = vmin.f32 %v1740, 255.0
    %v1759 = vmin.f32 %v1741, 255.0
    %v1760 = vmin.f32 %v1742, 255.0
    %v1761 = vmin.f32 %v1743, 255.0
    %v1762 = vmin.f32 %v1744, 255.0
    %v1763 = vmin.f32 %v1745, 255.0
    %v1764 = vmin.f32 %v1746, 255.0
    %v1765 = vmin.f32 %v1747, 255.0
    %v1766 = vmin.f32 %v1748, 255.0
    %v1767 = vmin.f32 %v1749, 255.0
    %v1768 = vmin.f32 %v1750, 255.0
    %v1769 = vmin.f32 %v1751, 255.0
    %v1770 = vmin.f32 %v1752, 255.0
    %v1771 = vmin.f32 %v1753, 255.0
    %v1772 = vmin.f32 %v1754, 255.0
    %v1773 = vmin.f32 %v1755, 255.0
    %v1774 = vmin.f32 %v1756, 255.0
    %v1775 = vmin.f32 %v1757, 255.0
    %v1776 = vmul.f32 %v1758, %v1702
    %v1777 = vmul.f32 %v1759, %v1702
    %v1778 = vmul.f32 %v1760, %v1702
    %v1779 = vmul.f32 %v1761, %v1702
    %v1780 = vmul.f32 %v1762, %v1702
    %v1781 = vmul.f32 %v1763, %v1702
    %v1782 = vmul.f32 %v1764, %v1702
    %v1783 = vmul.f32 %v1765, %v1702
    %v1784 = vmul.f32 %v1766, %v1702
    %v1785 = vmul.f32 %v1767, %v1702
    %v1786 = vmul.f32 %v1768, %v1702
    %v1787 = vmul.f32 %v1769, %v1702
    %v1788 = vmul.f32 %v1770, %v1702
    %v1789 = vmul.f32 %v1771, %v1702
    %v1790 = vmul.f32 %v1772, %v1702
    %v1791 = vmul.f32 %v1773, %v1702
    %v1792 = vmul.f32 %v1774, %v1702
    %v1793 = vmul.f32 %v1775, %v1702
    %1794 = vst [vmem:[#allocation2] sm:$0xff] %v1776
    %1795 = vst [vmem:[#allocation2 + $0x8] sm:$0xff] %v1777
    %1796 = vst [vmem:[#allocation2 + $0x10] sm:$0xff] %v1778
    %1797 = vst [vmem:[#allocation2 + $0x18] sm:$0xff] %v1779
    %1798 = vst [vmem:[#allocation2 + $0x20] sm:$0xff] %v1780
    %1799 = vst [vmem:[#allocation2 + $0x28] sm:$0xff] %v1781
    %1800 = vst [vmem:[#allocation2 + $0x30] sm:$0xff] %v1782
    %1801 = vst [vmem:[#allocation2 + $0x38] sm:$0xff] %v1783
    %1802 = vst [vmem:[#allocation2 + $0x40] sm:$0xff] %v1784
    %1803 = vst [vmem:[#allocation2 + $0x48] sm:$0xff] %v1785
    %1804 = vst [vmem:[#allocation2 + $0x50] sm:$0xff] %v1786
    %1805 = vst [vmem:[#allocation2 + $0x58] sm:$0xff] %v1787
    %1806 = vst [vmem:[#allocation2 + $0x60] sm:$0xff] %v1788
    %1807 = vst [vmem:[#allocation2 + $0x68] sm:$0xff] %v1789
    %1808 = vst [vmem:[#allocation2 + $0x70] sm:$0xff] %v1790
    %1809 = vst [vmem:[#allocation2 + $0x78] sm:$0xff] %v1791
    %1810 = vst [vmem:[#allocation2 + $0x80] sm:$0xff] %v1792
    %1811 = vst [vmem:[#allocation2 + $0x88] sm:$0xff] %v1793
    %v1812 = vld [vmem:[#allocation2] sm:$0xff]
    %v1813 = vld [vmem:[#allocation2 + $0x8] sm:$0xff]
    %v1814 = vld [vmem:[#allocation2 + $0x10] sm:$0xff]
    %v1815 = vld [vmem:[#allocation2 + $0x18] sm:$0xff]
    %v1816 = vld [vmem:[#allocation2 + $0x20] sm:$0xff]
    %v1817 = vld [vmem:[#allocation2 + $0x28] sm:$0xff]
    %v1818 = vld [vmem:[#allocation2 + $0x30] sm:$0xf]
    %v1819 = vld [vmem:[#allocation2 + $0x38] sm:$0xf]
    %v1820 = vld [vmem:[#allocation2 + $0x40] sm:$0xf]
    %v1821 = vld [vmem:[#allocation2 + $0x48] sm:$0xf]
    %v1822 = vld [vmem:[#allocation2 + $0x50] sm:$0xf]
    %v1823 = vld [vmem:[#allocation2 + $0x58] sm:$0xf]
    %v1824 = vld [vmem:[%s2] sm:$0xff]
    %v1825 = vld [vmem:[%s2 + $0x8] sm:$0xff]
    %v1826 = vld [vmem:[%s2 + $0x10] sm:$0xff]
    %v1827 = vld [vmem:[%s2 + $0x18] sm:$0xff]
    %v1828 = vld [vmem:[%s2 + $0x20] sm:$0xff]
    %v1829 = vld [vmem:[%s2 + $0x28] sm:$0xff]
    %v1830 = vld [vmem:[%s2 + $0x30] sm:$0xff]
    %v1831 = vld [vmem:[%s2 + $0x38] sm:$0xff]
    %v1832 = vld [vmem:[%s2 + $0x40] sm:$0xff]
    %v1833 = vld [vmem:[%s2 + $0x48] sm:$0xff]
    %v1834 = vld [vmem:[%s2 + $0x50] sm:$0xff]
    %v1835 = vld [vmem:[%s2 + $0x58] sm:$0xff]
    %v1836 = vld [vmem:[%s2 + $0x60] sm:$0xff]
    %v1837 = vld [vmem:[%s2 + $0x68] sm:$0xff]
    %v1838 = vld [vmem:[%s2 + $0x70] sm:$0xff]
    %v1839 = vld [vmem:[%s2 + $0x78] sm:$0xff]
    %v1840 = vld [vmem:[%s2 + $0x80] sm:$0xff]
    %v1841 = vld [vmem:[%s2 + $0x88] sm:$0xff]
    %v1842 = vld [vmem:[%s2 + $0x90] sm:$0xff]
    %v1843 = vld [vmem:[%s2 + $0x98] sm:$0xff]
    %v1844 = vld [vmem:[%s2 + $0xa0] sm:$0xff]
    %v1845 = vld [vmem:[%s2 + $0xa8] sm:$0xff]
    %v1846 = vld [vmem:[%s2 + $0xb0] sm:$0xff]
    %v1847 = vld [vmem:[%s2 + $0xb8] sm:$0xff]
    %v1848 = vld [vmem:[%s2 + $0xc0] sm:$0xff]
    %v1849 = vld [vmem:[%s2 + $0xc8] sm:$0xff]
    %v1850 = vld [vmem:[%s2 + $0xd0] sm:$0xff]
    %v1851 = vld [vmem:[%s2 + $0xd8] sm:$0xff]
    %v1852 = vld [vmem:[%s2 + $0xe0] sm:$0xff]
    %v1853 = vld [vmem:[%s2 + $0xe8] sm:$0xff]
    %v1854 = vld [vmem:[%s2 + $0xf0] sm:$0xff]
    %v1855 = vld [vmem:[%s2 + $0xf8] sm:$0xff]
    %v1856 = vld [vmem:[%s2 + $0x100] sm:$0xff]
    %v1857 = vld [vmem:[%s2 + $0x108] sm:$0xff]
    %v1858 = vld [vmem:[%s2 + $0x110] sm:$0xff]
    %v1859 = vld [vmem:[%s2 + $0x118] sm:$0xff]
    %v1860 = vld [vmem:[%s2 + $0x120] sm:$0xff]
    %v1861 = vld [vmem:[%s2 + $0x128] sm:$0xff]
    %v1862 = vld [vmem:[%s2 + $0x130] sm:$0xff]
    %v1863 = vld [vmem:[%s2 + $0x138] sm:$0xff]
    %v1864 = vld [vmem:[%s2 + $0x140] sm:$0xff]
    %v1865 = vld [vmem:[%s2 + $0x148] sm:$0xff]
    %v1866 = vld [vmem:[%s2 + $0x150] sm:$0xff]
    %v1867 = vld [vmem:[%s2 + $0x158] sm:$0xff]
    %v1868 = vld [vmem:[%s2 + $0x160] sm:$0xff]
    %v1869 = vld [vmem:[%s2 + $0x168] sm:$0xff]
    %v1870 = vld [vmem:[%s2 + $0x170] sm:$0xff]
    %v1871 = vld [vmem:[%s2 + $0x178] sm:$0xff]
    %v1872 = vld [vmem:[%s2 + $0x180] sm:$0xff]
    %v1873 = vld [vmem:[%s2 + $0x188] sm:$0xff]
    %v1874 = vld [vmem:[%s2 + $0x190] sm:$0xff]
    %v1875 = vld [vmem:[%s2 + $0x198] sm:$0xff]
    %v1876 = vld [vmem:[%s2 + $0x1a0] sm:$0xff]
    %v1877 = vld [vmem:[%s2 + $0x1a8] sm:$0xff]
    %v1878 = vld [vmem:[%s2 + $0x1b0] sm:$0xff]
    %v1879 = vld [vmem:[%s2 + $0x1b8] sm:$0xff]
    %v1880 = vld [vmem:[%s2 + $0x1c0] sm:$0xff]
    %v1881 = vld [vmem:[%s2 + $0x1c8] sm:$0xff]
    %v1882 = vld [vmem:[%s2 + $0x1d0] sm:$0xff]
    %v1883 = vld [vmem:[%s2 + $0x1d8] sm:$0xff]
    %v1884 = vld [vmem:[%s2 + $0x1e0] sm:$0xff]
    %v1885 = vld [vmem:[%s2 + $0x1e8] sm:$0xff]
    %v1886 = vld [vmem:[%s2 + $0x1f0] sm:$0xff]
    %v1887 = vld [vmem:[%s2 + $0x1f8] sm:$0xff]
    %v1888 = vld [vmem:[%s2 + $0x200] sm:$0xff]
    %v1889 = vld [vmem:[%s2 + $0x208] sm:$0xff]
    %v1890 = vld [vmem:[%s2 + $0x210] sm:$0xff]
    %v1891 = vld [vmem:[%s2 + $0x218] sm:$0xff]
    %v1892 = vld [vmem:[%s2 + $0x220] sm:$0xff]
    %v1893 = vld [vmem:[%s2 + $0x228] sm:$0xff]
    %v1894 = vld [vmem:[%s2 + $0x230] sm:$0xff]
    %v1895 = vld [vmem:[%s2 + $0x238] sm:$0xff]
    %v1896 = vld [vmem:[%s2 + $0x240] sm:$0xff]
    %v1897 = vld [vmem:[%s2 + $0x248] sm:$0xff]
    %v1898 = vld [vmem:[%s2 + $0x250] sm:$0xff]
    %v1899 = vld [vmem:[%s2 + $0x258] sm:$0xff]
    %v1900 = vld [vmem:[%s2 + $0x260] sm:$0xff]
    %v1901 = vld [vmem:[%s2 + $0x268] sm:$0xff]
    %v1902 = vld [vmem:[%s2 + $0x270] sm:$0xff]
    %v1903 = vld [vmem:[%s2 + $0x278] sm:$0xff]
    %v1904 = vld [vmem:[%s2 + $0x280] sm:$0xff]
    %v1905 = vld [vmem:[%s2 + $0x288] sm:$0xff]
    %v1906 = vld [vmem:[%s2 + $0x290] sm:$0xff]
    %v1907 = vld [vmem:[%s2 + $0x298] sm:$0xff]
    %v1908 = vld [vmem:[%s2 + $0x2a0] sm:$0xff]
    %v1909 = vld [vmem:[%s2 + $0x2a8] sm:$0xff]
    %v1910 = vld [vmem:[%s2 + $0x2b0] sm:$0xff]
    %v1911 = vld [vmem:[%s2 + $0x2b8] sm:$0xff]
    %v1912 = vld [vmem:[%s2 + $0x2c0] sm:$0xff]
    %v1913 = vld [vmem:[%s2 + $0x2c8] sm:$0xff]
    %v1914 = vld [vmem:[%s2 + $0x2d0] sm:$0xff]
    %v1915 = vld [vmem:[%s2 + $0x2d8] sm:$0xff]
    %v1916 = vld [vmem:[%s2 + $0x2e0] sm:$0xff]
    %v1917 = vld [vmem:[%s2 + $0x2e8] sm:$0xff]
    %v1918 = vld [vmem:[%s2 + $0x2f0] sm:$0xff]
    %v1919 = vld [vmem:[%s2 + $0x2f8] sm:$0xff]
    %v1920 = vpack.c.bf16 %v1818, %v1812
    %v1921 = vpack.c.bf16 %v1819, %v1813
    %v1922 = vpack.c.bf16 %v1820, %v1814
    %v1923 = vpack.c.bf16 %v1821, %v1815
    %v1924 = vpack.c.bf16 %v1822, %v1816
    %v1925 = vpack.c.bf16 %v1823, %v1817
    %v1926 = vld [vmem:[%s2 + $0x300] sm:$0xff]
    %v1927 = vld [vmem:[%s2 + $0x308] sm:$0xff]
    %v1928 = vld [vmem:[%s2 + $0x310] sm:$0xff]
    %v1929 = vld [vmem:[%s2 + $0x318] sm:$0xff]
    %v1930 = vld [vmem:[%s2 + $0x320] sm:$0xff]
    %v1931 = vld [vmem:[%s2 + $0x328] sm:$0xff]
    %v1932 = vld [vmem:[%s2 + $0x330] sm:$0xff]
    %v1933 = vld [vmem:[%s2 + $0x338] sm:$0xff]
    %v1934 = vld [vmem:[%s2 + $0x340] sm:$0xff]
    %v1935 = vld [vmem:[%s2 + $0x348] sm:$0xff]
    %v1936 = vld [vmem:[%s2 + $0x350] sm:$0xff]
    %v1937 = vld [vmem:[%s2 + $0x358] sm:$0xff]
    %v1938 = vld [vmem:[%s2 + $0x360] sm:$0xff]
    %v1939 = vld [vmem:[%s2 + $0x368] sm:$0xff]
    %v1940 = vld [vmem:[%s2 + $0x370] sm:$0xff]
    %v1941 = vld [vmem:[%s2 + $0x378] sm:$0xff]
    %v1942 = vld [vmem:[%s2 + $0x380] sm:$0xff]
    %v1943 = vld [vmem:[%s2 + $0x388] sm:$0xff]
    %v1944 = vld [vmem:[%s2 + $0x390] sm:$0xff]
    %v1945 = vld [vmem:[%s2 + $0x398] sm:$0xff]
    %v1946 = vld [vmem:[%s2 + $0x3a0] sm:$0xff]
    %v1947 = vld [vmem:[%s2 + $0x3a8] sm:$0xff]
    %v1948 = vld [vmem:[%s2 + $0x3b0] sm:$0xff]
    %v1949 = vld [vmem:[%s2 + $0x3b8] sm:$0xff]
    %v1950 = vld [vmem:[%s2 + $0x3c0] sm:$0xff]
    %v1951 = vld [vmem:[%s2 + $0x3c8] sm:$0xff]
    %v1952 = vld [vmem:[%s2 + $0x3d0] sm:$0xff]
    %v1953 = vld [vmem:[%s2 + $0x3d8] sm:$0xff]
    %v1954 = vld [vmem:[%s2 + $0x3e0] sm:$0xff]
    %v1955 = vld [vmem:[%s2 + $0x3e8] sm:$0xff]
    %v1956 = vld [vmem:[%s2 + $0x3f0] sm:$0xff]
    %v1957 = vld [vmem:[%s2 + $0x3f8] sm:$0xff]
    %v1958 = vld [vmem:[%s2 + $0x400] sm:$0xff]
    %v1959 = vld [vmem:[%s2 + $0x408] sm:$0xff]
    %v1960 = vld [vmem:[%s2 + $0x410] sm:$0xff]
    %v1961 = vld [vmem:[%s2 + $0x418] sm:$0xff]
    %v1962 = vld [vmem:[%s2 + $0x420] sm:$0xff]
    %v1963 = vld [vmem:[%s2 + $0x428] sm:$0xff]
    %v1964 = vld [vmem:[%s2 + $0x430] sm:$0xff]
    %v1965 = vld [vmem:[%s2 + $0x438] sm:$0xff]
    %v1966 = vld [vmem:[%s2 + $0x440] sm:$0xff]
    %v1967 = vld [vmem:[%s2 + $0x448] sm:$0xff]
    %v1968 = vld [vmem:[%s2 + $0x450] sm:$0xff]
    %v1969 = vld [vmem:[%s2 + $0x458] sm:$0xff]
    %v1970 = vld [vmem:[%s2 + $0x460] sm:$0xff]
    %v1971 = vld [vmem:[%s2 + $0x468] sm:$0xff]
    %v1972 = vld [vmem:[%s2 + $0x470] sm:$0xff]
    %v1973 = vld [vmem:[%s2 + $0x478] sm:$0xff]
    %v1974 = vld [vmem:[%s2 + $0x480] sm:$0xff]
    %v1975 = vld [vmem:[%s2 + $0x488] sm:$0xff]
    %v1976 = vld [vmem:[%s2 + $0x490] sm:$0xff]
    %v1977 = vld [vmem:[%s2 + $0x498] sm:$0xff]
    %v1978 = vld [vmem:[%s2 + $0x4a0] sm:$0xff]
    %v1979 = vld [vmem:[%s2 + $0x4a8] sm:$0xff]
    %v1980 = vld [vmem:[%s2 + $0x4b0] sm:$0xff]
    %v1981 = vld [vmem:[%s2 + $0x4b8] sm:$0xff]
    %v1982 = vld [vmem:[%s2 + $0x4c0] sm:$0xff]
    %v1983 = vld [vmem:[%s2 + $0x4c8] sm:$0xff]
    %v1984 = vld [vmem:[%s2 + $0x4d0] sm:$0xff]
    %v1985 = vld [vmem:[%s2 + $0x4d8] sm:$0xff]
    %v1986 = vld [vmem:[%s2 + $0x4e0] sm:$0xff]
    %v1987 = vld [vmem:[%s2 + $0x4e8] sm:$0xff]
    %v1988 = vld [vmem:[%s2 + $0x4f0] sm:$0xff]
    %v1989 = vld [vmem:[%s2 + $0x4f8] sm:$0xff]
    %v1990 = vld [vmem:[%s2 + $0x500] sm:$0xff]
    %v1991 = vld [vmem:[%s2 + $0x508] sm:$0xff]
    %v1992 = vld [vmem:[%s2 + $0x510] sm:$0xff]
    %v1993 = vld [vmem:[%s2 + $0x518] sm:$0xff]
    %v1994 = vld [vmem:[%s2 + $0x520] sm:$0xff]
    %v1995 = vld [vmem:[%s2 + $0x528] sm:$0xff]
    %v1996 = vld [vmem:[%s2 + $0x530] sm:$0xff]
    %v1997 = vld [vmem:[%s2 + $0x538] sm:$0xff]
    %v1998 = vld [vmem:[%s2 + $0x540] sm:$0xff]
    %v1999 = vld [vmem:[%s2 + $0x548] sm:$0xff]
    %v2000 = vld [vmem:[%s2 + $0x550] sm:$0xff]
    %v2001 = vld [vmem:[%s2 + $0x558] sm:$0xff]
    %v2002 = vld [vmem:[%s2 + $0x560] sm:$0xff]
    %v2003 = vld [vmem:[%s2 + $0x568] sm:$0xff]
    %v2004 = vld [vmem:[%s2 + $0x570] sm:$0xff]
    %v2005 = vld [vmem:[%s2 + $0x578] sm:$0xff]
    %v2006 = vld [vmem:[%s2 + $0x580] sm:$0xff]
    %v2007 = vld [vmem:[%s2 + $0x588] sm:$0xff]
    %v2008 = vld [vmem:[%s2 + $0x590] sm:$0xff]
    %v2009 = vld [vmem:[%s2 + $0x598] sm:$0xff]
    %v2010 = vld [vmem:[%s2 + $0x5a0] sm:$0xff]
    %v2011 = vld [vmem:[%s2 + $0x5a8] sm:$0xff]
    %v2012 = vld [vmem:[%s2 + $0x5b0] sm:$0xff]
    %v2013 = vld [vmem:[%s2 + $0x5b8] sm:$0xff]
    %v2014 = vld [vmem:[%s2 + $0x5c0] sm:$0xff]
    %v2015 = vld [vmem:[%s2 + $0x5c8] sm:$0xff]
    %v2016 = vld [vmem:[%s2 + $0x5d0] sm:$0xff]
    %v2017 = vld [vmem:[%s2 + $0x5d8] sm:$0xff]
    %v2018 = vld [vmem:[%s2 + $0x5e0] sm:$0xff]
    %v2019 = vld [vmem:[%s2 + $0x5e8] sm:$0xff]
    %v2020 = vld [vmem:[%s2 + $0x5f0] sm:$0xff]
    %v2021 = vld [vmem:[%s2 + $0x5f8] sm:$0xff]
    %v2023 = vshrl.u32 %v1920, 16
    %v2025 = vshll.u32 %v1920, 16
    %v2027 = vrot.slane %v2025, 1
    %v2028 = vor.u32 %v2023, %v2027
    %v2030 = vshrl.u32 %v1921, 16
    %v2032 = vshll.u32 %v1921, 16
    %v2034 = vrot.slane %v2032, 1
    %v2035 = vor.u32 %v2030, %v2034
    %v2037 = vshrl.u32 %v1922, 16
    %v2039 = vshll.u32 %v1922, 16
    %v2041 = vrot.slane %v2039, 1
    %v2042 = vor.u32 %v2037, %v2041
    %v2044 = vshrl.u32 %v1923, 16
    %v2046 = vshll.u32 %v1923, 16
    %v2048 = vrot.slane %v2046, 1
    %v2049 = vor.u32 %v2044, %v2048
    %v2051 = vshrl.u32 %v1924, 16
    %v2053 = vshll.u32 %v1924, 16
    %v2055 = vrot.slane %v2053, 1
    %v2056 = vor.u32 %v2051, %v2055
    %v2058 = vshrl.u32 %v1925, 16
    %v2060 = vshll.u32 %v1925, 16
    %v2062 = vrot.slane %v2060, 1
    %v2063 = vor.u32 %v2058, %v2062
    %v2166 = vunpack.c.l.b16 %v1926
    %v2167 = vunpack.c.h.b16 %v1926
    %v2168 = vunpack.c.l.b16 %v1927
    %v2169 = vunpack.c.h.b16 %v1927
    %v2170 = vunpack.c.l.b16 %v1928
    %v2171 = vunpack.c.h.b16 %v1928
    %v2172 = vunpack.c.l.b16 %v1929
    %v2173 = vunpack.c.h.b16 %v1929
    %v2174 = vunpack.c.l.b16 %v1930
    %v2175 = vunpack.c.h.b16 %v1930
    %v2176 = vunpack.c.l.b16 %v1931
    %v2177 = vunpack.c.h.b16 %v1931
    %v2178 = vunpack.c.l.b16 %v1932
    %v2179 = vunpack.c.h.b16 %v1932
    %v2180 = vunpack.c.l.b16 %v1933
    %v2181 = vunpack.c.h.b16 %v1933
    %v2182 = vunpack.c.l.b16 %v1934
    %v2183 = vunpack.c.h.b16 %v1934
    %v2184 = vunpack.c.l.b16 %v1935
    %v2185 = vunpack.c.h.b16 %v1935
    %v2186 = vunpack.c.l.b16 %v1936
    %v2187 = vunpack.c.h.b16 %v1936
    %v2188 = vunpack.c.l.b16 %v1937
    %v2189 = vunpack.c.h.b16 %v1937
    %v2190 = vunpack.c.l.b16 %v1938
    %v2191 = vunpack.c.h.b16 %v1938
    %v2192 = vunpack.c.l.b16 %v1939
    %v2193 = vunpack.c.h.b16 %v1939
    %v2194 = vunpack.c.l.b16 %v1940
    %v2195 = vunpack.c.h.b16 %v1940
    %v2196 = vunpack.c.l.b16 %v1941
    %v2197 = vunpack.c.h.b16 %v1941
    %v2198 = vunpack.c.l.b16 %v1942
    %v2199 = vunpack.c.h.b16 %v1942
    %v2200 = vunpack.c.l.b16 %v1943
    %v2201 = vunpack.c.h.b16 %v1943
    %v2202 = vunpack.c.l.b16 %v1944
    %v2203 = vunpack.c.h.b16 %v1944
    %v2204 = vunpack.c.l.b16 %v1945
    %v2205 = vunpack.c.h.b16 %v1945
    %v2206 = vunpack.c.l.b16 %v1946
    %v2207 = vunpack.c.h.b16 %v1946
    %v2208 = vunpack.c.l.b16 %v1947
    %v2209 = vunpack.c.h.b16 %v1947
    %v2210 = vunpack.c.l.b16 %v1948
    %v2211 = vunpack.c.h.b16 %v1948
    %v2212 = vunpack.c.l.b16 %v1949
    %v2213 = vunpack.c.h.b16 %v1949
    %v2214 = vunpack.c.l.b16 %v1950
    %v2215 = vunpack.c.h.b16 %v1950
    %v2216 = vunpack.c.l.b16 %v1951
    %v2217 = vunpack.c.h.b16 %v1951
    %v2218 = vunpack.c.l.b16 %v1952
    %v2219 = vunpack.c.h.b16 %v1952
    %v2220 = vunpack.c.l.b16 %v1953
    %v2221 = vunpack.c.h.b16 %v1953
    %v2222 = vunpack.c.l.b16 %v1954
    %v2223 = vunpack.c.h.b16 %v1954
    %v2224 = vunpack.c.l.b16 %v1955
    %v2225 = vunpack.c.h.b16 %v1955
    %v2226 = vunpack.c.l.b16 %v1956
    %v2227 = vunpack.c.h.b16 %v1956
    %v2228 = vunpack.c.l.b16 %v1957
    %v2229 = vunpack.c.h.b16 %v1957
    %v2230 = vunpack.c.l.b16 %v1958
    %v2231 = vunpack.c.h.b16 %v1958
    %v2232 = vunpack.c.l.b16 %v1959
    %v2233 = vunpack.c.h.b16 %v1959
    %v2234 = vunpack.c.l.b16 %v1960
    %v2235 = vunpack.c.h.b16 %v1960
    %v2236 = vunpack.c.l.b16 %v1961
    %v2237 = vunpack.c.h.b16 %v1961
    %v2238 = vunpack.c.l.b16 %v1962
    %v2239 = vunpack.c.h.b16 %v1962
    %v2240 = vunpack.c.l.b16 %v1963
    %v2241 = vunpack.c.h.b16 %v1963
    %v2242 = vunpack.c.l.b16 %v1964
    %v2243 = vunpack.c.h.b16 %v1964
    %v2244 = vunpack.c.l.b16 %v1965
    %v2245 = vunpack.c.h.b16 %v1965
    %v2246 = vunpack.c.l.b16 %v1966
    %v2247 = vunpack.c.h.b16 %v1966
    %v2248 = vunpack.c.l.b16 %v1967
    %v2249 = vunpack.c.h.b16 %v1967
    %v2250 = vunpack.c.l.b16 %v1968
    %v2251 = vunpack.c.h.b16 %v1968
    %v2252 = vunpack.c.l.b16 %v1969
    %v2253 = vunpack.c.h.b16 %v1969
    %v2254 = vunpack.c.l.b16 %v1970
    %v2255 = vunpack.c.h.b16 %v1970
    %v2256 = vunpack.c.l.b16 %v1971
    %v2257 = vunpack.c.h.b16 %v1971
    %v2258 = vunpack.c.l.b16 %v1972
    %v2259 = vunpack.c.h.b16 %v1972
    %v2260 = vunpack.c.l.b16 %v1973
    %v2261 = vunpack.c.h.b16 %v1973
    %v2262 = vunpack.c.l.b16 %v1974
    %v2263 = vunpack.c.h.b16 %v1974
    %v2264 = vunpack.c.l.b16 %v1975
    %v2265 = vunpack.c.h.b16 %v1975
    %v2266 = vunpack.c.l.b16 %v1976
    %v2267 = vunpack.c.h.b16 %v1976
    %v2268 = vunpack.c.l.b16 %v1977
    %v2269 = vunpack.c.h.b16 %v1977
    %v2270 = vunpack.c.l.b16 %v1978
    %v2271 = vunpack.c.h.b16 %v1978
    %v2272 = vunpack.c.l.b16 %v1979
    %v2273 = vunpack.c.h.b16 %v1979
    %v2274 = vunpack.c.l.b16 %v1980
    %v2275 = vunpack.c.h.b16 %v1980
    %v2276 = vunpack.c.l.b16 %v1981
    %v2277 = vunpack.c.h.b16 %v1981
    %v2278 = vunpack.c.l.b16 %v1982
    %v2279 = vunpack.c.h.b16 %v1982
    %v2280 = vunpack.c.l.b16 %v1983
    %v2281 = vunpack.c.h.b16 %v1983
    %v2282 = vunpack.c.l.b16 %v1984
    %v2283 = vunpack.c.h.b16 %v1984
    %v2284 = vunpack.c.l.b16 %v1985
    %v2285 = vunpack.c.h.b16 %v1985
    %v2286 = vunpack.c.l.b16 %v1986
    %v2287 = vunpack.c.h.b16 %v1986
    %v2288 = vunpack.c.l.b16 %v1987
    %v2289 = vunpack.c.h.b16 %v1987
    %v2290 = vunpack.c.l.b16 %v1988
    %v2291 = vunpack.c.h.b16 %v1988
    %v2292 = vunpack.c.l.b16 %v1989
    %v2293 = vunpack.c.h.b16 %v1989
    %v2294 = vunpack.c.l.b16 %v1990
    %v2295 = vunpack.c.h.b16 %v1990
    %v2296 = vunpack.c.l.b16 %v1991
    %v2297 = vunpack.c.h.b16 %v1991
    %v2298 = vunpack.c.l.b16 %v1992
    %v2299 = vunpack.c.h.b16 %v1992
    %v2300 = vunpack.c.l.b16 %v1993
    %v2301 = vunpack.c.h.b16 %v1993
    %v2302 = vunpack.c.l.b16 %v1994
    %v2303 = vunpack.c.h.b16 %v1994
    %v2304 = vunpack.c.l.b16 %v1995
    %v2305 = vunpack.c.h.b16 %v1995
    %v2306 = vunpack.c.l.b16 %v1996
    %v2307 = vunpack.c.h.b16 %v1996
    %v2308 = vunpack.c.l.b16 %v1997
    %v2309 = vunpack.c.h.b16 %v1997
    %v2310 = vunpack.c.l.b16 %v1998
    %v2311 = vunpack.c.h.b16 %v1998
    %v2312 = vunpack.c.l.b16 %v1999
    %v2313 = vunpack.c.h.b16 %v1999
    %v2314 = vunpack.c.l.b16 %v2000
    %v2315 = vunpack.c.h.b16 %v2000
    %v2316 = vunpack.c.l.b16 %v2001
    %v2317 = vunpack.c.h.b16 %v2001
    %v2318 = vunpack.c.l.b16 %v2002
    %v2319 = vunpack.c.h.b16 %v2002
    %v2320 = vunpack.c.l.b16 %v2003
    %v2321 = vunpack.c.h.b16 %v2003
    %v2322 = vunpack.c.l.b16 %v2004
    %v2323 = vunpack.c.h.b16 %v2004
    %v2324 = vunpack.c.l.b16 %v2005
    %v2325 = vunpack.c.h.b16 %v2005
    %v2326 = vunpack.c.l.b16 %v2006
    %v2327 = vunpack.c.h.b16 %v2006
    %v2328 = vunpack.c.l.b16 %v2007
    %v2329 = vunpack.c.h.b16 %v2007
    %v2330 = vunpack.c.l.b16 %v2008
    %v2331 = vunpack.c.h.b16 %v2008
    %v2332 = vunpack.c.l.b16 %v2009
    %v2333 = vunpack.c.h.b16 %v2009
    %v2334 = vunpack.c.l.b16 %v2010
    %v2335 = vunpack.c.h.b16 %v2010
    %v2336 = vunpack.c.l.b16 %v2011
    %v2337 = vunpack.c.h.b16 %v2011
    %v2338 = vunpack.c.l.b16 %v2012
    %v2339 = vunpack.c.h.b16 %v2012
    %v2340 = vunpack.c.l.b16 %v2013
    %v2341 = vunpack.c.h.b16 %v2013
    %v2342 = vunpack.c.l.b16 %v2014
    %v2343 = vunpack.c.h.b16 %v2014
    %v2344 = vunpack.c.l.b16 %v2015
    %v2345 = vunpack.c.h.b16 %v2015
    %v2346 = vunpack.c.l.b16 %v2016
    %v2347 = vunpack.c.h.b16 %v2016
    %v2348 = vunpack.c.l.b16 %v2017
    %v2349 = vunpack.c.h.b16 %v2017
    %v2350 = vunpack.c.l.b16 %v2018
    %v2351 = vunpack.c.h.b16 %v2018
    %v2352 = vunpack.c.l.b16 %v2019
    %v2353 = vunpack.c.h.b16 %v2019
    %v2354 = vunpack.c.l.b16 %v2020
    %v2355 = vunpack.c.h.b16 %v2020
    %v2356 = vunpack.c.l.b16 %v2021
    %v2357 = vunpack.c.h.b16 %v2021
    %v2358 = vpack.c.b16 %v2168, %v2166
    %v2359 = vpack.c.b16 %v2169, %v2167
    %v2360 = vpack.c.b16 %v2172, %v2170
    %v2361 = vpack.c.b16 %v2173, %v2171
    %v2362 = vpack.c.b16 %v2176, %v2174
    %v2363 = vpack.c.b16 %v2177, %v2175
    %v2364 = vpack.c.b16 %v2180, %v2178
    %v2365 = vpack.c.b16 %v2181, %v2179
    %v2366 = vpack.c.b16 %v2184, %v2182
    %v2367 = vpack.c.b16 %v2185, %v2183
    %v2368 = vpack.c.b16 %v2188, %v2186
    %v2369 = vpack.c.b16 %v2189, %v2187
    %v2370 = vpack.c.b16 %v2192, %v2190
    %v2371 = vpack.c.b16 %v2193, %v2191
    %v2372 = vpack.c.b16 %v2196, %v2194
    %v2373 = vpack.c.b16 %v2197, %v2195
    %v2374 = vpack.c.b16 %v2200, %v2198
    %v2375 = vpack.c.b16 %v2201, %v2199
    %v2376 = vpack.c.b16 %v2204, %v2202
    %v2377 = vpack.c.b16 %v2205, %v2203
    %v2378 = vpack.c.b16 %v2208, %v2206
    %v2379 = vpack.c.b16 %v2209, %v2207
    %v2380 = vpack.c.b16 %v2212, %v2210
    %v2381 = vpack.c.b16 %v2213, %v2211
    %v2382 = vpack.c.b16 %v2216, %v2214
    %v2383 = vpack.c.b16 %v2217, %v2215
    %v2384 = vpack.c.b16 %v2220, %v2218
    %v2385 = vpack.c.b16 %v2221, %v2219
    %v2386 = vpack.c.b16 %v2224, %v2222
    %v2387 = vpack.c.b16 %v2225, %v2223
    %v2388 = vpack.c.b16 %v2228, %v2226
    %v2389 = vpack.c.b16 %v2229, %v2227
    %v2390 = vpack.c.b16 %v2232, %v2230
    %v2391 = vpack.c.b16 %v2233, %v2231
    %v2392 = vpack.c.b16 %v2236, %v2234
    %v2393 = vpack.c.b16 %v2237, %v2235
    %v2394 = vpack.c.b16 %v2240, %v2238
    %v2395 = vpack.c.b16 %v2241, %v2239
    %v2396 = vpack.c.b16 %v2244, %v2242
    %v2397 = vpack.c.b16 %v2245, %v2243
    %v2398 = vpack.c.b16 %v2248, %v2246
    %v2399 = vpack.c.b16 %v2249, %v2247
    %v2400 = vpack.c.b16 %v2252, %v2250
    %v2401 = vpack.c.b16 %v2253, %v2251
    %v2402 = vpack.c.b16 %v2256, %v2254
    %v2403 = vpack.c.b16 %v2257, %v2255
    %v2404 = vpack.c.b16 %v2260, %v2258
    %v2405 = vpack.c.b16 %v2261, %v2259
    %v2406 = vpack.c.b16 %v2264, %v2262
    %v2407 = vpack.c.b16 %v2265, %v2263
    %v2408 = vpack.c.b16 %v2268, %v2266
    %v2409 = vpack.c.b16 %v2269, %v2267
    %v2410 = vpack.c.b16 %v2272, %v2270
    %v2411 = vpack.c.b16 %v2273, %v2271
    %v2412 = vpack.c.b16 %v2276, %v2274
    %v2413 = vpack.c.b16 %v2277, %v2275
    %v2414 = vpack.c.b16 %v2280, %v2278
    %v2415 = vpack.c.b16 %v2281, %v2279
    %v2416 = vpack.c.b16 %v2284, %v2282
    %v2417 = vpack.c.b16 %v2285, %v2283
    %v2418 = vpack.c.b16 %v2288, %v2286
    %v2419 = vpack.c.b16 %v2289, %v2287
    %v2420 = vpack.c.b16 %v2292, %v2290
    %v2421 = vpack.c.b16 %v2293, %v2291
    %v2422 = vpack.c.b16 %v2296, %v2294
    %v2423 = vpack.c.b16 %v2297, %v2295
    %v2424 = vpack.c.b16 %v2300, %v2298
    %v2425 = vpack.c.b16 %v2301, %v2299
    %v2426 = vpack.c.b16 %v2304, %v2302
    %v2427 = vpack.c.b16 %v2305, %v2303
    %v2428 = vpack.c.b16 %v2308, %v2306
    %v2429 = vpack.c.b16 %v2309, %v2307
    %v2430 = vpack.c.b16 %v2312, %v2310
    %v2431 = vpack.c.b16 %v2313, %v2311
    %v2432 = vpack.c.b16 %v2316, %v2314
    %v2433 = vpack.c.b16 %v2317, %v2315
    %v2434 = vpack.c.b16 %v2320, %v2318
    %v2435 = vpack.c.b16 %v2321, %v2319
    %v2436 = vpack.c.b16 %v2324, %v2322
    %v2437 = vpack.c.b16 %v2325, %v2323
    %v2438 = vpack.c.b16 %v2328, %v2326
    %v2439 = vpack.c.b16 %v2329, %v2327
    %v2440 = vpack.c.b16 %v2332, %v2330
    %v2441 = vpack.c.b16 %v2333, %v2331
    %v2442 = vpack.c.b16 %v2336, %v2334
    %v2443 = vpack.c.b16 %v2337, %v2335
    %v2444 = vpack.c.b16 %v2340, %v2338
    %v2445 = vpack.c.b16 %v2341, %v2339
    %v2446 = vpack.c.b16 %v2344, %v2342
    %v2447 = vpack.c.b16 %v2345, %v2343
    %v2448 = vpack.c.b16 %v2348, %v2346
    %v2449 = vpack.c.b16 %v2349, %v2347
    %v2450 = vpack.c.b16 %v2352, %v2350
    %v2451 = vpack.c.b16 %v2353, %v2351
    %v2452 = vpack.c.b16 %v2356, %v2354
    %v2453 = vpack.c.b16 %v2357, %v2355
    %2550 = vmatprep.subr.bf16.mxu0 %v2359
    %2551 = vmatpush1.bf16.msra.mxu0 %v2358
    %2552 = vmatprep.subr.bf16.mxu0 %v2361
    %2553 = vmatpush1.bf16.msra.mxu0 %v2360
    %2554 = vmatprep.subr.bf16.mxu0 %v2363
    %2555 = vmatpush1.bf16.msra.mxu0 %v2362
    %2556 = vmatprep.subr.bf16.mxu0 %v2365
    %2557 = vmatpush1.bf16.msra.mxu0 %v2364
    %2558 = vmatprep.subr.bf16.mxu0 %v2367
    %2559 = vmatpush1.bf16.msra.mxu0 %v2366
    %2560 = vmatprep.subr.bf16.mxu0 %v2369
    %2561 = vmatpush1.bf16.msra.mxu0 %v2368
    %2562 = vmatprep.subr.bf16.mxu0 %v2371
    %2563 = vmatpush1.bf16.msra.mxu0 %v2370
    %2564 = vmatprep.subr.bf16.mxu0 %v2373
    %2565 = vmatpush1.bf16.msra.mxu0 %v2372
    %2566 = vmatprep.subr.bf16.mxu0 %v2375
    %2567 = vmatpush1.bf16.msra.mxu0 %v2374
    %2568 = vmatprep.subr.bf16.mxu0 %v2377
    %2569 = vmatpush1.bf16.msra.mxu0 %v2376
    %2570 = vmatprep.subr.bf16.mxu0 %v2379
    %2571 = vmatpush1.bf16.msra.mxu0 %v2378
    %2572 = vmatprep.subr.bf16.mxu0 %v2381
    %2573 = vmatpush1.bf16.msra.mxu0 %v2380
    %2574 = vmatprep.subr.bf16.mxu0 %v2383
    %2575 = vmatpush1.bf16.msra.mxu0 %v2382
    %2576 = vmatprep.subr.bf16.mxu0 %v2385
    %2577 = vmatpush1.bf16.msra.mxu0 %v2384
    %2578 = vmatprep.subr.bf16.mxu0 %v2387
    %2579 = vmatpush1.bf16.msra.mxu0 %v2386
    %2580 = vmatprep.subr.bf16.mxu0 %v2389
    %2581 = vmatpush1.bf16.msra.mxu0 %v2388
    %2582 = vmatprep.mubr.bf16.mxu0 %v2035
    %2583 = vmatmul.mubr.bf16.gmra.mrb[0].mxu0 %v2028
    %v2584 = vpop.f32.mrb[0].mxu0
    %v2585 = vadd.f32 0.0, %v2584
    %v2586 = vpop.f32.mrb[0].mxu0
    %v2587 = vadd.f32 0.0, %v2586
    %v2588 = vpop.f32.mrb[0].mxu0
    %v2589 = vadd.f32 0.0, %v2588
    %v2590 = vpop.f32.mrb[0].mxu0
    %v2591 = vadd.f32 0.0, %v2590
    %2592 = vdwg.mxu0
    %2593 = vmatprep.subr.bf16.mxu0 %v2391
    %2594 = vmatpush1.bf16.msra.mxu0 %v2390
    %2595 = vmatprep.subr.bf16.mxu0 %v2393
    %2596 = vmatpush1.bf16.msra.mxu0 %v2392
    %2597 = vmatprep.subr.bf16.mxu0 %v2395
    %2598 = vmatpush1.bf16.msra.mxu0 %v2394
    %2599 = vmatprep.subr.bf16.mxu0 %v2397
    %2600 = vmatpush1.bf16.msra.mxu0 %v2396
    %2601 = vmatprep.subr.bf16.mxu0 %v2399
    %2602 = vmatpush1.bf16.msra.mxu0 %v2398
    %2603 = vmatprep.subr.bf16.mxu0 %v2401
    %2604 = vmatpush1.bf16.msra.mxu0 %v2400
    %2605 = vmatprep.subr.bf16.mxu0 %v2403
    %2606 = vmatpush1.bf16.msra.mxu0 %v2402
    %2607 = vmatprep.subr.bf16.mxu0 %v2405
    %2608 = vmatpush1.bf16.msra.mxu0 %v2404
    %2609 = vmatprep.subr.bf16.mxu0 %v2407
    %2610 = vmatpush1.bf16.msra.mxu0 %v2406
    %2611 = vmatprep.subr.bf16.mxu0 %v2409
    %2612 = vmatpush1.bf16.msra.mxu0 %v2408
    %2613 = vmatprep.subr.bf16.mxu0 %v2411
    %2614 = vmatpush1.bf16.msra.mxu0 %v2410
    %2615 = vmatprep.subr.bf16.mxu0 %v2413
    %2616 = vmatpush1.bf16.msra.mxu0 %v2412
    %2617 = vmatprep.subr.bf16.mxu0 %v2415
    %2618 = vmatpush1.bf16.msra.mxu0 %v2414
    %2619 = vmatprep.subr.bf16.mxu0 %v2417
    %2620 = vmatpush1.bf16.msra.mxu0 %v2416
    %2621 = vmatprep.subr.bf16.mxu0 %v2419
    %2622 = vmatpush1.bf16.msra.mxu0 %v2418
    %2623 = vmatprep.subr.bf16.mxu0 %v2421
    %2624 = vmatpush1.bf16.msra.mxu0 %v2420
    %2625 = vmatprep.mubr.bf16.mxu0 %v2049
    %2626 = vmatmul.mubr.bf16.gmra.mrb[0].mxu0 %v2042
    %v2627 = vpop.f32.mrb[0].mxu0
    %v2628 = vadd.f32 %v2585, %v2627
    %v2629 = vpop.f32.mrb[0].mxu0
    %v2630 = vadd.f32 %v2587, %v2629
    %v2631 = vpop.f32.mrb[0].mxu0
    %v2632 = vadd.f32 %v2589, %v2631
    %v2633 = vpop.f32.mrb[0].mxu0
    %v2634 = vadd.f32 %v2591, %v2633
    %2635 = vdwg.mxu0
    %2636 = vmatprep.subr.bf16.mxu0 %v2423
    %2637 = vmatpush1.bf16.msra.mxu0 %v2422
    %2638 = vmatprep.subr.bf16.mxu0 %v2425
    %2639 = vmatpush1.bf16.msra.mxu0 %v2424
    %2640 = vmatprep.subr.bf16.mxu0 %v2427
    %2641 = vmatpush1.bf16.msra.mxu0 %v2426
    %2642 = vmatprep.subr.bf16.mxu0 %v2429
    %2643 = vmatpush1.bf16.msra.mxu0 %v2428
    %2644 = vmatprep.subr.bf16.mxu0 %v2431
    %2645 = vmatpush1.bf16.msra.mxu0 %v2430
    %2646 = vmatprep.subr.bf16.mxu0 %v2433
    %2647 = vmatpush1.bf16.msra.mxu0 %v2432
    %2648 = vmatprep.subr.bf16.mxu0 %v2435
    %2649 = vmatpush1.bf16.msra.mxu0 %v2434
    %2650 = vmatprep.subr.bf16.mxu0 %v2437
    %2651 = vmatpush1.bf16.msra.mxu0 %v2436
    %2652 = vmatprep.subr.bf16.mxu0 %v2439
    %2653 = vmatpush1.bf16.msra.mxu0 %v2438
    %2654 = vmatprep.subr.bf16.mxu0 %v2441
    %2655 = vmatpush1.bf16.msra.mxu0 %v2440
    %2656 = vmatprep.subr.bf16.mxu0 %v2443
    %2657 = vmatpush1.bf16.msra.mxu0 %v2442
    %2658 = vmatprep.subr.bf16.mxu0 %v2445
    %2659 = vmatpush1.bf16.msra.mxu0 %v2444
    %2660 = vmatprep.subr.bf16.mxu0 %v2447
    %2661 = vmatpush1.bf16.msra.mxu0 %v2446
    %2662 = vmatprep.subr.bf16.mxu0 %v2449
    %2663 = vmatpush1.bf16.msra.mxu0 %v2448
    %2664 = vmatprep.subr.bf16.mxu0 %v2451
    %2665 = vmatpush1.bf16.msra.mxu0 %v2450
    %2666 = vmatprep.subr.bf16.mxu0 %v2453
    %2667 = vmatpush1.bf16.msra.mxu0 %v2452
    %2668 = vmatprep.mubr.bf16.mxu0 %v2063
    %2669 = vmatmul.mubr.bf16.gmra.mrb[0].mxu0 %v2056
    %v2670 = vpop.f32.mrb[0].mxu0
    %v2671 = vadd.f32 %v2628, %v2670
    %v2672 = vpop.f32.mrb[0].mxu0
    %v2673 = vadd.f32 %v2630, %v2672
    %v2674 = vpop.f32.mrb[0].mxu0
    %v2675 = vadd.f32 %v2632, %v2674
    %v2676 = vpop.f32.mrb[0].mxu0
    %v2677 = vadd.f32 %v2634, %v2676
    %2678 = vdwg.mxu0
    %v2775 = vunpack.c.l.b16 %v1824
    %v2776 = vunpack.c.h.b16 %v1824
    %v2777 = vunpack.c.l.b16 %v1825
    %v2778 = vunpack.c.h.b16 %v1825
    %v2779 = vunpack.c.l.b16 %v1826
    %v2780 = vunpack.c.h.b16 %v1826
    %v2781 = vunpack.c.l.b16 %v1827
    %v2782 = vunpack.c.h.b16 %v1827
    %v2783 = vunpack.c.l.b16 %v1828
    %v2784 = vunpack.c.h.b16 %v1828
    %v2785 = vunpack.c.l.b16 %v1829
    %v2786 = vunpack.c.h.b16 %v1829
    %v2787 = vunpack.c.l.b16 %v1830
    %v2788 = vunpack.c.h.b16 %v1830
    %v2789 = vunpack.c.l.b16 %v1831
    %v2790 = vunpack.c.h.b16 %v1831
    %v2791 = vunpack.c.l.b16 %v1832
    %v2792 = vunpack.c.h.b16 %v1832
    %v2793 = vunpack.c.l.b16 %v1833
    %v2794 = vunpack.c.h.b16 %v1833
    %v2795 = vunpack.c.l.b16 %v1834
    %v2796 = vunpack.c.h.b16 %v1834
    %v2797 = vunpack.c.l.b16 %v1835
    %v2798 = vunpack.c.h.b16 %v1835
    %v2799 = vunpack.c.l.b16 %v1836
    %v2800 = vunpack.c.h.b16 %v1836
    %v2801 = vunpack.c.l.b16 %v1837
    %v2802 = vunpack.c.h.b16 %v1837
    %v2803 = vunpack.c.l.b16 %v1838
    %v2804 = vunpack.c.h.b16 %v1838
    %v2805 = vunpack.c.l.b16 %v1839
    %v2806 = vunpack.c.h.b16 %v1839
    %v2807 = vunpack.c.l.b16 %v1840
    %v2808 = vunpack.c.h.b16 %v1840
    %v2809 = vunpack.c.l.b16 %v1841
    %v2810 = vunpack.c.h.b16 %v1841
    %v2811 = vunpack.c.l.b16 %v1842
    %v2812 = vunpack.c.h.b16 %v1842
    %v2813 = vunpack.c.l.b16 %v1843
    %v2814 = vunpack.c.h.b16 %v1843
    %v2815 = vunpack.c.l.b16 %v1844
    %v2816 = vunpack.c.h.b16 %v1844
    %v2817 = vunpack.c.l.b16 %v1845
    %v2818 = vunpack.c.h.b16 %v1845
    %v2819 = vunpack.c.l.b16 %v1846
    %v2820 = vunpack.c.h.b16 %v1846
    %v2821 = vunpack.c.l.b16 %v1847
    %v2822 = vunpack.c.h.b16 %v1847
    %v2823 = vunpack.c.l.b16 %v1848
    %v2824 = vunpack.c.h.b16 %v1848
    %v2825 = vunpack.c.l.b16 %v1849
    %v2826 = vunpack.c.h.b16 %v1849
    %v2827 = vunpack.c.l.b16 %v1850
    %v2828 = vunpack.c.h.b16 %v1850
    %v2829 = vunpack.c.l.b16 %v1851
    %v2830 = vunpack.c.h.b16 %v1851
    %v2831 = vunpack.c.l.b16 %v1852
    %v2832 = vunpack.c.h.b16 %v1852
    %v2833 = vunpack.c.l.b16 %v1853
    %v2834 = vunpack.c.h.b16 %v1853
    %v2835 = vunpack.c.l.b16 %v1854
    %v2836 = vunpack.c.h.b16 %v1854
    %v2837 = vunpack.c.l.b16 %v1855
    %v2838 = vunpack.c.h.b16 %v1855
    %v2839 = vunpack.c.l.b16 %v1856
    %v2840 = vunpack.c.h.b16 %v1856
    %v2841 = vunpack.c.l.b16 %v1857
    %v2842 = vunpack.c.h.b16 %v1857
    %v2843 = vunpack.c.l.b16 %v1858
    %v2844 = vunpack.c.h.b16 %v1858
    %v2845 = vunpack.c.l.b16 %v1859
    %v2846 = vunpack.c.h.b16 %v1859
    %v2847 = vunpack.c.l.b16 %v1860
    %v2848 = vunpack.c.h.b16 %v1860
    %v2849 = vunpack.c.l.b16 %v1861
    %v2850 = vunpack.c.h.b16 %v1861
    %v2851 = vunpack.c.l.b16 %v1862
    %v2852 = vunpack.c.h.b16 %v1862
    %v2853 = vunpack.c.l.b16 %v1863
    %v2854 = vunpack.c.h.b16 %v1863
    %v2855 = vunpack.c.l.b16 %v1864
    %v2856 = vunpack.c.h.b16 %v1864
    %v2857 = vunpack.c.l.b16 %v1865
    %v2858 = vunpack.c.h.b16 %v1865
    %v2859 = vunpack.c.l.b16 %v1866
    %v2860 = vunpack.c.h.b16 %v1866
    %v2861 = vunpack.c.l.b16 %v1867
    %v2862 = vunpack.c.h.b16 %v1867
    %v2863 = vunpack.c.l.b16 %v1868
    %v2864 = vunpack.c.h.b16 %v1868
    %v2865 = vunpack.c.l.b16 %v1869
    %v2866 = vunpack.c.h.b16 %v1869
    %v2867 = vunpack.c.l.b16 %v1870
    %v2868 = vunpack.c.h.b16 %v1870
    %v2869 = vunpack.c.l.b16 %v1871
    %v2870 = vunpack.c.h.b16 %v1871
    %v2871 = vunpack.c.l.b16 %v1872
    %v2872 = vunpack.c.h.b16 %v1872
    %v2873 = vunpack.c.l.b16 %v1873
    %v2874 = vunpack.c.h.b16 %v1873
    %v2875 = vunpack.c.l.b16 %v1874
    %v2876 = vunpack.c.h.b16 %v1874
    %v2877 = vunpack.c.l.b16 %v1875
    %v2878 = vunpack.c.h.b16 %v1875
    %v2879 = vunpack.c.l.b16 %v1876
    %v2880 = vunpack.c.h.b16 %v1876
    %v2881 = vunpack.c.l.b16 %v1877
    %v2882 = vunpack.c.h.b16 %v1877
    %v2883 = vunpack.c.l.b16 %v1878
    %v2884 = vunpack.c.h.b16 %v1878
    %v2885 = vunpack.c.l.b16 %v1879
    %v2886 = vunpack.c.h.b16 %v1879
    %v2887 = vunpack.c.l.b16 %v1880
    %v2888 = vunpack.c.h.b16 %v1880
    %v2889 = vunpack.c.l.b16 %v1881
    %v2890 = vunpack.c.h.b16 %v1881
    %v2891 = vunpack.c.l.b16 %v1882
    %v2892 = vunpack.c.h.b16 %v1882
    %v2893 = vunpack.c.l.b16 %v1883
    %v2894 = vunpack.c.h.b16 %v1883
    %v2895 = vunpack.c.l.b16 %v1884
    %v2896 = vunpack.c.h.b16 %v1884
    %v2897 = vunpack.c.l.b16 %v1885
    %v2898 = vunpack.c.h.b16 %v1885
    %v2899 = vunpack.c.l.b16 %v1886
    %v2900 = vunpack.c.h.b16 %v1886
    %v2901 = vunpack.c.l.b16 %v1887
    %v2902 = vunpack.c.h.b16 %v1887
    %v2903 = vunpack.c.l.b16 %v1888
    %v2904 = vunpack.c.h.b16 %v1888
    %v2905 = vunpack.c.l.b16 %v1889
    %v2906 = vunpack.c.h.b16 %v1889
    %v2907 = vunpack.c.l.b16 %v1890
    %v2908 = vunpack.c.h.b16 %v1890
    %v2909 = vunpack.c.l.b16 %v1891
    %v2910 = vunpack.c.h.b16 %v1891
    %v2911 = vunpack.c.l.b16 %v1892
    %v2912 = vunpack.c.h.b16 %v1892
    %v2913 = vunpack.c.l.b16 %v1893
    %v2914 = vunpack.c.h.b16 %v1893
    %v2915 = vunpack.c.l.b16 %v1894
    %v2916 = vunpack.c.h.b16 %v1894
    %v2917 = vunpack.c.l.b16 %v1895
    %v2918 = vunpack.c.h.b16 %v1895
    %v2919 = vunpack.c.l.b16 %v1896
    %v2920 = vunpack.c.h.b16 %v1896
    %v2921 = vunpack.c.l.b16 %v1897
    %v2922 = vunpack.c.h.b16 %v1897
    %v2923 = vunpack.c.l.b16 %v1898
    %v2924 = vunpack.c.h.b16 %v1898
    %v2925 = vunpack.c.l.b16 %v1899
    %v2926 = vunpack.c.h.b16 %v1899
    %v2927 = vunpack.c.l.b16 %v1900
    %v2928 = vunpack.c.h.b16 %v1900
    %v2929 = vunpack.c.l.b16 %v1901
    %v2930 = vunpack.c.h.b16 %v1901
    %v2931 = vunpack.c.l.b16 %v1902
    %v2932 = vunpack.c.h.b16 %v1902
    %v2933 = vunpack.c.l.b16 %v1903
    %v2934 = vunpack.c.h.b16 %v1903
    %v2935 = vunpack.c.l.b16 %v1904
    %v2936 = vunpack.c.h.b16 %v1904
    %v2937 = vunpack.c.l.b16 %v1905
    %v2938 = vunpack.c.h.b16 %v1905
    %v2939 = vunpack.c.l.b16 %v1906
    %v2940 = vunpack.c.h.b16 %v1906
    %v2941 = vunpack.c.l.b16 %v1907
    %v2942 = vunpack.c.h.b16 %v1907
    %v2943 = vunpack.c.l.b16 %v1908
    %v2944 = vunpack.c.h.b16 %v1908
    %v2945 = vunpack.c.l.b16 %v1909
    %v2946 = vunpack.c.h.b16 %v1909
    %v2947 = vunpack.c.l.b16 %v1910
    %v2948 = vunpack.c.h.b16 %v1910
    %v2949 = vunpack.c.l.b16 %v1911
    %v2950 = vunpack.c.h.b16 %v1911
    %v2951 = vunpack.c.l.b16 %v1912
    %v2952 = vunpack.c.h.b16 %v1912
    %v2953 = vunpack.c.l.b16 %v1913
    %v2954 = vunpack.c.h.b16 %v1913
    %v2955 = vunpack.c.l.b16 %v1914
    %v2956 = vunpack.c.h.b16 %v1914
    %v2957 = vunpack.c.l.b16 %v1915
    %v2958 = vunpack.c.h.b16 %v1915
    %v2959 = vunpack.c.l.b16 %v1916
    %v2960 = vunpack.c.h.b16 %v1916
    %v2961 = vunpack.c.l.b16 %v1917
    %v2962 = vunpack.c.h.b16 %v1917
    %v2963 = vunpack.c.l.b16 %v1918
    %v2964 = vunpack.c.h.b16 %v1918
    %v2965 = vunpack.c.l.b16 %v1919
    %v2966 = vunpack.c.h.b16 %v1919
    %v2967 = vpack.c.b16 %v2777, %v2775
    %v2968 = vpack.c.b16 %v2778, %v2776
    %v2969 = vpack.c.b16 %v2781, %v2779
    %v2970 = vpack.c.b16 %v2782, %v2780
    %v2971 = vpack.c.b16 %v2785, %v2783
    %v2972 = vpack.c.b16 %v2786, %v2784
    %v2973 = vpack.c.b16 %v2789, %v2787
    %v2974 = vpack.c.b16 %v2790, %v2788
    %v2975 = vpack.c.b16 %v2793, %v2791
    %v2976 = vpack.c.b16 %v2794, %v2792
    %v2977 = vpack.c.b16 %v2797, %v2795
    %v2978 = vpack.c.b16 %v2798, %v2796
    %v2979 = vpack.c.b16 %v2801, %v2799
    %v2980 = vpack.c.b16 %v2802, %v2800
    %v2981 = vpack.c.b16 %v2805, %v2803
    %v2982 = vpack.c.b16 %v2806, %v2804
    %v2983 = vpack.c.b16 %v2809, %v2807
    %v2984 = vpack.c.b16 %v2810, %v2808
    %v2985 = vpack.c.b16 %v2813, %v2811
    %v2986 = vpack.c.b16 %v2814, %v2812
    %v2987 = vpack.c.b16 %v2817, %v2815
    %v2988 = vpack.c.b16 %v2818, %v2816
    %v2989 = vpack.c.b16 %v2821, %v2819
    %v2990 = vpack.c.b16 %v2822, %v2820
    %v2991 = vpack.c.b16 %v2825, %v2823
    %v2992 = vpack.c.b16 %v2826, %v2824
    %v2993 = vpack.c.b16 %v2829, %v2827
    %v2994 = vpack.c.b16 %v2830, %v2828
    %v2995 = vpack.c.b16 %v2833, %v2831
    %v2996 = vpack.c.b16 %v2834, %v2832
    %v2997 = vpack.c.b16 %v2837, %v2835
    %v2998 = vpack.c.b16 %v2838, %v2836
    %v2999 = vpack.c.b16 %v2841, %v2839
    %v3000 = vpack.c.b16 %v2842, %v2840
    %v3001 = vpack.c.b16 %v2845, %v2843
    %v3002 = vpack.c.b16 %v2846, %v2844
    %v3003 = vpack.c.b16 %v2849, %v2847
    %v3004 = vpack.c.b16 %v2850, %v2848
    %v3005 = vpack.c.b16 %v2853, %v2851
    %v3006 = vpack.c.b16 %v2854, %v2852
    %v3007 = vpack.c.b16 %v2857, %v2855
    %v3008 = vpack.c.b16 %v2858, %v2856
    %v3009 = vpack.c.b16 %v2861, %v2859
    %v3010 = vpack.c.b16 %v2862, %v2860
    %v3011 = vpack.c.b16 %v2865, %v2863
    %v3012 = vpack.c.b16 %v2866, %v2864
    %v3013 = vpack.c.b16 %v2869, %v2867
    %v3014 = vpack.c.b16 %v2870, %v2868
    %v3015 = vpack.c.b16 %v2873, %v2871
    %v3016 = vpack.c.b16 %v2874, %v2872
    %v3017 = vpack.c.b16 %v2877, %v2875
    %v3018 = vpack.c.b16 %v2878, %v2876
    %v3019 = vpack.c.b16 %v2881, %v2879
    %v3020 = vpack.c.b16 %v2882, %v2880
    %v3021 = vpack.c.b16 %v2885, %v2883
    %v3022 = vpack.c.b16 %v2886, %v2884
    %v3023 = vpack.c.b16 %v2889, %v2887
    %v3024 = vpack.c.b16 %v2890, %v2888
    %v3025 = vpack.c.b16 %v2893, %v2891
    %v3026 = vpack.c.b16 %v2894, %v2892
    %v3027 = vpack.c.b16 %v2897, %v2895
    %v3028 = vpack.c.b16 %v2898, %v2896
    %v3029 = vpack.c.b16 %v2901, %v2899
    %v3030 = vpack.c.b16 %v2902, %v2900
    %v3031 = vpack.c.b16 %v2905, %v2903
    %v3032 = vpack.c.b16 %v2906, %v2904
    %v3033 = vpack.c.b16 %v2909, %v2907
    %v3034 = vpack.c.b16 %v2910, %v2908
    %v3035 = vpack.c.b16 %v2913, %v2911
    %v3036 = vpack.c.b16 %v2914, %v2912
    %v3037 = vpack.c.b16 %v2917, %v2915
    %v3038 = vpack.c.b16 %v2918, %v2916
    %v3039 = vpack.c.b16 %v2921, %v2919
    %v3040 = vpack.c.b16 %v2922, %v2920
    %v3041 = vpack.c.b16 %v2925, %v2923
    %v3042 = vpack.c.b16 %v2926, %v2924
    %v3043 = vpack.c.b16 %v2929, %v2927
    %v3044 = vpack.c.b16 %v2930, %v2928
    %v3045 = vpack.c.b16 %v2933, %v2931
    %v3046 = vpack.c.b16 %v2934, %v2932
    %v3047 = vpack.c.b16 %v2937, %v2935
    %v3048 = vpack.c.b16 %v2938, %v2936
    %v3049 = vpack.c.b16 %v2941, %v2939
    %v3050 = vpack.c.b16 %v2942, %v2940
    %v3051 = vpack.c.b16 %v2945, %v2943
    %v3052 = vpack.c.b16 %v2946, %v2944
    %v3053 = vpack.c.b16 %v2949, %v2947
    %v3054 = vpack.c.b16 %v2950, %v2948
    %v3055 = vpack.c.b16 %v2953, %v2951
    %v3056 = vpack.c.b16 %v2954, %v2952
    %v3057 = vpack.c.b16 %v2957, %v2955
    %v3058 = vpack.c.b16 %v2958, %v2956
    %v3059 = vpack.c.b16 %v2961, %v2959
    %v3060 = vpack.c.b16 %v2962, %v2960
    %v3061 = vpack.c.b16 %v2965, %v2963
    %v3062 = vpack.c.b16 %v2966, %v2964
    %3159 = vmatprep.subr.bf16.mxu0 %v2968
    %3160 = vmatpush1.bf16.msra.mxu0 %v2967
    %3161 = vmatprep.subr.bf16.mxu0 %v2970
    %3162 = vmatpush1.bf16.msra.mxu0 %v2969
    %3163 = vmatprep.subr.bf16.mxu0 %v2972
    %3164 = vmatpush1.bf16.msra.mxu0 %v2971
    %3165 = vmatprep.subr.bf16.mxu0 %v2974
    %3166 = vmatpush1.bf16.msra.mxu0 %v2973
    %3167 = vmatprep.subr.bf16.mxu0 %v2976
    %3168 = vmatpush1.bf16.msra.mxu0 %v2975
    %3169 = vmatprep.subr.bf16.mxu0 %v2978
    %3170 = vmatpush1.bf16.msra.mxu0 %v2977
    %3171 = vmatprep.subr.bf16.mxu0 %v2980
    %3172 = vmatpush1.bf16.msra.mxu0 %v2979
    %3173 = vmatprep.subr.bf16.mxu0 %v2982
    %3174 = vmatpush1.bf16.msra.mxu0 %v2981
    %3175 = vmatprep.subr.bf16.mxu0 %v2984
    %3176 = vmatpush1.bf16.msra.mxu0 %v2983
    %3177 = vmatprep.subr.bf16.mxu0 %v2986
    %3178 = vmatpush1.bf16.msra.mxu0 %v2985
    %3179 = vmatprep.subr.bf16.mxu0 %v2988
    %3180 = vmatpush1.bf16.msra.mxu0 %v2987
    %3181 = vmatprep.subr.bf16.mxu0 %v2990
    %3182 = vmatpush1.bf16.msra.mxu0 %v2989
    %3183 = vmatprep.subr.bf16.mxu0 %v2992
    %3184 = vmatpush1.bf16.msra.mxu0 %v2991
    %3185 = vmatprep.subr.bf16.mxu0 %v2994
    %3186 = vmatpush1.bf16.msra.mxu0 %v2993
    %3187 = vmatprep.subr.bf16.mxu0 %v2996
    %3188 = vmatpush1.bf16.msra.mxu0 %v2995
    %3189 = vmatprep.subr.bf16.mxu0 %v2998
    %3190 = vmatpush1.bf16.msra.mxu0 %v2997
    %3191 = vmatprep.mubr.bf16.mxu0 %v1921
    %3192 = vmatmul.mubr.bf16.gmra.mrb[0].mxu0 %v1920
    %v3193 = vpop.f32.mrb[0].mxu0
    %v3194 = vadd.f32 %v2671, %v3193
    %v3195 = vpop.f32.mrb[0].mxu0
    %v3196 = vadd.f32 %v2673, %v3195
    %v3197 = vpop.f32.mrb[0].mxu0
    %v3198 = vadd.f32 %v2675, %v3197
    %v3199 = vpop.f32.mrb[0].mxu0
    %v3200 = vadd.f32 %v2677, %v3199
    %3201 = vdwg.mxu0
    %3202 = vmatprep.subr.bf16.mxu0 %v3000
    %3203 = vmatpush1.bf16.msra.mxu0 %v2999
    %3204 = vmatprep.subr.bf16.mxu0 %v3002
    %3205 = vmatpush1.bf16.msra.mxu0 %v3001
    %3206 = vmatprep.subr.bf16.mxu0 %v3004
    %3207 = vmatpush1.bf16.msra.mxu0 %v3003
    %3208 = vmatprep.subr.bf16.mxu0 %v3006
    %3209 = vmatpush1.bf16.msra.mxu0 %v3005
    %3210 = vmatprep.subr.bf16.mxu0 %v3008
    %3211 = vmatpush1.bf16.msra.mxu0 %v3007
    %3212 = vmatprep.subr.bf16.mxu0 %v3010
    %3213 = vmatpush1.bf16.msra.mxu0 %v3009
    %3214 = vmatprep.subr.bf16.mxu0 %v3012
    %3215 = vmatpush1.bf16.msra.mxu0 %v3011
    %3216 = vmatprep.subr.bf16.mxu0 %v3014
    %3217 = vmatpush1.bf16.msra.mxu0 %v3013
    %3218 = vmatprep.subr.bf16.mxu0 %v3016
    %3219 = vmatpush1.bf16.msra.mxu0 %v3015
    %3220 = vmatprep.subr.bf16.mxu0 %v3018
    %3221 = vmatpush1.bf16.msra.mxu0 %v3017
    %3222 = vmatprep.subr.bf16.mxu0 %v3020
    %3223 = vmatpush1.bf16.msra.mxu0 %v3019
    %3224 = vmatprep.subr.bf16.mxu0 %v3022
    %3225 = vmatpush1.bf16.msra.mxu0 %v3021
    %3226 = vmatprep.subr.bf16.mxu0 %v3024
    %3227 = vmatpush1.bf16.msra.mxu0 %v3023
    %3228 = vmatprep.subr.bf16.mxu0 %v3026
    %3229 = vmatpush1.bf16.msra.mxu0 %v3025
    %3230 = vmatprep.subr.bf16.mxu0 %v3028
    %3231 = vmatpush1.bf16.msra.mxu0 %v3027
    %3232 = vmatprep.subr.bf16.mxu0 %v3030
    %3233 = vmatpush1.bf16.msra.mxu0 %v3029
    %3234 = vmatprep.mubr.bf16.mxu0 %v1923
    %3235 = vmatmul.mubr.bf16.gmra.mrb[0].mxu0 %v1922
    %v3236 = vpop.f32.mrb[0].mxu0
    %v3237 = vadd.f32 %v3194, %v3236
    %v3238 = vpop.f32.mrb[0].mxu0
    %v3239 = vadd.f32 %v3196, %v3238
    %v3240 = vpop.f32.mrb[0].mxu0
    %v3241 = vadd.f32 %v3198, %v3240
    %v3242 = vpop.f32.mrb[0].mxu0
    %v3243 = vadd.f32 %v3200, %v3242
    %3244 = vdwg.mxu0
    %3245 = vmatprep.subr.bf16.mxu0 %v3032
    %3246 = vmatpush1.bf16.msra.mxu0 %v3031
    %3247 = vmatprep.subr.bf16.mxu0 %v3034
    %3248 = vmatpush1.bf16.msra.mxu0 %v3033
    %3249 = vmatprep.subr.bf16.mxu0 %v3036
    %3250 = vmatpush1.bf16.msra.mxu0 %v3035
    %3251 = vmatprep.subr.bf16.mxu0 %v3038
    %3252 = vmatpush1.bf16.msra.mxu0 %v3037
    %3253 = vmatprep.subr.bf16.mxu0 %v3040
    %3254 = vmatpush1.bf16.msra.mxu0 %v3039
    %3255 = vmatprep.subr.bf16.mxu0 %v3042
    %3256 = vmatpush1.bf16.msra.mxu0 %v3041
    %3257 = vmatprep.subr.bf16.mxu0 %v3044
    %3258 = vmatpush1.bf16.msra.mxu0 %v3043
    %3259 = vmatprep.subr.bf16.mxu0 %v3046
    %3260 = vmatpush1.bf16.msra.mxu0 %v3045
    %3261 = vmatprep.subr.bf16.mxu0 %v3048
    %3262 = vmatpush1.bf16.msra.mxu0 %v3047
    %3263 = vmatprep.subr.bf16.mxu0 %v3050
    %3264 = vmatpush1.bf16.msra.mxu0 %v3049
    %3265 = vmatprep.subr.bf16.mxu0 %v3052
    %3266 = vmatpush1.bf16.msra.mxu0 %v3051
    %3267 = vmatprep.subr.bf16.mxu0 %v3054
    %3268 = vmatpush1.bf16.msra.mxu0 %v3053
    %3269 = vmatprep.subr.bf16.mxu0 %v3056
    %3270 = vmatpush1.bf16.msra.mxu0 %v3055
    %3271 = vmatprep.subr.bf16.mxu0 %v3058
    %3272 = vmatpush1.bf16.msra.mxu0 %v3057
    %3273 = vmatprep.subr.bf16.mxu0 %v3060
    %3274 = vmatpush1.bf16.msra.mxu0 %v3059
    %3275 = vmatprep.subr.bf16.mxu0 %v3062
    %3276 = vmatpush1.bf16.msra.mxu0 %v3061
    %3277 = vmatprep.mubr.bf16.mxu0 %v1925
    %3278 = vmatmul.mubr.bf16.gmra.mrb[0].mxu0 %v1924
    %v3279 = vpop.f32.mrb[0].mxu0
    %v3280 = vadd.f32 %v3237, %v3279
    %v3281 = vpop.f32.mrb[0].mxu0
    %v3282 = vadd.f32 %v3239, %v3281
    %v3283 = vpop.f32.mrb[0].mxu0
    %v3284 = vadd.f32 %v3241, %v3283
    %v3285 = vpop.f32.mrb[0].mxu0
    %v3286 = vadd.f32 %v3243, %v3285
    %3287 = vdwg.mxu0
    %v3288 = vld [vmem:[%s2 + $0x600] sm:$0xff]
    %v3289 = vld [vmem:[%s2 + $0x608] sm:$0xff]
    %v3290 = vld [vmem:[%s2 + $0x610] sm:$0xff]
    %v3291 = vld [vmem:[%s2 + $0x618] sm:$0xff]
    %v3292 = vld [vmem:[%s2 + $0x620] sm:$0xff]
    %v3293 = vld [vmem:[%s2 + $0x628] sm:$0xff]
    %v3294 = vld [vmem:[%s2 + $0x630] sm:$0xff]
    %v3295 = vld [vmem:[%s2 + $0x638] sm:$0xff]
    %v3296 = vld [vmem:[%s2 + $0x640] sm:$0xff]
    %v3297 = vld [vmem:[%s2 + $0x648] sm:$0xff]
    %v3298 = vld [vmem:[%s2 + $0x650] sm:$0xff]
    %v3299 = vld [vmem:[%s2 + $0x658] sm:$0xff]
    %v3300 = vld [vmem:[%s2 + $0x660] sm:$0xff]
    %v3301 = vld [vmem:[%s2 + $0x668] sm:$0xff]
    %v3302 = vld [vmem:[%s2 + $0x670] sm:$0xff]
    %v3303 = vld [vmem:[%s2 + $0x678] sm:$0xff]
    %v3304 = vld [vmem:[%s2 + $0x680] sm:$0xff]
    %v3305 = vld [vmem:[%s2 + $0x688] sm:$0xff]
    %v3306 = vld [vmem:[%s2 + $0x690] sm:$0xff]
    %v3307 = vld [vmem:[%s2 + $0x698] sm:$0xff]
    %v3308 = vld [vmem:[%s2 + $0x6a0] sm:$0xff]
    %v3309 = vld [vmem:[%s2 + $0x6a8] sm:$0xff]
    %v3310 = vld [vmem:[%s2 + $0x6b0] sm:$0xff]
    %v3311 = vld [vmem:[%s2 + $0x6b8] sm:$0xff]
    %v3312 = vld [vmem:[%s2 + $0x6c0] sm:$0xff]
    %v3313 = vld [vmem:[%s2 + $0x6c8] sm:$0xff]
    %v3314 = vld [vmem:[%s2 + $0x6d0] sm:$0xff]
    %v3315 = vld [vmem:[%s2 + $0x6d8] sm:$0xff]
    %v3316 = vld [vmem:[%s2 + $0x6e0] sm:$0xff]
    %v3317 = vld [vmem:[%s2 + $0x6e8] sm:$0xff]
    %v3318 = vld [vmem:[%s2 + $0x6f0] sm:$0xff]
    %v3319 = vld [vmem:[%s2 + $0x6f8] sm:$0xff]
    %v3320 = vld [vmem:[%s2 + $0x700] sm:$0xff]
    %v3321 = vld [vmem:[%s2 + $0x708] sm:$0xff]
    %v3322 = vld [vmem:[%s2 + $0x710] sm:$0xff]
    %v3323 = vld [vmem:[%s2 + $0x718] sm:$0xff]
    %v3324 = vld [vmem:[%s2 + $0x720] sm:$0xff]
    %v3325 = vld [vmem:[%s2 + $0x728] sm:$0xff]
    %v3326 = vld [vmem:[%s2 + $0x730] sm:$0xff]
    %v3327 = vld [vmem:[%s2 + $0x738] sm:$0xff]
    %v3328 = vld [vmem:[%s2 + $0x740] sm:$0xff]
    %v3329 = vld [vmem:[%s2 + $0x748] sm:$0xff]
    %v3330 = vld [vmem:[%s2 + $0x750] sm:$0xff]
    %v3331 = vld [vmem:[%s2 + $0x758] sm:$0xff]
    %v3332 = vld [vmem:[%s2 + $0x760] sm:$0xff]
    %v3333 = vld [vmem:[%s2 + $0x768] sm:$0xff]
    %v3334 = vld [vmem:[%s2 + $0x770] sm:$0xff]
    %v3335 = vld [vmem:[%s2 + $0x778] sm:$0xff]
    %v3336 = vld [vmem:[%s2 + $0x780] sm:$0xff]
    %v3337 = vld [vmem:[%s2 + $0x788] sm:$0xff]
    %v3338 = vld [vmem:[%s2 + $0x790] sm:$0xff]
    %v3339 = vld [vmem:[%s2 + $0x798] sm:$0xff]
    %v3340 = vld [vmem:[%s2 + $0x7a0] sm:$0xff]
    %v3341 = vld [vmem:[%s2 + $0x7a8] sm:$0xff]
    %v3342 = vld [vmem:[%s2 + $0x7b0] sm:$0xff]
    %v3343 = vld [vmem:[%s2 + $0x7b8] sm:$0xff]
    %v3344 = vld [vmem:[%s2 + $0x7c0] sm:$0xff]
    %v3345 = vld [vmem:[%s2 + $0x7c8] sm:$0xff]
    %v3346 = vld [vmem:[%s2 + $0x7d0] sm:$0xff]
    %v3347 = vld [vmem:[%s2 + $0x7d8] sm:$0xff]
    %v3348 = vld [vmem:[%s2 + $0x7e0] sm:$0xff]
    %v3349 = vld [vmem:[%s2 + $0x7e8] sm:$0xff]
    %v3350 = vld [vmem:[%s2 + $0x7f0] sm:$0xff]
    %v3351 = vld [vmem:[%s2 + $0x7f8] sm:$0xff]
    %v3352 = vld [vmem:[%s2 + $0x800] sm:$0xff]
    %v3353 = vld [vmem:[%s2 + $0x808] sm:$0xff]
    %v3354 = vld [vmem:[%s2 + $0x810] sm:$0xff]
    %v3355 = vld [vmem:[%s2 + $0x818] sm:$0xff]
    %v3356 = vld [vmem:[%s2 + $0x820] sm:$0xff]
    %v3357 = vld [vmem:[%s2 + $0x828] sm:$0xff]
    %v3358 = vld [vmem:[%s2 + $0x830] sm:$0xff]
    %v3359 = vld [vmem:[%s2 + $0x838] sm:$0xff]
    %v3360 = vld [vmem:[%s2 + $0x840] sm:$0xff]
    %v3361 = vld [vmem:[%s2 + $0x848] sm:$0xff]
    %v3362 = vld [vmem:[%s2 + $0x850] sm:$0xff]
    %v3363 = vld [vmem:[%s2 + $0x858] sm:$0xff]
    %v3364 = vld [vmem:[%s2 + $0x860] sm:$0xff]
    %v3365 = vld [vmem:[%s2 + $0x868] sm:$0xff]
    %v3366 = vld [vmem:[%s2 + $0x870] sm:$0xff]
    %v3367 = vld [vmem:[%s2 + $0x878] sm:$0xff]
    %v3368 = vld [vmem:[%s2 + $0x880] sm:$0xff]
    %v3369 = vld [vmem:[%s2 + $0x888] sm:$0xff]
    %v3370 = vld [vmem:[%s2 + $0x890] sm:$0xff]
    %v3371 = vld [vmem:[%s2 + $0x898] sm:$0xff]
    %v3372 = vld [vmem:[%s2 + $0x8a0] sm:$0xff]
    %v3373 = vld [vmem:[%s2 + $0x8a8] sm:$0xff]
    %v3374 = vld [vmem:[%s2 + $0x8b0] sm:$0xff]
    %v3375 = vld [vmem:[%s2 + $0x8b8] sm:$0xff]
    %v3376 = vld [vmem:[%s2 + $0x8c0] sm:$0xff]
    %v3377 = vld [vmem:[%s2 + $0x8c8] sm:$0xff]
    %v3378 = vld [vmem:[%s2 + $0x8d0] sm:$0xff]
    %v3379 = vld [vmem:[%s2 + $0x8d8] sm:$0xff]
    %v3380 = vld [vmem:[%s2 + $0x8e0] sm:$0xff]
    %v3381 = vld [vmem:[%s2 + $0x8e8] sm:$0xff]
    %v3382 = vld [vmem:[%s2 + $0x8f0] sm:$0xff]
    %v3383 = vld [vmem:[%s2 + $0x8f8] sm:$0xff]
    %v3390 = vrot.slane %v1920, 1
    %v3391 = vrot.slane %v1921, 1
    %v3392 = vrot.slane %v1922, 1
    %v3393 = vrot.slane %v1923, 1
    %v3394 = vrot.slane %v1924, 1
    %v3395 = vrot.slane %v1925, 1
    %v3498 = vunpack.c.l.b16 %v3288
    %v3499 = vunpack.c.h.b16 %v3288
    %v3500 = vunpack.c.l.b16 %v3289
    %v3501 = vunpack.c.h.b16 %v3289
    %v3502 = vunpack.c.l.b16 %v3290
    %v3503 = vunpack.c.h.b16 %v3290
    %v3504 = vunpack.c.l.b16 %v3291
    %v3505 = vunpack.c.h.b16 %v3291
    %v3506 = vunpack.c.l.b16 %v3292
    %v3507 = vunpack.c.h.b16 %v3292
    %v3508 = vunpack.c.l.b16 %v3293
    %v3509 = vunpack.c.h.b16 %v3293
    %v3510 = vunpack.c.l.b16 %v3294
    %v3511 = vunpack.c.h.b16 %v3294
    %v3512 = vunpack.c.l.b16 %v3295
    %v3513 = vunpack.c.h.b16 %v3295
    %v3514 = vunpack.c.l.b16 %v3296
    %v3515 = vunpack.c.h.b16 %v3296
    %v3516 = vunpack.c.l.b16 %v3297
    %v3517 = vunpack.c.h.b16 %v3297
    %v3518 = vunpack.c.l.b16 %v3298
    %v3519 = vunpack.c.h.b16 %v3298
    %v3520 = vunpack.c.l.b16 %v3299
    %v3521 = vunpack.c.h.b16 %v3299
    %v3522 = vunpack.c.l.b16 %v3300
    %v3523 = vunpack.c.h.b16 %v3300
    %v3524 = vunpack.c.l.b16 %v3301
    %v3525 = vunpack.c.h.b16 %v3301
    %v3526 = vunpack.c.l.b16 %v3302
    %v3527 = vunpack.c.h.b16 %v3302
    %v3528 = vunpack.c.l.b16 %v3303
    %v3529 = vunpack.c.h.b16 %v3303
    %v3530 = vunpack.c.l.b16 %v3304
    %v3531 = vunpack.c.h.b16 %v3304
    %v3532 = vunpack.c.l.b16 %v3305
    %v3533 = vunpack.c.h.b16 %v3305
    %v3534 = vunpack.c.l.b16 %v3306
    %v3535 = vunpack.c.h.b16 %v3306
    %v3536 = vunpack.c.l.b16 %v3307
    %v3537 = vunpack.c.h.b16 %v3307
    %v3538 = vunpack.c.l.b16 %v3308
    %v3539 = vunpack.c.h.b16 %v3308
    %v3540 = vunpack.c.l.b16 %v3309
    %v3541 = vunpack.c.h.b16 %v3309
    %v3542 = vunpack.c.l.b16 %v3310
    %v3543 = vunpack.c.h.b16 %v3310
    %v3544 = vunpack.c.l.b16 %v3311
    %v3545 = vunpack.c.h.b16 %v3311
    %v3546 = vunpack.c.l.b16 %v3312
    %v3547 = vunpack.c.h.b16 %v3312
    %v3548 = vunpack.c.l.b16 %v3313
    %v3549 = vunpack.c.h.b16 %v3313
    %v3550 = vunpack.c.l.b16 %v3314
    %v3551 = vunpack.c.h.b16 %v3314
    %v3552 = vunpack.c.l.b16 %v3315
    %v3553 = vunpack.c.h.b16 %v3315
    %v3554 = vunpack.c.l.b16 %v3316
    %v3555 = vunpack.c.h.b16 %v3316
    %v3556 = vunpack.c.l.b16 %v3317
    %v3557 = vunpack.c.h.b16 %v3317
    %v3558 = vunpack.c.l.b16 %v3318
    %v3559 = vunpack.c.h.b16 %v3318
    %v3560 = vunpack.c.l.b16 %v3319
    %v3561 = vunpack.c.h.b16 %v3319
    %v3562 = vunpack.c.l.b16 %v3320
    %v3563 = vunpack.c.h.b16 %v3320
    %v3564 = vunpack.c.l.b16 %v3321
    %v3565 = vunpack.c.h.b16 %v3321
    %v3566 = vunpack.c.l.b16 %v3322
    %v3567 = vunpack.c.h.b16 %v3322
    %v3568 = vunpack.c.l.b16 %v3323
    %v3569 = vunpack.c.h.b16 %v3323
    %v3570 = vunpack.c.l.b16 %v3324
    %v3571 = vunpack.c.h.b16 %v3324
    %v3572 = vunpack.c.l.b16 %v3325
    %v3573 = vunpack.c.h.b16 %v3325
    %v3574 = vunpack.c.l.b16 %v3326
    %v3575 = vunpack.c.h.b16 %v3326
    %v3576 = vunpack.c.l.b16 %v3327
    %v3577 = vunpack.c.h.b16 %v3327
    %v3578 = vunpack.c.l.b16 %v3328
    %v3579 = vunpack.c.h.b16 %v3328
    %v3580 = vunpack.c.l.b16 %v3329
    %v3581 = vunpack.c.h.b16 %v3329
    %v3582 = vunpack.c.l.b16 %v3330
    %v3583 = vunpack.c.h.b16 %v3330
    %v3584 = vunpack.c.l.b16 %v3331
    %v3585 = vunpack.c.h.b16 %v3331
    %v3586 = vunpack.c.l.b16 %v3332
    %v3587 = vunpack.c.h.b16 %v3332
    %v3588 = vunpack.c.l.b16 %v3333
    %v3589 = vunpack.c.h.b16 %v3333
    %v3590 = vunpack.c.l.b16 %v3334
    %v3591 = vunpack.c.h.b16 %v3334
    %v3592 = vunpack.c.l.b16 %v3335
    %v3593 = vunpack.c.h.b16 %v3335
    %v3594 = vunpack.c.l.b16 %v3336
    %v3595 = vunpack.c.h.b16 %v3336
    %v3596 = vunpack.c.l.b16 %v3337
    %v3597 = vunpack.c.h.b16 %v3337
    %v3598 = vunpack.c.l.b16 %v3338
    %v3599 = vunpack.c.h.b16 %v3338
    %v3600 = vunpack.c.l.b16 %v3339
    %v3601 = vunpack.c.h.b16 %v3339
    %v3602 = vunpack.c.l.b16 %v3340
    %v3603 = vunpack.c.h.b16 %v3340
    %v3604 = vunpack.c.l.b16 %v3341
    %v3605 = vunpack.c.h.b16 %v3341
    %v3606 = vunpack.c.l.b16 %v3342
    %v3607 = vunpack.c.h.b16 %v3342
    %v3608 = vunpack.c.l.b16 %v3343
    %v3609 = vunpack.c.h.b16 %v3343
    %v3610 = vunpack.c.l.b16 %v3344
    %v3611 = vunpack.c.h.b16 %v3344
    %v3612 = vunpack.c.l.b16 %v3345
    %v3613 = vunpack.c.h.b16 %v3345
    %v3614 = vunpack.c.l.b16 %v3346
    %v3615 = vunpack.c.h.b16 %v3346
    %v3616 = vunpack.c.l.b16 %v3347
    %v3617 = vunpack.c.h.b16 %v3347
    %v3618 = vunpack.c.l.b16 %v3348
    %v3619 = vunpack.c.h.b16 %v3348
    %v3620 = vunpack.c.l.b16 %v3349
    %v3621 = vunpack.c.h.b16 %v3349
    %v3622 = vunpack.c.l.b16 %v3350
    %v3623 = vunpack.c.h.b16 %v3350
    %v3624 = vunpack.c.l.b16 %v3351
    %v3625 = vunpack.c.h.b16 %v3351
    %v3626 = vunpack.c.l.b16 %v3352
    %v3627 = vunpack.c.h.b16 %v3352
    %v3628 = vunpack.c.l.b16 %v3353
    %v3629 = vunpack.c.h.b16 %v3353
    %v3630 = vunpack.c.l.b16 %v3354
    %v3631 = vunpack.c.h.b16 %v3354
    %v3632 = vunpack.c.l.b16 %v3355
    %v3633 = vunpack.c.h.b16 %v3355
    %v3634 = vunpack.c.l.b16 %v3356
    %v3635 = vunpack.c.h.b16 %v3356
    %v3636 = vunpack.c.l.b16 %v3357
    %v3637 = vunpack.c.h.b16 %v3357
    %v3638 = vunpack.c.l.b16 %v3358
    %v3639 = vunpack.c.h.b16 %v3358
    %v3640 = vunpack.c.l.b16 %v3359
    %v3641 = vunpack.c.h.b16 %v3359
    %v3642 = vunpack.c.l.b16 %v3360
    %v3643 = vunpack.c.h.b16 %v3360
    %v3644 = vunpack.c.l.b16 %v3361
    %v3645 = vunpack.c.h.b16 %v3361
    %v3646 = vunpack.c.l.b16 %v3362
    %v3647 = vunpack.c.h.b16 %v3362
    %v3648 = vunpack.c.l.b16 %v3363
    %v3649 = vunpack.c.h.b16 %v3363
    %v3650 = vunpack.c.l.b16 %v3364
    %v3651 = vunpack.c.h.b16 %v3364
    %v3652 = vunpack.c.l.b16 %v3365
    %v3653 = vunpack.c.h.b16 %v3365
    %v3654 = vunpack.c.l.b16 %v3366
    %v3655 = vunpack.c.h.b16 %v3366
    %v3656 = vunpack.c.l.b16 %v3367
    %v3657 = vunpack.c.h.b16 %v3367
    %v3658 = vunpack.c.l.b16 %v3368
    %v3659 = vunpack.c.h.b16 %v3368
    %v3660 = vunpack.c.l.b16 %v3369
    %v3661 = vunpack.c.h.b16 %v3369
    %v3662 = vunpack.c.l.b16 %v3370
    %v3663 = vunpack.c.h.b16 %v3370
    %v3664 = vunpack.c.l.b16 %v3371
    %v3665 = vunpack.c.h.b16 %v3371
    %v3666 = vunpack.c.l.b16 %v3372
    %v3667 = vunpack.c.h.b16 %v3372
    %v3668 = vunpack.c.l.b16 %v3373
    %v3669 = vunpack.c.h.b16 %v3373
    %v3670 = vunpack.c.l.b16 %v3374
    %v3671 = vunpack.c.h.b16 %v3374
    %v3672 = vunpack.c.l.b16 %v3375
    %v3673 = vunpack.c.h.b16 %v3375
    %v3674 = vunpack.c.l.b16 %v3376
    %v3675 = vunpack.c.h.b16 %v3376
    %v3676 = vunpack.c.l.b16 %v3377
    %v3677 = vunpack.c.h.b16 %v3377
    %v3678 = vunpack.c.l.b16 %v3378
    %v3679 = vunpack.c.h.b16 %v3378
    %v3680 = vunpack.c.l.b16 %v3379
    %v3681 = vunpack.c.h.b16 %v3379
    %v3682 = vunpack.c.l.b16 %v3380
    %v3683 = vunpack.c.h.b16 %v3380
    %v3684 = vunpack.c.l.b16 %v3381
    %v3685 = vunpack.c.h.b16 %v3381
    %v3686 = vunpack.c.l.b16 %v3382
    %v3687 = vunpack.c.h.b16 %v3382
    %v3688 = vunpack.c.l.b16 %v3383
    %v3689 = vunpack.c.h.b16 %v3383
    %v3690 = vpack.c.b16 %v3500, %v3498
    %v3691 = vpack.c.b16 %v3501, %v3499
    %v3692 = vpack.c.b16 %v3504, %v3502
    %v3693 = vpack.c.b16 %v3505, %v3503
    %v3694 = vpack.c.b16 %v3508, %v3506
    %v3695 = vpack.c.b16 %v3509, %v3507
    %v3696 = vpack.c.b16 %v3512, %v3510
    %v3697 = vpack.c.b16 %v3513, %v3511
    %v3698 = vpack.c.b16 %v3516, %v3514
    %v3699 = vpack.c.b16 %v3517, %v3515
    %v3700 = vpack.c.b16 %v3520, %v3518
    %v3701 = vpack.c.b16 %v3521, %v3519
    %v3702 = vpack.c.b16 %v3524, %v3522
    %v3703 = vpack.c.b16 %v3525, %v3523
    %v3704 = vpack.c.b16 %v3528, %v3526
    %v3705 = vpack.c.b16 %v3529, %v3527
    %v3706 = vpack.c.b16 %v3532, %v3530
    %v3707 = vpack.c.b16 %v3533, %v3531
    %v3708 = vpack.c.b16 %v3536, %v3534
    %v3709 = vpack.c.b16 %v3537, %v3535
    %v3710 = vpack.c.b16 %v3540, %v3538
    %v3711 = vpack.c.b16 %v3541, %v3539
    %v3712 = vpack.c.b16 %v3544, %v3542
    %v3713 = vpack.c.b16 %v3545, %v3543
    %v3714 = vpack.c.b16 %v3548, %v3546
    %v3715 = vpack.c.b16 %v3549, %v3547
    %v3716 = vpack.c.b16 %v3552, %v3550
    %v3717 = vpack.c.b16 %v3553, %v3551
    %v3718 = vpack.c.b16 %v3556, %v3554
    %v3719 = vpack.c.b16 %v3557, %v3555
    %v3720 = vpack.c.b16 %v3560, %v3558
    %v3721 = vpack.c.b16 %v3561, %v3559
    %v3722 = vpack.c.b16 %v3564, %v3562
    %v3723 = vpack.c.b16 %v3565, %v3563
    %v3724 = vpack.c.b16 %v3568, %v3566
    %v3725 = vpack.c.b16 %v3569, %v3567
    %v3726 = vpack.c.b16 %v3572, %v3570
    %v3727 = vpack.c.b16 %v3573, %v3571
    %v3728 = vpack.c.b16 %v3576, %v3574
    %v3729 = vpack.c.b16 %v3577, %v3575
    %v3730 = vpack.c.b16 %v3580, %v3578
    %v3731 = vpack.c.b16 %v3581, %v3579
    %v3732 = vpack.c.b16 %v3584, %v3582
    %v3733 = vpack.c.b16 %v3585, %v3583
    %v3734 = vpack.c.b16 %v3588, %v3586
    %v3735 = vpack.c.b16 %v3589, %v3587
    %v3736 = vpack.c.b16 %v3592, %v3590
    %v3737 = vpack.c.b16 %v3593, %v3591
    %v3738 = vpack.c.b16 %v3596, %v3594
    %v3739 = vpack.c.b16 %v3597, %v3595
    %v3740 = vpack.c.b16 %v3600, %v3598
    %v3741 = vpack.c.b16 %v3601, %v3599
    %v3742 = vpack.c.b16 %v3604, %v3602
    %v3743 = vpack.c.b16 %v3605, %v3603
    %v3744 = vpack.c.b16 %v3608, %v3606
    %v3745 = vpack.c.b16 %v3609, %v3607
    %v3746 = vpack.c.b16 %v3612, %v3610
    %v3747 = vpack.c.b16 %v3613, %v3611
    %v3748 = vpack.c.b16 %v3616, %v3614
    %v3749 = vpack.c.b16 %v3617, %v3615
    %v3750 = vpack.c.b16 %v3620, %v3618
    %v3751 = vpack.c.b16 %v3621, %v3619
    %v3752 = vpack.c.b16 %v3624, %v3622
    %v3753 = vpack.c.b16 %v3625, %v3623
    %v3754 = vpack.c.b16 %v3628, %v3626
    %v3755 = vpack.c.b16 %v3629, %v3627
    %v3756 = vpack.c.b16 %v3632, %v3630
    %v3757 = vpack.c.b16 %v3633, %v3631
    %v3758 = vpack.c.b16 %v3636, %v3634
    %v3759 = vpack.c.b16 %v3637, %v3635
    %v3760 = vpack.c.b16 %v3640, %v3638
    %v3761 = vpack.c.b16 %v3641, %v3639
    %v3762 = vpack.c.b16 %v3644, %v3642
    %v3763 = vpack.c.b16 %v3645, %v3643
    %v3764 = vpack.c.b16 %v3648, %v3646
    %v3765 = vpack.c.b16 %v3649, %v3647
    %v3766 = vpack.c.b16 %v3652, %v3650
    %v3767 = vpack.c.b16 %v3653, %v3651
    %v3768 = vpack.c.b16 %v3656, %v3654
    %v3769 = vpack.c.b16 %v3657, %v3655
    %v3770 = vpack.c.b16 %v3660, %v3658
    %v3771 = vpack.c.b16 %v3661, %v3659
    %v3772 = vpack.c.b16 %v3664, %v3662
    %v3773 = vpack.c.b16 %v3665, %v3663
    %v3774 = vpack.c.b16 %v3668, %v3666
    %v3775 = vpack.c.b16 %v3669, %v3667
    %v3776 = vpack.c.b16 %v3672, %v3670
    %v3777 = vpack.c.b16 %v3673, %v3671
    %v3778 = vpack.c.b16 %v3676, %v3674
    %v3779 = vpack.c.b16 %v3677, %v3675
    %v3780 = vpack.c.b16 %v3680, %v3678
    %v3781 = vpack.c.b16 %v3681, %v3679
    %v3782 = vpack.c.b16 %v3684, %v3682
    %v3783 = vpack.c.b16 %v3685, %v3683
    %v3784 = vpack.c.b16 %v3688, %v3686
    %v3785 = vpack.c.b16 %v3689, %v3687
    %3882 = vmatprep.subr.bf16.mxu0 %v3691
    %3883 = vmatpush1.bf16.msra.mxu0 %v3690
    %3884 = vmatprep.subr.bf16.mxu0 %v3693
    %3885 = vmatpush1.bf16.msra.mxu0 %v3692
    %3886 = vmatprep.subr.bf16.mxu0 %v3695
    %3887 = vmatpush1.bf16.msra.mxu0 %v3694
    %3888 = vmatprep.subr.bf16.mxu0 %v3697
    %3889 = vmatpush1.bf16.msra.mxu0 %v3696
    %3890 = vmatprep.subr.bf16.mxu0 %v3699
    %3891 = vmatpush1.bf16.msra.mxu0 %v3698
    %3892 = vmatprep.subr.bf16.mxu0 %v3701
    %3893 = vmatpush1.bf16.msra.mxu0 %v3700
    %3894 = vmatprep.subr.bf16.mxu0 %v3703
    %3895 = vmatpush1.bf16.msra.mxu0 %v3702
    %3896 = vmatprep.subr.bf16.mxu0 %v3705
    %3897 = vmatpush1.bf16.msra.mxu0 %v3704
    %3898 = vmatprep.subr.bf16.mxu0 %v3707
    %3899 = vmatpush1.bf16.msra.mxu0 %v3706
    %3900 = vmatprep.subr.bf16.mxu0 %v3709
    %3901 = vmatpush1.bf16.msra.mxu0 %v3708
    %3902 = vmatprep.subr.bf16.mxu0 %v3711
    %3903 = vmatpush1.bf16.msra.mxu0 %v3710
    %3904 = vmatprep.subr.bf16.mxu0 %v3713
    %3905 = vmatpush1.bf16.msra.mxu0 %v3712
    %3906 = vmatprep.subr.bf16.mxu0 %v3715
    %3907 = vmatpush1.bf16.msra.mxu0 %v3714
    %3908 = vmatprep.subr.bf16.mxu0 %v3717
    %3909 = vmatpush1.bf16.msra.mxu0 %v3716
    %3910 = vmatprep.subr.bf16.mxu0 %v3719
    %3911 = vmatpush1.bf16.msra.mxu0 %v3718
    %3912 = vmatprep.subr.bf16.mxu0 %v3721
    %3913 = vmatpush1.bf16.msra.mxu0 %v3720
    %3914 = vmatprep.mubr.bf16.mxu0 %v3391
    %3915 = vmatmul.mubr.bf16.gmra.mrb[0].mxu0 %v3390
    %v3916 = vpop.f32.mrb[0].mxu0
    %v3917 = vadd.f32 0.0, %v3916
    %v3918 = vpop.f32.mrb[0].mxu0
    %v3919 = vadd.f32 0.0, %v3918
    %v3920 = vpop.f32.mrb[0].mxu0
    %v3921 = vadd.f32 0.0, %v3920
    %v3922 = vpop.f32.mrb[0].mxu0
    %v3923 = vadd.f32 0.0, %v3922
    %3924 = vdwg.mxu0
    %3925 = vmatprep.subr.bf16.mxu0 %v3723
    %3926 = vmatpush1.bf16.msra.mxu0 %v3722
    %3927 = vmatprep.subr.bf16.mxu0 %v3725
    %3928 = vmatpush1.bf16.msra.mxu0 %v3724
    %3929 = vmatprep.subr.bf16.mxu0 %v3727
    %3930 = vmatpush1.bf16.msra.mxu0 %v3726
    %3931 = vmatprep.subr.bf16.mxu0 %v3729
    %3932 = vmatpush1.bf16.msra.mxu0 %v3728
    %3933 = vmatprep.subr.bf16.mxu0 %v3731
    %3934 = vmatpush1.bf16.msra.mxu0 %v3730
    %3935 = vmatprep.subr.bf16.mxu0 %v3733
    %3936 = vmatpush1.bf16.msra.mxu0 %v3732
    %3937 = vmatprep.subr.bf16.mxu0 %v3735
    %3938 = vmatpush1.bf16.msra.mxu0 %v3734
    %3939 = vmatprep.subr.bf16.mxu0 %v3737
    %3940 = vmatpush1.bf16.msra.mxu0 %v3736
    %3941 = vmatprep.subr.bf16.mxu0 %v3739
    %3942 = vmatpush1.bf16.msra.mxu0 %v3738
    %3943 = vmatprep.subr.bf16.mxu0 %v3741
    %3944 = vmatpush1.bf16.msra.mxu0 %v3740
    %3945 = vmatprep.subr.bf16.mxu0 %v3743
    %3946 = vmatpush1.bf16.msra.mxu0 %v3742
    %3947 = vmatprep.subr.bf16.mxu0 %v3745
    %3948 = vmatpush1.bf16.msra.mxu0 %v3744
    %3949 = vmatprep.subr.bf16.mxu0 %v3747
    %3950 = vmatpush1.bf16.msra.mxu0 %v3746
    %3951 = vmatprep.subr.bf16.mxu0 %v3749
    %3952 = vmatpush1.bf16.msra.mxu0 %v3748
    %3953 = vmatprep.subr.bf16.mxu0 %v3751
    %3954 = vmatpush1.bf16.msra.mxu0 %v3750
    %3955 = vmatprep.subr.bf16.mxu0 %v3753
    %3956 = vmatpush1.bf16.msra.mxu0 %v3752
    %3957 = vmatprep.mubr.bf16.mxu0 %v3393
    %3958 = vmatmul.mubr.bf16.gmra.mrb[0].mxu0 %v3392
    %v3959 = vpop.f32.mrb[0].mxu0
    %v3960 = vadd.f32 %v3917, %v3959
    %v3961 = vpop.f32.mrb[0].mxu0
    %v3962 = vadd.f32 %v3919, %v3961
    %v3963 = vpop.f32.mrb[0].mxu0
    %v3964 = vadd.f32 %v3921, %v3963
    %v3965 = vpop.f32.mrb[0].mxu0
    %v3966 = vadd.f32 %v3923, %v3965
    %3967 = vdwg.mxu0
    %3968 = vmatprep.subr.bf16.mxu0 %v3755
    %3969 = vmatpush1.bf16.msra.mxu0 %v3754
    %3970 = vmatprep.subr.bf16.mxu0 %v3757
    %3971 = vmatpush1.bf16.msra.mxu0 %v3756
    %3972 = vmatprep.subr.bf16.mxu0 %v3759
    %3973 = vmatpush1.bf16.msra.mxu0 %v3758
    %3974 = vmatprep.subr.bf16.mxu0 %v3761
    %3975 = vmatpush1.bf16.msra.mxu0 %v3760
    %3976 = vmatprep.subr.bf16.mxu0 %v3763
    %3977 = vmatpush1.bf16.msra.mxu0 %v3762
    %3978 = vmatprep.subr.bf16.mxu0 %v3765
    %3979 = vmatpush1.bf16.msra.mxu0 %v3764
    %3980 = vmatprep.subr.bf16.mxu0 %v3767
    %3981 = vmatpush1.bf16.msra.mxu0 %v3766
    %3982 = vmatprep.subr.bf16.mxu0 %v3769
    %3983 = vmatpush1.bf16.msra.mxu0 %v3768
    %3984 = vmatprep.subr.bf16.mxu0 %v3771
    %3985 = vmatpush1.bf16.msra.mxu0 %v3770
    %3986 = vmatprep.subr.bf16.mxu0 %v3773
    %3987 = vmatpush1.bf16.msra.mxu0 %v3772
    %3988 = vmatprep.subr.bf16.mxu0 %v3775
    %3989 = vmatpush1.bf16.msra.mxu0 %v3774
    %3990 = vmatprep.subr.bf16.mxu0 %v3777
    %3991 = vmatpush1.bf16.msra.mxu0 %v3776
    %3992 = vmatprep.subr.bf16.mxu0 %v3779
    %3993 = vmatpush1.bf16.msra.mxu0 %v3778
    %3994 = vmatprep.subr.bf16.mxu0 %v3781
    %3995 = vmatpush1.bf16.msra.mxu0 %v3780
    %3996 = vmatprep.subr.bf16.mxu0 %v3783
    %3997 = vmatpush1.bf16.msra.mxu0 %v3782
    %3998 = vmatprep.subr.bf16.mxu0 %v3785
    %3999 = vmatpush1.bf16.msra.mxu0 %v3784
    %4000 = vmatprep.mubr.bf16.mxu0 %v3395
    %4001 = vmatmul.mubr.bf16.gmra.mrb[0].mxu0 %v3394
    %v4002 = vpop.f32.mrb[0].mxu0
    %v4003 = vadd.f32 %v3960, %v4002
    %v4004 = vpop.f32.mrb[0].mxu0
    %v4005 = vadd.f32 %v3962, %v4004
    %v4006 = vpop.f32.mrb[0].mxu0
    %v4007 = vadd.f32 %v3964, %v4006
    %v4008 = vpop.f32.mrb[0].mxu0
    %v4009 = vadd.f32 %v3966, %v4008
    %4010 = vdwg.mxu0
    %v4011 = vadd.f32 %v3280, %v4003
    %v4012 = vadd.f32 %v3282, %v4005
    %v4013 = vadd.f32 %v3284, %v4007
    %v4014 = vadd.f32 %v3286, %v4009
    %v4017 = vrot.slane %v4011, 1
    %v4018 = vrot.slane %v4012, 1
    %v4021 = vmax.f32 %v4011, %v4017
    %v4022 = vmax.f32 %v4012, %v4018
    %4024 = vrot.lane.b32.xlu0 %v4021, 112
    %v4025 = vpop.permute.xlu0 %4024
    %v4027 = vmax.f32 %v4021, %v4025
    %4029 = vrot.lane.b32.xlu0 %v4022, 112
    %v4030 = vpop.permute.xlu0 %4029
    %v4032 = vmax.f32 %v4022, %v4030
    %v4035 = vrot.slane %v4013, 1
    %v4036 = vrot.slane %v4014, 1
    %v4039 = vmax.f32 %v4013, %v4035
    %v4040 = vmax.f32 %v4014, %v4036
    %4042 = vrot.lane.b32.xlu0 %v4039, 112
    %v4043 = vpop.permute.xlu0 %4042
    %v4045 = vmax.f32 %v4039, %v4043
    %4047 = vrot.lane.b32.xlu0 %v4040, 112
    %v4048 = vpop.permute.xlu0 %4047
    %v4050 = vmax.f32 %v4040, %v4048
    %4052 = vrot.lane.b32.xlu0 %v4027, 112
    %v4053 = vpop.permute.xlu0 %4052
    %4055 = vrot.lane.b32.xlu0 %v4027, 96
    %v4056 = vpop.permute.xlu0 %4055
    %4058 = vrot.lane.b32.xlu0 %v4027, 80
    %v4059 = vpop.permute.xlu0 %4058
    %4062 = vrot.lane.b32.xlu0 %v4032, 64
    %v4063 = vpop.permute.xlu0 %4062
    %v4065 = vrot.slane %v4027, 2
    %4066 = vrot.lane.b32.xlu0 %v4065, 80
    %v4067 = vpop.permute.xlu0 %4066
    %4069 = vrot.lane.b32.xlu0 %v4065, 64
    %v4070 = vpop.permute.xlu0 %4069
    %4072 = vrot.lane.b32.xlu0 %v4065, 48
    %v4073 = vpop.permute.xlu0 %4072
    %4075 = vrot.lane.b32.xlu0 %v4065, 32
    %v4076 = vpop.permute.xlu0 %4075
    %v4078 = vrot.slane %v4032, 2
    %4079 = vrot.lane.b32.xlu0 %v4078, 16
    %v4080 = vpop.permute.xlu0 %4079
    %v4082 = vrot.slane %v4027, 4
    %4083 = vrot.lane.b32.xlu0 %v4082, 32
    %v4084 = vpop.permute.xlu0 %4083
    %4086 = vrot.lane.b32.xlu0 %v4082, 16
    %v4087 = vpop.permute.xlu0 %4086
    %4090 = vrot.lane.b32.xlu0 %v4082, 112
    %v4091 = vpop.permute.xlu0 %4090
    %v4093 = vrot.slane %v4032, 4
    %4094 = vrot.lane.b32.xlu0 %v4093, 96
    %v4095 = vpop.permute.xlu0 %4094
    %v4097 = vrot.slane %v4027, 6
    %4098 = vrot.lane.b32.xlu0 %v4097, 112
    %v4099 = vpop.permute.xlu0 %4098
    %vm4101 = vcmask 130048
    %v4102 = vsel %vm4101, %v4027, %v4053
    %vm4103 = vcmask 261120
    %v4104 = vsel %vm4103, %v4102, %v4056
    %vm4105 = vcmask 392192
    %v4106 = vsel %vm4105, %v4104, %v4059
    %v4107 = vsel %vm1575, %v4106, %v4063
    %vm4108 = vcmask 654336
    %v4109 = vsel %vm4108, %v4107, %v4067
    %vm4110 = vcmask 785408
    %v4111 = vsel %vm4110, %v4109, %v4070
    %vm4112 = vcmask 916480
    %v4113 = vsel %vm4112, %v4111, %v4073
    %v4114 = vsel %vm4101, %v4076, %v4080
    %v4115 = vsel %vm4103, %v4114, %v4084
    %v4116 = vsel %vm4105, %v4115, %v4087
    %v4117 = vsel %vm1575, %v4116, %v4082
    %v4118 = vsel %vm4108, %v4117, %v4091
    %v4119 = vsel %vm4110, %v4118, %v4095
    %v4120 = vsel %vm4112, %v4119, %v4099
    %4121 = vrot.lane.b32.xlu0 %v4027, 64
    %v4122 = vpop.permute.xlu0 %4121
    %4124 = vrot.lane.b32.xlu0 %v4032, 48
    %v4125 = vpop.permute.xlu0 %4124
    %v4128 = vrot.slane %v4045, 2
    %4129 = vrot.lane.b32.xlu0 %v4128, 64
    %v4130 = vpop.permute.xlu0 %4129
    %4132 = vrot.lane.b32.xlu0 %v4128, 48
    %v4133 = vpop.permute.xlu0 %4132
    %4135 = vrot.lane.b32.xlu0 %v4128, 32
    %v4136 = vpop.permute.xlu0 %4135
    %4138 = vrot.lane.b32.xlu0 %v4128, 16
    %v4139 = vpop.permute.xlu0 %4138
    %v4142 = vrot.slane %v4050, 2
    %v4143 = vsel %vm4101, %v4056, %v4059
    %v4144 = vsel %vm4103, %v4143, %v4122
    %v4145 = vsel %vm4105, %v4144, %v4125
    %v4146 = vsel %vm1575, %v4145, %v4130
    %v4147 = vsel %vm4108, %v4146, %v4133
    %v4148 = vsel %vm4110, %v4147, %v4136
    %v4149 = vsel %vm4112, %v4148, %v4139
    %v4151 = vrot.slane %v4149, 6
    %v4152 = vrot.slane %v4142, 6
    %v4155 = vcombine.low %v4113, %v4120
    %v4156 = vcombine.low %v4151, %v4152
    %v4158 = vunpack.c.l.s4 1966171168
    %v4159 = vunpack.c.0.s8 %v4158
    %v4160 = vlaneseq
    %v4161 = vshrl.u32 %v4160, 7
    %v4162 = vsub.s32 %v4159, %v4161
    %v4163 = vrot.slane %v4155, %v4162
    %v4165 = vunpack.c.l.s4 1966171168
    %v4166 = vunpack.c.0.s8 %v4165
    %v4167 = vlaneseq
    %v4168 = vshrl.u32 %v4167, 7
    %v4169 = vsub.s32 %v4166, %v4168
    %v4170 = vrot.slane %v4156, %v4169
    %v4171 = vcombine.low %v4163, %v4170
    %v4173 = vunpack.c.l.s4 1966171168
    %v4174 = vunpack.c.0.s8 %v4173
    %v4175 = vlaneseq
    %v4176 = vshrl.u32 %v4175, 7
    %v4177 = vsub.s32 %v4174, %v4176
    %v4178 = vrot.slane %v4171, %v4177
    %v4180 = vlaneseq
    %vm4181 = vcmp.ge.s32.totalorder %v4180, 0
    %vm4182 = vcmp.lt.s32.totalorder %v4180, 400
    %vm4183 = vmand %vm4181, %vm4182
    %4184 = vst.msk [vmem:[#allocation3] ss:$2 sm:$0xf] %vm4183, %v4178
    %v4185 = vld [vmem:[#allocation2 + $0x30] sm:$0xf0]
    %v4186 = vld [vmem:[#allocation2 + $0x38] sm:$0xf0]
    %v4187 = vld [vmem:[#allocation2 + $0x40] sm:$0xf0]
    %v4188 = vld [vmem:[#allocation2 + $0x48] sm:$0xf0]
    %v4189 = vld [vmem:[#allocation2 + $0x50] sm:$0xf0]
    %v4190 = vld [vmem:[#allocation2 + $0x58] sm:$0xf0]
    %v4191 = vld [vmem:[#allocation2 + $0x60] sm:$0xff]
    %v4192 = vld [vmem:[#allocation2 + $0x68] sm:$0xff]
    %v4193 = vld [vmem:[#allocation2 + $0x70] sm:$0xff]
    %v4194 = vld [vmem:[#allocation2 + $0x78] sm:$0xff]
    %v4195 = vld [vmem:[#allocation2 + $0x80] sm:$0xff]
    %v4196 = vld [vmem:[#allocation2 + $0x88] sm:$0xff]
    %v4197 = vld [vmem:[%s2] sm:$0xff]
    %v4198 = vld [vmem:[%s2 + $0x8] sm:$0xff]
    %v4199 = vld [vmem:[%s2 + $0x10] sm:$0xff]
    %v4200 = vld [vmem:[%s2 + $0x18] sm:$0xff]
    %v4201 = vld [vmem:[%s2 + $0x20] sm:$0xff]
    %v4202 = vld [vmem:[%s2 + $0x28] sm:$0xff]
    %v4203 = vld [vmem:[%s2 + $0x30] sm:$0xff]
    %v4204 = vld [vmem:[%s2 + $0x38] sm:$0xff]
    %v4205 = vld [vmem:[%s2 + $0x40] sm:$0xff]
    %v4206 = vld [vmem:[%s2 + $0x48] sm:$0xff]
    %v4207 = vld [vmem:[%s2 + $0x50] sm:$0xff]
    %v4208 = vld [vmem:[%s2 + $0x58] sm:$0xff]
    %v4209 = vld [vmem:[%s2 + $0x60] sm:$0xff]
    %v4210 = vld [vmem:[%s2 + $0x68] sm:$0xff]
    %v4211 = vld [vmem:[%s2 + $0x70] sm:$0xff]
    %v4212 = vld [vmem:[%s2 + $0x78] sm:$0xff]
    %v4213 = vld [vmem:[%s2 + $0x80] sm:$0xff]
    %v4214 = vld [vmem:[%s2 + $0x88] sm:$0xff]
    %v4215 = vld [vmem:[%s2 + $0x90] sm:$0xff]
    %v4216 = vld [vmem:[%s2 + $0x98] sm:$0xff]
    %v4217 = vld [vmem:[%s2 + $0xa0] sm:$0xff]
    %v4218 = vld [vmem:[%s2 + $0xa8] sm:$0xff]
    %v4219 = vld [vmem:[%s2 + $0xb0] sm:$0xff]
    %v4220 = vld [vmem:[%s2 + $0xb8] sm:$0xff]
    %v4221 = vld [vmem:[%s2 + $0xc0] sm:$0xff]
    %v4222 = vld [vmem:[%s2 + $0xc8] sm:$0xff]
    %v4223 = vld [vmem:[%s2 + $0xd0] sm:$0xff]
    %v4224 = vld [vmem:[%s2 + $0xd8] sm:$0xff]
    %v4225 = vld [vmem:[%s2 + $0xe0] sm:$0xff]
    %v4226 = vld [vmem:[%s2 + $0xe8] sm:$0xff]
    %v4227 = vld [vmem:[%s2 + $0xf0] sm:$0xff]
    %v4228 = vld [vmem:[%s2 + $0xf8] sm:$0xff]
    %v4229 = vld [vmem:[%s2 + $0x100] sm:$0xff]
    %v4230 = vld [vmem:[%s2 + $0x108] sm:$0xff]
    %v4231 = vld [vmem:[%s2 + $0x110] sm:$0xff]
    %v4232 = vld [vmem:[%s2 + $0x118] sm:$0xff]
    %v4233 = vld [vmem:[%s2 + $0x120] sm:$0xff]
    %v4234 = vld [vmem:[%s2 + $0x128] sm:$0xff]
    %v4235 = vld [vmem:[%s2 + $0x130] sm:$0xff]
    %v4236 = vld [vmem:[%s2 + $0x138] sm:$0xff]
    %v4237 = vld [vmem:[%s2 + $0x140] sm:$0xff]
    %v4238 = vld [vmem:[%s2 + $0x148] sm:$0xff]
    %v4239 = vld [vmem:[%s2 + $0x150] sm:$0xff]
    %v4240 = vld [vmem:[%s2 + $0x158] sm:$0xff]
    %v4241 = vld [vmem:[%s2 + $0x160] sm:$0xff]
    %v4242 = vld [vmem:[%s2 + $0x168] sm:$0xff]
    %v4243 = vld [vmem:[%s2 + $0x170] sm:$0xff]
    %v4244 = vld [vmem:[%s2 + $0x178] sm:$0xff]
    %v4245 = vld [vmem:[%s2 + $0x180] sm:$0xff]
    %v4246 = vld [vmem:[%s2 + $0x188] sm:$0xff]
    %v4247 = vld [vmem:[%s2 + $0x190] sm:$0xff]
    %v4248 = vld [vmem:[%s2 + $0x198] sm:$0xff]
    %v4249 = vld [vmem:[%s2 + $0x1a0] sm:$0xff]
    %v4250 = vld [vmem:[%s2 + $0x1a8] sm:$0xff]
    %v4251 = vld [vmem:[%s2 + $0x1b0] sm:$0xff]
    %v4252 = vld [vmem:[%s2 + $0x1b8] sm:$0xff]
    %v4253 = vld [vmem:[%s2 + $0x1c0] sm:$0xff]
    %v4254 = vld [vmem:[%s2 + $0x1c8] sm:$0xff]
    %v4255 = vld [vmem:[%s2 + $0x1d0] sm:$0xff]
    %v4256 = vld [vmem:[%s2 + $0x1d8] sm:$0xff]
    %v4257 = vld [vmem:[%s2 + $0x1e0] sm:$0xff]
    %v4258 = vld [vmem:[%s2 + $0x1e8] sm:$0xff]
    %v4259 = vld [vmem:[%s2 + $0x1f0] sm:$0xff]
    %v4260 = vld [vmem:[%s2 + $0x1f8] sm:$0xff]
    %v4261 = vld [vmem:[%s2 + $0x200] sm:$0xff]
    %v4262 = vld [vmem:[%s2 + $0x208] sm:$0xff]
    %v4263 = vld [vmem:[%s2 + $0x210] sm:$0xff]
    %v4264 = vld [vmem:[%s2 + $0x218] sm:$0xff]
    %v4265 = vld [vmem:[%s2 + $0x220] sm:$0xff]
    %v4266 = vld [vmem:[%s2 + $0x228] sm:$0xff]
    %v4267 = vld [vmem:[%s2 + $0x230] sm:$0xff]
    %v4268 = vld [vmem:[%s2 + $0x238] sm:$0xff]
    %v4269 = vld [vmem:[%s2 + $0x240] sm:$0xff]
    %v4270 = vld [vmem:[%s2 + $0x248] sm:$0xff]
    %v4271 = vld [vmem:[%s2 + $0x250] sm:$0xff]
    %v4272 = vld [vmem:[%s2 + $0x258] sm:$0xff]
    %v4273 = vld [vmem:[%s2 + $0x260] sm:$0xff]
    %v4274 = vld [vmem:[%s2 + $0x268] sm:$0xff]
    %v4275 = vld [vmem:[%s2 + $0x270] sm:$0xff]
    %v4276 = vld [vmem:[%s2 + $0x278] sm:$0xff]
    %v4277 = vld [vmem:[%s2 + $0x280] sm:$0xff]
    %v4278 = vld [vmem:[%s2 + $0x288] sm:$0xff]
    %v4279 = vld [vmem:[%s2 + $0x290] sm:$0xff]
    %v4280 = vld [vmem:[%s2 + $0x298] sm:$0xff]
    %v4281 = vld [vmem:[%s2 + $0x2a0] sm:$0xff]
    %v4282 = vld [vmem:[%s2 + $0x2a8] sm:$0xff]
    %v4283 = vld [vmem:[%s2 + $0x2b0] sm:$0xff]
    %v4284 = vld [vmem:[%s2 + $0x2b8] sm:$0xff]
    %v4285 = vld [vmem:[%s2 + $0x2c0] sm:$0xff]
    %v4286 = vld [vmem:[%s2 + $0x2c8] sm:$0xff]
    %v4287 = vld [vmem:[%s2 + $0x2d0] sm:$0xff]
    %v4288 = vld [vmem:[%s2 + $0x2d8] sm:$0xff]
    %v4289 = vld [vmem:[%s2 + $0x2e0] sm:$0xff]
    %v4290 = vld [vmem:[%s2 + $0x2e8] sm:$0xff]
    %v4291 = vld [vmem:[%s2 + $0x2f0] sm:$0xff]
    %v4292 = vld [vmem:[%s2 + $0x2f8] sm:$0xff]
    %v4293 = vpack.c.bf16 %v4191, %v4185
    %v4294 = vpack.c.bf16 %v4192, %v4186
    %v4295 = vpack.c.bf16 %v4193, %v4187
    %v4296 = vpack.c.bf16 %v4194, %v4188
    %v4297 = vpack.c.bf16 %v4195, %v4189
    %v4298 = vpack.c.bf16 %v4196, %v4190
    %v4299 = vld [vmem:[%s2 + $0x300] sm:$0xff]
    %v4300 = vld [vmem:[%s2 + $0x308] sm:$0xff]
    %v4301 = vld [vmem:[%s2 + $0x310] sm:$0xff]
    %v4302 = vld [vmem:[%s2 + $0x318] sm:$0xff]
    %v4303 = vld [vmem:[%s2 + $0x320] sm:$0xff]
    %v4304 = vld [vmem:[%s2 + $0x328] sm:$0xff]
    %v4305 = vld [vmem:[%s2 + $0x330] sm:$0xff]
    %v4306 = vld [vmem:[%s2 + $0x338] sm:$0xff]
    %v4307 = vld [vmem:[%s2 + $0x340] sm:$0xff]
    %v4308 = vld [vmem:[%s2 + $0x348] sm:$0xff]
    %v4309 = vld [vmem:[%s2 + $0x350] sm:$0xff]
    %v4310 = vld [vmem:[%s2 + $0x358] sm:$0xff]
    %v4311 = vld [vmem:[%s2 + $0x360] sm:$0xff]
    %v4312 = vld [vmem:[%s2 + $0x368] sm:$0xff]
    %v4313 = vld [vmem:[%s2 + $0x370] sm:$0xff]
    %v4314 = vld [vmem:[%s2 + $0x378] sm:$0xff]
    %v4315 = vld [vmem:[%s2 + $0x380] sm:$0xff]
    %v4316 = vld [vmem:[%s2 + $0x388] sm:$0xff]
    %v4317 = vld [vmem:[%s2 + $0x390] sm:$0xff]
    %v4318 = vld [vmem:[%s2 + $0x398] sm:$0xff]
    %v4319 = vld [vmem:[%s2 + $0x3a0] sm:$0xff]
    %v4320 = vld [vmem:[%s2 + $0x3a8] sm:$0xff]
    %v4321 = vld [vmem:[%s2 + $0x3b0] sm:$0xff]
    %v4322 = vld [vmem:[%s2 + $0x3b8] sm:$0xff]
    %v4323 = vld [vmem:[%s2 + $0x3c0] sm:$0xff]
    %v4324 = vld [vmem:[%s2 + $0x3c8] sm:$0xff]
    %v4325 = vld [vmem:[%s2 + $0x3d0] sm:$0xff]
    %v4326 = vld [vmem:[%s2 + $0x3d8] sm:$0xff]
    %v4327 = vld [vmem:[%s2 + $0x3e0] sm:$0xff]
    %v4328 = vld [vmem:[%s2 + $0x3e8] sm:$0xff]
    %v4329 = vld [vmem:[%s2 + $0x3f0] sm:$0xff]
    %v4330 = vld [vmem:[%s2 + $0x3f8] sm:$0xff]
    %v4331 = vld [vmem:[%s2 + $0x400] sm:$0xff]
    %v4332 = vld [vmem:[%s2 + $0x408] sm:$0xff]
    %v4333 = vld [vmem:[%s2 + $0x410] sm:$0xff]
    %v4334 = vld [vmem:[%s2 + $0x418] sm:$0xff]
    %v4335 = vld [vmem:[%s2 + $0x420] sm:$0xff]
    %v4336 = vld [vmem:[%s2 + $0x428] sm:$0xff]
    %v4337 = vld [vmem:[%s2 + $0x430] sm:$0xff]
    %v4338 = vld [vmem:[%s2 + $0x438] sm:$0xff]
    %v4339 = vld [vmem:[%s2 + $0x440] sm:$0xff]
    %v4340 = vld [vmem:[%s2 + $0x448] sm:$0xff]
    %v4341 = vld [vmem:[%s2 + $0x450] sm:$0xff]
    %v4342 = vld [vmem:[%s2 + $0x458] sm:$0xff]
    %v4343 = vld [vmem:[%s2 + $0x460] sm:$0xff]
    %v4344 = vld [vmem:[%s2 + $0x468] sm:$0xff]
    %v4345 = vld [vmem:[%s2 + $0x470] sm:$0xff]
    %v4346 = vld [vmem:[%s2 + $0x478] sm:$0xff]
    %v4347 = vld [vmem:[%s2 + $0x480] sm:$0xff]
    %v4348 = vld [vmem:[%s2 + $0x488] sm:$0xff]
    %v4349 = vld [vmem:[%s2 + $0x490] sm:$0xff]
    %v4350 = vld [vmem:[%s2 + $0x498] sm:$0xff]
    %v4351 = vld [vmem:[%s2 + $0x4a0] sm:$0xff]
    %v4352 = vld [vmem:[%s2 + $0x4a8] sm:$0xff]
    %v4353 = vld [vmem:[%s2 + $0x4b0] sm:$0xff]
    %v4354 = vld [vmem:[%s2 + $0x4b8] sm:$0xff]
    %v4355 = vld [vmem:[%s2 + $0x4c0] sm:$0xff]
    %v4356 = vld [vmem:[%s2 + $0x4c8] sm:$0xff]
    %v4357 = vld [vmem:[%s2 + $0x4d0] sm:$0xff]
    %v4358 = vld [vmem:[%s2 + $0x4d8] sm:$0xff]
    %v4359 = vld [vmem:[%s2 + $0x4e0] sm:$0xff]
    %v4360 = vld [vmem:[%s2 + $0x4e8] sm:$0xff]
    %v4361 = vld [vmem:[%s2 + $0x4f0] sm:$0xff]
    %v4362 = vld [vmem:[%s2 + $0x4f8] sm:$0xff]
    %v4363 = vld [vmem:[%s2 + $0x500] sm:$0xff]
    %v4364 = vld [vmem:[%s2 + $0x508] sm:$0xff]
    %v4365 = vld [vmem:[%s2 + $0x510] sm:$0xff]
    %v4366 = vld [vmem:[%s2 + $0x518] sm:$0xff]
    %v4367 = vld [vmem:[%s2 + $0x520] sm:$0xff]
    %v4368 = vld [vmem:[%s2 + $0x528] sm:$0xff]
    %v4369 = vld [vmem:[%s2 + $0x530] sm:$0xff]
    %v4370 = vld [vmem:[%s2 + $0x538] sm:$0xff]
    %v4371 = vld [vmem:[%s2 + $0x540] sm:$0xff]
    %v4372 = vld [vmem:[%s2 + $0x548] sm:$0xff]
    %v4373 = vld [vmem:[%s2 + $0x550] sm:$0xff]
    %v4374 = vld [vmem:[%s2 + $0x558] sm:$0xff]
    %v4375 = vld [vmem:[%s2 + $0x560] sm:$0xff]
    %v4376 = vld [vmem:[%s2 + $0x568] sm:$0xff]
    %v4377 = vld [vmem:[%s2 + $0x570] sm:$0xff]
    %v4378 = vld [vmem:[%s2 + $0x578] sm:$0xff]
    %v4379 = vld [vmem:[%s2 + $0x580] sm:$0xff]
    %v4380 = vld [vmem:[%s2 + $0x588] sm:$0xff]
    %v4381 = vld [vmem:[%s2 + $0x590] sm:$0xff]
    %v4382 = vld [vmem:[%s2 + $0x598] sm:$0xff]
    %v4383 = vld [vmem:[%s2 + $0x5a0] sm:$0xff]
    %v4384 = vld [vmem:[%s2 + $0x5a8] sm:$0xff]
    %v4385 = vld [vmem:[%s2 + $0x5b0] sm:$0xff]
    %v4386 = vld [vmem:[%s2 + $0x5b8] sm:$0xff]
    %v4387 = vld [vmem:[%s2 + $0x5c0] sm:$0xff]
    %v4388 = vld [vmem:[%s2 + $0x5c8] sm:$0xff]
    %v4389 = vld [vmem:[%s2 + $0x5d0] sm:$0xff]
    %v4390 = vld [vmem:[%s2 + $0x5d8] sm:$0xff]
    %v4391 = vld [vmem:[%s2 + $0x5e0] sm:$0xff]
    %v4392 = vld [vmem:[%s2 + $0x5e8] sm:$0xff]
    %v4393 = vld [vmem:[%s2 + $0x5f0] sm:$0xff]
    %v4394 = vld [vmem:[%s2 + $0x5f8] sm:$0xff]
    %v4396 = vshrl.u32 %v4293, 16
    %v4398 = vrot.slane %v4396, 2
    %v4399 = vshll.u32 %v4293, 16
    %v4401 = vrot.slane %v4399, 3
    %v4402 = vor.u32 %v4398, %v4401
    %v4404 = vshrl.u32 %v4294, 16
    %v4406 = vrot.slane %v4404, 2
    %v4407 = vshll.u32 %v4294, 16
    %v4409 = vrot.slane %v4407, 3
    %v4410 = vor.u32 %v4406, %v4409
    %v4412 = vshrl.u32 %v4295, 16
    %v4414 = vrot.slane %v4412, 2
    %v4415 = vshll.u32 %v4295, 16
    %v4417 = vrot.slane %v4415, 3
    %v4418 = vor.u32 %v4414, %v4417
    %v4420 = vshrl.u32 %v4296, 16
    %v4422 = vrot.slane %v4420, 2
    %v4423 = vshll.u32 %v4296, 16
    %v4425 = vrot.slane %v4423, 3
    %v4426 = vor.u32 %v4422, %v4425
    %v4428 = vshrl.u32 %v4297, 16
    %v4430 = vrot.slane %v4428, 2
    %v4431 = vshll.u32 %v4297, 16
    %v4433 = vrot.slane %v4431, 3
    %v4434 = vor.u32 %v4430, %v4433
    %v4436 = vshrl.u32 %v4298, 16
    %v4438 = vrot.slane %v4436, 2
    %v4439 = vshll.u32 %v4298, 16
    %v4441 = vrot.slane %v4439, 3
    %v4442 = vor.u32 %v4438, %v4441
    %v4545 = vunpack.c.l.b16 %v4299
    %v4546 = vunpack.c.h.b16 %v4299
    %v4547 = vunpack.c.l.b16 %v4300
    %v4548 = vunpack.c.h.b16 %v4300
    %v4549 = vunpack.c.l.b16 %v4301
    %v4550 = vunpack.c.h.b16 %v4301
    %v4551 = vunpack.c.l.b16 %v4302
    %v4552 = vunpack.c.h.b16 %v4302
    %v4553 = vunpack.c.l.b16 %v4303
    %v4554 = vunpack.c.h.b16 %v4303
    %v4555 = vunpack.c.l.b16 %v4304
    %v4556 = vunpack.c.h.b16 %v4304
    %v4557 = vunpack.c.l.b16 %v4305
    %v4558 = vunpack.c.h.b16 %v4305
    %v4559 = vunpack.c.l.b16 %v4306
    %v4560 = vunpack.c.h.b16 %v4306
    %v4561 = vunpack.c.l.b16 %v4307
    %v4562 = vunpack.c.h.b16 %v4307
    %v4563 = vunpack.c.l.b16 %v4308
    %v4564 = vunpack.c.h.b16 %v4308
    %v4565 = vunpack.c.l.b16 %v4309
    %v4566 = vunpack.c.h.b16 %v4309
    %v4567 = vunpack.c.l.b16 %v4310
    %v4568 = vunpack.c.h.b16 %v4310
    %v4569 = vunpack.c.l.b16 %v4311
    %v4570 = vunpack.c.h.b16 %v4311
    %v4571 = vunpack.c.l.b16 %v4312
    %v4572 = vunpack.c.h.b16 %v4312
    %v4573 = vunpack.c.l.b16 %v4313
    %v4574 = vunpack.c.h.b16 %v4313
    %v4575 = vunpack.c.l.b16 %v4314
    %v4576 = vunpack.c.h.b16 %v4314
    %v4577 = vunpack.c.l.b16 %v4315
    %v4578 = vunpack.c.h.b16 %v4315
    %v4579 = vunpack.c.l.b16 %v4316
    %v4580 = vunpack.c.h.b16 %v4316
    %v4581 = vunpack.c.l.b16 %v4317
    %v4582 = vunpack.c.h.b16 %v4317
    %v4583 = vunpack.c.l.b16 %v4318
    %v4584 = vunpack.c.h.b16 %v4318
    %v4585 = vunpack.c.l.b16 %v4319
    %v4586 = vunpack.c.h.b16 %v4319
    %v4587 = vunpack.c.l.b16 %v4320
    %v4588 = vunpack.c.h.b16 %v4320
    %v4589 = vunpack.c.l.b16 %v4321
    %v4590 = vunpack.c.h.b16 %v4321
    %v4591 = vunpack.c.l.b16 %v4322
    %v4592 = vunpack.c.h.b16 %v4322
    %v4593 = vunpack.c.l.b16 %v4323
    %v4594 = vunpack.c.h.b16 %v4323
    %v4595 = vunpack.c.l.b16 %v4324
    %v4596 = vunpack.c.h.b16 %v4324
    %v4597 = vunpack.c.l.b16 %v4325
    %v4598 = vunpack.c.h.b16 %v4325
    %v4599 = vunpack.c.l.b16 %v4326
    %v4600 = vunpack.c.h.b16 %v4326
    %v4601 = vunpack.c.l.b16 %v4327
    %v4602 = vunpack.c.h.b16 %v4327
    %v4603 = vunpack.c.l.b16 %v4328
    %v4604 = vunpack.c.h.b16 %v4328
    %v4605 = vunpack.c.l.b16 %v4329
    %v4606 = vunpack.c.h.b16 %v4329
    %v4607 = vunpack.c.l.b16 %v4330
    %v4608 = vunpack.c.h.b16 %v4330
    %v4609 = vunpack.c.l.b16 %v4331
    %v4610 = vunpack.c.h.b16 %v4331
    %v4611 = vunpack.c.l.b16 %v4332
    %v4612 = vunpack.c.h.b16 %v4332
    %v4613 = vunpack.c.l.b16 %v4333
    %v4614 = vunpack.c.h.b16 %v4333
    %v4615 = vunpack.c.l.b16 %v4334
    %v4616 = vunpack.c.h.b16 %v4334
    %v4617 = vunpack.c.l.b16 %v4335
    %v4618 = vunpack.c.h.b16 %v4335
    %v4619 = vunpack.c.l.b16 %v4336
    %v4620 = vunpack.c.h.b16 %v4336
    %v4621 = vunpack.c.l.b16 %v4337
    %v4622 = vunpack.c.h.b16 %v4337
    %v4623 = vunpack.c.l.b16 %v4338
    %v4624 = vunpack.c.h.b16 %v4338
    %v4625 = vunpack.c.l.b16 %v4339
    %v4626 = vunpack.c.h.b16 %v4339
    %v4627 = vunpack.c.l.b16 %v4340
    %v4628 = vunpack.c.h.b16 %v4340
    %v4629 = vunpack.c.l.b16 %v4341
    %v4630 = vunpack.c.h.b16 %v4341
    %v4631 = vunpack.c.l.b16 %v4342
    %v4632 = vunpack.c.h.b16 %v4342
    %v4633 = vunpack.c.l.b16 %v4343
    %v4634 = vunpack.c.h.b16 %v4343
    %v4635 = vunpack.c.l.b16 %v4344
    %v4636 = vunpack.c.h.b16 %v4344
    %v4637 = vunpack.c.l.b16 %v4345
    %v4638 = vunpack.c.h.b16 %v4345
    %v4639 = vunpack.c.l.b16 %v4346
    %v4640 = vunpack.c.h.b16 %v4346
    %v4641 = vunpack.c.l.b16 %v4347
    %v4642 = vunpack.c.h.b16 %v4347
    %v4643 = vunpack.c.l.b16 %v4348
    %v4644 = vunpack.c.h.b16 %v4348
    %v4645 = vunpack.c.l.b16 %v4349
    %v4646 = vunpack.c.h.b16 %v4349
    %v4647 = vunpack.c.l.b16 %v4350
    %v4648 = vunpack.c.h.b16 %v4350
    %v4649 = vunpack.c.l.b16 %v4351
    %v4650 = vunpack.c.h.b16 %v4351
    %v4651 = vunpack.c.l.b16 %v4352
    %v4652 = vunpack.c.h.b16 %v4352
    %v4653 = vunpack.c.l.b16 %v4353
    %v4654 = vunpack.c.h.b16 %v4353
    %v4655 = vunpack.c.l.b16 %v4354
    %v4656 = vunpack.c.h.b16 %v4354
    %v4657 = vunpack.c.l.b16 %v4355
    %v4658 = vunpack.c.h.b16 %v4355
    %v4659 = vunpack.c.l.b16 %v4356
    %v4660 = vunpack.c.h.b16 %v4356
    %v4661 = vunpack.c.l.b16 %v4357
    %v4662 = vunpack.c.h.b16 %v4357
    %v4663 = vunpack.c.l.b16 %v4358
    %v4664 = vunpack.c.h.b16 %v4358
    %v4665 = vunpack.c.l.b16 %v4359
    %v4666 = vunpack.c.h.b16 %v4359
    %v4667 = vunpack.c.l.b16 %v4360
    %v4668 = vunpack.c.h.b16 %v4360
    %v4669 = vunpack.c.l.b16 %v4361
    %v4670 = vunpack.c.h.b16 %v4361
    %v4671 = vunpack.c.l.b16 %v4362
    %v4672 = vunpack.c.h.b16 %v4362
    %v4673 = vunpack.c.l.b16 %v4363
    %v4674 = vunpack.c.h.b16 %v4363
    %v4675 = vunpack.c.l.b16 %v4364
    %v4676 = vunpack.c.h.b16 %v4364
    %v4677 = vunpack.c.l.b16 %v4365
    %v4678 = vunpack.c.h.b16 %v4365
    %v4679 = vunpack.c.l.b16 %v4366
    %v4680 = vunpack.c.h.b16 %v4366
    %v4681 = vunpack.c.l.b16 %v4367
    %v4682 = vunpack.c.h.b16 %v4367
    %v4683 = vunpack.c.l.b16 %v4368
    %v4684 = vunpack.c.h.b16 %v4368
    %v4685 = vunpack.c.l.b16 %v4369
    %v4686 = vunpack.c.h.b16 %v4369
    %v4687 = vunpack.c.l.b16 %v4370
    %v4688 = vunpack.c.h.b16 %v4370
    %v4689 = vunpack.c.l.b16 %v4371
    %v4690 = vunpack.c.h.b16 %v4371
    %v4691 = vunpack.c.l.b16 %v4372
    %v4692 = vunpack.c.h.b16 %v4372
    %v4693 = vunpack.c.l.b16 %v4373
    %v4694 = vunpack.c.h.b16 %v4373
    %v4695 = vunpack.c.l.b16 %v4374
    %v4696 = vunpack.c.h.b16 %v4374
    %v4697 = vunpack.c.l.b16 %v4375
    %v4698 = vunpack.c.h.b16 %v4375
    %v4699 = vunpack.c.l.b16 %v4376
    %v4700 = vunpack.c.h.b16 %v4376
    %v4701 = vunpack.c.l.b16 %v4377
    %v4702 = vunpack.c.h.b16 %v4377
    %v4703 = vunpack.c.l.b16 %v4378
    %v4704 = vunpack.c.h.b16 %v4378
    %v4705 = vunpack.c.l.b16 %v4379
    %v4706 = vunpack.c.h.b16 %v4379
    %v4707 = vunpack.c.l.b16 %v4380
    %v4708 = vunpack.c.h.b16 %v4380
    %v4709 = vunpack.c.l.b16 %v4381
    %v4710 = vunpack.c.h.b16 %v4381
    %v4711 = vunpack.c.l.b16 %v4382
    %v4712 = vunpack.c.h.b16 %v4382
    %v4713 = vunpack.c.l.b16 %v4383
    %v4714 = vunpack.c.h.b16 %v4383
    %v4715 = vunpack.c.l.b16 %v4384
    %v4716 = vunpack.c.h.b16 %v4384
    %v4717 = vunpack.c.l.b16 %v4385
    %v4718 = vunpack.c.h.b16 %v4385
    %v4719 = vunpack.c.l.b16 %v4386
    %v4720 = vunpack.c.h.b16 %v4386
    %v4721 = vunpack.c.l.b16 %v4387
    %v4722 = vunpack.c.h.b16 %v4387
    %v4723 = vunpack.c.l.b16 %v4388
    %v4724 = vunpack.c.h.b16 %v4388
    %v4725 = vunpack.c.l.b16 %v4389
    %v4726 = vunpack.c.h.b16 %v4389
    %v4727 = vunpack.c.l.b16 %v4390
    %v4728 = vunpack.c.h.b16 %v4390
    %v4729 = vunpack.c.l.b16 %v4391
    %v4730 = vunpack.c.h.b16 %v4391
    %v4731 = vunpack.c.l.b16 %v4392
    %v4732 = vunpack.c.h.b16 %v4392
    %v4733 = vunpack.c.l.b16 %v4393
    %v4734 = vunpack.c.h.b16 %v4393
    %v4735 = vunpack.c.l.b16 %v4394
    %v4736 = vunpack.c.h.b16 %v4394
    %v4737 = vpack.c.b16 %v4547, %v4545
    %v4738 = vpack.c.b16 %v4548, %v4546
    %v4739 = vpack.c.b16 %v4551, %v4549
    %v4740 = vpack.c.b16 %v4552, %v4550
    %v4741 = vpack.c.b16 %v4555, %v4553
    %v4742 = vpack.c.b16 %v4556, %v4554
    %v4743 = vpack.c.b16 %v4559, %v4557
    %v4744 = vpack.c.b16 %v4560, %v4558
    %v4745 = vpack.c.b16 %v4563, %v4561
    %v4746 = vpack.c.b16 %v4564, %v4562
    %v4747 = vpack.c.b16 %v4567, %v4565
    %v4748 = vpack.c.b16 %v4568, %v4566
    %v4749 = vpack.c.b16 %v4571, %v4569
    %v4750 = vpack.c.b16 %v4572, %v4570
    %v4751 = vpack.c.b16 %v4575, %v4573
    %v4752 = vpack.c.b16 %v4576, %v4574
    %v4753 = vpack.c.b16 %v4579, %v4577
    %v4754 = vpack.c.b16 %v4580, %v4578
    %v4755 = vpack.c.b16 %v4583, %v4581
    %v4756 = vpack.c.b16 %v4584, %v4582
    %v4757 = vpack.c.b16 %v4587, %v4585
    %v4758 = vpack.c.b16 %v4588, %v4586
    %v4759 = vpack.c.b16 %v4591, %v4589
    %v4760 = vpack.c.b16 %v4592, %v4590
    %v4761 = vpack.c.b16 %v4595, %v4593
    %v4762 = vpack.c.b16 %v4596, %v4594
    %v4763 = vpack.c.b16 %v4599, %v4597
    %v4764 = vpack.c.b16 %v4600, %v4598
    %v4765 = vpack.c.b16 %v4603, %v4601
    %v4766 = vpack.c.b16 %v4604, %v4602
    %v4767 = vpack.c.b16 %v4607, %v4605
    %v4768 = vpack.c.b16 %v4608, %v4606
    %v4769 = vpack.c.b16 %v4611, %v4609
    %v4770 = vpack.c.b16 %v4612, %v4610
    %v4771 = vpack.c.b16 %v4615, %v4613
    %v4772 = vpack.c.b16 %v4616, %v4614
    %v4773 = vpack.c.b16 %v4619, %v4617
    %v4774 = vpack.c.b16 %v4620, %v4618
    %v4775 = vpack.c.b16 %v4623, %v4621
    %v4776 = vpack.c.b16 %v4624, %v4622
    %v4777 = vpack.c.b16 %v4627, %v4625
    %v4778 = vpack.c.b16 %v4628, %v4626
    %v4779 = vpack.c.b16 %v4631, %v4629
    %v4780 = vpack.c.b16 %v4632, %v4630
    %v4781 = vpack.c.b16 %v4635, %v4633
    %v4782 = vpack.c.b16 %v4636, %v4634
    %v4783 = vpack.c.b16 %v4639, %v4637
    %v4784 = vpack.c.b16 %v4640, %v4638
    %v4785 = vpack.c.b16 %v4643, %v4641
    %v4786 = vpack.c.b16 %v4644, %v4642
    %v4787 = vpack.c.b16 %v4647, %v4645
    %v4788 = vpack.c.b16 %v4648, %v4646
    %v4789 = vpack.c.b16 %v4651, %v4649
    %v4790 = vpack.c.b16 %v4652, %v4650
    %v4791 = vpack.c.b16 %v4655, %v4653
    %v4792 = vpack.c.b16 %v4656, %v4654
    %v4793 = vpack.c.b16 %v4659, %v4657
    %v4794 = vpack.c.b16 %v4660, %v4658
    %v4795 = vpack.c.b16 %v4663, %v4661
    %v4796 = vpack.c.b16 %v4664, %v4662
    %v4797 = vpack.c.b16 %v4667, %v4665
    %v4798 = vpack.c.b16 %v4668, %v4666
    %v4799 = vpack.c.b16 %v4671, %v4669
    %v4800 = vpack.c.b16 %v4672, %v4670
    %v4801 = vpack.c.b16 %v4675, %v4673
    %v4802 = vpack.c.b16 %v4676, %v4674
    %v4803 = vpack.c.b16 %v4679, %v4677
    %v4804 = vpack.c.b16 %v4680, %v4678
    %v4805 = vpack.c.b16 %v4683, %v4681
    %v4806 = vpack.c.b16 %v4684, %v4682
    %v4807 = vpack.c.b16 %v4687, %v4685
    %v4808 = vpack.c.b16 %v4688, %v4686
    %v4809 = vpack.c.b16 %v4691, %v4689
    %v4810 = vpack.c.b16 %v4692, %v4690
    %v4811 = vpack.c.b16 %v4695, %v4693
    %v4812 = vpack.c.b16 %v4696, %v4694
    %v4813 = vpack.c.b16 %v4699, %v4697
    %v4814 = vpack.c.b16 %v4700, %v4698
    %v4815 = vpack.c.b16 %v4703, %v4701
    %v4816 = vpack.c.b16 %v4704, %v4702
    %v4817 = vpack.c.b16 %v4707, %v4705
    %v4818 = vpack.c.b16 %v4708, %v4706
    %v4819 = vpack.c.b16 %v4711, %v4709
    %v4820 = vpack.c.b16 %v4712, %v4710
    %v4821 = vpack.c.b16 %v4715, %v4713
    %v4822 = vpack.c.b16 %v4716, %v4714
    %v4823 = vpack.c.b16 %v4719, %v4717
    %v4824 = vpack.c.b16 %v4720, %v4718
    %v4825 = vpack.c.b16 %v4723, %v4721
    %v4826 = vpack.c.b16 %v4724, %v4722
    %v4827 = vpack.c.b16 %v4727, %v4725
    %v4828 = vpack.c.b16 %v4728, %v4726
    %v4829 = vpack.c.b16 %v4731, %v4729
    %v4830 = vpack.c.b16 %v4732, %v4730
    %v4831 = vpack.c.b16 %v4735, %v4733
    %v4832 = vpack.c.b16 %v4736, %v4734
    %4929 = vmatprep.subr.bf16.mxu0 %v4738
    %4930 = vmatpush1.bf16.msra.mxu0 %v4737
    %4931 = vmatprep.subr.bf16.mxu0 %v4740
    %4932 = vmatpush1.bf16.msra.mxu0 %v4739
    %4933 = vmatprep.subr.bf16.mxu0 %v4742
    %4934 = vmatpush1.bf16.msra.mxu0 %v4741
    %4935 = vmatprep.subr.bf16.mxu0 %v4744
    %4936 = vmatpush1.bf16.msra.mxu0 %v4743
    %4937 = vmatprep.subr.bf16.mxu0 %v4746
    %4938 = vmatpush1.bf16.msra.mxu0 %v4745
    %4939 = vmatprep.subr.bf16.mxu0 %v4748
    %4940 = vmatpush1.bf16.msra.mxu0 %v4747
    %4941 = vmatprep.subr.bf16.mxu0 %v4750
    %4942 = vmatpush1.bf16.msra.mxu0 %v4749
    %4943 = vmatprep.subr.bf16.mxu0 %v4752
    %4944 = vmatpush1.bf16.msra.mxu0 %v4751
    %4945 = vmatprep.subr.bf16.mxu0 %v4754
    %4946 = vmatpush1.bf16.msra.mxu0 %v4753
    %4947 = vmatprep.subr.bf16.mxu0 %v4756
    %4948 = vmatpush1.bf16.msra.mxu0 %v4755
    %4949 = vmatprep.subr.bf16.mxu0 %v4758
    %4950 = vmatpush1.bf16.msra.mxu0 %v4757
    %4951 = vmatprep.subr.bf16.mxu0 %v4760
    %4952 = vmatpush1.bf16.msra.mxu0 %v4759
    %4953 = vmatprep.subr.bf16.mxu0 %v4762
    %4954 = vmatpush1.bf16.msra.mxu0 %v4761
    %4955 = vmatprep.subr.bf16.mxu0 %v4764
    %4956 = vmatpush1.bf16.msra.mxu0 %v4763
    %4957 = vmatprep.subr.bf16.mxu0 %v4766
    %4958 = vmatpush1.bf16.msra.mxu0 %v4765
    %4959 = vmatprep.subr.bf16.mxu0 %v4768
    %4960 = vmatpush1.bf16.msra.mxu0 %v4767
    %4961 = vmatprep.mubr.bf16.mxu0 %v4410
    %4962 = vmatmul.mubr.bf16.gmra.mrb[0].mxu0 %v4402
    %v4963 = vpop.f32.mrb[0].mxu0
    %v4964 = vadd.f32 0.0, %v4963
    %v4965 = vpop.f32.mrb[0].mxu0
    %v4966 = vadd.f32 0.0, %v4965
    %v4967 = vpop.f32.mrb[0].mxu0
    %v4968 = vadd.f32 0.0, %v4967
    %v4969 = vpop.f32.mrb[0].mxu0
    %v4970 = vadd.f32 0.0, %v4969
    %4971 = vdwg.mxu0
    %4972 = vmatprep.subr.bf16.mxu0 %v4770
    %4973 = vmatpush1.bf16.msra.mxu0 %v4769
    %4974 = vmatprep.subr.bf16.mxu0 %v4772
    %4975 = vmatpush1.bf16.msra.mxu0 %v4771
    %4976 = vmatprep.subr.bf16.mxu0 %v4774
    %4977 = vmatpush1.bf16.msra.mxu0 %v4773
    %4978 = vmatprep.subr.bf16.mxu0 %v4776
    %4979 = vmatpush1.bf16.msra.mxu0 %v4775
    %4980 = vmatprep.subr.bf16.mxu0 %v4778
    %4981 = vmatpush1.bf16.msra.mxu0 %v4777
    %4982 = vmatprep.subr.bf16.mxu0 %v4780
    %4983 = vmatpush1.bf16.msra.mxu0 %v4779
    %4984 = vmatprep.subr.bf16.mxu0 %v4782
    %4985 = vmatpush1.bf16.msra.mxu0 %v4781
    %4986 = vmatprep.subr.bf16.mxu0 %v4784
    %4987 = vmatpush1.bf16.msra.mxu0 %v4783
    %4988 = vmatprep.subr.bf16.mxu0 %v4786
    %4989 = vmatpush1.bf16.msra.mxu0 %v4785
    %4990 = vmatprep.subr.bf16.mxu0 %v4788
    %4991 = vmatpush1.bf16.msra.mxu0 %v4787
    %4992 = vmatprep.subr.bf16.mxu0 %v4790
    %4993 = vmatpush1.bf16.msra.mxu0 %v4789
    %4994 = vmatprep.subr.bf16.mxu0 %v4792
    %4995 = vmatpush1.bf16.msra.mxu0 %v4791
    %4996 = vmatprep.subr.bf16.mxu0 %v4794
    %4997 = vmatpush1.bf16.msra.mxu0 %v4793
    %4998 = vmatprep.subr.bf16.mxu0 %v4796
    %4999 = vmatpush1.bf16.msra.mxu0 %v4795
    %5000 = vmatprep.subr.bf16.mxu0 %v4798
    %5001 = vmatpush1.bf16.msra.mxu0 %v4797
    %5002 = vmatprep.subr.bf16.mxu0 %v4800
    %5003 = vmatpush1.bf16.msra.mxu0 %v4799
    %5004 = vmatprep.mubr.bf16.mxu0 %v4426
    %5005 = vmatmul.mubr.bf16.gmra.mrb[0].mxu0 %v4418
    %v5006 = vpop.f32.mrb[0].mxu0
    %v5007 = vadd.f32 %v4964, %v5006
    %v5008 = vpop.f32.mrb[0].mxu0
    %v5009 = vadd.f32 %v4966, %v5008
    %v5010 = vpop.f32.mrb[0].mxu0
    %v5011 = vadd.f32 %v4968, %v5010
    %v5012 = vpop.f32.mrb[0].mxu0
    %v5013 = vadd.f32 %v4970, %v5012
    %5014 = vdwg.mxu0
    %5015 = vmatprep.subr.bf16.mxu0 %v4802
    %5016 = vmatpush1.bf16.msra.mxu0 %v4801
    %5017 = vmatprep.subr.bf16.mxu0 %v4804
    %5018 = vmatpush1.bf16.msra.mxu0 %v4803
    %5019 = vmatprep.subr.bf16.mxu0 %v4806
    %5020 = vmatpush1.bf16.msra.mxu0 %v4805
    %5021 = vmatprep.subr.bf16.mxu0 %v4808
    %5022 = vmatpush1.bf16.msra.mxu0 %v4807
    %5023 = vmatprep.subr.bf16.mxu0 %v4810
    %5024 = vmatpush1.bf16.msra.mxu0 %v4809
    %5025 = vmatprep.subr.bf16.mxu0 %v4812
    %5026 = vmatpush1.bf16.msra.mxu0 %v4811
    %5027 = vmatprep.subr.bf16.mxu0 %v4814
    %5028 = vmatpush1.bf16.msra.mxu0 %v4813
    %5029 = vmatprep.subr.bf16.mxu0 %v4816
    %5030 = vmatpush1.bf16.msra.mxu0 %v4815
    %5031 = vmatprep.subr.bf16.mxu0 %v4818
    %5032 = vmatpush1.bf16.msra.mxu0 %v4817
    %5033 = vmatprep.subr.bf16.mxu0 %v4820
    %5034 = vmatpush1.bf16.msra.mxu0 %v4819
    %5035 = vmatprep.subr.bf16.mxu0 %v4822
    %5036 = vmatpush1.bf16.msra.mxu0 %v4821
    %5037 = vmatprep.subr.bf16.mxu0 %v4824
    %5038 = vmatpush1.bf16.msra.mxu0 %v4823
    %5039 = vmatprep.subr.bf16.mxu0 %v4826
    %5040 = vmatpush1.bf16.msra.mxu0 %v4825
    %5041 = vmatprep.subr.bf16.mxu0 %v4828
    %5042 = vmatpush1.bf16.msra.mxu0 %v4827
    %5043 = vmatprep.subr.bf16.mxu0 %v4830
    %5044 = vmatpush1.bf16.msra.mxu0 %v4829
    %5045 = vmatprep.subr.bf16.mxu0 %v4832
    %5046 = vmatpush1.bf16.msra.mxu0 %v4831
    %5047 = vmatprep.mubr.bf16.mxu0 %v4442
    %5048 = vmatmul.mubr.bf16.gmra.mrb[0].mxu0 %v4434
    %v5049 = vpop.f32.mrb[0].mxu0
    %v5050 = vadd.f32 %v5007, %v5049
    %v5051 = vpop.f32.mrb[0].mxu0
    %v5052 = vadd.f32 %v5009, %v5051
    %v5053 = vpop.f32.mrb[0].mxu0
    %v5054 = vadd.f32 %v5011, %v5053
    %v5055 = vpop.f32.mrb[0].mxu0
    %v5056 = vadd.f32 %v5013, %v5055
    %5057 = vdwg.mxu0
    %v5064 = vrot.slane %v4293, 2
    %v5065 = vrot.slane %v4294, 2
    %v5066 = vrot.slane %v4295, 2
    %v5067 = vrot.slane %v4296, 2
    %v5068 = vrot.slane %v4297, 2
    %v5069 = vrot.slane %v4298, 2
    %v5172 = vunpack.c.l.b16 %v4197
    %v5173 = vunpack.c.h.b16 %v4197
    %v5174 = vunpack.c.l.b16 %v4198
    %v5175 = vunpack.c.h.b16 %v4198
    %v5176 = vunpack.c.l.b16 %v4199
    %v5177 = vunpack.c.h.b16 %v4199
    %v5178 = vunpack.c.l.b16 %v4200
    %v5179 = vunpack.c.h.b16 %v4200
    %v5180 = vunpack.c.l.b16 %v4201
    %v5181 = vunpack.c.h.b16 %v4201
    %v5182 = vunpack.c.l.b16 %v4202
    %v5183 = vunpack.c.h.b16 %v4202
    %v5184 = vunpack.c.l.b16 %v4203
    %v5185 = vunpack.c.h.b16 %v4203
    %v5186 = vunpack.c.l.b16 %v4204
    %v5187 = vunpack.c.h.b16 %v4204
    %v5188 = vunpack.c.l.b16 %v4205
    %v5189 = vunpack.c.h.b16 %v4205
    %v5190 = vunpack.c.l.b16 %v4206
    %v5191 = vunpack.c.h.b16 %v4206
    %v5192 = vunpack.c.l.b16 %v4207
    %v5193 = vunpack.c.h.b16 %v4207
    %v5194 = vunpack.c.l.b16 %v4208
    %v5195 = vunpack.c.h.b16 %v4208
    %v5196 = vunpack.c.l.b16 %v4209
    %v5197 = vunpack.c.h.b16 %v4209
    %v5198 = vunpack.c.l.b16 %v4210
    %v5199 = vunpack.c.h.b16 %v4210
    %v5200 = vunpack.c.l.b16 %v4211
    %v5201 = vunpack.c.h.b16 %v4211
    %v5202 = vunpack.c.l.b16 %v4212
    %v5203 = vunpack.c.h.b16 %v4212
    %v5204 = vunpack.c.l.b16 %v4213
    %v5205 = vunpack.c.h.b16 %v4213
    %v5206 = vunpack.c.l.b16 %v4214
    %v5207 = vunpack.c.h.b16 %v4214
    %v5208 = vunpack.c.l.b16 %v4215
    %v5209 = vunpack.c.h.b16 %v4215
    %v5210 = vunpack.c.l.b16 %v4216
    %v5211 = vunpack.c.h.b16 %v4216
    %v5212 = vunpack.c.l.b16 %v4217
    %v5213 = vunpack.c.h.b16 %v4217
    %v5214 = vunpack.c.l.b16 %v4218
    %v5215 = vunpack.c.h.b16 %v4218
    %v5216 = vunpack.c.l.b16 %v4219
    %v5217 = vunpack.c.h.b16 %v4219
    %v5218 = vunpack.c.l.b16 %v4220
    %v5219 = vunpack.c.h.b16 %v4220
    %v5220 = vunpack.c.l.b16 %v4221
    %v5221 = vunpack.c.h.b16 %v4221
    %v5222 = vunpack.c.l.b16 %v4222
    %v5223 = vunpack.c.h.b16 %v4222
    %v5224 = vunpack.c.l.b16 %v4223
    %v5225 = vunpack.c.h.b16 %v4223
    %v5226 = vunpack.c.l.b16 %v4224
    %v5227 = vunpack.c.h.b16 %v4224
    %v5228 = vunpack.c.l.b16 %v4225
    %v5229 = vunpack.c.h.b16 %v4225
    %v5230 = vunpack.c.l.b16 %v4226
    %v5231 = vunpack.c.h.b16 %v4226
    %v5232 = vunpack.c.l.b16 %v4227
    %v5233 = vunpack.c.h.b16 %v4227
    %v5234 = vunpack.c.l.b16 %v4228
    %v5235 = vunpack.c.h.b16 %v4228
    %v5236 = vunpack.c.l.b16 %v4229
    %v5237 = vunpack.c.h.b16 %v4229
    %v5238 = vunpack.c.l.b16 %v4230
    %v5239 = vunpack.c.h.b16 %v4230
    %v5240 = vunpack.c.l.b16 %v4231
    %v5241 = vunpack.c.h.b16 %v4231
    %v5242 = vunpack.c.l.b16 %v4232
    %v5243 = vunpack.c.h.b16 %v4232
    %v5244 = vunpack.c.l.b16 %v4233
    %v5245 = vunpack.c.h.b16 %v4233
    %v5246 = vunpack.c.l.b16 %v4234
    %v5247 = vunpack.c.h.b16 %v4234
    %v5248 = vunpack.c.l.b16 %v4235
    %v5249 = vunpack.c.h.b16 %v4235
    %v5250 = vunpack.c.l.b16 %v4236
    %v5251 = vunpack.c.h.b16 %v4236
    %v5252 = vunpack.c.l.b16 %v4237
    %v5253 = vunpack.c.h.b16 %v4237
    %v5254 = vunpack.c.l.b16 %v4238
    %v5255 = vunpack.c.h.b16 %v4238
    %v5256 = vunpack.c.l.b16 %v4239
    %v5257 = vunpack.c.h.b16 %v4239
    %v5258 = vunpack.c.l.b16 %v4240
    %v5259 = vunpack.c.h.b16 %v4240
    %v5260 = vunpack.c.l.b16 %v4241
    %v5261 = vunpack.c.h.b16 %v4241
    %v5262 = vunpack.c.l.b16 %v4242
    %v5263 = vunpack.c.h.b16 %v4242
    %v5264 = vunpack.c.l.b16 %v4243
    %v5265 = vunpack.c.h.b16 %v4243
    %v5266 = vunpack.c.l.b16 %v4244
    %v5267 = vunpack.c.h.b16 %v4244
    %v5268 = vunpack.c.l.b16 %v4245
    %v5269 = vunpack.c.h.b16 %v4245
    %v5270 = vunpack.c.l.b16 %v4246
    %v5271 = vunpack.c.h.b16 %v4246
    %v5272 = vunpack.c.l.b16 %v4247
    %v5273 = vunpack.c.h.b16 %v4247
    %v5274 = vunpack.c.l.b16 %v4248
    %v5275 = vunpack.c.h.b16 %v4248
    %v5276 = vunpack.c.l.b16 %v4249
    %v5277 = vunpack.c.h.b16 %v4249
    %v5278 = vunpack.c.l.b16 %v4250
    %v5279 = vunpack.c.h.b16 %v4250
    %v5280 = vunpack.c.l.b16 %v4251
    %v5281 = vunpack.c.h.b16 %v4251
    %v5282 = vunpack.c.l.b16 %v4252
    %v5283 = vunpack.c.h.b16 %v4252
    %v5284 = vunpack.c.l.b16 %v4253
    %v5285 = vunpack.c.h.b16 %v4253
    %v5286 = vunpack.c.l.b16 %v4254
    %v5287 = vunpack.c.h.b16 %v4254
    %v5288 = vunpack.c.l.b16 %v4255
    %v5289 = vunpack.c.h.b16 %v4255
    %v5290 = vunpack.c.l.b16 %v4256
    %v5291 = vunpack.c.h.b16 %v4256
    %v5292 = vunpack.c.l.b16 %v4257
    %v5293 = vunpack.c.h.b16 %v4257
    %v5294 = vunpack.c.l.b16 %v4258
    %v5295 = vunpack.c.h.b16 %v4258
    %v5296 = vunpack.c.l.b16 %v4259
    %v5297 = vunpack.c.h.b16 %v4259
    %v5298 = vunpack.c.l.b16 %v4260
    %v5299 = vunpack.c.h.b16 %v4260
    %v5300 = vunpack.c.l.b16 %v4261
    %v5301 = vunpack.c.h.b16 %v4261
    %v5302 = vunpack.c.l.b16 %v4262
    %v5303 = vunpack.c.h.b16 %v4262
    %v5304 = vunpack.c.l.b16 %v4263
    %v5305 = vunpack.c.h.b16 %v4263
    %v5306 = vunpack.c.l.b16 %v4264
    %v5307 = vunpack.c.h.b16 %v4264
    %v5308 = vunpack.c.l.b16 %v4265
    %v5309 = vunpack.c.h.b16 %v4265
    %v5310 = vunpack.c.l.b16 %v4266
    %v5311 = vunpack.c.h.b16 %v4266
    %v5312 = vunpack.c.l.b16 %v4267
    %v5313 = vunpack.c.h.b16 %v4267
    %v5314 = vunpack.c.l.b16 %v4268
    %v5315 = vunpack.c.h.b16 %v4268
    %v5316 = vunpack.c.l.b16 %v4269
    %v5317 = vunpack.c.h.b16 %v4269
    %v5318 = vunpack.c.l.b16 %v4270
    %v5319 = vunpack.c.h.b16 %v4270
    %v5320 = vunpack.c.l.b16 %v4271
    %v5321 = vunpack.c.h.b16 %v4271
    %v5322 = vunpack.c.l.b16 %v4272
    %v5323 = vunpack.c.h.b16 %v4272
    %v5324 = vunpack.c.l.b16 %v4273
    %v5325 = vunpack.c.h.b16 %v4273
    %v5326 = vunpack.c.l.b16 %v4274
    %v5327 = vunpack.c.h.b16 %v4274
    %v5328 = vunpack.c.l.b16 %v4275
    %v5329 = vunpack.c.h.b16 %v4275
    %v5330 = vunpack.c.l.b16 %v4276
    %v5331 = vunpack.c.h.b16 %v4276
    %v5332 = vunpack.c.l.b16 %v4277
    %v5333 = vunpack.c.h.b16 %v4277
    %v5334 = vunpack.c.l.b16 %v4278
    %v5335 = vunpack.c.h.b16 %v4278
    %v5336 = vunpack.c.l.b16 %v4279
    %v5337 = vunpack.c.h.b16 %v4279
    %v5338 = vunpack.c.l.b16 %v4280
    %v5339 = vunpack.c.h.b16 %v4280
    %v5340 = vunpack.c.l.b16 %v4281
    %v5341 = vunpack.c.h.b16 %v4281
    %v5342 = vunpack.c.l.b16 %v4282
    %v5343 = vunpack.c.h.b16 %v4282
    %v5344 = vunpack.c.l.b16 %v4283
    %v5345 = vunpack.c.h.b16 %v4283
    %v5346 = vunpack.c.l.b16 %v4284
    %v5347 = vunpack.c.h.b16 %v4284
    %v5348 = vunpack.c.l.b16 %v4285
    %v5349 = vunpack.c.h.b16 %v4285
    %v5350 = vunpack.c.l.b16 %v4286
    %v5351 = vunpack.c.h.b16 %v4286
    %v5352 = vunpack.c.l.b16 %v4287
    %v5353 = vunpack.c.h.b16 %v4287
    %v5354 = vunpack.c.l.b16 %v4288
    %v5355 = vunpack.c.h.b16 %v4288
    %v5356 = vunpack.c.l.b16 %v4289
    %v5357 = vunpack.c.h.b16 %v4289
    %v5358 = vunpack.c.l.b16 %v4290
    %v5359 = vunpack.c.h.b16 %v4290
    %v5360 = vunpack.c.l.b16 %v4291
    %v5361 = vunpack.c.h.b16 %v4291
    %v5362 = vunpack.c.l.b16 %v4292
    %v5363 = vunpack.c.h.b16 %v4292
    %v5364 = vpack.c.b16 %v5174, %v5172
    %v5365 = vpack.c.b16 %v5175, %v5173
    %v5366 = vpack.c.b16 %v5178, %v5176
    %v5367 = vpack.c.b16 %v5179, %v5177
    %v5368 = vpack.c.b16 %v5182, %v5180
    %v5369 = vpack.c.b16 %v5183, %v5181
    %v5370 = vpack.c.b16 %v5186, %v5184
    %v5371 = vpack.c.b16 %v5187, %v5185
    %v5372 = vpack.c.b16 %v5190, %v5188
    %v5373 = vpack.c.b16 %v5191, %v5189
    %v5374 = vpack.c.b16 %v5194, %v5192
    %v5375 = vpack.c.b16 %v5195, %v5193
    %v5376 = vpack.c.b16 %v5198, %v5196
    %v5377 = vpack.c.b16 %v5199, %v5197
    %v5378 = vpack.c.b16 %v5202, %v5200
    %v5379 = vpack.c.b16 %v5203, %v5201
    %v5380 = vpack.c.b16 %v5206, %v5204
    %v5381 = vpack.c.b16 %v5207, %v5205
    %v5382 = vpack.c.b16 %v5210, %v5208
    %v5383 = vpack.c.b16 %v5211, %v5209
    %v5384 = vpack.c.b16 %v5214, %v5212
    %v5385 = vpack.c.b16 %v5215, %v5213
    %v5386 = vpack.c.b16 %v5218, %v5216
    %v5387 = vpack.c.b16 %v5219, %v5217
    %v5388 = vpack.c.b16 %v5222, %v5220
    %v5389 = vpack.c.b16 %v5223, %v5221
    %v5390 = vpack.c.b16 %v5226, %v5224
    %v5391 = vpack.c.b16 %v5227, %v5225
    %v5392 = vpack.c.b16 %v5230, %v5228
    %v5393 = vpack.c.b16 %v5231, %v5229
    %v5394 = vpack.c.b16 %v5234, %v5232
    %v5395 = vpack.c.b16 %v5235, %v5233
    %v5396 = vpack.c.b16 %v5238, %v5236
    %v5397 = vpack.c.b16 %v5239, %v5237
    %v5398 = vpack.c.b16 %v5242, %v5240
    %v5399 = vpack.c.b16 %v5243, %v5241
    %v5400 = vpack.c.b16 %v5246, %v5244
    %v5401 = vpack.c.b16 %v5247, %v5245
    %v5402 = vpack.c.b16 %v5250, %v5248
    %v5403 = vpack.c.b16 %v5251, %v5249
    %v5404 = vpack.c.b16 %v5254, %v5252
    %v5405 = vpack.c.b16 %v5255, %v5253
    %v5406 = vpack.c.b16 %v5258, %v5256
    %v5407 = vpack.c.b16 %v5259, %v5257
    %v5408 = vpack.c.b16 %v5262, %v5260
    %v5409 = vpack.c.b16 %v5263, %v5261
    %v5410 = vpack.c.b16 %v5266, %v5264
    %v5411 = vpack.c.b16 %v5267, %v5265
    %v5412 = vpack.c.b16 %v5270, %v5268
    %v5413 = vpack.c.b16 %v5271, %v5269
    %v5414 = vpack.c.b16 %v5274, %v5272
    %v5415 = vpack.c.b16 %v5275, %v5273
    %v5416 = vpack.c.b16 %v5278, %v5276
    %v5417 = vpack.c.b16 %v5279, %v5277
    %v5418 = vpack.c.b16 %v5282, %v5280
    %v5419 = vpack.c.b16 %v5283, %v5281
    %v5420 = vpack.c.b16 %v5286, %v5284
    %v5421 = vpack.c.b16 %v5287, %v5285
    %v5422 = vpack.c.b16 %v5290, %v5288
    %v5423 = vpack.c.b16 %v5291, %v5289
    %v5424 = vpack.c.b16 %v5294, %v5292
    %v5425 = vpack.c.b16 %v5295, %v5293
    %v5426 = vpack.c.b16 %v5298, %v5296
    %v5427 = vpack.c.b16 %v5299, %v5297
    %v5428 = vpack.c.b16 %v5302, %v5300
    %v5429 = vpack.c.b16 %v5303, %v5301
    %v5430 = vpack.c.b16 %v5306, %v5304
    %v5431 = vpack.c.b16 %v5307, %v5305
    %v5432 = vpack.c.b16 %v5310, %v5308
    %v5433 = vpack.c.b16 %v5311, %v5309
    %v5434 = vpack.c.b16 %v5314, %v5312
    %v5435 = vpack.c.b16 %v5315, %v5313
    %v5436 = vpack.c.b16 %v5318, %v5316
    %v5437 = vpack.c.b16 %v5319, %v5317
    %v5438 = vpack.c.b16 %v5322, %v5320
    %v5439 = vpack.c.b16 %v5323, %v5321
    %v5440 = vpack.c.b16 %v5326, %v5324
    %v5441 = vpack.c.b16 %v5327, %v5325
    %v5442 = vpack.c.b16 %v5330, %v5328
    %v5443 = vpack.c.b16 %v5331, %v5329
    %v5444 = vpack.c.b16 %v5334, %v5332
    %v5445 = vpack.c.b16 %v5335, %v5333
    %v5446 = vpack.c.b16 %v5338, %v5336
    %v5447 = vpack.c.b16 %v5339, %v5337
    %v5448 = vpack.c.b16 %v5342, %v5340
    %v5449 = vpack.c.b16 %v5343, %v5341
    %v5450 = vpack.c.b16 %v5346, %v5344
    %v5451 = vpack.c.b16 %v5347, %v5345
    %v5452 = vpack.c.b16 %v5350, %v5348
    %v5453 = vpack.c.b16 %v5351, %v5349
    %v5454 = vpack.c.b16 %v5354, %v5352
    %v5455 = vpack.c.b16 %v5355, %v5353
    %v5456 = vpack.c.b16 %v5358, %v5356
    %v5457 = vpack.c.b16 %v5359, %v5357
    %v5458 = vpack.c.b16 %v5362, %v5360
    %v5459 = vpack.c.b16 %v5363, %v5361
    %5556 = vmatprep.subr.bf16.mxu0 %v5365
    %5557 = vmatpush1.bf16.msra.mxu0 %v5364
    %5558 = vmatprep.subr.bf16.mxu0 %v5367
    %5559 = vmatpush1.bf16.msra.mxu0 %v5366
    %5560 = vmatprep.subr.bf16.mxu0 %v5369
    %5561 = vmatpush1.bf16.msra.mxu0 %v5368
    %5562 = vmatprep.subr.bf16.mxu0 %v5371
    %5563 = vmatpush1.bf16.msra.mxu0 %v5370
    %5564 = vmatprep.subr.bf16.mxu0 %v5373
    %5565 = vmatpush1.bf16.msra.mxu0 %v5372
    %5566 = vmatprep.subr.bf16.mxu0 %v5375
    %5567 = vmatpush1.bf16.msra.mxu0 %v5374
    %5568 = vmatprep.subr.bf16.mxu0 %v5377
    %5569 = vmatpush1.bf16.msra.mxu0 %v5376
    %5570 = vmatprep.subr.bf16.mxu0 %v5379
    %5571 = vmatpush1.bf16.msra.mxu0 %v5378
    %5572 = vmatprep.subr.bf16.mxu0 %v5381
    %5573 = vmatpush1.bf16.msra.mxu0 %v5380
    %5574 = vmatprep.subr.bf16.mxu0 %v5383
    %5575 = vmatpush1.bf16.msra.mxu0 %v5382
    %5576 = vmatprep.subr.bf16.mxu0 %v5385
    %5577 = vmatpush1.bf16.msra.mxu0 %v5384
    %5578 = vmatprep.subr.bf16.mxu0 %v5387
    %5579 = vmatpush1.bf16.msra.mxu0 %v5386
    %5580 = vmatprep.subr.bf16.mxu0 %v5389
    %5581 = vmatpush1.bf16.msra.mxu0 %v5388
    %5582 = vmatprep.subr.bf16.mxu0 %v5391
    %5583 = vmatpush1.bf16.msra.mxu0 %v5390
    %5584 = vmatprep.subr.bf16.mxu0 %v5393
    %5585 = vmatpush1.bf16.msra.mxu0 %v5392
    %5586 = vmatprep.subr.bf16.mxu0 %v5395
    %5587 = vmatpush1.bf16.msra.mxu0 %v5394
    %5588 = vmatprep.mubr.bf16.mxu0 %v5065
    %5589 = vmatmul.mubr.bf16.gmra.mrb[0].mxu0 %v5064
    %v5590 = vpop.f32.mrb[0].mxu0
    %v5591 = vadd.f32 %v5050, %v5590
    %v5592 = vpop.f32.mrb[0].mxu0
    %v5593 = vadd.f32 %v5052, %v5592
    %v5594 = vpop.f32.mrb[0].mxu0
    %v5595 = vadd.f32 %v5054, %v5594
    %v5596 = vpop.f32.mrb[0].mxu0
    %v5597 = vadd.f32 %v5056, %v5596
    %5598 = vdwg.mxu0
    %5599 = vmatprep.subr.bf16.mxu0 %v5397
    %5600 = vmatpush1.bf16.msra.mxu0 %v5396
    %5601 = vmatprep.subr.bf16.mxu0 %v5399
    %5602 = vmatpush1.bf16.msra.mxu0 %v5398
    %5603 = vmatprep.subr.bf16.mxu0 %v5401
    %5604 = vmatpush1.bf16.msra.mxu0 %v5400
    %5605 = vmatprep.subr.bf16.mxu0 %v5403
    %5606 = vmatpush1.bf16.msra.mxu0 %v5402
    %5607 = vmatprep.subr.bf16.mxu0 %v5405
    %5608 = vmatpush1.bf16.msra.mxu0 %v5404
    %5609 = vmatprep.subr.bf16.mxu0 %v5407
    %5610 = vmatpush1.bf16.msra.mxu0 %v5406
    %5611 = vmatprep.subr.bf16.mxu0 %v5409
    %5612 = vmatpush1.bf16.msra.mxu0 %v5408
    %5613 = vmatprep.subr.bf16.mxu0 %v5411
    %5614 = vmatpush1.bf16.msra.mxu0 %v5410
    %5615 = vmatprep.subr.bf16.mxu0 %v5413
    %5616 = vmatpush1.bf16.msra.mxu0 %v5412
    %5617 = vmatprep.subr.bf16.mxu0 %v5415
    %5618 = vmatpush1.bf16.msra.mxu0 %v5414
    %5619 = vmatprep.subr.bf16.mxu0 %v5417
    %5620 = vmatpush1.bf16.msra.mxu0 %v5416
    %5621 = vmatprep.subr.bf16.mxu0 %v5419
    %5622 = vmatpush1.bf16.msra.mxu0 %v5418
    %5623 = vmatprep.subr.bf16.mxu0 %v5421
    %5624 = vmatpush1.bf16.msra.mxu0 %v5420
    %5625 = vmatprep.subr.bf16.mxu0 %v5423
    %5626 = vmatpush1.bf16.msra.mxu0 %v5422
    %5627 = vmatprep.subr.bf16.mxu0 %v5425
    %5628 = vmatpush1.bf16.msra.mxu0 %v5424
    %5629 = vmatprep.subr.bf16.mxu0 %v5427
    %5630 = vmatpush1.bf16.msra.mxu0 %v5426
    %5631 = vmatprep.mubr.bf16.mxu0 %v5067
    %5632 = vmatmul.mubr.bf16.gmra.mrb[0].mxu0 %v5066
    %v5633 = vpop.f32.mrb[0].mxu0
    %v5634 = vadd.f32 %v5591, %v5633
    %v5635 = vpop.f32.mrb[0].mxu0
    %v5636 = vadd.f32 %v5593, %v5635
    %v5637 = vpop.f32.mrb[0].mxu0
    %v5638 = vadd.f32 %v5595, %v5637
    %v5639 = vpop.f32.mrb[0].mxu0
    %v5640 = vadd.f32 %v5597, %v5639
    %5641 = vdwg.mxu0
    %5642 = vmatprep.subr.bf16.mxu0 %v5429
    %5643 = vmatpush1.bf16.msra.mxu0 %v5428
    %5644 = vmatprep.subr.bf16.mxu0 %v5431
    %5645 = vmatpush1.bf16.msra.mxu0 %v5430
    %5646 = vmatprep.subr.bf16.mxu0 %v5433
    %5647 = vmatpush1.bf16.msra.mxu0 %v5432
    %5648 = vmatprep.subr.bf16.mxu0 %v5435
    %5649 = vmatpush1.bf16.msra.mxu0 %v5434
    %5650 = vmatprep.subr.bf16.mxu0 %v5437
    %5651 = vmatpush1.bf16.msra.mxu0 %v5436
    %5652 = vmatprep.subr.bf16.mxu0 %v5439
    %5653 = vmatpush1.bf16.msra.mxu0 %v5438
    %5654 = vmatprep.subr.bf16.mxu0 %v5441
    %5655 = vmatpush1.bf16.msra.mxu0 %v5440
    %5656 = vmatprep.subr.bf16.mxu0 %v5443
    %5657 = vmatpush1.bf16.msra.mxu0 %v5442
    %5658 = vmatprep.subr.bf16.mxu0 %v5445
    %5659 = vmatpush1.bf16.msra.mxu0 %v5444
    %5660 = vmatprep.subr.bf16.mxu0 %v5447
    %5661 = vmatpush1.bf16.msra.mxu0 %v5446
    %5662 = vmatprep.subr.bf16.mxu0 %v5449
    %5663 = vmatpush1.bf16.msra.mxu0 %v5448
    %5664 = vmatprep.subr.bf16.mxu0 %v5451
    %5665 = vmatpush1.bf16.msra.mxu0 %v5450
    %5666 = vmatprep.subr.bf16.mxu0 %v5453
    %5667 = vmatpush1.bf16.msra.mxu0 %v5452
    %5668 = vmatprep.subr.bf16.mxu0 %v5455
    %5669 = vmatpush1.bf16.msra.mxu0 %v5454
    %5670 = vmatprep.subr.bf16.mxu0 %v5457
    %5671 = vmatpush1.bf16.msra.mxu0 %v5456
    %5672 = vmatprep.subr.bf16.mxu0 %v5459
    %5673 = vmatpush1.bf16.msra.mxu0 %v5458
    %5674 = vmatprep.mubr.bf16.mxu0 %v5069
    %5675 = vmatmul.mubr.bf16.gmra.mrb[0].mxu0 %v5068
    %v5676 = vpop.f32.mrb[0].mxu0
    %v5677 = vadd.f32 %v5634, %v5676
    %v5678 = vpop.f32.mrb[0].mxu0
    %v5679 = vadd.f32 %v5636, %v5678
    %v5680 = vpop.f32.mrb[0].mxu0
    %v5681 = vadd.f32 %v5638, %v5680
    %v5682 = vpop.f32.mrb[0].mxu0
    %v5683 = vadd.f32 %v5640, %v5682
    %5684 = vdwg.mxu0
    %v5685 = vld [vmem:[%s2 + $0x600] sm:$0xff]
    %v5686 = vld [vmem:[%s2 + $0x608] sm:$0xff]
    %v5687 = vld [vmem:[%s2 + $0x610] sm:$0xff]
    %v5688 = vld [vmem:[%s2 + $0x618] sm:$0xff]
    %v5689 = vld [vmem:[%s2 + $0x620] sm:$0xff]
    %v5690 = vld [vmem:[%s2 + $0x628] sm:$0xff]
    %v5691 = vld [vmem:[%s2 + $0x630] sm:$0xff]
    %v5692 = vld [vmem:[%s2 + $0x638] sm:$0xff]
    %v5693 = vld [vmem:[%s2 + $0x640] sm:$0xff]
    %v5694 = vld [vmem:[%s2 + $0x648] sm:$0xff]
    %v5695 = vld [vmem:[%s2 + $0x650] sm:$0xff]
    %v5696 = vld [vmem:[%s2 + $0x658] sm:$0xff]
    %v5697 = vld [vmem:[%s2 + $0x660] sm:$0xff]
    %v5698 = vld [vmem:[%s2 + $0x668] sm:$0xff]
    %v5699 = vld [vmem:[%s2 + $0x670] sm:$0xff]
    %v5700 = vld [vmem:[%s2 + $0x678] sm:$0xff]
    %v5701 = vld [vmem:[%s2 + $0x680] sm:$0xff]
    %v5702 = vld [vmem:[%s2 + $0x688] sm:$0xff]
    %v5703 = vld [vmem:[%s2 + $0x690] sm:$0xff]
    %v5704 = vld [vmem:[%s2 + $0x698] sm:$0xff]
    %v5705 = vld [vmem:[%s2 + $0x6a0] sm:$0xff]
    %v5706 = vld [vmem:[%s2 + $0x6a8] sm:$0xff]
    %v5707 = vld [vmem:[%s2 + $0x6b0] sm:$0xff]
    %v5708 = vld [vmem:[%s2 + $0x6b8] sm:$0xff]
    %v5709 = vld [vmem:[%s2 + $0x6c0] sm:$0xff]
    %v5710 = vld [vmem:[%s2 + $0x6c8] sm:$0xff]
    %v5711 = vld [vmem:[%s2 + $0x6d0] sm:$0xff]
    %v5712 = vld [vmem:[%s2 + $0x6d8] sm:$0xff]
    %v5713 = vld [vmem:[%s2 + $0x6e0] sm:$0xff]
    %v5714 = vld [vmem:[%s2 + $0x6e8] sm:$0xff]
    %v5715 = vld [vmem:[%s2 + $0x6f0] sm:$0xff]
    %v5716 = vld [vmem:[%s2 + $0x6f8] sm:$0xff]
    %v5717 = vld [vmem:[%s2 + $0x700] sm:$0xff]
    %v5718 = vld [vmem:[%s2 + $0x708] sm:$0xff]
    %v5719 = vld [vmem:[%s2 + $0x710] sm:$0xff]
    %v5720 = vld [vmem:[%s2 + $0x718] sm:$0xff]
    %v5721 = vld [vmem:[%s2 + $0x720] sm:$0xff]
    %v5722 = vld [vmem:[%s2 + $0x728] sm:$0xff]
    %v5723 = vld [vmem:[%s2 + $0x730] sm:$0xff]
    %v5724 = vld [vmem:[%s2 + $0x738] sm:$0xff]
    %v5725 = vld [vmem:[%s2 + $0x740] sm:$0xff]
    %v5726 = vld [vmem:[%s2 + $0x748] sm:$0xff]
    %v5727 = vld [vmem:[%s2 + $0x750] sm:$0xff]
    %v5728 = vld [vmem:[%s2 + $0x758] sm:$0xff]
    %v5729 = vld [vmem:[%s2 + $0x760] sm:$0xff]
    %v5730 = vld [vmem:[%s2 + $0x768] sm:$0xff]
    %v5731 = vld [vmem:[%s2 + $0x770] sm:$0xff]
    %v5732 = vld [vmem:[%s2 + $0x778] sm:$0xff]
    %v5733 = vld [vmem:[%s2 + $0x780] sm:$0xff]
    %v5734 = vld [vmem:[%s2 + $0x788] sm:$0xff]
    %v5735 = vld [vmem:[%s2 + $0x790] sm:$0xff]
    %v5736 = vld [vmem:[%s2 + $0x798] sm:$0xff]
    %v5737 = vld [vmem:[%s2 + $0x7a0] sm:$0xff]
    %v5738 = vld [vmem:[%s2 + $0x7a8] sm:$0xff]
    %v5739 = vld [vmem:[%s2 + $0x7b0] sm:$0xff]
    %v5740 = vld [vmem:[%s2 + $0x7b8] sm:$0xff]
    %v5741 = vld [vmem:[%s2 + $0x7c0] sm:$0xff]
    %v5742 = vld [vmem:[%s2 + $0x7c8] sm:$0xff]
    %v5743 = vld [vmem:[%s2 + $0x7d0] sm:$0xff]
    %v5744 = vld [vmem:[%s2 + $0x7d8] sm:$0xff]
    %v5745 = vld [vmem:[%s2 + $0x7e0] sm:$0xff]
    %v5746 = vld [vmem:[%s2 + $0x7e8] sm:$0xff]
    %v5747 = vld [vmem:[%s2 + $0x7f0] sm:$0xff]
    %v5748 = vld [vmem:[%s2 + $0x7f8] sm:$0xff]
    %v5749 = vld [vmem:[%s2 + $0x800] sm:$0xff]
    %v5750 = vld [vmem:[%s2 + $0x808] sm:$0xff]
    %v5751 = vld [vmem:[%s2 + $0x810] sm:$0xff]
    %v5752 = vld [vmem:[%s2 + $0x818] sm:$0xff]
    %v5753 = vld [vmem:[%s2 + $0x820] sm:$0xff]
    %v5754 = vld [vmem:[%s2 + $0x828] sm:$0xff]
    %v5755 = vld [vmem:[%s2 + $0x830] sm:$0xff]
    %v5756 = vld [vmem:[%s2 + $0x838] sm:$0xff]
    %v5757 = vld [vmem:[%s2 + $0x840] sm:$0xff]
    %v5758 = vld [vmem:[%s2 + $0x848] sm:$0xff]
    %v5759 = vld [vmem:[%s2 + $0x850] sm:$0xff]
    %v5760 = vld [vmem:[%s2 + $0x858] sm:$0xff]
    %v5761 = vld [vmem:[%s2 + $0x860] sm:$0xff]
    %v5762 = vld [vmem:[%s2 + $0x868] sm:$0xff]
    %v5763 = vld [vmem:[%s2 + $0x870] sm:$0xff]
    %v5764 = vld [vmem:[%s2 + $0x878] sm:$0xff]
    %v5765 = vld [vmem:[%s2 + $0x880] sm:$0xff]
    %v5766 = vld [vmem:[%s2 + $0x888] sm:$0xff]
    %v5767 = vld [vmem:[%s2 + $0x890] sm:$0xff]
    %v5768 = vld [vmem:[%s2 + $0x898] sm:$0xff]
    %v5769 = vld [vmem:[%s2 + $0x8a0] sm:$0xff]
    %v5770 = vld [vmem:[%s2 + $0x8a8] sm:$0xff]
    %v5771 = vld [vmem:[%s2 + $0x8b0] sm:$0xff]
    %v5772 = vld [vmem:[%s2 + $0x8b8] sm:$0xff]
    %v5773 = vld [vmem:[%s2 + $0x8c0] sm:$0xff]
    %v5774 = vld [vmem:[%s2 + $0x8c8] sm:$0xff]
    %v5775 = vld [vmem:[%s2 + $0x8d0] sm:$0xff]
    %v5776 = vld [vmem:[%s2 + $0x8d8] sm:$0xff]
    %v5777 = vld [vmem:[%s2 + $0x8e0] sm:$0xff]
    %v5778 = vld [vmem:[%s2 + $0x8e8] sm:$0xff]
    %v5779 = vld [vmem:[%s2 + $0x8f0] sm:$0xff]
    %v5780 = vld [vmem:[%s2 + $0x8f8] sm:$0xff]
    %v5781 = vrot.slane %v4293, 3
    %v5782 = vrot.slane %v4294, 3
    %v5783 = vrot.slane %v4295, 3
    %v5784 = vrot.slane %v4296, 3
    %v5785 = vrot.slane %v4297, 3
    %v5786 = vrot.slane %v4298, 3
    %v5889 = vunpack.c.l.b16 %v5685
    %v5890 = vunpack.c.h.b16 %v5685
    %v5891 = vunpack.c.l.b16 %v5686
    %v5892 = vunpack.c.h.b16 %v5686
    %v5893 = vunpack.c.l.b16 %v5687
    %v5894 = vunpack.c.h.b16 %v5687
    %v5895 = vunpack.c.l.b16 %v5688
    %v5896 = vunpack.c.h.b16 %v5688
    %v5897 = vunpack.c.l.b16 %v5689
    %v5898 = vunpack.c.h.b16 %v5689
    %v5899 = vunpack.c.l.b16 %v5690
    %v5900 = vunpack.c.h.b16 %v5690
    %v5901 = vunpack.c.l.b16 %v5691
    %v5902 = vunpack.c.h.b16 %v5691
    %v5903 = vunpack.c.l.b16 %v5692
    %v5904 = vunpack.c.h.b16 %v5692
    %v5905 = vunpack.c.l.b16 %v5693
    %v5906 = vunpack.c.h.b16 %v5693
    %v5907 = vunpack.c.l.b16 %v5694
    %v5908 = vunpack.c.h.b16 %v5694
    %v5909 = vunpack.c.l.b16 %v5695
    %v5910 = vunpack.c.h.b16 %v5695
    %v5911 = vunpack.c.l.b16 %v5696
    %v5912 = vunpack.c.h.b16 %v5696
    %v5913 = vunpack.c.l.b16 %v5697
    %v5914 = vunpack.c.h.b16 %v5697
    %v5915 = vunpack.c.l.b16 %v5698
    %v5916 = vunpack.c.h.b16 %v5698
    %v5917 = vunpack.c.l.b16 %v5699
    %v5918 = vunpack.c.h.b16 %v5699
    %v5919 = vunpack.c.l.b16 %v5700
    %v5920 = vunpack.c.h.b16 %v5700
    %v5921 = vunpack.c.l.b16 %v5701
    %v5922 = vunpack.c.h.b16 %v5701
    %v5923 = vunpack.c.l.b16 %v5702
    %v5924 = vunpack.c.h.b16 %v5702
    %v5925 = vunpack.c.l.b16 %v5703
    %v5926 = vunpack.c.h.b16 %v5703
    %v5927 = vunpack.c.l.b16 %v5704
    %v5928 = vunpack.c.h.b16 %v5704
    %v5929 = vunpack.c.l.b16 %v5705
    %v5930 = vunpack.c.h.b16 %v5705
    %v5931 = vunpack.c.l.b16 %v5706
    %v5932 = vunpack.c.h.b16 %v5706
    %v5933 = vunpack.c.l.b16 %v5707
    %v5934 = vunpack.c.h.b16 %v5707
    %v5935 = vunpack.c.l.b16 %v5708
    %v5936 = vunpack.c.h.b16 %v5708
    %v5937 = vunpack.c.l.b16 %v5709
    %v5938 = vunpack.c.h.b16 %v5709
    %v5939 = vunpack.c.l.b16 %v5710
    %v5940 = vunpack.c.h.b16 %v5710
    %v5941 = vunpack.c.l.b16 %v5711
    %v5942 = vunpack.c.h.b16 %v5711
    %v5943 = vunpack.c.l.b16 %v5712
    %v5944 = vunpack.c.h.b16 %v5712
    %v5945 = vunpack.c.l.b16 %v5713
    %v5946 = vunpack.c.h.b16 %v5713
    %v5947 = vunpack.c.l.b16 %v5714
    %v5948 = vunpack.c.h.b16 %v5714
    %v5949 = vunpack.c.l.b16 %v5715
    %v5950 = vunpack.c.h.b16 %v5715
    %v5951 = vunpack.c.l.b16 %v5716
    %v5952 = vunpack.c.h.b16 %v5716
    %v5953 = vunpack.c.l.b16 %v5717
    %v5954 = vunpack.c.h.b16 %v5717
    %v5955 = vunpack.c.l.b16 %v5718
    %v5956 = vunpack.c.h.b16 %v5718
    %v5957 = vunpack.c.l.b16 %v5719
    %v5958 = vunpack.c.h.b16 %v5719
    %v5959 = vunpack.c.l.b16 %v5720
    %v5960 = vunpack.c.h.b16 %v5720
    %v5961 = vunpack.c.l.b16 %v5721
    %v5962 = vunpack.c.h.b16 %v5721
    %v5963 = vunpack.c.l.b16 %v5722
    %v5964 = vunpack.c.h.b16 %v5722
    %v5965 = vunpack.c.l.b16 %v5723
    %v5966 = vunpack.c.h.b16 %v5723
    %v5967 = vunpack.c.l.b16 %v5724
    %v5968 = vunpack.c.h.b16 %v5724
    %v5969 = vunpack.c.l.b16 %v5725
    %v5970 = vunpack.c.h.b16 %v5725
    %v5971 = vunpack.c.l.b16 %v5726
    %v5972 = vunpack.c.h.b16 %v5726
    %v5973 = vunpack.c.l.b16 %v5727
    %v5974 = vunpack.c.h.b16 %v5727
    %v5975 = vunpack.c.l.b16 %v5728
    %v5976 = vunpack.c.h.b16 %v5728
    %v5977 = vunpack.c.l.b16 %v5729
    %v5978 = vunpack.c.h.b16 %v5729
    %v5979 = vunpack.c.l.b16 %v5730
    %v5980 = vunpack.c.h.b16 %v5730
    %v5981 = vunpack.c.l.b16 %v5731
    %v5982 = vunpack.c.h.b16 %v5731
    %v5983 = vunpack.c.l.b16 %v5732
    %v5984 = vunpack.c.h.b16 %v5732
    %v5985 = vunpack.c.l.b16 %v5733
    %v5986 = vunpack.c.h.b16 %v5733
    %v5987 = vunpack.c.l.b16 %v5734
    %v5988 = vunpack.c.h.b16 %v5734
    %v5989 = vunpack.c.l.b16 %v5735
    %v5990 = vunpack.c.h.b16 %v5735
    %v5991 = vunpack.c.l.b16 %v5736
    %v5992 = vunpack.c.h.b16 %v5736
    %v5993 = vunpack.c.l.b16 %v5737
    %v5994 = vunpack.c.h.b16 %v5737
    %v5995 = vunpack.c.l.b16 %v5738
    %v5996 = vunpack.c.h.b16 %v5738
    %v5997 = vunpack.c.l.b16 %v5739
    %v5998 = vunpack.c.h.b16 %v5739
    %v5999 = vunpack.c.l.b16 %v5740
    %v6000 = vunpack.c.h.b16 %v5740
    %v6001 = vunpack.c.l.b16 %v5741
    %v6002 = vunpack.c.h.b16 %v5741
    %v6003 = vunpack.c.l.b16 %v5742
    %v6004 = vunpack.c.h.b16 %v5742
    %v6005 = vunpack.c.l.b16 %v5743
    %v6006 = vunpack.c.h.b16 %v5743
    %v6007 = vunpack.c.l.b16 %v5744
    %v6008 = vunpack.c.h.b16 %v5744
    %v6009 = vunpack.c.l.b16 %v5745
    %v6010 = vunpack.c.h.b16 %v5745
    %v6011 = vunpack.c.l.b16 %v5746
    %v6012 = vunpack.c.h.b16 %v5746
    %v6013 = vunpack.c.l.b16 %v5747
    %v6014 = vunpack.c.h.b16 %v5747
    %v6015 = vunpack.c.l.b16 %v5748
    %v6016 = vunpack.c.h.b16 %v5748
    %v6017 = vunpack.c.l.b16 %v5749
    %v6018 = vunpack.c.h.b16 %v5749
    %v6019 = vunpack.c.l.b16 %v5750
    %v6020 = vunpack.c.h.b16 %v5750
    %v6021 = vunpack.c.l.b16 %v5751
    %v6022 = vunpack.c.h.b16 %v5751
    %v6023 = vunpack.c.l.b16 %v5752
    %v6024 = vunpack.c.h.b16 %v5752
    %v6025 = vunpack.c.l.b16 %v5753
    %v6026 = vunpack.c.h.b16 %v5753
    %v6027 = vunpack.c.l.b16 %v5754
    %v6028 = vunpack.c.h.b16 %v5754
    %v6029 = vunpack.c.l.b16 %v5755
    %v6030 = vunpack.c.h.b16 %v5755
    %v6031 = vunpack.c.l.b16 %v5756
    %v6032 = vunpack.c.h.b16 %v5756
    %v6033 = vunpack.c.l.b16 %v5757
    %v6034 = vunpack.c.h.b16 %v5757
    %v6035 = vunpack.c.l.b16 %v5758
    %v6036 = vunpack.c.h.b16 %v5758
    %v6037 = vunpack.c.l.b16 %v5759
    %v6038 = vunpack.c.h.b16 %v5759
    %v6039 = vunpack.c.l.b16 %v5760
    %v6040 = vunpack.c.h.b16 %v5760
    %v6041 = vunpack.c.l.b16 %v5761
    %v6042 = vunpack.c.h.b16 %v5761
    %v6043 = vunpack.c.l.b16 %v5762
    %v6044 = vunpack.c.h.b16 %v5762
    %v6045 = vunpack.c.l.b16 %v5763
    %v6046 = vunpack.c.h.b16 %v5763
    %v6047 = vunpack.c.l.b16 %v5764
    %v6048 = vunpack.c.h.b16 %v5764
    %v6049 = vunpack.c.l.b16 %v5765
    %v6050 = vunpack.c.h.b16 %v5765
    %v6051 = vunpack.c.l.b16 %v5766
    %v6052 = vunpack.c.h.b16 %v5766
    %v6053 = vunpack.c.l.b16 %v5767
    %v6054 = vunpack.c.h.b16 %v5767
    %v6055 = vunpack.c.l.b16 %v5768
    %v6056 = vunpack.c.h.b16 %v5768
    %v6057 = vunpack.c.l.b16 %v5769
    %v6058 = vunpack.c.h.b16 %v5769
    %v6059 = vunpack.c.l.b16 %v5770
    %v6060 = vunpack.c.h.b16 %v5770
    %v6061 = vunpack.c.l.b16 %v5771
    %v6062 = vunpack.c.h.b16 %v5771
    %v6063 = vunpack.c.l.b16 %v5772
    %v6064 = vunpack.c.h.b16 %v5772
    %v6065 = vunpack.c.l.b16 %v5773
    %v6066 = vunpack.c.h.b16 %v5773
    %v6067 = vunpack.c.l.b16 %v5774
    %v6068 = vunpack.c.h.b16 %v5774
    %v6069 = vunpack.c.l.b16 %v5775
    %v6070 = vunpack.c.h.b16 %v5775
    %v6071 = vunpack.c.l.b16 %v5776
    %v6072 = vunpack.c.h.b16 %v5776
    %v6073 = vunpack.c.l.b16 %v5777
    %v6074 = vunpack.c.h.b16 %v5777
    %v6075 = vunpack.c.l.b16 %v5778
    %v6076 = vunpack.c.h.b16 %v5778
    %v6077 = vunpack.c.l.b16 %v5779
    %v6078 = vunpack.c.h.b16 %v5779
    %v6079 = vunpack.c.l.b16 %v5780
    %v6080 = vunpack.c.h.b16 %v5780
    %v6081 = vpack.c.b16 %v5891, %v5889
    %v6082 = vpack.c.b16 %v5892, %v5890
    %v6083 = vpack.c.b16 %v5895, %v5893
    %v6084 = vpack.c.b16 %v5896, %v5894
    %v6085 = vpack.c.b16 %v5899, %v5897
    %v6086 = vpack.c.b16 %v5900, %v5898
    %v6087 = vpack.c.b16 %v5903, %v5901
    %v6088 = vpack.c.b16 %v5904, %v5902
    %v6089 = vpack.c.b16 %v5907, %v5905
    %v6090 = vpack.c.b16 %v5908, %v5906
    %v6091 = vpack.c.b16 %v5911, %v5909
    %v6092 = vpack.c.b16 %v5912, %v5910
    %v6093 = vpack.c.b16 %v5915, %v5913
    %v6094 = vpack.c.b16 %v5916, %v5914
    %v6095 = vpack.c.b16 %v5919, %v5917
    %v6096 = vpack.c.b16 %v5920, %v5918
    %v6097 = vpack.c.b16 %v5923, %v5921
    %v6098 = vpack.c.b16 %v5924, %v5922
    %v6099 = vpack.c.b16 %v5927, %v5925
    %v6100 = vpack.c.b16 %v5928, %v5926
    %v6101 = vpack.c.b16 %v5931, %v5929
    %v6102 = vpack.c.b16 %v5932, %v5930
    %v6103 = vpack.c.b16 %v5935, %v5933
    %v6104 = vpack.c.b16 %v5936, %v5934
    %v6105 = vpack.c.b16 %v5939, %v5937
    %v6106 = vpack.c.b16 %v5940, %v5938
    %v6107 = vpack.c.b16 %v5943, %v5941
    %v6108 = vpack.c.b16 %v5944, %v5942
    %v6109 = vpack.c.b16 %v5947, %v5945
    %v6110 = vpack.c.b16 %v5948, %v5946
    %v6111 = vpack.c.b16 %v5951, %v5949
    %v6112 = vpack.c.b16 %v5952, %v5950
    %v6113 = vpack.c.b16 %v5955, %v5953
    %v6114 = vpack.c.b16 %v5956, %v5954
    %v6115 = vpack.c.b16 %v5959, %v5957
    %v6116 = vpack.c.b16 %v5960, %v5958
    %v6117 = vpack.c.b16 %v5963, %v5961
    %v6118 = vpack.c.b16 %v5964, %v5962
    %v6119 = vpack.c.b16 %v5967, %v5965
    %v6120 = vpack.c.b16 %v5968, %v5966
    %v6121 = vpack.c.b16 %v5971, %v5969
    %v6122 = vpack.c.b16 %v5972, %v5970
    %v6123 = vpack.c.b16 %v5975, %v5973
    %v6124 = vpack.c.b16 %v5976, %v5974
    %v6125 = vpack.c.b16 %v5979, %v5977
    %v6126 = vpack.c.b16 %v5980, %v5978
    %v6127 = vpack.c.b16 %v5983, %v5981
    %v6128 = vpack.c.b16 %v5984, %v5982
    %v6129 = vpack.c.b16 %v5987, %v5985
    %v6130 = vpack.c.b16 %v5988, %v5986
    %v6131 = vpack.c.b16 %v5991, %v5989
    %v6132 = vpack.c.b16 %v5992, %v5990
    %v6133 = vpack.c.b16 %v5995, %v5993
    %v6134 = vpack.c.b16 %v5996, %v5994
    %v6135 = vpack.c.b16 %v5999, %v5997
    %v6136 = vpack.c.b16 %v6000, %v5998
    %v6137 = vpack.c.b16 %v6003, %v6001
    %v6138 = vpack.c.b16 %v6004, %v6002
    %v6139 = vpack.c.b16 %v6007, %v6005
    %v6140 = vpack.c.b16 %v6008, %v6006
    %v6141 = vpack.c.b16 %v6011, %v6009
    %v6142 = vpack.c.b16 %v6012, %v6010
    %v6143 = vpack.c.b16 %v6015, %v6013
    %v6144 = vpack.c.b16 %v6016, %v6014
    %v6145 = vpack.c.b16 %v6019, %v6017
    %v6146 = vpack.c.b16 %v6020, %v6018
    %v6147 = vpack.c.b16 %v6023, %v6021
    %v6148 = vpack.c.b16 %v6024, %v6022
    %v6149 = vpack.c.b16 %v6027, %v6025
    %v6150 = vpack.c.b16 %v6028, %v6026
    %v6151 = vpack.c.b16 %v6031, %v6029
    %v6152 = vpack.c.b16 %v6032, %v6030
    %v6153 = vpack.c.b16 %v6035, %v6033
    %v6154 = vpack.c.b16 %v6036, %v6034
    %v6155 = vpack.c.b16 %v6039, %v6037
    %v6156 = vpack.c.b16 %v6040, %v6038
    %v6157 = vpack.c.b16 %v6043, %v6041
    %v6158 = vpack.c.b16 %v6044, %v6042
    %v6159 = vpack.c.b16 %v6047, %v6045
    %v6160 = vpack.c.b16 %v6048, %v6046
    %v6161 = vpack.c.b16 %v6051, %v6049
    %v6162 = vpack.c.b16 %v6052, %v6050
    %v6163 = vpack.c.b16 %v6055, %v6053
    %v6164 = vpack.c.b16 %v6056, %v6054
    %v6165 = vpack.c.b16 %v6059, %v6057
    %v6166 = vpack.c.b16 %v6060, %v6058
    %v6167 = vpack.c.b16 %v6063, %v6061
    %v6168 = vpack.c.b16 %v6064, %v6062
    %v6169 = vpack.c.b16 %v6067, %v6065
    %v6170 = vpack.c.b16 %v6068, %v6066
    %v6171 = vpack.c.b16 %v6071, %v6069
    %v6172 = vpack.c.b16 %v6072, %v6070
    %v6173 = vpack.c.b16 %v6075, %v6073
    %v6174 = vpack.c.b16 %v6076, %v6074
    %v6175 = vpack.c.b16 %v6079, %v6077
    %v6176 = vpack.c.b16 %v6080, %v6078
    %6273 = vmatprep.subr.bf16.mxu0 %v6082
    %6274 = vmatpush1.bf16.msra.mxu0 %v6081
    %6275 = vmatprep.subr.bf16.mxu0 %v6084
    %6276 = vmatpush1.bf16.msra.mxu0 %v6083
    %6277 = vmatprep.subr.bf16.mxu0 %v6086
    %6278 = vmatpush1.bf16.msra.mxu0 %v6085
    %6279 = vmatprep.subr.bf16.mxu0 %v6088
    %6280 = vmatpush1.bf16.msra.mxu0 %v6087
    %6281 = vmatprep.subr.bf16.mxu0 %v6090
    %6282 = vmatpush1.bf16.msra.mxu0 %v6089
    %6283 = vmatprep.subr.bf16.mxu0 %v6092
    %6284 = vmatpush1.bf16.msra.mxu0 %v6091
    %6285 = vmatprep.subr.bf16.mxu0 %v6094
    %6286 = vmatpush1.bf16.msra.mxu0 %v6093
    %6287 = vmatprep.subr.bf16.mxu0 %v6096
    %6288 = vmatpush1.bf16.msra.mxu0 %v6095
    %6289 = vmatprep.subr.bf16.mxu0 %v6098
    %6290 = vmatpush1.bf16.msra.mxu0 %v6097
    %6291 = vmatprep.subr.bf16.mxu0 %v6100
    %6292 = vmatpush1.bf16.msra.mxu0 %v6099
    %6293 = vmatprep.subr.bf16.mxu0 %v6102
    %6294 = vmatpush1.bf16.msra.mxu0 %v6101
    %6295 = vmatprep.subr.bf16.mxu0 %v6104
    %6296 = vmatpush1.bf16.msra.mxu0 %v6103
    %6297 = vmatprep.subr.bf16.mxu0 %v6106
    %6298 = vmatpush1.bf16.msra.mxu0 %v6105
    %6299 = vmatprep.subr.bf16.mxu0 %v6108
    %6300 = vmatpush1.bf16.msra.mxu0 %v6107
    %6301 = vmatprep.subr.bf16.mxu0 %v6110
    %6302 = vmatpush1.bf16.msra.mxu0 %v6109
    %6303 = vmatprep.subr.bf16.mxu0 %v6112
    %6304 = vmatpush1.bf16.msra.mxu0 %v6111
    %6305 = vmatprep.mubr.bf16.mxu0 %v5782
    %6306 = vmatmul.mubr.bf16.gmra.mrb[0].mxu0 %v5781
    %v6307 = vpop.f32.mrb[0].mxu0
    %v6308 = vadd.f32 0.0, %v6307
    %v6309 = vpop.f32.mrb[0].mxu0
    %v6310 = vadd.f32 0.0, %v6309
    %v6311 = vpop.f32.mrb[0].mxu0
    %v6312 = vadd.f32 0.0, %v6311
    %v6313 = vpop.f32.mrb[0].mxu0
    %v6314 = vadd.f32 0.0, %v6313
    %6315 = vdwg.mxu0
    %6316 = vmatprep.subr.bf16.mxu0 %v6114
    %6317 = vmatpush1.bf16.msra.mxu0 %v6113
    %6318 = vmatprep.subr.bf16.mxu0 %v6116
    %6319 = vmatpush1.bf16.msra.mxu0 %v6115
    %6320 = vmatprep.subr.bf16.mxu0 %v6118
    %6321 = vmatpush1.bf16.msra.mxu0 %v6117
    %6322 = vmatprep.subr.bf16.mxu0 %v6120
    %6323 = vmatpush1.bf16.msra.mxu0 %v6119
    %6324 = vmatprep.subr.bf16.mxu0 %v6122
    %6325 = vmatpush1.bf16.msra.mxu0 %v6121
    %6326 = vmatprep.subr.bf16.mxu0 %v6124
    %6327 = vmatpush1.bf16.msra.mxu0 %v6123
    %6328 = vmatprep.subr.bf16.mxu0 %v6126
    %6329 = vmatpush1.bf16.msra.mxu0 %v6125
    %6330 = vmatprep.subr.bf16.mxu0 %v6128
    %6331 = vmatpush1.bf16.msra.mxu0 %v6127
    %6332 = vmatprep.subr.bf16.mxu0 %v6130
    %6333 = vmatpush1.bf16.msra.mxu0 %v6129
    %6334 = vmatprep.subr.bf16.mxu0 %v6132
    %6335 = vmatpush1.bf16.msra.mxu0 %v6131
    %6336 = vmatprep.subr.bf16.mxu0 %v6134
    %6337 = vmatpush1.bf16.msra.mxu0 %v6133
    %6338 = vmatprep.subr.bf16.mxu0 %v6136
    %6339 = vmatpush1.bf16.msra.mxu0 %v6135
    %6340 = vmatprep.subr.bf16.mxu0 %v6138
    %6341 = vmatpush1.bf16.msra.mxu0 %v6137
    %6342 = vmatprep.subr.bf16.mxu0 %v6140
    %6343 = vmatpush1.bf16.msra.mxu0 %v6139
    %6344 = vmatprep.subr.bf16.mxu0 %v6142
    %6345 = vmatpush1.bf16.msra.mxu0 %v6141
    %6346 = vmatprep.subr.bf16.mxu0 %v6144
    %6347 = vmatpush1.bf16.msra.mxu0 %v6143
    %6348 = vmatprep.mubr.bf16.mxu0 %v5784
    %6349 = vmatmul.mubr.bf16.gmra.mrb[0].mxu0 %v5783
    %v6350 = vpop.f32.mrb[0].mxu0
    %v6351 = vadd.f32 %v6308, %v6350
    %v6352 = vpop.f32.mrb[0].mxu0
    %v6353 = vadd.f32 %v6310, %v6352
    %v6354 = vpop.f32.mrb[0].mxu0
    %v6355 = vadd.f32 %v6312, %v6354
    %v6356 = vpop.f32.mrb[0].mxu0
    %v6357 = vadd.f32 %v6314, %v6356
    %6358 = vdwg.mxu0
    %6359 = vmatprep.subr.bf16.mxu0 %v6146
    %6360 = vmatpush1.bf16.msra.mxu0 %v6145
    %6361 = vmatprep.subr.bf16.mxu0 %v6148
    %6362 = vmatpush1.bf16.msra.mxu0 %v6147
    %6363 = vmatprep.subr.bf16.mxu0 %v6150
    %6364 = vmatpush1.bf16.msra.mxu0 %v6149
    %6365 = vmatprep.subr.bf16.mxu0 %v6152
    %6366 = vmatpush1.bf16.msra.mxu0 %v6151
    %6367 = vmatprep.subr.bf16.mxu0 %v6154
    %6368 = vmatpush1.bf16.msra.mxu0 %v6153
    %6369 = vmatprep.subr.bf16.mxu0 %v6156
    %6370 = vmatpush1.bf16.msra.mxu0 %v6155
    %6371 = vmatprep.subr.bf16.mxu0 %v6158
    %6372 = vmatpush1.bf16.msra.mxu0 %v6157
    %6373 = vmatprep.subr.bf16.mxu0 %v6160
    %6374 = vmatpush1.bf16.msra.mxu0 %v6159
    %6375 = vmatprep.subr.bf16.mxu0 %v6162
    %6376 = vmatpush1.bf16.msra.mxu0 %v6161
    %6377 = vmatprep.subr.bf16.mxu0 %v6164
    %6378 = vmatpush1.bf16.msra.mxu0 %v6163
    %6379 = vmatprep.subr.bf16.mxu0 %v6166
    %6380 = vmatpush1.bf16.msra.mxu0 %v6165
    %6381 = vmatprep.subr.bf16.mxu0 %v6168
    %6382 = vmatpush1.bf16.msra.mxu0 %v6167
    %6383 = vmatprep.subr.bf16.mxu0 %v6170
    %6384 = vmatpush1.bf16.msra.mxu0 %v6169
    %6385 = vmatprep.subr.bf16.mxu0 %v6172
    %6386 = vmatpush1.bf16.msra.mxu0 %v6171
    %6387 = vmatprep.subr.bf16.mxu0 %v6174
    %6388 = vmatpush1.bf16.msra.mxu0 %v6173
    %6389 = vmatprep.subr.bf16.mxu0 %v6176
    %6390 = vmatpush1.bf16.msra.mxu0 %v6175
    %6391 = vmatprep.mubr.bf16.mxu0 %v5786
    %6392 = vmatmul.mubr.bf16.gmra.mrb[0].mxu0 %v5785
    %v6393 = vpop.f32.mrb[0].mxu0
    %v6394 = vadd.f32 %v6351, %v6393
    %v6395 = vpop.f32.mrb[0].mxu0
    %v6396 = vadd.f32 %v6353, %v6395
    %v6397 = vpop.f32.mrb[0].mxu0
    %v6398 = vadd.f32 %v6355, %v6397
    %v6399 = vpop.f32.mrb[0].mxu0
    %v6400 = vadd.f32 %v6357, %v6399
    %6401 = vdwg.mxu0
    %v6402 = vadd.f32 %v5677, %v6394
    %v6403 = vadd.f32 %v5679, %v6396
    %v6404 = vadd.f32 %v5681, %v6398
    %v6405 = vadd.f32 %v5683, %v6400
    %v6408 = vrot.slane %v6402, 1
    %v6409 = vrot.slane %v6403, 1
    %v6412 = vmax.f32 %v6402, %v6408
    %v6413 = vmax.f32 %v6403, %v6409
    %6415 = vrot.lane.b32.xlu0 %v6412, 112
    %v6416 = vpop.permute.xlu0 %6415
    %v6418 = vmax.f32 %v6412, %v6416
    %6420 = vrot.lane.b32.xlu0 %v6413, 112
    %v6421 = vpop.permute.xlu0 %6420
    %v6423 = vmax.f32 %v6413, %v6421
    %v6426 = vrot.slane %v6404, 1
    %v6427 = vrot.slane %v6405, 1
    %v6430 = vmax.f32 %v6404, %v6426
    %v6431 = vmax.f32 %v6405, %v6427
    %6433 = vrot.lane.b32.xlu0 %v6430, 112
    %v6434 = vpop.permute.xlu0 %6433
    %v6436 = vmax.f32 %v6430, %v6434
    %6438 = vrot.lane.b32.xlu0 %v6431, 112
    %v6439 = vpop.permute.xlu0 %6438
    %v6441 = vmax.f32 %v6431, %v6439
    %6443 = vrot.lane.b32.xlu0 %v6418, 112
    %v6444 = vpop.permute.xlu0 %6443
    %6446 = vrot.lane.b32.xlu0 %v6418, 96
    %v6447 = vpop.permute.xlu0 %6446
    %6449 = vrot.lane.b32.xlu0 %v6418, 80
    %v6450 = vpop.permute.xlu0 %6449
    %6453 = vrot.lane.b32.xlu0 %v6423, 64
    %v6454 = vpop.permute.xlu0 %6453
    %v6456 = vrot.slane %v6418, 2
    %6457 = vrot.lane.b32.xlu0 %v6456, 80
    %v6458 = vpop.permute.xlu0 %6457
    %6460 = vrot.lane.b32.xlu0 %v6456, 64
    %v6461 = vpop.permute.xlu0 %6460
    %6463 = vrot.lane.b32.xlu0 %v6456, 48
    %v6464 = vpop.permute.xlu0 %6463
    %6466 = vrot.lane.b32.xlu0 %v6456, 32
    %v6467 = vpop.permute.xlu0 %6466
    %v6469 = vrot.slane %v6423, 2
    %6470 = vrot.lane.b32.xlu0 %v6469, 16
    %v6471 = vpop.permute.xlu0 %6470
    %v6473 = vrot.slane %v6418, 4
    %6474 = vrot.lane.b32.xlu0 %v6473, 32
    %v6475 = vpop.permute.xlu0 %6474
    %6477 = vrot.lane.b32.xlu0 %v6473, 16
    %v6478 = vpop.permute.xlu0 %6477
    %6481 = vrot.lane.b32.xlu0 %v6473, 112
    %v6482 = vpop.permute.xlu0 %6481
    %v6484 = vrot.slane %v6423, 4
    %6485 = vrot.lane.b32.xlu0 %v6484, 96
    %v6486 = vpop.permute.xlu0 %6485
    %v6488 = vrot.slane %v6418, 6
    %6489 = vrot.lane.b32.xlu0 %v6488, 112
    %v6490 = vpop.permute.xlu0 %6489
    %v6492 = vsel %vm4101, %v6418, %v6444
    %v6493 = vsel %vm4103, %v6492, %v6447
    %v6494 = vsel %vm4105, %v6493, %v6450
    %v6495 = vsel %vm1575, %v6494, %v6454
    %v6496 = vsel %vm4108, %v6495, %v6458
    %v6497 = vsel %vm4110, %v6496, %v6461
    %v6498 = vsel %vm4112, %v6497, %v6464
    %v6499 = vsel %vm4101, %v6467, %v6471
    %v6500 = vsel %vm4103, %v6499, %v6475
    %v6501 = vsel %vm4105, %v6500, %v6478
    %v6502 = vsel %vm1575, %v6501, %v6473
    %v6503 = vsel %vm4108, %v6502, %v6482
    %v6504 = vsel %vm4110, %v6503, %v6486
    %v6505 = vsel %vm4112, %v6504, %v6490
    %6506 = vrot.lane.b32.xlu0 %v6418, 64
    %v6507 = vpop.permute.xlu0 %6506
    %6509 = vrot.lane.b32.xlu0 %v6423, 48
    %v6510 = vpop.permute.xlu0 %6509
    %v6513 = vrot.slane %v6436, 2
    %6514 = vrot.lane.b32.xlu0 %v6513, 64
    %v6515 = vpop.permute.xlu0 %6514
    %6517 = vrot.lane.b32.xlu0 %v6513, 48
    %v6518 = vpop.permute.xlu0 %6517
    %6520 = vrot.lane.b32.xlu0 %v6513, 32
    %v6521 = vpop.permute.xlu0 %6520
    %6523 = vrot.lane.b32.xlu0 %v6513, 16
    %v6524 = vpop.permute.xlu0 %6523
    %v6527 = vrot.slane %v6441, 2
    %v6528 = vsel %vm4101, %v6447, %v6450
    %v6529 = vsel %vm4103, %v6528, %v6507
    %v6530 = vsel %vm4105, %v6529, %v6510
    %v6531 = vsel %vm1575, %v6530, %v6515
    %v6532 = vsel %vm4108, %v6531, %v6518
    %v6533 = vsel %vm4110, %v6532, %v6521
    %v6534 = vsel %vm4112, %v6533, %v6524
    %v6536 = vrot.slane %v6534, 6
    %v6537 = vrot.slane %v6527, 6
    %v6540 = vcombine.low %v6498, %v6505
    %v6541 = vcombine.low %v6536, %v6537
    %v6543 = vunpack.c.l.s4 1966171168
    %v6544 = vunpack.c.0.s8 %v6543
    %v6545 = vlaneseq
    %v6546 = vshrl.u32 %v6545, 7
    %v6547 = vsub.s32 %v6544, %v6546
    %v6548 = vrot.slane %v6540, %v6547
    %v6550 = vunpack.c.l.s4 1966171168
    %v6551 = vunpack.c.0.s8 %v6550
    %v6552 = vlaneseq
    %v6553 = vshrl.u32 %v6552, 7
    %v6554 = vsub.s32 %v6551, %v6553
    %v6555 = vrot.slane %v6541, %v6554
    %v6556 = vcombine.low %v6548, %v6555
    %v6558 = vunpack.c.l.s4 1966171168
    %v6559 = vunpack.c.0.s8 %v6558
    %v6560 = vlaneseq
    %v6561 = vshrl.u32 %v6560, 7
    %v6562 = vsub.s32 %v6559, %v6561
    %v6563 = vrot.slane %v6556, %v6562
    %s6565 = scalar_lea.vmem [#allocation3], 1
    %6566 = vst.msk [vmem:[%s6565] ss:$2 sm:$0xf] %vm4183, %v6563
    %v6567 = vld [vmem:[#allocation3] sm:$0xff]
    %v6569 = vcombine.high %v6567, %v6567
    %v6571 = vunpack.c.l.s4 1983009808
    %v6572 = vunpack.c.0.s8 %v6571
    %v6573 = vlaneseq
    %v6574 = vshrl.u32 %v6573, 7
    %v6575 = vsub.s32 %v6572, %v6574
    %v6576 = vrot.slane %v6567, %v6575
    %v6578 = vunpack.c.l.s4 1983009808
    %v6579 = vunpack.c.0.s8 %v6578
    %v6580 = vlaneseq
    %v6581 = vshrl.u32 %v6580, 7
    %v6582 = vsub.s32 %v6579, %v6581
    %v6583 = vrot.slane %v6569, %v6582
    %v6584 = vcombine.high %v6576, %v6576
    %v6585 = vcombine.high %v6583, %v6583
    %vm6590 = vcmask 1041408
    %v6591 = vsel %vm6590, %v6576, 0.0
    %v6592 = vrot.slane %v6591, 4
    %v6593 = vadd.f32 %v6591, %v6592
    %v6594 = vrot.slane %v6593, 2
    %v6595 = vadd.f32 %v6593, %v6594
    %v6596 = vrot.slane %v6595, 1
    %v6597 = vadd.f32 %v6595, %v6596
    %v6598 = vsel %vm6590, %v6584, 0.0
    %v6599 = vrot.slane %v6598, 4
    %v6600 = vadd.f32 %v6598, %v6599
    %v6601 = vrot.slane %v6600, 2
    %v6602 = vadd.f32 %v6600, %v6601
    %v6603 = vrot.slane %v6602, 1
    %v6604 = vadd.f32 %v6602, %v6603
    %v6605 = vsel %vm6590, %v6583, 0.0
    %v6606 = vrot.slane %v6605, 4
    %v6607 = vadd.f32 %v6605, %v6606
    %v6608 = vrot.slane %v6607, 2
    %v6609 = vadd.f32 %v6607, %v6608
    %v6610 = vrot.slane %v6609, 1
    %v6611 = vadd.f32 %v6609, %v6610
    %vm6612 = vcmask 123904
    %v6613 = vsel %vm6612, %v6585, 0.0
    %v6614 = vrot.slane %v6613, 4
    %v6615 = vadd.f32 %v6613, %v6614
    %v6616 = vrot.slane %v6615, 2
    %v6617 = vadd.f32 %v6615, %v6616
    %v6618 = vrot.slane %v6617, 1
    %v6619 = vadd.f32 %v6617, %v6618
    %v6620 = vld [vmem:[%s4] sm:$0xff]
    %v6621 = vld [vmem:[%s4 + $0x8] sm:$0xff]
    %v6622 = vld [vmem:[%s4 + $0x10] sm:$0xff]
    %v6623 = vld [vmem:[%s4 + $0x18] sm:$0xff]
    %v6624 = vld [vmem:[%s4 + $0x20] sm:$0xff]
    %v6625 = vld [vmem:[%s4 + $0x28] sm:$0xff]
    %v6626 = vld [vmem:[%s4 + $0x30] sm:$0xff]
    %v6627 = vld [vmem:[%s4 + $0x38] sm:$0xff]
    %v6628 = vld [vmem:[%s4 + $0x40] sm:$0xff]
    %v6629 = vld [vmem:[%s4 + $0x48] sm:$0xff]
    %v6630 = vld [vmem:[%s4 + $0x50] sm:$0xff]
    %v6631 = vld [vmem:[%s4 + $0x58] sm:$0xff]
    %v6632 = vld [vmem:[%s4 + $0x60] sm:$0xff]
    %v6633 = vld [vmem:[%s4 + $0x68] sm:$0xff]
    %v6634 = vld [vmem:[%s4 + $0x70] sm:$0xff]
    %v6635 = vld [vmem:[%s4 + $0x78] sm:$0xff]
    %v6636 = vld [vmem:[%s4 + $0x80] sm:$0xff]
    %v6637 = vld [vmem:[%s4 + $0x88] sm:$0xff]
    %v6638 = vld [vmem:[%s4 + $0x90] sm:$0xff]
    %v6639 = vld [vmem:[%s4 + $0x98] sm:$0xff]
    %v6640 = vld [vmem:[%s4 + $0xa0] sm:$0xff]
    %v6641 = vld [vmem:[%s4 + $0xa8] sm:$0xff]
    %v6642 = vld [vmem:[%s4 + $0xb0] sm:$0xff]
    %v6643 = vld [vmem:[%s4 + $0xb8] sm:$0xff]
    %v6644 = vld [vmem:[%s4 + $0xc0] sm:$0xff]
    %v6645 = vld [vmem:[%s4 + $0xc8] sm:$0xff]
    %v6646 = vld [vmem:[%s4 + $0xd0] sm:$0xff]
    %v6647 = vld [vmem:[%s4 + $0xd8] sm:$0xff]
    %v6648 = vld [vmem:[%s4 + $0xe0] sm:$0xff]
    %v6649 = vld [vmem:[%s4 + $0xe8] sm:$0xff]
    %v6650 = vld [vmem:[%s4 + $0xf0] sm:$0xff]
    %v6651 = vld [vmem:[%s4 + $0xf8] sm:$0xff]
    %v6652 = vld [vmem:[%s4 + $0x100] sm:$0xff]
    %v6653 = vld [vmem:[%s4 + $0x108] sm:$0xff]
    %v6654 = vld [vmem:[%s4 + $0x110] sm:$0xff]
    %v6655 = vld [vmem:[%s4 + $0x118] sm:$0xff]
    %v6656 = vld [vmem:[%s4 + $0x120] sm:$0xff]
    %v6657 = vld [vmem:[%s4 + $0x128] sm:$0xff]
    %v6658 = vld [vmem:[%s4 + $0x130] sm:$0xff]
    %v6659 = vld [vmem:[%s4 + $0x138] sm:$0xff]
    %v6660 = vld [vmem:[%s4 + $0x140] sm:$0xff]
    %v6661 = vld [vmem:[%s4 + $0x148] sm:$0xff]
    %v6662 = vld [vmem:[%s4 + $0x150] sm:$0xff]
    %v6663 = vld [vmem:[%s4 + $0x158] sm:$0xff]
    %v6664 = vld [vmem:[%s4 + $0x160] sm:$0xff]
    %v6665 = vld [vmem:[%s4 + $0x168] sm:$0xff]
    %v6666 = vld [vmem:[%s4 + $0x170] sm:$0xff]
    %v6667 = vld [vmem:[%s4 + $0x178] sm:$0xff]
    %v6668 = vld [vmem:[%s4 + $0x180] sm:$0xff]
    %v6669 = vld [vmem:[%s4 + $0x188] sm:$0xff]
    %v6671 = vsel %vm4101, %v6619, 0
    %6673 = vmatprep.subr.mxu0 0.0
    %6674 = vmatpush1.msra.mxu0 %v6620
    %6675 = vmatprep.subr.mxu0 0.0
    %6676 = vmatpush1.msra.mxu0 %v6621
    %6677 = vmatprep.subr.mxu0 0.0
    %6678 = vmatpush1.msra.mxu0 %v6622
    %6679 = vmatprep.subr.mxu0 0.0
    %6680 = vmatpush1.msra.mxu0 %v6623
    %6681 = vmatprep.subr.mxu0 0.0
    %6682 = vmatpush1.msra.mxu0 %v6624
    %6683 = vmatprep.subr.mxu0 0.0
    %6684 = vmatpush1.msra.mxu0 %v6625
    %6685 = vmatprep.subr.mxu0 0.0
    %6686 = vmatpush1.msra.mxu0 %v6626
    %6687 = vmatprep.subr.mxu0 0.0
    %6688 = vmatpush1.msra.mxu0 %v6627
    %6689 = vmatprep.subr.mxu0 0.0
    %6690 = vmatpush1.msra.mxu0 %v6628
    %6691 = vmatprep.subr.mxu0 0.0
    %6692 = vmatpush1.msra.mxu0 %v6629
    %6693 = vmatprep.subr.mxu0 0.0
    %6694 = vmatpush1.msra.mxu0 %v6630
    %6695 = vmatprep.subr.mxu0 0.0
    %6696 = vmatpush1.msra.mxu0 %v6631
    %6697 = vmatprep.subr.mxu0 0.0
    %6698 = vmatpush1.msra.mxu0 %v6632
    %6699 = vmatprep.subr.mxu0 0.0
    %6700 = vmatpush1.msra.mxu0 %v6633
    %6701 = vmatprep.subr.mxu0 0.0
    %6702 = vmatpush1.msra.mxu0 %v6634
    %6703 = vmatprep.subr.mxu0 0.0
    %6704 = vmatpush1.msra.mxu0 %v6635
    %6705 = vmatprep.subr.mxu0 0.0
    %6706 = vmatpush1.msra.mxu0 %v6636
    %6707 = vmatprep.subr.mxu0 0.0
    %6708 = vmatpush1.msra.mxu0 %v6637
    %6709 = vmatprep.subr.mxu0 0.0
    %6710 = vmatpush1.msra.mxu0 %v6638
    %6711 = vmatprep.subr.mxu0 0.0
    %6712 = vmatpush1.msra.mxu0 %v6639
    %6713 = vmatprep.subr.mxu0 0.0
    %6714 = vmatpush1.msra.mxu0 %v6640
    %6715 = vmatprep.subr.mxu0 0.0
    %6716 = vmatpush1.msra.mxu0 %v6641
    %6717 = vmatprep.subr.mxu0 0.0
    %6718 = vmatpush1.msra.mxu0 %v6642
    %6719 = vmatprep.subr.mxu0 0.0
    %6720 = vmatpush1.msra.mxu0 %v6643
    %6721 = vmatprep.subr.mxu0 0.0
    %6722 = vmatpush1.msra.mxu0 %v6644
    %6723 = vmatprep.subr.mxu0 0.0
    %6724 = vmatpush1.msra.mxu0 %v6645
    %6725 = vmatprep.subr.mxu0 0.0
    %6726 = vmatpush1.msra.mxu0 %v6646
    %6727 = vmatprep.subr.mxu0 0.0
    %6728 = vmatpush1.msra.mxu0 %v6647
    %6729 = vmatprep.subr.mxu0 0.0
    %6730 = vmatpush1.msra.mxu0 %v6648
    %6731 = vmatprep.subr.mxu0 0.0
    %6732 = vmatpush1.msra.mxu0 %v6649
    %6733 = vmatprep.subr.mxu0 0.0
    %6734 = vmatpush1.msra.mxu0 %v6650
    %6735 = vmatprep.subr.mxu0 0.0
    %6736 = vmatpush1.msra.mxu0 %v6651
    %6737 = vmatprep.mubr.f32.mxu0 %v6604
    %6738 = vmatmul.mubr.f32.gmra.mrb[0].mxu0 %v6597
    %v6739 = vpop.f32.mrb[0].mxu0
    %v6740 = vadd.f32 0.0, %v6739
    %v6741 = vpop.f32.mrb[0].mxu0
    %6742 = vdwg.mxu0
    %6743 = vmatprep.subr.mxu0 0.0
    %6744 = vmatpush1.msra.mxu0 %v6652
    %6745 = vmatprep.subr.mxu0 0.0
    %6746 = vmatpush1.msra.mxu0 %v6653
    %6747 = vmatprep.subr.mxu0 0.0
    %6748 = vmatpush1.msra.mxu0 %v6654
    %6749 = vmatprep.subr.mxu0 0.0
    %6750 = vmatpush1.msra.mxu0 %v6655
    %6751 = vmatprep.subr.mxu0 0.0
    %6752 = vmatpush1.msra.mxu0 %v6656
    %6753 = vmatprep.subr.mxu0 0.0
    %6754 = vmatpush1.msra.mxu0 %v6657
    %6755 = vmatprep.subr.mxu0 0.0
    %6756 = vmatpush1.msra.mxu0 %v6658
    %6757 = vmatprep.subr.mxu0 0.0
    %6758 = vmatpush1.msra.mxu0 %v6659
    %6759 = vmatprep.subr.mxu0 0.0
    %6760 = vmatpush1.msra.mxu0 %v6660
    %6761 = vmatprep.subr.mxu0 0.0
    %6762 = vmatpush1.msra.mxu0 %v6661
    %6763 = vmatprep.subr.mxu0 0.0
    %6764 = vmatpush1.msra.mxu0 %v6662
    %6765 = vmatprep.subr.mxu0 0.0
    %6766 = vmatpush1.msra.mxu0 %v6663
    %6767 = vmatprep.subr.mxu0 0.0
    %6768 = vmatpush1.msra.mxu0 %v6664
    %6769 = vmatprep.subr.mxu0 0.0
    %6770 = vmatpush1.msra.mxu0 %v6665
    %6771 = vmatprep.subr.mxu0 0.0
    %6772 = vmatpush1.msra.mxu0 %v6666
    %6773 = vmatprep.subr.mxu0 0.0
    %6774 = vmatpush1.msra.mxu0 %v6667
    %6775 = vmatprep.subr.mxu0 0.0
    %6776 = vmatpush1.msra.mxu0 %v6668
    %6777 = vmatprep.subr.mxu0 0.0
    %6778 = vmatpush1.msra.mxu0 %v6669
    %6779 = vmatprep.subr.mxu0 0.0
    %6780 = vmatpush1.msra.mxu0 0.0
    %6781 = vmatprep.subr.mxu0 0.0
    %6782 = vmatpush1.msra.mxu0 0.0
    %6783 = vmatprep.subr.mxu0 0.0
    %6784 = vmatpush1.msra.mxu0 0.0
    %6785 = vmatprep.subr.mxu0 0.0
    %6786 = vmatpush1.msra.mxu0 0.0
    %6787 = vmatprep.subr.mxu0 0.0
    %6788 = vmatpush1.msra.mxu0 0.0
    %6789 = vmatprep.subr.mxu0 0.0
    %6790 = vmatpush1.msra.mxu0 0.0
    %6791 = vmatprep.subr.mxu0 0.0
    %6792 = vmatpush1.msra.mxu0 0.0
    %6793 = vmatprep.subr.mxu0 0.0
    %6794 = vmatpush1.msra.mxu0 0.0
    %6795 = vmatprep.subr.mxu0 0.0
    %6796 = vmatpush1.msra.mxu0 0.0
    %6797 = vmatprep.subr.mxu0 0.0
    %6798 = vmatpush1.msra.mxu0 0.0
    %6799 = vmatprep.subr.mxu0 0.0
    %6800 = vmatpush1.msra.mxu0 0.0
    %6801 = vmatprep.subr.mxu0 0.0
    %6802 = vmatpush1.msra.mxu0 0.0
    %6803 = vmatprep.subr.mxu0 0.0
    %6804 = vmatpush1.msra.mxu0 0.0
    %6805 = vmatprep.subr.mxu0 0.0
    %6806 = vmatpush1.msra.mxu0 0.0
    %6807 = vmatprep.mubr.f32.mxu0 %v6671
    %6808 = vmatmul.mubr.f32.gmra.mrb[0].mxu0 %v6611
    %v6809 = vpop.f32.mrb[0].mxu0
    %v6810 = vadd.f32 %v6740, %v6809
    %v6811 = vpop.f32.mrb[0].mxu0
    %6812 = vdwg.mxu0
    %v6813 = vmul.f32 %v6567, %v6567
    %v6815 = vcombine.high %v6813, %v6813
    %v6817 = vunpack.c.l.s4 1983009808
    %v6818 = vunpack.c.0.s8 %v6817
    %v6819 = vlaneseq
    %v6820 = vshrl.u32 %v6819, 7
    %v6821 = vsub.s32 %v6818, %v6820
    %v6822 = vrot.slane %v6813, %v6821
    %v6824 = vunpack.c.l.s4 1983009808
    %v6825 = vunpack.c.0.s8 %v6824
    %v6826 = vlaneseq
    %v6827 = vshrl.u32 %v6826, 7
    %v6828 = vsub.s32 %v6825, %v6827
    %v6829 = vrot.slane %v6815, %v6828
    %v6830 = vcombine.high %v6822, %v6822
    %v6831 = vcombine.high %v6829, %v6829
    %v6836 = vsel %vm6590, %v6822, 0.0
    %v6837 = vrot.slane %v6836, 4
    %v6838 = vadd.f32 %v6836, %v6837
    %v6839 = vrot.slane %v6838, 2
    %v6840 = vadd.f32 %v6838, %v6839
    %v6841 = vrot.slane %v6840, 1
    %v6842 = vadd.f32 %v6840, %v6841
    %v6843 = vsel %vm6590, %v6830, 0.0
    %v6844 = vrot.slane %v6843, 4
    %v6845 = vadd.f32 %v6843, %v6844
    %v6846 = vrot.slane %v6845, 2
    %v6847 = vadd.f32 %v6845, %v6846
    %v6848 = vrot.slane %v6847, 1
    %v6849 = vadd.f32 %v6847, %v6848
    %v6850 = vsel %vm6590, %v6829, 0.0
    %v6851 = vrot.slane %v6850, 4
    %v6852 = vadd.f32 %v6850, %v6851
    %v6853 = vrot.slane %v6852, 2
    %v6854 = vadd.f32 %v6852, %v6853
    %v6855 = vrot.slane %v6854, 1
    %v6856 = vadd.f32 %v6854, %v6855
    %v6857 = vsel %vm6612, %v6831, 0.0
    %v6858 = vrot.slane %v6857, 4
    %v6859 = vadd.f32 %v6857, %v6858
    %v6860 = vrot.slane %v6859, 2
    %v6861 = vadd.f32 %v6859, %v6860
    %v6862 = vrot.slane %v6861, 1
    %v6863 = vadd.f32 %v6861, %v6862
    %v6865 = vsel %vm4101, %v6863, 0
    %6867 = vmatprep.subr.mxu0 0.0
    %6868 = vmatpush1.msra.mxu0 %v6620
    %6869 = vmatprep.subr.mxu0 0.0
    %6870 = vmatpush1.msra.mxu0 %v6621
    %6871 = vmatprep.subr.mxu0 0.0
    %6872 = vmatpush1.msra.mxu0 %v6622
    %6873 = vmatprep.subr.mxu0 0.0
    %6874 = vmatpush1.msra.mxu0 %v6623
    %6875 = vmatprep.subr.mxu0 0.0
    %6876 = vmatpush1.msra.mxu0 %v6624
    %6877 = vmatprep.subr.mxu0 0.0
    %6878 = vmatpush1.msra.mxu0 %v6625
    %6879 = vmatprep.subr.mxu0 0.0
    %6880 = vmatpush1.msra.mxu0 %v6626
    %6881 = vmatprep.subr.mxu0 0.0
    %6882 = vmatpush1.msra.mxu0 %v6627
    %6883 = vmatprep.subr.mxu0 0.0
    %6884 = vmatpush1.msra.mxu0 %v6628
    %6885 = vmatprep.subr.mxu0 0.0
    %6886 = vmatpush1.msra.mxu0 %v6629
    %6887 = vmatprep.subr.mxu0 0.0
    %6888 = vmatpush1.msra.mxu0 %v6630
    %6889 = vmatprep.subr.mxu0 0.0
    %6890 = vmatpush1.msra.mxu0 %v6631
    %6891 = vmatprep.subr.mxu0 0.0
    %6892 = vmatpush1.msra.mxu0 %v6632
    %6893 = vmatprep.subr.mxu0 0.0
    %6894 = vmatpush1.msra.mxu0 %v6633
    %6895 = vmatprep.subr.mxu0 0.0
    %6896 = vmatpush1.msra.mxu0 %v6634
    %6897 = vmatprep.subr.mxu0 0.0
    %6898 = vmatpush1.msra.mxu0 %v6635
    %6899 = vmatprep.subr.mxu0 0.0
    %6900 = vmatpush1.msra.mxu0 %v6636
    %6901 = vmatprep.subr.mxu0 0.0
    %6902 = vmatpush1.msra.mxu0 %v6637
    %6903 = vmatprep.subr.mxu0 0.0
    %6904 = vmatpush1.msra.mxu0 %v6638
    %6905 = vmatprep.subr.mxu0 0.0
    %6906 = vmatpush1.msra.mxu0 %v6639
    %6907 = vmatprep.subr.mxu0 0.0
    %6908 = vmatpush1.msra.mxu0 %v6640
    %6909 = vmatprep.subr.mxu0 0.0
    %6910 = vmatpush1.msra.mxu0 %v6641
    %6911 = vmatprep.subr.mxu0 0.0
    %6912 = vmatpush1.msra.mxu0 %v6642
    %6913 = vmatprep.subr.mxu0 0.0
    %6914 = vmatpush1.msra.mxu0 %v6643
    %6915 = vmatprep.subr.mxu0 0.0
    %6916 = vmatpush1.msra.mxu0 %v6644
    %6917 = vmatprep.subr.mxu0 0.0
    %6918 = vmatpush1.msra.mxu0 %v6645
    %6919 = vmatprep.subr.mxu0 0.0
    %6920 = vmatpush1.msra.mxu0 %v6646
    %6921 = vmatprep.subr.mxu0 0.0
    %6922 = vmatpush1.msra.mxu0 %v6647
    %6923 = vmatprep.subr.mxu0 0.0
    %6924 = vmatpush1.msra.mxu0 %v6648
    %6925 = vmatprep.subr.mxu0 0.0
    %6926 = vmatpush1.msra.mxu0 %v6649
    %6927 = vmatprep.subr.mxu0 0.0
    %6928 = vmatpush1.msra.mxu0 %v6650
    %6929 = vmatprep.subr.mxu0 0.0
    %6930 = vmatpush1.msra.mxu0 %v6651
    %6931 = vmatprep.mubr.f32.mxu0 %v6849
    %6932 = vmatmul.mubr.f32.gmra.mrb[0].mxu0 %v6842
    %v6933 = vpop.f32.mrb[0].mxu0
    %v6934 = vadd.f32 0.0, %v6933
    %v6935 = vpop.f32.mrb[0].mxu0
    %6936 = vdwg.mxu0
    %6937 = vmatprep.subr.mxu0 0.0
    %6938 = vmatpush1.msra.mxu0 %v6652
    %6939 = vmatprep.subr.mxu0 0.0
    %6940 = vmatpush1.msra.mxu0 %v6653
    %6941 = vmatprep.subr.mxu0 0.0
    %6942 = vmatpush1.msra.mxu0 %v6654
    %6943 = vmatprep.subr.mxu0 0.0
    %6944 = vmatpush1.msra.mxu0 %v6655
    %6945 = vmatprep.subr.mxu0 0.0
    %6946 = vmatpush1.msra.mxu0 %v6656
    %6947 = vmatprep.subr.mxu0 0.0
    %6948 = vmatpush1.msra.mxu0 %v6657
    %6949 = vmatprep.subr.mxu0 0.0
    %6950 = vmatpush1.msra.mxu0 %v6658
    %6951 = vmatprep.subr.mxu0 0.0
    %6952 = vmatpush1.msra.mxu0 %v6659
    %6953 = vmatprep.subr.mxu0 0.0
    %6954 = vmatpush1.msra.mxu0 %v6660
    %6955 = vmatprep.subr.mxu0 0.0
    %6956 = vmatpush1.msra.mxu0 %v6661
    %6957 = vmatprep.subr.mxu0 0.0
    %6958 = vmatpush1.msra.mxu0 %v6662
    %6959 = vmatprep.subr.mxu0 0.0
    %6960 = vmatpush1.msra.mxu0 %v6663
    %6961 = vmatprep.subr.mxu0 0.0
    %6962 = vmatpush1.msra.mxu0 %v6664
    %6963 = vmatprep.subr.mxu0 0.0
    %6964 = vmatpush1.msra.mxu0 %v6665
    %6965 = vmatprep.subr.mxu0 0.0
    %6966 = vmatpush1.msra.mxu0 %v6666
    %6967 = vmatprep.subr.mxu0 0.0
    %6968 = vmatpush1.msra.mxu0 %v6667
    %6969 = vmatprep.subr.mxu0 0.0
    %6970 = vmatpush1.msra.mxu0 %v6668
    %6971 = vmatprep.subr.mxu0 0.0
    %6972 = vmatpush1.msra.mxu0 %v6669
    %6973 = vmatprep.subr.mxu0 0.0
    %6974 = vmatpush1.msra.mxu0 0.0
    %6975 = vmatprep.subr.mxu0 0.0
    %6976 = vmatpush1.msra.mxu0 0.0
    %6977 = vmatprep.subr.mxu0 0.0
    %6978 = vmatpush1.msra.mxu0 0.0
    %6979 = vmatprep.subr.mxu0 0.0
    %6980 = vmatpush1.msra.mxu0 0.0
    %6981 = vmatprep.subr.mxu0 0.0
    %6982 = vmatpush1.msra.mxu0 0.0
    %6983 = vmatprep.subr.mxu0 0.0
    %6984 = vmatpush1.msra.mxu0 0.0
    %6985 = vmatprep.subr.mxu0 0.0
    %6986 = vmatpush1.msra.mxu0 0.0
    %6987 = vmatprep.subr.mxu0 0.0
    %6988 = vmatpush1.msra.mxu0 0.0
    %6989 = vmatprep.subr.mxu0 0.0
    %6990 = vmatpush1.msra.mxu0 0.0
    %6991 = vmatprep.subr.mxu0 0.0
    %6992 = vmatpush1.msra.mxu0 0.0
    %6993 = vmatprep.subr.mxu0 0.0
    %6994 = vmatpush1.msra.mxu0 0.0
    %6995 = vmatprep.subr.mxu0 0.0
    %6996 = vmatpush1.msra.mxu0 0.0
    %6997 = vmatprep.subr.mxu0 0.0
    %6998 = vmatpush1.msra.mxu0 0.0
    %6999 = vmatprep.subr.mxu0 0.0
    %7000 = vmatpush1.msra.mxu0 0.0
    %7001 = vmatprep.mubr.f32.mxu0 %v6865
    %7002 = vmatmul.mubr.f32.gmra.mrb[0].mxu0 %v6856
    %v7003 = vpop.f32.mrb[0].mxu0
    %v7004 = vadd.f32 %v6934, %v7003
    %v7005 = vpop.f32.mrb[0].mxu0
    %7006 = vdwg.mxu0
    %v7007 = vrcp.pop 50.0
    %v7008 = vmul.f32 %v6810, %v7007
    %v7009 = vmul.f32 %v7004, %v7007
    %v7010 = vmul.f32 %v7008, %v7008
    %v7011 = vsub.f32 %v7009, %v7010
    %v7012 = vmax.f32 %v7011, 0.0
    %v7013 = vadd.f32 %v7012, 1e-05
    %v7014 = vrsqrt.pop %v7013
    %7016 = vrot.lane.b32.xlu0 %v7008, 16
    %v7017 = vpop.permute.xlu0 %7016
    %7019 = vrot.lane.b32.xlu0 %v7008, 32
    %v7020 = vpop.permute.xlu0 %7019
    %7022 = vrot.lane.b32.xlu0 %v7008, 48
    %v7023 = vpop.permute.xlu0 %7022
    %7025 = vrot.lane.b32.xlu0 %v7008, 64
    %v7026 = vpop.permute.xlu0 %7025
    %7028 = vrot.lane.b32.xlu0 %v7008, 80
    %v7029 = vpop.permute.xlu0 %7028
    %7031 = vrot.lane.b32.xlu0 %v7008, 96
    %v7032 = vpop.permute.xlu0 %7031
    %7034 = vrot.lane.b32.xlu0 %v7008, 112
    %v7035 = vpop.permute.xlu0 %7034
    %v7037 = vsel %vm4101, %v7008, %v7017
    %v7038 = vsel %vm4103, %v7037, %v7020
    %v7039 = vsel %vm4105, %v7038, %v7023
    %v7040 = vsel %vm1575, %v7039, %v7026
    %v7041 = vsel %vm4108, %v7040, %v7029
    %v7042 = vsel %vm4110, %v7041, %v7032
    %v7043 = vsel %vm4112, %v7042, %v7035
    %7045 = vrot.lane.b32.xlu0 %v7014, 16
    %v7046 = vpop.permute.xlu0 %7045
    %7048 = vrot.lane.b32.xlu0 %v7014, 32
    %v7049 = vpop.permute.xlu0 %7048
    %7051 = vrot.lane.b32.xlu0 %v7014, 48
    %v7052 = vpop.permute.xlu0 %7051
    %7054 = vrot.lane.b32.xlu0 %v7014, 64
    %v7055 = vpop.permute.xlu0 %7054
    %7057 = vrot.lane.b32.xlu0 %v7014, 80
    %v7058 = vpop.permute.xlu0 %7057
    %7060 = vrot.lane.b32.xlu0 %v7014, 96
    %v7061 = vpop.permute.xlu0 %7060
    %7063 = vrot.lane.b32.xlu0 %v7014, 112
    %v7064 = vpop.permute.xlu0 %7063
    %v7066 = vsel %vm4101, %v7014, %v7046
    %v7067 = vsel %vm4103, %v7066, %v7049
    %v7068 = vsel %vm4105, %v7067, %v7052
    %v7069 = vsel %vm1575, %v7068, %v7055
    %v7070 = vsel %vm4108, %v7069, %v7058
    %v7071 = vsel %vm4110, %v7070, %v7061
    %v7072 = vsel %vm4112, %v7071, %v7064
    %v7073 = vlaneseq
    %v7074 = vshrl.u32 %v7073, 7
    %v7075 = vsub.s32 0, %v7074
    %v7076 = vrot.slane %v7043, %v7075
    %v7077 = vlaneseq
    %v7078 = vshrl.u32 %v7077, 7
    %v7079 = vsub.s32 0, %v7078
    %v7080 = vrot.slane %v7008, %v7079
    %v7083 = vcombine.low %v7076, %v7076
    %v7084 = vcombine.low %v7076, %v7080
    %v7086 = vunpack.c.l.s4 1983009808
    %v7087 = vunpack.c.0.s8 %v7086
    %v7088 = vlaneseq
    %v7089 = vshrl.u32 %v7088, 7
    %v7090 = vsub.s32 %v7087, %v7089
    %v7091 = vrot.slane %v7083, %v7090
    %v7093 = vunpack.c.l.s4 1983009808
    %v7094 = vunpack.c.0.s8 %v7093
    %v7095 = vlaneseq
    %v7096 = vshrl.u32 %v7095, 7
    %v7097 = vsub.s32 %v7094, %v7096
    %v7098 = vrot.slane %v7084, %v7097
    %v7099 = vcombine.low %v7091, %v7098
    %v7101 = vsub.f32 %v6567, %v7099
    %v7102 = vlaneseq
    %v7103 = vshrl.u32 %v7102, 7
    %v7104 = vsub.s32 0, %v7103
    %v7105 = vrot.slane %v7072, %v7104
    %v7106 = vlaneseq
    %v7107 = vshrl.u32 %v7106, 7
    %v7108 = vsub.s32 0, %v7107
    %v7109 = vrot.slane %v7014, %v7108
    %v7112 = vcombine.low %v7105, %v7105
    %v7113 = vcombine.low %v7105, %v7109
    %v7115 = vunpack.c.l.s4 1983009808
    %v7116 = vunpack.c.0.s8 %v7115
    %v7117 = vlaneseq
    %v7118 = vshrl.u32 %v7117, 7
    %v7119 = vsub.s32 %v7116, %v7118
    %v7120 = vrot.slane %v7112, %v7119
    %v7122 = vunpack.c.l.s4 1983009808
    %v7123 = vunpack.c.0.s8 %v7122
    %v7124 = vlaneseq
    %v7125 = vshrl.u32 %v7124, 7
    %v7126 = vsub.s32 %v7123, %v7125
    %v7127 = vrot.slane %v7113, %v7126
    %v7128 = vcombine.low %v7120, %v7127
    %v7130 = vmul.f32 %v7101, %v7128
    %v7131 = vmax.f32 %v7130, 0.0
    %v7133 = vcombine.high %v7131, %v7131
    %v7135 = vunpack.c.l.s4 1983009808
    %v7136 = vunpack.c.0.s8 %v7135
    %v7137 = vlaneseq
    %v7138 = vshrl.u32 %v7137, 7
    %v7139 = vsub.s32 %v7136, %v7138
    %v7140 = vrot.slane %v7131, %v7139
    %v7142 = vunpack.c.l.s4 1983009808
    %v7143 = vunpack.c.0.s8 %v7142
    %v7144 = vlaneseq
    %v7145 = vshrl.u32 %v7144, 7
    %v7146 = vsub.s32 %v7143, %v7145
    %v7147 = vrot.slane %v7133, %v7146
    %v7148 = vcombine.high %v7140, %v7140
    %v7149 = vcombine.high %v7147, %v7147
    %v7154 = vsel %vm6590, %v7140, -inf
    %v7155 = vsel %vm6590, %v7148, -inf
    %v7156 = vsel %vm6590, %v7147, -inf
    %v7157 = vsel %vm6612, %v7149, -inf
    %v7158 = vmax.f32 %v7154, %v7155
    %v7159 = vmax.f32 %v7156, %v7157
    %v7160 = vmax.f32 %v7158, %v7159
    %7161 = vmax.xlane.f32.xlu0 %v7160
    %v7162 = vpop.xlane.xlu0 %7161
    %v7163 = vrot.slane %v7162, 4
    %v7164 = vmax.f32 %v7162, %v7163
    %v7165 = vrot.slane %v7164, 2
    %v7166 = vmax.f32 %v7164, %v7165
    %v7167 = vrot.slane %v7166, 1
    %v7168 = vmax.f32 %v7166, %v7167
    %s7169 = vtos %v7168
    %v7170 = vsel %vm6590, %v7140, inf
    %v7171 = vsel %vm6590, %v7148, inf
    %v7172 = vsel %vm6590, %v7147, inf
    %v7173 = vsel %vm6612, %v7149, inf
    %v7174 = vmin.f32 %v7170, %v7171
    %v7175 = vmin.f32 %v7172, %v7173
    %v7176 = vmin.f32 %v7174, %v7175
    %7177 = vmin.xlane.f32.xlu0 %v7176
    %v7178 = vpop.xlane.xlu0 %7177
    %v7179 = vrot.slane %v7178, 4
    %v7180 = vmin.f32 %v7178, %v7179
    %v7181 = vrot.slane %v7180, 2
    %v7182 = vmin.f32 %v7180, %v7181
    %v7183 = vrot.slane %v7182, 1
    %v7184 = vmin.f32 %v7182, %v7183
    %s7185 = vtos %v7184
    %s7186 = ssub.f32 %s7169, %s7185
    %v7187 = vrcp.pop 255.0
    %s7188 = vtos %v7187
    %s7189 = smul.f32 %s7186, %s7188
    %p7190 = scmp.eq.f32.partialorder %s7189, 0.0
    %s7191 = scalar_select %p7190, 1.0, %s7189
    %v7192 = vstv %s7191
    %v7193 = vrcp.pop %v7192
    %v7194 = vmul.f32 %v7131, %v7193
    %v7195 = vround.ne.pseudo %v7194
    %v7196 = vmax.f32 %v7195, 0.0
    %v7197 = vmin.f32 %v7196, 255.0
    %v7198 = vmul.f32 %v7197, %v7192
    %v7200 = vcombine.high %v7198, %v7198
    %v7202 = vunpack.c.l.s4 1983009808
    %v7203 = vunpack.c.0.s8 %v7202
    %v7204 = vlaneseq
    %v7205 = vshrl.u32 %v7204, 7
    %v7206 = vsub.s32 %v7203, %v7205
    %v7207 = vrot.slane %v7198, %v7206
    %v7209 = vunpack.c.l.s4 1983009808
    %v7210 = vunpack.c.0.s8 %v7209
    %v7211 = vlaneseq
    %v7212 = vshrl.u32 %v7211, 7
    %v7213 = vsub.s32 %v7210, %v7212
    %v7214 = vrot.slane %v7200, %v7213
    %v7215 = vcombine.high %v7207, %v7207
    %v7216 = vcombine.high %v7214, %v7214
    %v7221 = vpack.c.bf16 %v7207, %v7207
    %v7222 = vpack.c.bf16 %v7215, %v7215
    %v7223 = vpack.c.bf16 %v7214, %v7214
    %v7224 = vpack.c.bf16 %v7216, %v7216
    %v7225 = vld [vmem:[%s5] sm:$0xf]
    %v7226 = vld [vmem:[%s5 + $0x4] sm:$0xf]
    %v7227 = vld [vmem:[%s5 + $0x8] sm:$0xf]
    %v7228 = vld [vmem:[%s5 + $0xc] sm:$0xf]
    %v7229 = vld [vmem:[%s5 + $0x10] sm:$0xf]
    %v7230 = vld [vmem:[%s5 + $0x14] sm:$0xf]
    %v7231 = vld [vmem:[%s5 + $0x18] sm:$0xf]
    %v7232 = vld [vmem:[%s5 + $0x1c] sm:$0xf]
    %v7233 = vld [vmem:[%s5 + $0x20] sm:$0xf]
    %v7234 = vld [vmem:[%s5 + $0x24] sm:$0xf]
    %v7235 = vld [vmem:[%s5 + $0x28] sm:$0xf]
    %v7236 = vld [vmem:[%s5 + $0x2c] sm:$0xf]
    %v7237 = vld [vmem:[%s5 + $0x30] sm:$0xf]
    %v7238 = vld [vmem:[%s5 + $0x34] sm:$0xf]
    %v7239 = vld [vmem:[%s5 + $0x38] sm:$0xf]
    %v7240 = vld [vmem:[%s5 + $0x3c] sm:$0xf]
    %v7241 = vld [vmem:[%s5 + $0x40] sm:$0xf]
    %v7242 = vld [vmem:[%s5 + $0x44] sm:$0xf]
    %v7243 = vld [vmem:[%s5 + $0x48] sm:$0xf]
    %v7244 = vld [vmem:[%s5 + $0x4c] sm:$0xf]
    %v7245 = vld [vmem:[%s5 + $0x50] sm:$0xf]
    %v7246 = vld [vmem:[%s5 + $0x54] sm:$0xf]
    %v7247 = vld [vmem:[%s5 + $0x58] sm:$0xf]
    %v7248 = vld [vmem:[%s5 + $0x5c] sm:$0xf]
    %v7249 = vld [vmem:[%s5 + $0x60] sm:$0xf]
    %v7250 = vld [vmem:[%s5 + $0x64] sm:$0xf]
    %v7251 = vld [vmem:[%s5 + $0x68] sm:$0xf]
    %v7252 = vld [vmem:[%s5 + $0x6c] sm:$0xf]
    %v7253 = vld [vmem:[%s5 + $0x70] sm:$0xf]
    %v7254 = vld [vmem:[%s5 + $0x74] sm:$0xf]
    %v7255 = vld [vmem:[%s5 + $0x78] sm:$0xf]
    %v7256 = vld [vmem:[%s5 + $0x7c] sm:$0xf]
    %v7257 = vld [vmem:[%s5 + $0x80] sm:$0xf]
    %v7258 = vld [vmem:[%s5 + $0x84] sm:$0xf]
    %v7259 = vld [vmem:[%s5 + $0x88] sm:$0xf]
    %v7260 = vld [vmem:[%s5 + $0x8c] sm:$0xf]
    %v7261 = vld [vmem:[%s5 + $0x90] sm:$0xf]
    %v7262 = vld [vmem:[%s5 + $0x94] sm:$0xf]
    %v7263 = vld [vmem:[%s5 + $0x98] sm:$0xf]
    %v7264 = vld [vmem:[%s5 + $0x9c] sm:$0xf]
    %v7265 = vld [vmem:[%s5 + $0xa0] sm:$0xf]
    %v7266 = vld [vmem:[%s5 + $0xa4] sm:$0xf]
    %v7267 = vld [vmem:[%s5 + $0xa8] sm:$0xf]
    %v7268 = vld [vmem:[%s5 + $0xac] sm:$0xf]
    %v7269 = vld [vmem:[%s5 + $0xb0] sm:$0xf]
    %v7270 = vld [vmem:[%s5 + $0xb4] sm:$0xf]
    %v7271 = vld [vmem:[%s5 + $0xb8] sm:$0xf]
    %v7272 = vld [vmem:[%s5 + $0xbc] sm:$0xf]
    %v7273 = vld [vmem:[%s5 + $0xc0] sm:$0xf]
    %v7274 = vld [vmem:[%s5 + $0xc4] sm:$0xf]
    %v7325 = vunpack.c.l.b16 %v7225
    %v7326 = vunpack.c.l.b16 %v7226
    %v7327 = vunpack.c.l.b16 %v7227
    %v7328 = vunpack.c.l.b16 %v7228
    %v7329 = vunpack.c.l.b16 %v7229
    %v7330 = vunpack.c.l.b16 %v7230
    %v7331 = vunpack.c.l.b16 %v7231
    %v7332 = vunpack.c.l.b16 %v7232
    %v7333 = vunpack.c.l.b16 %v7233
    %v7334 = vunpack.c.l.b16 %v7234
    %v7335 = vunpack.c.l.b16 %v7235
    %v7336 = vunpack.c.l.b16 %v7236
    %v7337 = vunpack.c.l.b16 %v7237
    %v7338 = vunpack.c.l.b16 %v7238
    %v7339 = vunpack.c.l.b16 %v7239
    %v7340 = vunpack.c.l.b16 %v7240
    %v7341 = vunpack.c.l.b16 %v7241
    %v7342 = vunpack.c.l.b16 %v7242
    %v7343 = vunpack.c.l.b16 %v7243
    %v7344 = vunpack.c.l.b16 %v7244
    %v7345 = vunpack.c.l.b16 %v7245
    %v7346 = vunpack.c.l.b16 %v7246
    %v7347 = vunpack.c.l.b16 %v7247
    %v7348 = vunpack.c.l.b16 %v7248
    %v7349 = vunpack.c.l.b16 %v7249
    %v7350 = vunpack.c.l.b16 %v7250
    %v7351 = vunpack.c.l.b16 %v7251
    %v7352 = vunpack.c.l.b16 %v7252
    %v7353 = vunpack.c.l.b16 %v7253
    %v7354 = vunpack.c.l.b16 %v7254
    %v7355 = vunpack.c.l.b16 %v7255
    %v7356 = vunpack.c.l.b16 %v7256
    %v7357 = vunpack.c.l.b16 %v7257
    %v7358 = vunpack.c.l.b16 %v7258
    %v7359 = vunpack.c.l.b16 %v7259
    %v7360 = vunpack.c.l.b16 %v7260
    %v7361 = vunpack.c.l.b16 %v7261
    %v7362 = vunpack.c.l.b16 %v7262
    %v7363 = vunpack.c.l.b16 %v7263
    %v7364 = vunpack.c.l.b16 %v7264
    %v7365 = vunpack.c.l.b16 %v7265
    %v7366 = vunpack.c.l.b16 %v7266
    %v7367 = vunpack.c.l.b16 %v7267
    %v7368 = vunpack.c.l.b16 %v7268
    %v7369 = vunpack.c.l.b16 %v7269
    %v7370 = vunpack.c.l.b16 %v7270
    %v7371 = vunpack.c.l.b16 %v7271
    %v7372 = vunpack.c.l.b16 %v7272
    %v7373 = vunpack.c.l.b16 %v7273
    %v7374 = vunpack.c.l.b16 %v7274
    %v7375 = vpack.c.b16 %v7326, %v7325
    %v7376 = vpack.c.b16 %v7328, %v7327
    %v7377 = vpack.c.b16 %v7330, %v7329
    %v7378 = vpack.c.b16 %v7332, %v7331
    %v7379 = vpack.c.b16 %v7334, %v7333
    %v7380 = vpack.c.b16 %v7336, %v7335
    %v7381 = vpack.c.b16 %v7338, %v7337
    %v7382 = vpack.c.b16 %v7340, %v7339
    %v7383 = vpack.c.b16 %v7342, %v7341
    %v7384 = vpack.c.b16 %v7344, %v7343
    %v7385 = vpack.c.b16 %v7346, %v7345
    %v7386 = vpack.c.b16 %v7348, %v7347
    %v7387 = vpack.c.b16 %v7350, %v7349
    %v7388 = vpack.c.b16 %v7352, %v7351
    %v7389 = vpack.c.b16 %v7354, %v7353
    %v7390 = vpack.c.b16 %v7356, %v7355
    %v7391 = vpack.c.b16 %v7358, %v7357
    %v7392 = vpack.c.b16 %v7360, %v7359
    %v7393 = vpack.c.b16 %v7362, %v7361
    %v7394 = vpack.c.b16 %v7364, %v7363
    %v7395 = vpack.c.b16 %v7366, %v7365
    %v7396 = vpack.c.b16 %v7368, %v7367
    %v7397 = vpack.c.b16 %v7370, %v7369
    %v7398 = vpack.c.b16 %v7372, %v7371
    %v7399 = vpack.c.b16 %v7374, %v7373
    %v7426 = vsel %vm4101, %v7224, 0
    %7428 = vmatprep.subr.bf16.mxu0 0
    %7429 = vmatpush1.bf16.msra.mxu0 %v7375
    %7430 = vmatprep.subr.bf16.mxu0 0
    %7431 = vmatpush1.bf16.msra.mxu0 %v7376
    %7432 = vmatprep.subr.bf16.mxu0 0
    %7433 = vmatpush1.bf16.msra.mxu0 %v7377
    %7434 = vmatprep.subr.bf16.mxu0 0
    %7435 = vmatpush1.bf16.msra.mxu0 %v7378
    %7436 = vmatprep.subr.bf16.mxu0 0
    %7437 = vmatpush1.bf16.msra.mxu0 %v7379
    %7438 = vmatprep.subr.bf16.mxu0 0
    %7439 = vmatpush1.bf16.msra.mxu0 %v7380
    %7440 = vmatprep.subr.bf16.mxu0 0
    %7441 = vmatpush1.bf16.msra.mxu0 %v7381
    %7442 = vmatprep.subr.bf16.mxu0 0
    %7443 = vmatpush1.bf16.msra.mxu0 %v7382
    %7444 = vmatprep.subr.bf16.mxu0 0
    %7445 = vmatpush1.bf16.msra.mxu0 %v7383
    %7446 = vmatprep.subr.bf16.mxu0 0
    %7447 = vmatpush1.bf16.msra.mxu0 %v7384
    %7448 = vmatprep.subr.bf16.mxu0 0
    %7449 = vmatpush1.bf16.msra.mxu0 %v7385
    %7450 = vmatprep.subr.bf16.mxu0 0
    %7451 = vmatpush1.bf16.msra.mxu0 %v7386
    %7452 = vmatprep.subr.bf16.mxu0 0
    %7453 = vmatpush1.bf16.msra.mxu0 %v7387
    %7454 = vmatprep.subr.bf16.mxu0 0
    %7455 = vmatpush1.bf16.msra.mxu0 %v7388
    %7456 = vmatprep.subr.bf16.mxu0 0
    %7457 = vmatpush1.bf16.msra.mxu0 %v7389
    %7458 = vmatprep.subr.bf16.mxu0 0
    %7459 = vmatpush1.bf16.msra.mxu0 %v7390
    %7460 = vmatprep.mubr.bf16.mxu0 %v7222
    %7461 = vmatmul.mubr.bf16.gmra.mrb[0].mxu0 %v7221
    %v7462 = vpop.f32.mrb[0].mxu0
    %v7463 = vadd.f32 0.0, %v7462
    %v7464 = vpop.f32.mrb[0].mxu0
    %v7465 = vpop.f32.mrb[0].mxu0
    %v7466 = vpop.f32.mrb[0].mxu0
    %7467 = vdwg.mxu0
    %7468 = vmatprep.subr.bf16.mxu0 0
    %7469 = vmatpush1.bf16.msra.mxu0 %v7391
    %7470 = vmatprep.subr.bf16.mxu0 0
    %7471 = vmatpush1.bf16.msra.mxu0 %v7392
    %7472 = vmatprep.subr.bf16.mxu0 0
    %7473 = vmatpush1.bf16.msra.mxu0 %v7393
    %7474 = vmatprep.subr.bf16.mxu0 0
    %7475 = vmatpush1.bf16.msra.mxu0 %v7394
    %7476 = vmatprep.subr.bf16.mxu0 0
    %7477 = vmatpush1.bf16.msra.mxu0 %v7395
    %7478 = vmatprep.subr.bf16.mxu0 0
    %7479 = vmatpush1.bf16.msra.mxu0 %v7396
    %7480 = vmatprep.subr.bf16.mxu0 0
    %7481 = vmatpush1.bf16.msra.mxu0 %v7397
    %7482 = vmatprep.subr.bf16.mxu0 0
    %7483 = vmatpush1.bf16.msra.mxu0 %v7398
    %7484 = vmatprep.subr.bf16.mxu0 0
    %7485 = vmatpush1.bf16.msra.mxu0 %v7399
    %7486 = vmatprep.subr.bf16.mxu0 0
    %7487 = vmatpush1.bf16.msra.mxu0 0
    %7488 = vmatprep.subr.bf16.mxu0 0
    %7489 = vmatpush1.bf16.msra.mxu0 0
    %7490 = vmatprep.subr.bf16.mxu0 0
    %7491 = vmatpush1.bf16.msra.mxu0 0
    %7492 = vmatprep.subr.bf16.mxu0 0
    %7493 = vmatpush1.bf16.msra.mxu0 0
    %7494 = vmatprep.subr.bf16.mxu0 0
    %7495 = vmatpush1.bf16.msra.mxu0 0
    %7496 = vmatprep.subr.bf16.mxu0 0
    %7497 = vmatpush1.bf16.msra.mxu0 0
    %7498 = vmatprep.subr.bf16.mxu0 0
    %7499 = vmatpush1.bf16.msra.mxu0 0
    %7500 = vmatprep.mubr.bf16.mxu0 %v7426
    %7501 = vmatmul.mubr.bf16.gmra.mrb[0].mxu0 %v7223
    %v7502 = vpop.f32.mrb[0].mxu0
    %v7503 = vadd.f32 %v7463, %v7502
    %v7504 = vpop.f32.mrb[0].mxu0
    %v7505 = vpop.f32.mrb[0].mxu0
    %v7506 = vpop.f32.mrb[0].mxu0
    %7507 = vdwg.mxu0
    %v7508 = vmax.f32 %v7503, 0.0
    %v7509 = vsel %vm6590, %v7508, -inf
    %7510 = vmax.xlane.f32.xlu0 %v7509
    %v7511 = vpop.xlane.xlu0 %7510
    %v7512 = vrot.slane %v7511, 4
    %v7513 = vmax.f32 %v7511, %v7512
    %v7514 = vrot.slane %v7513, 2
    %v7515 = vmax.f32 %v7513, %v7514
    %v7516 = vrot.slane %v7515, 1
    %v7517 = vmax.f32 %v7515, %v7516
    %s7518 = vtos %v7517
    %v7519 = vsel %vm6590, %v7508, inf
    %7520 = vmin.xlane.f32.xlu0 %v7519
    %v7521 = vpop.xlane.xlu0 %7520
    %v7522 = vrot.slane %v7521, 4
    %v7523 = vmin.f32 %v7521, %v7522
    %v7524 = vrot.slane %v7523, 2
    %v7525 = vmin.f32 %v7523, %v7524
    %v7526 = vrot.slane %v7525, 1
    %v7527 = vmin.f32 %v7525, %v7526
    %s7528 = vtos %v7527
    %s7529 = ssub.f32 %s7518, %s7528
    %v7530 = vrcp.pop 255.0
    %s7531 = vtos %v7530
    %s7532 = smul.f32 %s7529, %s7531
    %p7533 = scmp.eq.f32.partialorder %s7532, 0.0
    %s7534 = scalar_select %p7533, 1.0, %s7532
    %v7535 = vstv %s7534
    %v7536 = vrcp.pop %v7535
    %v7537 = vmul.f32 %v7508, %v7536
    %v7538 = vround.ne.pseudo %v7537
    %v7539 = vmax.f32 %v7538, 0.0
    %v7540 = vmin.f32 %v7539, 255.0
    %v7541 = vmul.f32 %v7540, %v7535
    %v7542 = vpack.c.bf16 %v7541, %v7541
    %v7543 = vld [vmem:[%s6] sm:$0xf]
    %v7544 = vld [vmem:[%s6 + $0x4] sm:$0xf]
    %v7545 = vld [vmem:[%s6 + $0x8] sm:$0xf]
    %v7546 = vld [vmem:[%s6 + $0xc] sm:$0xf]
    %v7547 = vld [vmem:[%s6 + $0x10] sm:$0xf]
    %v7548 = vld [vmem:[%s6 + $0x14] sm:$0xf]
    %v7549 = vld [vmem:[%s6 + $0x18] sm:$0xf]
    %v7550 = vld [vmem:[%s6 + $0x1c] sm:$0xf]
    %v7551 = vld [vmem:[%s6 + $0x20] sm:$0xf]
    %v7552 = vld [vmem:[%s6 + $0x24] sm:$0xf]
    %v7553 = vld [vmem:[%s6 + $0x28] sm:$0xf]
    %v7554 = vld [vmem:[%s6 + $0x2c] sm:$0xf]
    %v7555 = vld [vmem:[%s6 + $0x30] sm:$0xf]
    %v7556 = vld [vmem:[%s6 + $0x34] sm:$0xf]
    %v7557 = vld [vmem:[%s6 + $0x38] sm:$0xf]
    %v7558 = vld [vmem:[%s6 + $0x3c] sm:$0xf]
    %v7575 = vunpack.c.l.b16 %v7543
    %v7576 = vunpack.c.l.b16 %v7544
    %v7577 = vunpack.c.l.b16 %v7545
    %v7578 = vunpack.c.l.b16 %v7546
    %v7579 = vunpack.c.l.b16 %v7547
    %v7580 = vunpack.c.l.b16 %v7548
    %v7581 = vunpack.c.l.b16 %v7549
    %v7582 = vunpack.c.l.b16 %v7550
    %v7583 = vunpack.c.l.b16 %v7551
    %v7584 = vunpack.c.l.b16 %v7552
    %v7585 = vunpack.c.l.b16 %v7553
    %v7586 = vunpack.c.l.b16 %v7554
    %v7587 = vunpack.c.l.b16 %v7555
    %v7588 = vunpack.c.l.b16 %v7556
    %v7589 = vunpack.c.l.b16 %v7557
    %v7590 = vunpack.c.l.b16 %v7558
    %v7591 = vpack.c.b16 %v7576, %v7575
    %v7592 = vpack.c.b16 %v7578, %v7577
    %v7593 = vpack.c.b16 %v7580, %v7579
    %v7594 = vpack.c.b16 %v7582, %v7581
    %v7595 = vpack.c.b16 %v7584, %v7583
    %v7596 = vpack.c.b16 %v7586, %v7585
    %v7597 = vpack.c.b16 %v7588, %v7587
    %v7598 = vpack.c.b16 %v7590, %v7589
    %7607 = vmatprep.subr.bf16.mxu0 0
    %7608 = vmatpush1.bf16.msra.mxu0 %v7591
    %7609 = vmatprep.subr.bf16.mxu0 0
    %7610 = vmatpush1.bf16.msra.mxu0 %v7592
    %7611 = vmatprep.subr.bf16.mxu0 0
    %7612 = vmatpush1.bf16.msra.mxu0 %v7593
    %7613 = vmatprep.subr.bf16.mxu0 0
    %7614 = vmatpush1.bf16.msra.mxu0 %v7594
    %7615 = vmatprep.subr.bf16.mxu0 0
    %7616 = vmatpush1.bf16.msra.mxu0 %v7595
    %7617 = vmatprep.subr.bf16.mxu0 0
    %7618 = vmatpush1.bf16.msra.mxu0 %v7596
    %7619 = vmatprep.subr.bf16.mxu0 0
    %7620 = vmatpush1.bf16.msra.mxu0 %v7597
    %7621 = vmatprep.subr.bf16.mxu0 0
    %7622 = vmatpush1.bf16.msra.mxu0 %v7598
    %7623 = vmatprep.subr.bf16.mxu0 0
    %7624 = vmatpush1.bf16.msra.mxu0 0
    %7625 = vmatprep.subr.bf16.mxu0 0
    %7626 = vmatpush1.bf16.msra.mxu0 0
    %7627 = vmatprep.subr.bf16.mxu0 0
    %7628 = vmatpush1.bf16.msra.mxu0 0
    %7629 = vmatprep.subr.bf16.mxu0 0
    %7630 = vmatpush1.bf16.msra.mxu0 0
    %7631 = vmatprep.subr.bf16.mxu0 0
    %7632 = vmatpush1.bf16.msra.mxu0 0
    %7633 = vmatprep.subr.bf16.mxu0 0
    %7634 = vmatpush1.bf16.msra.mxu0 0
    %7635 = vmatprep.subr.bf16.mxu0 0
    %7636 = vmatpush1.bf16.msra.mxu0 0
    %7637 = vmatprep.subr.bf16.mxu0 0
    %7638 = vmatpush1.bf16.msra.mxu0 0
    %7639 = vmatprep.mubr.bf16.mxu0 0
    %7640 = vmatmul.mubr.bf16.gmra.mrb[0].mxu0 %v7542
    %v7641 = vpop.f32.mrb[0].mxu0
    %v7642 = vadd.f32 0.0, %v7641
    %v7643 = vpop.f32.mrb[0].mxu0
    %v7644 = vpop.f32.mrb[0].mxu0
    %v7645 = vpop.f32.mrb[0].mxu0
    %7646 = vdwg.mxu0
    %v7647 = vlaneseq
    %v7648 = vand.u32 %v7647, 127
    %vm7649 = vcmp.lt.s32.totalorder %v7648, 10
    %v7650 = vsel %vm7649, 1, 0
    %vm7651 = vcmp.eq.s32.totalorder %v7650, 1
    %v7652 = vsel %vm7651, %v7642, -1e+30
    %v7653 = vsel %vm6590, %v7652, -inf
    %7654 = vmax.xlane.f32.xlu0 %v7653
    %v7655 = vpop.xlane.xlu0 %7654
    %v7656 = vsub.f32 %v7652, %v7655
    %v7657 = vmul.f32 %v7656, 1.442695
    %v7658 = vpow.pop %v7657
    %v7659 = vsel %vm6590, %v7658, 0.0
    %7660 = vadd.xlane.f32.xlu0 %v7659
    %v7661 = vpop.xlane.xlu0 %7660
    %v7662 = vlog2.pop %v7661
    %v7663 = vmul.f32 %v7662, 0.6931472
    %v7664 = vsub.f32 %v7656, %v7663
    %7665 = vst [vmem:[#allocation4] sm:$0x3] %v7664
    // Predicated region
    $region30: #{_lambda_.1} parent=1 // pred_check
      _
    $region31: #{_lambda_.1} parent=1 // pred_check_branch
      %7667 = sbr.rel (0) target = $region33
    $region32: #{_lambda_.1} parent=1 // pred_region
      %s7669 = ssub.s32 32, 32
      %7670 = vsyncadd [#allocation5], %s7669
      %s7672 = sshll.u32 [#allocation4], 4
      %s7673 = int_to_ptr.vmem [resolvable:$true] %s7672
      %7675 = dma.vmem_to_hbm [thread:$0]  %s7673, 32, %s7, [#allocation5]
    $region33: #{_lambda_.1} parent=1 // pred_fallthru
      _
    // Predicated region
    $region34: #{_lambda_.1} parent=1 // pred_check
      _
    $region35: #{_lambda_.1} parent=1 // pred_check_branch
      %7677 = sbr.rel (0) target = $region37
    $region36: #{_lambda_.1} parent=1 // pred_region
      %7678 = dma.done [#allocation5], 32
    $region37: #{_lambda_.1} parent=1 // pred_fallthru
      _
    %7679 = vsyncpa [#allocation5], 1

</llo_original>
